<compile_context>
chip_gen: v7x
topology: tpu7x:2x2x1
jax: 0.10.0
libtpu: 0.0.40
codegen_flags: <defaults>
</compile_context>

<pallas_src>
import functools
import math

import jax
import jax.numpy as jnp
from jax.experimental import pallas as pl
from jax.experimental.pallas import tpu as pltpu


# ---------------------------------------------------------------------------
# Config
# ---------------------------------------------------------------------------

BASE = 4          # scaled-down from resnet50's 64
EXPANSION = 4
BLOCKS = [3, 4, 6, 3]
STRIDES = [1, 2, 2, 2]
WIDTHS = [BASE, 2 * BASE, 4 * BASE, 8 * BASE]
EMBED_SIZE = 32

_VMEM_LIMIT = 32 * 1024 * 1024   # safe on v5e/v6e (128 MiB) and v7x (64 MiB)


def _round_up(x, m):
    return (x + m - 1) // m * m


def _pad2(a, rows, cols):
    r, c = a.shape
    if r == rows and c == cols:
        return a
    return jnp.pad(a, ((0, rows - r), (0, cols - c)))


# ---------------------------------------------------------------------------
# Pallas kernels
# ---------------------------------------------------------------------------

def _matmul_bias_kernel(x_ref, w_ref, b_ref, o_ref, acc_ref, *, apply_relu):
    kk = pl.program_id(2)

    @pl.when(kk == 0)
    def _():
        acc_ref[...] = jnp.zeros_like(acc_ref)

    acc_ref[...] += jnp.dot(x_ref[...], w_ref[...],
                            preferred_element_type=jnp.float32)

    @pl.when(kk == pl.num_programs(2) - 1)
    def _():
        y = acc_ref[...] + b_ref[...]
        if apply_relu:
            y = jnp.maximum(y, 0.0)
        o_ref[...] = y.astype(o_ref.dtype)


def _matmul_bias_res_kernel(x_ref, w_ref, b_ref, r_ref, o_ref, acc_ref, *,
                            apply_relu):
    # Same as above but fuses "out = relu(acc + bias + residual)" (bottleneck
    # epilogue) so the residual add never round-trips HBM on its own.
    kk = pl.program_id(2)

    @pl.when(kk == 0)
    def _():
        acc_ref[...] = jnp.zeros_like(acc_ref)

    acc_ref[...] += jnp.dot(x_ref[...], w_ref[...],
                            preferred_element_type=jnp.float32)

    @pl.when(kk == pl.num_programs(2) - 1)
    def _():
        y = acc_ref[...] + b_ref[...] + r_ref[...]
        if apply_relu:
            y = jnp.maximum(y, 0.0)
        o_ref[...] = y.astype(o_ref.dtype)


def _max_reduce_kernel(p_ref, o_ref):
    # (tm, T, C) -> max over T -> (tm, C); axis reduction (XLU) not an
    # unrolled per-slice loop.
    o_ref[...] = jnp.max(p_ref[...], axis=1)


def _pool_embed_kernel(x_ref, w_ref, b_ref, o_ref, *, inv_hw):
    # Fused AdaptiveAvgPool2d((1,1)) + flatten + Linear.
    feat = jnp.sum(x_ref[...], axis=1) * inv_hw          # (B, C) f32
    y = jnp.dot(feat.astype(jnp.bfloat16), w_ref[...],
                preferred_element_type=jnp.float32) + b_ref[...]
    o_ref[...] = y


# ---------------------------------------------------------------------------
# Kernel wrappers (tiling / padding decisions)
# ---------------------------------------------------------------------------

def matmul_bias(x, w, b, *, relu, residual=None):
    """out = maybe_relu(x @ w + b [+ residual]).  x:(M,K) w:(K,N) b:(N,)."""
    m, k = x.shape
    n = w.shape[1]

    # M tiling: sublane aligned; one tile if small, 256-wide tiles otherwise.
    if m <= 512:
        mp = _round_up(m, 8)
        tm = mp
    else:
        mp = _round_up(m, 256)
        tm = 256
    # N/K tiling: lane aligned; prefer 256-wide tiles (v6e/v7x MXU cadence).
    np_ = _round_up(n, 128)
    tn = 256 if (np_ % 256 == 0) else 128
    kp = _round_up(k, 128)
    tk = 256 if (kp % 256 == 0) else 128

    xb = _pad2(x, mp, kp).astype(jnp.bfloat16)           # bf16 -> MXU native
    wb = _pad2(w, kp, np_).astype(jnp.bfloat16)
    bb = _pad2(b.reshape(1, n).astype(jnp.float32), 1, np_)

    grid = (mp // tm, np_ // tn, kp // tk)
    in_specs = [
        pl.BlockSpec((tm, tk), lambda i, j, kk: (i, kk)),
        pl.BlockSpec((tk, tn), lambda i, j, kk: (kk, j)),
        pl.BlockSpec((1, tn), lambda i, j, kk: (0, j)),
    ]
    args = [xb, wb, bb]
    if residual is not None:
        rb = _pad2(residual.astype(jnp.float32), mp, np_)
        in_specs.append(pl.BlockSpec((tm, tn), lambda i, j, kk: (i, j)))
        args.append(rb)
        kernel = functools.partial(_matmul_bias_res_kernel, apply_relu=relu)
    else:
        kernel = functools.partial(_matmul_bias_kernel, apply_relu=relu)

    out = pl.pallas_call(
        kernel,
        out_shape=jax.ShapeDtypeStruct((mp, np_), jnp.float32),
        grid=grid,
        in_specs=in_specs,
        out_specs=pl.BlockSpec((tm, tn), lambda i, j, kk: (i, j)),
        scratch_shapes=[pltpu.VMEM((tm, tn), jnp.float32)],
        compiler_params=pltpu.CompilerParams(
            dimension_semantics=("parallel", "parallel", "arbitrary"),
            vmem_limit_bytes=_VMEM_LIMIT),
    )(*args)
    return out[:m, :n]


def max_reduce(p):
    """(M, T, C) -> max over T -> (M, C), tiled over rows."""
    m, t, c = p.shape
    tm = min(512, _round_up(m, 8))
    mp = _round_up(m, tm)
    if mp != m:
        p = jnp.pad(p, ((0, mp - m), (0, 0), (0, 0)),
                    constant_values=-jnp.inf)
    out = pl.pallas_call(
        _max_reduce_kernel,
        out_shape=jax.ShapeDtypeStruct((mp, c), jnp.float32),
        grid=(mp // tm,),
        in_specs=[pl.BlockSpec((tm, t, c), lambda i: (i, 0, 0))],
        out_specs=pl.BlockSpec((tm, c), lambda i: (i, 0)),
        compiler_params=pltpu.CompilerParams(
            dimension_semantics=("parallel",),
            vmem_limit_bytes=_VMEM_LIMIT),
    )(p)
    return out[:m]


def pool_embed(x, w_t, b):
    """Fused global average pool + Linear.  x:(B,HW,C) w_t:(C,E) b:(E,)."""
    bsz, hw, c = x.shape
    e = w_t.shape[1]
    cp = _round_up(c, 128)
    ep = _round_up(e, 128)
    xp = jnp.pad(x, ((0, 0), (0, 0), (0, cp - c)))
    wp = _pad2(w_t, cp, ep).astype(jnp.bfloat16)
    bp = _pad2(b.reshape(1, e).astype(jnp.float32), 1, ep)
    out = pl.pallas_call(
        functools.partial(_pool_embed_kernel, inv_hw=1.0 / hw),
        out_shape=jax.ShapeDtypeStruct((bsz, ep), jnp.float32),
        grid=(1,),
        in_specs=[pl.BlockSpec((bsz, hw, cp), lambda i: (0, 0, 0)),
                  pl.BlockSpec((cp, ep), lambda i: (0, 0)),
                  pl.BlockSpec((1, ep), lambda i: (0, 0))],
        out_specs=pl.BlockSpec((bsz, ep), lambda i: (0, 0)),
        compiler_params=pltpu.CompilerParams(
            dimension_semantics=("arbitrary",),
            vmem_limit_bytes=_VMEM_LIMIT),
    )(xp, wp, bp)
    return out[:, :e]


# ---------------------------------------------------------------------------
# Conv / pool built on the kernels (im2col glue is plain JAX)
# ---------------------------------------------------------------------------

def _im2col(x, kh, kw, stride, padding, pad_value=0.0):
    # x: (B, H, W, C) NHWC -> (B, OH, OW, kh*kw, C)
    # TODO(synk): the patch tensor is still materialized in HBM once; a
    # kh*kw-as-reduction-axis BlockSpec would stream windows directly.
    b, h, w, c = x.shape
    xp = jnp.pad(x, ((0, 0), (padding, padding), (padding, padding), (0, 0)),
                 constant_values=pad_value)
    oh = (h + 2 * padding - kh) // stride + 1
    ow = (w + 2 * padding - kw) // stride + 1
    patches = []
    for i in range(kh):
        for j in range(kw):
            patches.append(xp[:, i:i + oh * stride:stride,
                              j:j + ow * stride:stride, :])
    return jnp.stack(patches, axis=3), oh, ow


def conv2d(x, w, bias, *, stride, padding, relu, residual=None):
    # x: NHWC, w: PyTorch (Cout, Cin, kh, kw) with BN folded in, bias: (Cout,)
    b, _, _, cin = x.shape
    cout, _, kh, kw = w.shape
    patches, oh, ow = _im2col(x, kh, kw, stride, padding)
    p = patches.reshape(b * oh * ow, kh * kw * cin)
    wmat = jnp.transpose(w, (2, 3, 1, 0)).reshape(kh * kw * cin, cout)
    res = None if residual is None else residual.reshape(b * oh * ow, cout)
    out = matmul_bias(p, wmat, bias, relu=relu, residual=res)
    return out.reshape(b, oh, ow, cout)


def maxpool_3x3_s2(x):
    b, _, _, c = x.shape
    patches, oh, ow = _im2col(x, 3, 3, 2, 1, pad_value=-jnp.inf)
    out = max_reduce(patches.reshape(b * oh * ow, 9, c))
    return out.reshape(b, oh, ow, c)


# ---------------------------------------------------------------------------
# Static architecture config (kept out of the jitted pytree)
# ---------------------------------------------------------------------------

def _block_configs():
    cfgs = []
    inplanes = BASE
    for width, n_blocks, stride in zip(WIDTHS, BLOCKS, STRIDES):
        out_ch = width * EXPANSION
        layer = []
        for b_idx in range(n_blocks):
            blk_stride = stride if b_idx == 0 else 1
            has_ds = b_idx == 0 and (blk_stride != 1 or inplanes != out_ch)
            layer.append((blk_stride, has_ds))
            inplanes = out_ch
        cfgs.append(tuple(layer))
    return tuple(cfgs)


_BLOCK_CONFIGS = _block_configs()


# ---------------------------------------------------------------------------
# Parameters (deterministic synthetic init; BN folded into conv)
# ---------------------------------------------------------------------------

def _init_conv_bn(key, cout, cin, kh, kw):
    k1, k2, k3, k4, k5 = jax.random.split(key, 5)
    fan_in = cin * kh * kw
    w = jax.random.normal(k1, (cout, cin, kh, kw), jnp.float32) / math.sqrt(fan_in)
    gamma = 1.0 + 0.1 * jax.random.normal(k2, (cout,), jnp.float32)
    beta = 0.1 * jax.random.normal(k3, (cout,), jnp.float32)
    r_mean = 0.1 * jax.random.normal(k4, (cout,), jnp.float32)
    r_var = jax.random.uniform(k5, (cout,), jnp.float32, 0.5, 1.5)
    scale = gamma / jnp.sqrt(r_var + 1e-5)
    return w * scale[:, None, None, None], beta - r_mean * scale


def init_params(key):
    params = {}
    key, k = jax.random.split(key)
    params["stem"] = _init_conv_bn(k, BASE, 3, 7, 7)

    inplanes = BASE
    layers = []
    for width, n_blocks, stride in zip(WIDTHS, BLOCKS, STRIDES):
        out_ch = width * EXPANSION
        layer = []
        for b_idx in range(n_blocks):
            blk_stride = stride if b_idx == 0 else 1
            key, k1, k2, k3, k4 = jax.random.split(key, 5)
            blk = {}
            blk["w1"], blk["b1"] = _init_conv_bn(k1, width, inplanes, 1, 1)
            blk["w2"], blk["b2"] = _init_conv_bn(k2, width, width, 3, 3)
            blk["w3"], blk["b3"] = _init_conv_bn(k3, out_ch, width, 1, 1)
            if b_idx == 0 and (blk_stride != 1 or inplanes != out_ch):
                blk["wd"], blk["bd"] = _init_conv_bn(k4, out_ch, inplanes, 1, 1)
            layer.append(blk)
            inplanes = out_ch
        layers.append(layer)
    params["layers"] = layers

    in_features = WIDTHS[-1] * EXPANSION  # stand-in for resnet.fc.in_features
    key, k1, k2 = jax.random.split(key, 3)
    bound = 1.0 / math.sqrt(in_features)
    # Stored pre-transposed (in_features, embed_size): no per-call .T copy.
    params["embed_w_t"] = jax.random.uniform(k1, (in_features, EMBED_SIZE),
                                             jnp.float32, -bound, bound)
    params["embed_b"] = jax.random.uniform(k2, (EMBED_SIZE,),
                                           jnp.float32, -bound, bound)
    return params


# ---------------------------------------------------------------------------
# Forward pass (== EncoderCNN.forward), one jax.jit over the whole thing
# ---------------------------------------------------------------------------

def _bottleneck(x, blk, stride, has_ds):
    identity = x
    out = conv2d(x, blk["w1"], blk["b1"], stride=1, padding=0, relu=True)
    out = conv2d(out, blk["w2"], blk["b2"], stride=stride, padding=1, relu=True)
    if has_ds:
        identity = conv2d(x, blk["wd"], blk["bd"], stride=stride, padding=0,
                          relu=False)
    # residual add + ReLU fused into the 3rd conv's matmul epilogue
    return conv2d(out, blk["w3"], blk["b3"], stride=1, padding=0, relu=True,
                  residual=identity)


@jax.jit
def encoder_cnn_forward(images_nchw, params):
    # images: (B, 3, H, W) NCHW float32, as in PyTorch.
    x = jnp.transpose(images_nchw.astype(jnp.float32), (0, 2, 3, 1))  # -> NHWC
    w, bias = params["stem"]
    x = conv2d(x, w, bias, stride=2, padding=3, relu=True)
    x = maxpool_3x3_s2(x)
    for layer_cfg, layer_p in zip(_BLOCK_CONFIGS, params["layers"]):
        for (stride, has_ds), blk in zip(layer_cfg, layer_p):
            x = _bottleneck(x, blk, stride, has_ds)
    b, h, w_, c = x.shape
    # AdaptiveAvgPool2d((1,1)) + view(B,-1) + Linear, fused in one kernel.
    return pool_embed(x.reshape(b, h * w_, c),
                      params["embed_w_t"], params["embed_b"])


# ---------------------------------------------------------------------------
# Pure-JAX reference (same bf16-operand / f32-accumulate arithmetic)
# ---------------------------------------------------------------------------

def _conv_ref(x, w, bias, stride, padding):
    y = jax.lax.conv_general_dilated(
        x.astype(jnp.bfloat16),
        jnp.transpose(w, (2, 3, 1, 0)).astype(jnp.bfloat16),
        (stride, stride), [(padding, padding), (padding, padding)],
        dimension_numbers=("NHWC", "HWIO", "NHWC"),
        preferred_element_type=jnp.float32)
    return y + bias


@jax.jit
def _forward_ref(images_nchw, params):
    x = jnp.transpose(images_nchw, (0, 2, 3, 1))
    w, bias = params["stem"]
    x = jax.nn.relu(_conv_ref(x, w, bias, 2, 3))
    x = jax.lax.reduce_window(x, -jnp.inf, jax.lax.max, (1, 3, 3, 1),
                              (1, 2, 2, 1), [(0, 0), (1, 1), (1, 1), (0, 0)])
    for layer_cfg, layer_p in zip(_BLOCK_CONFIGS, params["layers"]):
        for (stride, has_ds), blk in zip(layer_cfg, layer_p):
            ident = x
            o = jax.nn.relu(_conv_ref(x, blk["w1"], blk["b1"], 1, 0))
            o = jax.nn.relu(_conv_ref(o, blk["w2"], blk["b2"], stride, 1))
            o = _conv_ref(o, blk["w3"], blk["b3"], 1, 0)
            if has_ds:
                ident = _conv_ref(x, blk["wd"], blk["bd"], stride, 0)
            x = jax.nn.relu(o + ident)
    feat = jnp.mean(x, axis=(1, 2))
    return jnp.dot(feat.astype(jnp.bfloat16),
                   params["embed_w_t"].astype(jnp.bfloat16),
                   preferred_element_type=jnp.float32) + params["embed_b"]


# ---------------------------------------------------------------------------

if __name__ == "__main__":
    key = jax.random.PRNGKey(0)
    key, pkey, xkey = jax.random.split(key, 3)
    params = init_params(pkey)

    images = jax.random.normal(xkey, (2, 3, 32, 32), jnp.float32)  # NCHW

    out = jax.block_until_ready(encoder_cnn_forward(images, params))
    assert out.shape == (2, EMBED_SIZE), out.shape
    assert bool(jnp.all(jnp.isfinite(out)))

    ref = jax.block_until_ready(_forward_ref(images, params))
    assert bool(jnp.allclose(out, ref, rtol=5e-2, atol=5e-2)), "mismatch vs reference"

    print("KERNEL_OK")
</pallas_src>

<mosaic_0001>
module attributes {stable_mosaic.version = 11 : i64} {
  func.func @_matmul_bias_kernel(%arg0: i32, %arg1: i32, %arg2: i32, %arg3: memref<512x256xbf16, #tpu.memory_space<vmem>>, %arg4: memref<256x128xbf16, #tpu.memory_space<vmem>>, %arg5: memref<1x128xf32, #tpu.memory_space<vmem>>, %arg6: memref<512x128xf32, #tpu.memory_space<vmem>>, %arg7: memref<512x128xf32, #tpu.memory_space<vmem>>) attributes {dimension_semantics = [#tpu.dimension_semantics<parallel>, #tpu.dimension_semantics<parallel>, #tpu.dimension_semantics<arbitrary>], iteration_bounds = array<i64: 1, 1, 1>, scalar_prefetch = 0 : i64, scratch_operands = 1 : i64, tpu.core_type = #tpu.core_type<tc>, window_params = [{transform_indices = @transform_0, window_bounds = array<i64: 512, 256>}, {transform_indices = @transform_1, window_bounds = array<i64: 256, 128>}, {transform_indices = @transform_2, window_bounds = array<i64: 1, 128>}, {transform_indices = @transform_3, window_bounds = array<i64: 512, 128>}]} {
    %c0_i32 = arith.constant 0 : i32
    %0 = arith.cmpi eq, %arg2, %c0_i32 : i32
    %1 = arith.extui %0 : i1 to i32
    %c0_i32_0 = arith.constant 0 : i32
    %2 = arith.cmpi ne, %1, %c0_i32_0 : i32
    scf.if %2 {
      %cst_10 = arith.constant 0.000000e+00 : f32
      %12 = vector.broadcast %cst_10 : f32 to vector<512x128xf32>
      %c0_11 = arith.constant 0 : index
      %c0_12 = arith.constant 0 : index
      %13 = vector.load %arg7[%c0_11, %c0_12] : memref<512x128xf32, #tpu.memory_space<vmem>>, vector<512x128xf32>
      tpu.vector_store %arg7[%c0_11, %c0_12], %12 {strides = array<i32>} : memref<512x128xf32, #tpu.memory_space<vmem>>, vector<512x128xf32>,
    } else {
    }
    %c0 = arith.constant 0 : index
    %c0_1 = arith.constant 0 : index
    %3 = vector.load %arg7[%c0, %c0_1] : memref<512x128xf32, #tpu.memory_space<vmem>>, vector<512x128xf32>
    %c0_2 = arith.constant 0 : index
    %c0_3 = arith.constant 0 : index
    %4 = vector.load %arg3[%c0_2, %c0_3] : memref<512x256xbf16, #tpu.memory_space<vmem>>, vector<512x256xbf16>
    %c0_4 = arith.constant 0 : index
    %c0_5 = arith.constant 0 : index
    %5 = vector.load %arg4[%c0_4, %c0_5] : memref<256x128xbf16, #tpu.memory_space<vmem>>, vector<256x128xbf16>
    %cst = arith.constant dense<0.000000e+00> : vector<512x128xf32>
    %6 = tpu.matmul %4, %5, %cst {dimension_numbers = #tpu.dot_dimension_numbers<[1], [0], [0], [1], [0, 0, 1, 1], [], []>} : vector<512x256xbf16>, vector<256x128xbf16>, vector<512x128xf32> -> vector<512x128xf32>
    %7 = arith.addf %3, %6 : vector<512x128xf32>
    %c0_6 = arith.constant 0 : index
    %c0_7 = arith.constant 0 : index
    %8 = vector.load %arg7[%c0_6, %c0_7] : memref<512x128xf32, #tpu.memory_space<vmem>>, vector<512x128xf32>
    tpu.vector_store %arg7[%c0_6, %c0_7], %7 {strides = array<i32>} : memref<512x128xf32, #tpu.memory_space<vmem>>, vector<512x128xf32>,
    %c0_i32_8 = arith.constant 0 : i32
    %9 = arith.cmpi eq, %arg2, %c0_i32_8 : i32
    %10 = arith.extui %9 : i1 to i32
    %c0_i32_9 = arith.constant 0 : i32
    %11 = arith.cmpi ne, %10, %c0_i32_9 : i32
    scf.if %11 {
      %c0_10 = arith.constant 0 : index
      %c0_11 = arith.constant 0 : index
      %12 = vector.load %arg7[%c0_10, %c0_11] : memref<512x128xf32, #tpu.memory_space<vmem>>, vector<512x128xf32>
      %c0_12 = arith.constant 0 : index
      %c0_13 = arith.constant 0 : index
      %13 = vector.load %arg5[%c0_12, %c0_13] : memref<1x128xf32, #tpu.memory_space<vmem>>, vector<1x128xf32>
      %14 = vector.broadcast %13 : vector<1x128xf32> to vector<512x128xf32>
      %15 = arith.addf %12, %14 : vector<512x128xf32>
      %cst_14 = arith.constant 0.000000e+00 : f32
      %16 = vector.broadcast %cst_14 : f32 to vector<512x128xf32>
      %17 = arith.maximumf %15, %16 : vector<512x128xf32>
      %c0_15 = arith.constant 0 : index
      %c0_16 = arith.constant 0 : index
      %18 = vector.load %arg6[%c0_15, %c0_16] : memref<512x128xf32, #tpu.memory_space<vmem>>, vector<512x128xf32>
      tpu.vector_store %arg6[%c0_15, %c0_16], %17 {strides = array<i32>} : memref<512x128xf32, #tpu.memory_space<vmem>>, vector<512x128xf32>,
    } else {
    }
    return
  }
  func.func @transform_0(%arg0: i32, %arg1: i32, %arg2: i32) -> (i32, i32) {
    %c0_i32 = arith.constant 0 : i32
    return %arg0, %arg2 : i32, i32
  }
  func.func @transform_1(%arg0: i32, %arg1: i32, %arg2: i32) -> (i32, i32) {
    %c0_i32 = arith.constant 0 : i32
    return %arg2, %arg1 : i32, i32
  }
  func.func @transform_2(%arg0: i32, %arg1: i32, %arg2: i32) -> (i32, i32) {
    %c0_i32 = arith.constant 0 : i32
    %c0_i32_0 = arith.constant 0 : i32
    return %c0_i32, %arg1 : i32, i32
  }
  func.func @transform_3(%arg0: i32, %arg1: i32, %arg2: i32) -> (i32, i32) {
    %c0_i32 = arith.constant 0 : i32
    return %arg0, %arg1 : i32, i32
  }
}

module attributes {stable_mosaic.version = 11 : i64} {
  func.func @_max_reduce_kernel(%arg0: i32, %arg1: memref<128x9x4xf32, #tpu.memory_space<vmem>>, %arg2: memref<128x4xf32, #tpu.memory_space<vmem>>) attributes {dimension_semantics = [#tpu.dimension_semantics<parallel>], iteration_bounds = array<i64: 1>, scalar_prefetch = 0 : i64, scratch_operands = 0 : i64, tpu.core_type = #tpu.core_type<tc>, window_params = [{transform_indices = @transform_0, window_bounds = array<i64: 128, 9, 4>}, {transform_indices = @transform_1, window_bounds = array<i64: 128, 4>}]} {
    %c0 = arith.constant 0 : index
    %c0_0 = arith.constant 0 : index
    %c0_1 = arith.constant 0 : index
    %0 = vector.load %arg1[%c0, %c0_0, %c0_1] : memref<128x9x4xf32, #tpu.memory_space<vmem>>, vector<128x9x4xf32>
    %cst = arith.constant dense<0xFF800000> : vector<128x4xf32>
    %1 = vector.multi_reduction <maximumf>, %0, %cst [1] : vector<128x9x4xf32> to vector<128x4xf32>
    %c0_2 = arith.constant 0 : index
    %c0_3 = arith.constant 0 : index
    %2 = vector.load %arg2[%c0_2, %c0_3] : memref<128x4xf32, #tpu.memory_space<vmem>>, vector<128x4xf32>
    tpu.vector_store %arg2[%c0_2, %c0_3], %1 {strides = array<i32>} : memref<128x4xf32, #tpu.memory_space<vmem>>, vector<128x4xf32>,
    return
  }
  func.func @transform_0(%arg0: i32) -> (i32, i32, i32) {
    %c0_i32 = arith.constant 0 : i32
    %c0_i32_0 = arith.constant 0 : i32
    %c0_i32_1 = arith.constant 0 : i32
    return %arg0, %c0_i32, %c0_i32_0 : i32, i32, i32
  }
  func.func @transform_1(%arg0: i32) -> (i32, i32) {
    %c0_i32 = arith.constant 0 : i32
    %c0_i32_0 = arith.constant 0 : i32
    return %arg0, %c0_i32 : i32, i32
  }
}

module attributes {stable_mosaic.version = 11 : i64} {
  func.func @_matmul_bias_kernel(%arg0: i32, %arg1: i32, %arg2: i32, %arg3: memref<128x128xbf16, #tpu.memory_space<vmem>>, %arg4: memref<128x128xbf16, #tpu.memory_space<vmem>>, %arg5: memref<1x128xf32, #tpu.memory_space<vmem>>, %arg6: memref<128x128xf32, #tpu.memory_space<vmem>>, %arg7: memref<128x128xf32, #tpu.memory_space<vmem>>) attributes {dimension_semantics = [#tpu.dimension_semantics<parallel>, #tpu.dimension_semantics<parallel>, #tpu.dimension_semantics<arbitrary>], iteration_bounds = array<i64: 1, 1, 1>, scalar_prefetch = 0 : i64, scratch_operands = 1 : i64, tpu.core_type = #tpu.core_type<tc>, window_params = [{transform_indices = @transform_0, window_bounds = array<i64: 128, 128>}, {transform_indices = @transform_1, window_bounds = array<i64: 128, 128>}, {transform_indices = @transform_2, window_bounds = array<i64: 1, 128>}, {transform_indices = @transform_3, window_bounds = array<i64: 128, 128>}]} {
    %c0_i32 = arith.constant 0 : i32
    %0 = arith.cmpi eq, %arg2, %c0_i32 : i32
    %1 = arith.extui %0 : i1 to i32
    %c0_i32_0 = arith.constant 0 : i32
    %2 = arith.cmpi ne, %1, %c0_i32_0 : i32
    scf.if %2 {
      %cst_10 = arith.constant 0.000000e+00 : f32
      %12 = vector.broadcast %cst_10 : f32 to vector<128x128xf32>
      %c0_11 = arith.constant 0 : index
      %c0_12 = arith.constant 0 : index
      %13 = vector.load %arg7[%c0_11, %c0_12] : memref<128x128xf32, #tpu.memory_space<vmem>>, vector<128x128xf32>
      tpu.vector_store %arg7[%c0_11, %c0_12], %12 {strides = array<i32>} : memref<128x128xf32, #tpu.memory_space<vmem>>, vector<128x128xf32>,
    } else {
    }
    %c0 = arith.constant 0 : index
    %c0_1 = arith.constant 0 : index
    %3 = vector.load %arg7[%c0, %c0_1] : memref<128x128xf32, #tpu.memory_space<vmem>>, vector<128x128xf32>
    %c0_2 = arith.constant 0 : index
    %c0_3 = arith.constant 0 : index
    %4 = vector.load %arg3[%c0_2, %c0_3] : memref<128x128xbf16, #tpu.memory_space<vmem>>, vector<128x128xbf16>
    %c0_4 = arith.constant 0 : index
    %c0_5 = arith.constant 0 : index
    %5 = vector.load %arg4[%c0_4, %c0_5] : memref<128x128xbf16, #tpu.memory_space<vmem>>, vector<128x128xbf16>
    %cst = arith.constant dense<0.000000e+00> : vector<128x128xf32>
    %6 = tpu.matmul %4, %5, %cst {dimension_numbers = #tpu.dot_dimension_numbers<[1], [0], [0], [1], [0, 0, 1, 1], [], []>} : vector<128x128xbf16>, vector<128x128xbf16>, vector<128x128xf32> -> vector<128x128xf32>
    %7 = arith.addf %3, %6 : vector<128x128xf32>
    %c0_6 = arith.constant 0 : index
    %c0_7 = arith.constant 0 : index
    %8 = vector.load %arg7[%c0_6, %c0_7] : memref<128x128xf32, #tpu.memory_space<vmem>>, vector<128x128xf32>
    tpu.vector_store %arg7[%c0_6, %c0_7], %7 {strides = array<i32>} : memref<128x128xf32, #tpu.memory_space<vmem>>, vector<128x128xf32>,
    %c0_i32_8 = arith.constant 0 : i32
    %9 = arith.cmpi eq, %arg2, %c0_i32_8 : i32
    %10 = arith.extui %9 : i1 to i32
    %c0_i32_9 = arith.constant 0 : i32
    %11 = arith.cmpi ne, %10, %c0_i32_9 : i32
    scf.if %11 {
      %c0_10 = arith.constant 0 : index
      %c0_11 = arith.constant 0 : index
      %12 = vector.load %arg7[%c0_10, %c0_11] : memref<128x128xf32, #tpu.memory_space<vmem>>, vector<128x128xf32>
      %c0_12 = arith.constant 0 : index
      %c0_13 = arith.constant 0 : index
      %13 = vector.load %arg5[%c0_12, %c0_13] : memref<1x128xf32, #tpu.memory_space<vmem>>, vector<1x128xf32>
      %14 = vector.broadcast %13 : vector<1x128xf32> to vector<128x128xf32>
      %15 = arith.addf %12, %14 : vector<128x128xf32>
      %cst_14 = arith.constant 0.000000e+00 : f32
      %16 = vector.broadcast %cst_14 : f32 to vector<128x128xf32>
      %17 = arith.maximumf %15, %16 : vector<128x128xf32>
      %c0_15 = arith.constant 0 : index
      %c0_16 = arith.constant 0 : index
      %18 = vector.load %arg6[%c0_15, %c0_16] : memref<128x128xf32, #tpu.memory_space<vmem>>, vector<128x128xf32>
      tpu.vector_store %arg6[%c0_15, %c0_16], %17 {strides = array<i32>} : memref<128x128xf32, #tpu.memory_space<vmem>>, vector<128x128xf32>,
    } else {
    }
    return
  }
  func.func @transform_0(%arg0: i32, %arg1: i32, %arg2: i32) -> (i32, i32) {
    %c0_i32 = arith.constant 0 : i32
    return %arg0, %arg2 : i32, i32
  }
  func.func @transform_1(%arg0: i32, %arg1: i32, %arg2: i32) -> (i32, i32) {
    %c0_i32 = arith.constant 0 : i32
    return %arg2, %arg1 : i32, i32
  }
  func.func @transform_2(%arg0: i32, %arg1: i32, %arg2: i32) -> (i32, i32) {
    %c0_i32 = arith.constant 0 : i32
    %c0_i32_0 = arith.constant 0 : i32
    return %c0_i32, %arg1 : i32, i32
  }
  func.func @transform_3(%arg0: i32, %arg1: i32, %arg2: i32) -> (i32, i32) {
    %c0_i32 = arith.constant 0 : i32
    return %arg0, %arg1 : i32, i32
  }
}

module attributes {stable_mosaic.version = 11 : i64} {
  func.func @_matmul_bias_kernel(%arg0: i32, %arg1: i32, %arg2: i32, %arg3: memref<128x128xbf16, #tpu.memory_space<vmem>>, %arg4: memref<128x128xbf16, #tpu.memory_space<vmem>>, %arg5: memref<1x128xf32, #tpu.memory_space<vmem>>, %arg6: memref<128x128xf32, #tpu.memory_space<vmem>>, %arg7: memref<128x128xf32, #tpu.memory_space<vmem>>) attributes {dimension_semantics = [#tpu.dimension_semantics<parallel>, #tpu.dimension_semantics<parallel>, #tpu.dimension_semantics<arbitrary>], iteration_bounds = array<i64: 1, 1, 1>, scalar_prefetch = 0 : i64, scratch_operands = 1 : i64, tpu.core_type = #tpu.core_type<tc>, window_params = [{transform_indices = @transform_0, window_bounds = array<i64: 128, 128>}, {transform_indices = @transform_1, window_bounds = array<i64: 128, 128>}, {transform_indices = @transform_2, window_bounds = array<i64: 1, 128>}, {transform_indices = @transform_3, window_bounds = array<i64: 128, 128>}]} {
    %c0_i32 = arith.constant 0 : i32
    %0 = arith.cmpi eq, %arg2, %c0_i32 : i32
    %1 = arith.extui %0 : i1 to i32
    %c0_i32_0 = arith.constant 0 : i32
    %2 = arith.cmpi ne, %1, %c0_i32_0 : i32
    scf.if %2 {
      %cst_10 = arith.constant 0.000000e+00 : f32
      %12 = vector.broadcast %cst_10 : f32 to vector<128x128xf32>
      %c0_11 = arith.constant 0 : index
      %c0_12 = arith.constant 0 : index
      %13 = vector.load %arg7[%c0_11, %c0_12] : memref<128x128xf32, #tpu.memory_space<vmem>>, vector<128x128xf32>
      tpu.vector_store %arg7[%c0_11, %c0_12], %12 {strides = array<i32>} : memref<128x128xf32, #tpu.memory_space<vmem>>, vector<128x128xf32>,
    } else {
    }
    %c0 = arith.constant 0 : index
    %c0_1 = arith.constant 0 : index
    %3 = vector.load %arg7[%c0, %c0_1] : memref<128x128xf32, #tpu.memory_space<vmem>>, vector<128x128xf32>
    %c0_2 = arith.constant 0 : index
    %c0_3 = arith.constant 0 : index
    %4 = vector.load %arg3[%c0_2, %c0_3] : memref<128x128xbf16, #tpu.memory_space<vmem>>, vector<128x128xbf16>
    %c0_4 = arith.constant 0 : index
    %c0_5 = arith.constant 0 : index
    %5 = vector.load %arg4[%c0_4, %c0_5] : memref<128x128xbf16, #tpu.memory_space<vmem>>, vector<128x128xbf16>
    %cst = arith.constant dense<0.000000e+00> : vector<128x128xf32>
    %6 = tpu.matmul %4, %5, %cst {dimension_numbers = #tpu.dot_dimension_numbers<[1], [0], [0], [1], [0, 0, 1, 1], [], []>} : vector<128x128xbf16>, vector<128x128xbf16>, vector<128x128xf32> -> vector<128x128xf32>
    %7 = arith.addf %3, %6 : vector<128x128xf32>
    %c0_6 = arith.constant 0 : index
    %c0_7 = arith.constant 0 : index
    %8 = vector.load %arg7[%c0_6, %c0_7] : memref<128x128xf32, #tpu.memory_space<vmem>>, vector<128x128xf32>
    tpu.vector_store %arg7[%c0_6, %c0_7], %7 {strides = array<i32>} : memref<128x128xf32, #tpu.memory_space<vmem>>, vector<128x128xf32>,
    %c0_i32_8 = arith.constant 0 : i32
    %9 = arith.cmpi eq, %arg2, %c0_i32_8 : i32
    %10 = arith.extui %9 : i1 to i32
    %c0_i32_9 = arith.constant 0 : i32
    %11 = arith.cmpi ne, %10, %c0_i32_9 : i32
    scf.if %11 {
      %c0_10 = arith.constant 0 : index
      %c0_11 = arith.constant 0 : index
      %12 = vector.load %arg7[%c0_10, %c0_11] : memref<128x128xf32, #tpu.memory_space<vmem>>, vector<128x128xf32>
      %c0_12 = arith.constant 0 : index
      %c0_13 = arith.constant 0 : index
      %13 = vector.load %arg5[%c0_12, %c0_13] : memref<1x128xf32, #tpu.memory_space<vmem>>, vector<1x128xf32>
      %14 = vector.broadcast %13 : vector<1x128xf32> to vector<128x128xf32>
      %15 = arith.addf %12, %14 : vector<128x128xf32>
      %c0_14 = arith.constant 0 : index
      %c0_15 = arith.constant 0 : index
      %16 = vector.load %arg6[%c0_14, %c0_15] : memref<128x128xf32, #tpu.memory_space<vmem>>, vector<128x128xf32>
      tpu.vector_store %arg6[%c0_14, %c0_15], %15 {strides = array<i32>} : memref<128x128xf32, #tpu.memory_space<vmem>>, vector<128x128xf32>,
    } else {
    }
    return
  }
  func.func @transform_0(%arg0: i32, %arg1: i32, %arg2: i32) -> (i32, i32) {
    %c0_i32 = arith.constant 0 : i32
    return %arg0, %arg2 : i32, i32
  }
  func.func @transform_1(%arg0: i32, %arg1: i32, %arg2: i32) -> (i32, i32) {
    %c0_i32 = arith.constant 0 : i32
    return %arg2, %arg1 : i32, i32
  }
  func.func @transform_2(%arg0: i32, %arg1: i32, %arg2: i32) -> (i32, i32) {
    %c0_i32 = arith.constant 0 : i32
    %c0_i32_0 = arith.constant 0 : i32
    return %c0_i32, %arg1 : i32, i32
  }
  func.func @transform_3(%arg0: i32, %arg1: i32, %arg2: i32) -> (i32, i32) {
    %c0_i32 = arith.constant 0 : i32
    return %arg0, %arg1 : i32, i32
  }
}

module attributes {stable_mosaic.version = 11 : i64} {
  func.func @_matmul_bias_res_kernel(%arg0: i32, %arg1: i32, %arg2: i32, %arg3: memref<128x128xbf16, #tpu.memory_space<vmem>>, %arg4: memref<128x128xbf16, #tpu.memory_space<vmem>>, %arg5: memref<1x128xf32, #tpu.memory_space<vmem>>, %arg6: memref<128x128xf32, #tpu.memory_space<vmem>>, %arg7: memref<128x128xf32, #tpu.memory_space<vmem>>, %arg8: memref<128x128xf32, #tpu.memory_space<vmem>>) attributes {dimension_semantics = [#tpu.dimension_semantics<parallel>, #tpu.dimension_semantics<parallel>, #tpu.dimension_semantics<arbitrary>], iteration_bounds = array<i64: 1, 1, 1>, scalar_prefetch = 0 : i64, scratch_operands = 1 : i64, tpu.core_type = #tpu.core_type<tc>, window_params = [{transform_indices = @transform_0, window_bounds = array<i64: 128, 128>}, {transform_indices = @transform_1, window_bounds = array<i64: 128, 128>}, {transform_indices = @transform_2, window_bounds = array<i64: 1, 128>}, {transform_indices = @transform_3, window_bounds = array<i64: 128, 128>}, {transform_indices = @transform_4, window_bounds = array<i64: 128, 128>}]} {
    %c0_i32 = arith.constant 0 : i32
    %0 = arith.cmpi eq, %arg2, %c0_i32 : i32
    %1 = arith.extui %0 : i1 to i32
    %c0_i32_0 = arith.constant 0 : i32
    %2 = arith.cmpi ne, %1, %c0_i32_0 : i32
    scf.if %2 {
      %cst_10 = arith.constant 0.000000e+00 : f32
      %12 = vector.broadcast %cst_10 : f32 to vector<128x128xf32>
      %c0_11 = arith.constant 0 : index
      %c0_12 = arith.constant 0 : index
      %13 = vector.load %arg8[%c0_11, %c0_12] : memref<128x128xf32, #tpu.memory_space<vmem>>, vector<128x128xf32>
      tpu.vector_store %arg8[%c0_11, %c0_12], %12 {strides = array<i32>} : memref<128x128xf32, #tpu.memory_space<vmem>>, vector<128x128xf32>,
    } else {
    }
    %c0 = arith.constant 0 : index
    %c0_1 = arith.constant 0 : index
    %3 = vector.load %arg8[%c0, %c0_1] : memref<128x128xf32, #tpu.memory_space<vmem>>, vector<128x128xf32>
    %c0_2 = arith.constant 0 : index
    %c0_3 = arith.constant 0 : index
    %4 = vector.load %arg3[%c0_2, %c0_3] : memref<128x128xbf16, #tpu.memory_space<vmem>>, vector<128x128xbf16>
    %c0_4 = arith.constant 0 : index
    %c0_5 = arith.constant 0 : index
    %5 = vector.load %arg4[%c0_4, %c0_5] : memref<128x128xbf16, #tpu.memory_space<vmem>>, vector<128x128xbf16>
    %cst = arith.constant dense<0.000000e+00> : vector<128x128xf32>
    %6 = tpu.matmul %4, %5, %cst {dimension_numbers = #tpu.dot_dimension_numbers<[1], [0], [0], [1], [0, 0, 1, 1], [], []>} : vector<128x128xbf16>, vector<128x128xbf16>, vector<128x128xf32> -> vector<128x128xf32>
    %7 = arith.addf %3, %6 : vector<128x128xf32>
    %c0_6 = arith.constant 0 : index
    %c0_7 = arith.constant 0 : index
    %8 = vector.load %arg8[%c0_6, %c0_7] : memref<128x128xf32, #tpu.memory_space<vmem>>, vector<128x128xf32>
    tpu.vector_store %arg8[%c0_6, %c0_7], %7 {strides = array<i32>} : memref<128x128xf32, #tpu.memory_space<vmem>>, vector<128x128xf32>,
    %c0_i32_8 = arith.constant 0 : i32
    %9 = arith.cmpi eq, %arg2, %c0_i32_8 : i32
    %10 = arith.extui %9 : i1 to i32
    %c0_i32_9 = arith.constant 0 : i32
    %11 = arith.cmpi ne, %10, %c0_i32_9 : i32
    scf.if %11 {
      %c0_10 = arith.constant 0 : index
      %c0_11 = arith.constant 0 : index
      %12 = vector.load %arg8[%c0_10, %c0_11] : memref<128x128xf32, #tpu.memory_space<vmem>>, vector<128x128xf32>
      %c0_12 = arith.constant 0 : index
      %c0_13 = arith.constant 0 : index
      %13 = vector.load %arg5[%c0_12, %c0_13] : memref<1x128xf32, #tpu.memory_space<vmem>>, vector<1x128xf32>
      %14 = vector.broadcast %13 : vector<1x128xf32> to vector<128x128xf32>
      %15 = arith.addf %12, %14 : vector<128x128xf32>
      %c0_14 = arith.constant 0 : index
      %c0_15 = arith.constant 0 : index
      %16 = vector.load %arg6[%c0_14, %c0_15] : memref<128x128xf32, #tpu.memory_space<vmem>>, vector<128x128xf32>
      %17 = arith.addf %15, %16 : vector<128x128xf32>
      %cst_16 = arith.constant 0.000000e+00 : f32
      %18 = vector.broadcast %cst_16 : f32 to vector<128x128xf32>
      %19 = arith.maximumf %17, %18 : vector<128x128xf32>
      %c0_17 = arith.constant 0 : index
      %c0_18 = arith.constant 0 : index
      %20 = vector.load %arg7[%c0_17, %c0_18] : memref<128x128xf32, #tpu.memory_space<vmem>>, vector<128x128xf32>
      tpu.vector_store %arg7[%c0_17, %c0_18], %19 {strides = array<i32>} : memref<128x128xf32, #tpu.memory_space<vmem>>, vector<128x128xf32>,
    } else {
    }
    return
  }
  func.func @transform_0(%arg0: i32, %arg1: i32, %arg2: i32) -> (i32, i32) {
    %c0_i32 = arith.constant 0 : i32
    return %arg0, %arg2 : i32, i32
  }
  func.func @transform_1(%arg0: i32, %arg1: i32, %arg2: i32) -> (i32, i32) {
    %c0_i32 = arith.constant 0 : i32
    return %arg2, %arg1 : i32, i32
  }
  func.func @transform_2(%arg0: i32, %arg1: i32, %arg2: i32) -> (i32, i32) {
    %c0_i32 = arith.constant 0 : i32
    %c0_i32_0 = arith.constant 0 : i32
    return %c0_i32, %arg1 : i32, i32
  }
  func.func @transform_3(%arg0: i32, %arg1: i32, %arg2: i32) -> (i32, i32) {
    %c0_i32 = arith.constant 0 : i32
    return %arg0, %arg1 : i32, i32
  }
  func.func @transform_4(%arg0: i32, %arg1: i32, %arg2: i32) -> (i32, i32) {
    %c0_i32 = arith.constant 0 : i32
    return %arg0, %arg1 : i32, i32
  }
}

module attributes {stable_mosaic.version = 11 : i64} {
  func.func @_matmul_bias_kernel(%arg0: i32, %arg1: i32, %arg2: i32, %arg3: memref<32x128xbf16, #tpu.memory_space<vmem>>, %arg4: memref<128x128xbf16, #tpu.memory_space<vmem>>, %arg5: memref<1x128xf32, #tpu.memory_space<vmem>>, %arg6: memref<32x128xf32, #tpu.memory_space<vmem>>, %arg7: memref<32x128xf32, #tpu.memory_space<vmem>>) attributes {dimension_semantics = [#tpu.dimension_semantics<parallel>, #tpu.dimension_semantics<parallel>, #tpu.dimension_semantics<arbitrary>], iteration_bounds = array<i64: 1, 1, 1>, scalar_prefetch = 0 : i64, scratch_operands = 1 : i64, tpu.core_type = #tpu.core_type<tc>, window_params = [{transform_indices = @transform_0, window_bounds = array<i64: 32, 128>}, {transform_indices = @transform_1, window_bounds = array<i64: 128, 128>}, {transform_indices = @transform_2, window_bounds = array<i64: 1, 128>}, {transform_indices = @transform_3, window_bounds = array<i64: 32, 128>}]} {
    %c0_i32 = arith.constant 0 : i32
    %0 = arith.cmpi eq, %arg2, %c0_i32 : i32
    %1 = arith.extui %0 : i1 to i32
    %c0_i32_0 = arith.constant 0 : i32
    %2 = arith.cmpi ne, %1, %c0_i32_0 : i32
    scf.if %2 {
      %cst_10 = arith.constant 0.000000e+00 : f32
      %12 = vector.broadcast %cst_10 : f32 to vector<32x128xf32>
      %c0_11 = arith.constant 0 : index
      %c0_12 = arith.constant 0 : index
      %13 = vector.load %arg7[%c0_11, %c0_12] : memref<32x128xf32, #tpu.memory_space<vmem>>, vector<32x128xf32>
      tpu.vector_store %arg7[%c0_11, %c0_12], %12 {strides = array<i32>} : memref<32x128xf32, #tpu.memory_space<vmem>>, vector<32x128xf32>,
    } else {
    }
    %c0 = arith.constant 0 : index
    %c0_1 = arith.constant 0 : index
    %3 = vector.load %arg7[%c0, %c0_1] : memref<32x128xf32, #tpu.memory_space<vmem>>, vector<32x128xf32>
    %c0_2 = arith.constant 0 : index
    %c0_3 = arith.constant 0 : index
    %4 = vector.load %arg3[%c0_2, %c0_3] : memref<32x128xbf16, #tpu.memory_space<vmem>>, vector<32x128xbf16>
    %c0_4 = arith.constant 0 : index
    %c0_5 = arith.constant 0 : index
    %5 = vector.load %arg4[%c0_4, %c0_5] : memref<128x128xbf16, #tpu.memory_space<vmem>>, vector<128x128xbf16>
    %cst = arith.constant dense<0.000000e+00> : vector<32x128xf32>
    %6 = tpu.matmul %4, %5, %cst {dimension_numbers = #tpu.dot_dimension_numbers<[1], [0], [0], [1], [0, 0, 1, 1], [], []>} : vector<32x128xbf16>, vector<128x128xbf16>, vector<32x128xf32> -> vector<32x128xf32>
    %7 = arith.addf %3, %6 : vector<32x128xf32>
    %c0_6 = arith.constant 0 : index
    %c0_7 = arith.constant 0 : index
    %8 = vector.load %arg7[%c0_6, %c0_7] : memref<32x128xf32, #tpu.memory_space<vmem>>, vector<32x128xf32>
    tpu.vector_store %arg7[%c0_6, %c0_7], %7 {strides = array<i32>} : memref<32x128xf32, #tpu.memory_space<vmem>>, vector<32x128xf32>,
    %c0_i32_8 = arith.constant 0 : i32
    %9 = arith.cmpi eq, %arg2, %c0_i32_8 : i32
    %10 = arith.extui %9 : i1 to i32
    %c0_i32_9 = arith.constant 0 : i32
    %11 = arith.cmpi ne, %10, %c0_i32_9 : i32
    scf.if %11 {
      %c0_10 = arith.constant 0 : index
      %c0_11 = arith.constant 0 : index
      %12 = vector.load %arg7[%c0_10, %c0_11] : memref<32x128xf32, #tpu.memory_space<vmem>>, vector<32x128xf32>
      %c0_12 = arith.constant 0 : index
      %c0_13 = arith.constant 0 : index
      %13 = vector.load %arg5[%c0_12, %c0_13] : memref<1x128xf32, #tpu.memory_space<vmem>>, vector<1x128xf32>
      %14 = vector.broadcast %13 : vector<1x128xf32> to vector<32x128xf32>
      %15 = arith.addf %12, %14 : vector<32x128xf32>
      %cst_14 = arith.constant 0.000000e+00 : f32
      %16 = vector.broadcast %cst_14 : f32 to vector<32x128xf32>
      %17 = arith.maximumf %15, %16 : vector<32x128xf32>
      %c0_15 = arith.constant 0 : index
      %c0_16 = arith.constant 0 : index
      %18 = vector.load %arg6[%c0_15, %c0_16] : memref<32x128xf32, #tpu.memory_space<vmem>>, vector<32x128xf32>
      tpu.vector_store %arg6[%c0_15, %c0_16], %17 {strides = array<i32>} : memref<32x128xf32, #tpu.memory_space<vmem>>, vector<32x128xf32>,
    } else {
    }
    return
  }
  func.func @transform_0(%arg0: i32, %arg1: i32, %arg2: i32) -> (i32, i32) {
    %c0_i32 = arith.constant 0 : i32
    return %arg0, %arg2 : i32, i32
  }
  func.func @transform_1(%arg0: i32, %arg1: i32, %arg2: i32) -> (i32, i32) {
    %c0_i32 = arith.constant 0 : i32
    return %arg2, %arg1 : i32, i32
  }
  func.func @transform_2(%arg0: i32, %arg1: i32, %arg2: i32) -> (i32, i32) {
    %c0_i32 = arith.constant 0 : i32
    %c0_i32_0 = arith.constant 0 : i32
    return %c0_i32, %arg1 : i32, i32
  }
  func.func @transform_3(%arg0: i32, %arg1: i32, %arg2: i32) -> (i32, i32) {
    %c0_i32 = arith.constant 0 : i32
    return %arg0, %arg1 : i32, i32
  }
}

module attributes {stable_mosaic.version = 11 : i64} {
  func.func @_matmul_bias_res_kernel(%arg0: i32, %arg1: i32, %arg2: i32, %arg3: memref<32x128xbf16, #tpu.memory_space<vmem>>, %arg4: memref<128x128xbf16, #tpu.memory_space<vmem>>, %arg5: memref<1x128xf32, #tpu.memory_space<vmem>>, %arg6: memref<32x128xf32, #tpu.memory_space<vmem>>, %arg7: memref<32x128xf32, #tpu.memory_space<vmem>>, %arg8: memref<32x128xf32, #tpu.memory_space<vmem>>) attributes {dimension_semantics = [#tpu.dimension_semantics<parallel>, #tpu.dimension_semantics<parallel>, #tpu.dimension_semantics<arbitrary>], iteration_bounds = array<i64: 1, 1, 1>, scalar_prefetch = 0 : i64, scratch_operands = 1 : i64, tpu.core_type = #tpu.core_type<tc>, window_params = [{transform_indices = @transform_0, window_bounds = array<i64: 32, 128>}, {transform_indices = @transform_1, window_bounds = array<i64: 128, 128>}, {transform_indices = @transform_2, window_bounds = array<i64: 1, 128>}, {transform_indices = @transform_3, window_bounds = array<i64: 32, 128>}, {transform_indices = @transform_4, window_bounds = array<i64: 32, 128>}]} {
    %c0_i32 = arith.constant 0 : i32
    %0 = arith.cmpi eq, %arg2, %c0_i32 : i32
    %1 = arith.extui %0 : i1 to i32
    %c0_i32_0 = arith.constant 0 : i32
    %2 = arith.cmpi ne, %1, %c0_i32_0 : i32
    scf.if %2 {
      %cst_10 = arith.constant 0.000000e+00 : f32
      %12 = vector.broadcast %cst_10 : f32 to vector<32x128xf32>
      %c0_11 = arith.constant 0 : index
      %c0_12 = arith.constant 0 : index
      %13 = vector.load %arg8[%c0_11, %c0_12] : memref<32x128xf32, #tpu.memory_space<vmem>>, vector<32x128xf32>
      tpu.vector_store %arg8[%c0_11, %c0_12], %12 {strides = array<i32>} : memref<32x128xf32, #tpu.memory_space<vmem>>, vector<32x128xf32>,
    } else {
    }
    %c0 = arith.constant 0 : index
    %c0_1 = arith.constant 0 : index
    %3 = vector.load %arg8[%c0, %c0_1] : memref<32x128xf32, #tpu.memory_space<vmem>>, vector<32x128xf32>
    %c0_2 = arith.constant 0 : index
    %c0_3 = arith.constant 0 : index
    %4 = vector.load %arg3[%c0_2, %c0_3] : memref<32x128xbf16, #tpu.memory_space<vmem>>, vector<32x128xbf16>
    %c0_4 = arith.constant 0 : index
    %c0_5 = arith.constant 0 : index
    %5 = vector.load %arg4[%c0_4, %c0_5] : memref<128x128xbf16, #tpu.memory_space<vmem>>, vector<128x128xbf16>
    %cst = arith.constant dense<0.000000e+00> : vector<32x128xf32>
    %6 = tpu.matmul %4, %5, %cst {dimension_numbers = #tpu.dot_dimension_numbers<[1], [0], [0], [1], [0, 0, 1, 1], [], []>} : vector<32x128xbf16>, vector<128x128xbf16>, vector<32x128xf32> -> vector<32x128xf32>
    %7 = arith.addf %3, %6 : vector<32x128xf32>
    %c0_6 = arith.constant 0 : index
    %c0_7 = arith.constant 0 : index
    %8 = vector.load %arg8[%c0_6, %c0_7] : memref<32x128xf32, #tpu.memory_space<vmem>>, vector<32x128xf32>
    tpu.vector_store %arg8[%c0_6, %c0_7], %7 {strides = array<i32>} : memref<32x128xf32, #tpu.memory_space<vmem>>, vector<32x128xf32>,
    %c0_i32_8 = arith.constant 0 : i32
    %9 = arith.cmpi eq, %arg2, %c0_i32_8 : i32
    %10 = arith.extui %9 : i1 to i32
    %c0_i32_9 = arith.constant 0 : i32
    %11 = arith.cmpi ne, %10, %c0_i32_9 : i32
    scf.if %11 {
      %c0_10 = arith.constant 0 : index
      %c0_11 = arith.constant 0 : index
      %12 = vector.load %arg8[%c0_10, %c0_11] : memref<32x128xf32, #tpu.memory_space<vmem>>, vector<32x128xf32>
      %c0_12 = arith.constant 0 : index
      %c0_13 = arith.constant 0 : index
      %13 = vector.load %arg5[%c0_12, %c0_13] : memref<1x128xf32, #tpu.memory_space<vmem>>, vector<1x128xf32>
      %14 = vector.broadcast %13 : vector<1x128xf32> to vector<32x128xf32>
      %15 = arith.addf %12, %14 : vector<32x128xf32>
      %c0_14 = arith.constant 0 : index
      %c0_15 = arith.constant 0 : index
      %16 = vector.load %arg6[%c0_14, %c0_15] : memref<32x128xf32, #tpu.memory_space<vmem>>, vector<32x128xf32>
      %17 = arith.addf %15, %16 : vector<32x128xf32>
      %cst_16 = arith.constant 0.000000e+00 : f32
      %18 = vector.broadcast %cst_16 : f32 to vector<32x128xf32>
      %19 = arith.maximumf %17, %18 : vector<32x128xf32>
      %c0_17 = arith.constant 0 : index
      %c0_18 = arith.constant 0 : index
      %20 = vector.load %arg7[%c0_17, %c0_18] : memref<32x128xf32, #tpu.memory_space<vmem>>, vector<32x128xf32>
      tpu.vector_store %arg7[%c0_17, %c0_18], %19 {strides = array<i32>} : memref<32x128xf32, #tpu.memory_space<vmem>>, vector<32x128xf32>,
    } else {
    }
    return
  }
  func.func @transform_0(%arg0: i32, %arg1: i32, %arg2: i32) -> (i32, i32) {
    %c0_i32 = arith.constant 0 : i32
    return %arg0, %arg2 : i32, i32
  }
  func.func @transform_1(%arg0: i32, %arg1: i32, %arg2: i32) -> (i32, i32) {
    %c0_i32 = arith.constant 0 : i32
    return %arg2, %arg1 : i32, i32
  }
  func.func @transform_2(%arg0: i32, %arg1: i32, %arg2: i32) -> (i32, i32) {
    %c0_i32 = arith.constant 0 : i32
    %c0_i32_0 = arith.constant 0 : i32
    return %c0_i32, %arg1 : i32, i32
  }
  func.func @transform_3(%arg0: i32, %arg1: i32, %arg2: i32) -> (i32, i32) {
    %c0_i32 = arith.constant 0 : i32
    return %arg0, %arg1 : i32, i32
  }
  func.func @transform_4(%arg0: i32, %arg1: i32, %arg2: i32) -> (i32, i32) {
    %c0_i32 = arith.constant 0 : i32
    return %arg0, %arg1 : i32, i32
  }
}

module attributes {stable_mosaic.version = 11 : i64} {
  func.func @_matmul_bias_kernel(%arg0: i32, %arg1: i32, %arg2: i32, %arg3: memref<32x128xbf16, #tpu.memory_space<vmem>>, %arg4: memref<128x128xbf16, #tpu.memory_space<vmem>>, %arg5: memref<1x128xf32, #tpu.memory_space<vmem>>, %arg6: memref<32x128xf32, #tpu.memory_space<vmem>>, %arg7: memref<32x128xf32, #tpu.memory_space<vmem>>) attributes {dimension_semantics = [#tpu.dimension_semantics<parallel>, #tpu.dimension_semantics<parallel>, #tpu.dimension_semantics<arbitrary>], iteration_bounds = array<i64: 1, 1, 1>, scalar_prefetch = 0 : i64, scratch_operands = 1 : i64, tpu.core_type = #tpu.core_type<tc>, window_params = [{transform_indices = @transform_0, window_bounds = array<i64: 32, 128>}, {transform_indices = @transform_1, window_bounds = array<i64: 128, 128>}, {transform_indices = @transform_2, window_bounds = array<i64: 1, 128>}, {transform_indices = @transform_3, window_bounds = array<i64: 32, 128>}]} {
    %c0_i32 = arith.constant 0 : i32
    %0 = arith.cmpi eq, %arg2, %c0_i32 : i32
    %1 = arith.extui %0 : i1 to i32
    %c0_i32_0 = arith.constant 0 : i32
    %2 = arith.cmpi ne, %1, %c0_i32_0 : i32
    scf.if %2 {
      %cst_10 = arith.constant 0.000000e+00 : f32
      %12 = vector.broadcast %cst_10 : f32 to vector<32x128xf32>
      %c0_11 = arith.constant 0 : index
      %c0_12 = arith.constant 0 : index
      %13 = vector.load %arg7[%c0_11, %c0_12] : memref<32x128xf32, #tpu.memory_space<vmem>>, vector<32x128xf32>
      tpu.vector_store %arg7[%c0_11, %c0_12], %12 {strides = array<i32>} : memref<32x128xf32, #tpu.memory_space<vmem>>, vector<32x128xf32>,
    } else {
    }
    %c0 = arith.constant 0 : index
    %c0_1 = arith.constant 0 : index
    %3 = vector.load %arg7[%c0, %c0_1] : memref<32x128xf32, #tpu.memory_space<vmem>>, vector<32x128xf32>
    %c0_2 = arith.constant 0 : index
    %c0_3 = arith.constant 0 : index
    %4 = vector.load %arg3[%c0_2, %c0_3] : memref<32x128xbf16, #tpu.memory_space<vmem>>, vector<32x128xbf16>
    %c0_4 = arith.constant 0 : index
    %c0_5 = arith.constant 0 : index
    %5 = vector.load %arg4[%c0_4, %c0_5] : memref<128x128xbf16, #tpu.memory_space<vmem>>, vector<128x128xbf16>
    %cst = arith.constant dense<0.000000e+00> : vector<32x128xf32>
    %6 = tpu.matmul %4, %5, %cst {dimension_numbers = #tpu.dot_dimension_numbers<[1], [0], [0], [1], [0, 0, 1, 1], [], []>} : vector<32x128xbf16>, vector<128x128xbf16>, vector<32x128xf32> -> vector<32x128xf32>
    %7 = arith.addf %3, %6 : vector<32x128xf32>
    %c0_6 = arith.constant 0 : index
    %c0_7 = arith.constant 0 : index
    %8 = vector.load %arg7[%c0_6, %c0_7] : memref<32x128xf32, #tpu.memory_space<vmem>>, vector<32x128xf32>
    tpu.vector_store %arg7[%c0_6, %c0_7], %7 {strides = array<i32>} : memref<32x128xf32, #tpu.memory_space<vmem>>, vector<32x128xf32>,
    %c0_i32_8 = arith.constant 0 : i32
    %9 = arith.cmpi eq, %arg2, %c0_i32_8 : i32
    %10 = arith.extui %9 : i1 to i32
    %c0_i32_9 = arith.constant 0 : i32
    %11 = arith.cmpi ne, %10, %c0_i32_9 : i32
    scf.if %11 {
      %c0_10 = arith.constant 0 : index
      %c0_11 = arith.constant 0 : index
      %12 = vector.load %arg7[%c0_10, %c0_11] : memref<32x128xf32, #tpu.memory_space<vmem>>, vector<32x128xf32>
      %c0_12 = arith.constant 0 : index
      %c0_13 = arith.constant 0 : index
      %13 = vector.load %arg5[%c0_12, %c0_13] : memref<1x128xf32, #tpu.memory_space<vmem>>, vector<1x128xf32>
      %14 = vector.broadcast %13 : vector<1x128xf32> to vector<32x128xf32>
      %15 = arith.addf %12, %14 : vector<32x128xf32>
      %c0_14 = arith.constant 0 : index
      %c0_15 = arith.constant 0 : index
      %16 = vector.load %arg6[%c0_14, %c0_15] : memref<32x128xf32, #tpu.memory_space<vmem>>, vector<32x128xf32>
      tpu.vector_store %arg6[%c0_14, %c0_15], %15 {strides = array<i32>} : memref<32x128xf32, #tpu.memory_space<vmem>>, vector<32x128xf32>,
    } else {
    }
    return
  }
  func.func @transform_0(%arg0: i32, %arg1: i32, %arg2: i32) -> (i32, i32) {
    %c0_i32 = arith.constant 0 : i32
    return %arg0, %arg2 : i32, i32
  }
  func.func @transform_1(%arg0: i32, %arg1: i32, %arg2: i32) -> (i32, i32) {
    %c0_i32 = arith.constant 0 : i32
    return %arg2, %arg1 : i32, i32
  }
  func.func @transform_2(%arg0: i32, %arg1: i32, %arg2: i32) -> (i32, i32) {
    %c0_i32 = arith.constant 0 : i32
    %c0_i32_0 = arith.constant 0 : i32
    return %c0_i32, %arg1 : i32, i32
  }
  func.func @transform_3(%arg0: i32, %arg1: i32, %arg2: i32) -> (i32, i32) {
    %c0_i32 = arith.constant 0 : i32
    return %arg0, %arg1 : i32, i32
  }
}

module attributes {stable_mosaic.version = 11 : i64} {
  func.func @_matmul_bias_kernel(%arg0: i32, %arg1: i32, %arg2: i32, %arg3: memref<8x256xbf16, #tpu.memory_space<vmem>>, %arg4: memref<256x128xbf16, #tpu.memory_space<vmem>>, %arg5: memref<1x128xf32, #tpu.memory_space<vmem>>, %arg6: memref<8x128xf32, #tpu.memory_space<vmem>>, %arg7: memref<8x128xf32, #tpu.memory_space<vmem>>) attributes {dimension_semantics = [#tpu.dimension_semantics<parallel>, #tpu.dimension_semantics<parallel>, #tpu.dimension_semantics<arbitrary>], iteration_bounds = array<i64: 1, 1, 1>, scalar_prefetch = 0 : i64, scratch_operands = 1 : i64, tpu.core_type = #tpu.core_type<tc>, window_params = [{transform_indices = @transform_0, window_bounds = array<i64: 8, 256>}, {transform_indices = @transform_1, window_bounds = array<i64: 256, 128>}, {transform_indices = @transform_2, window_bounds = array<i64: 1, 128>}, {transform_indices = @transform_3, window_bounds = array<i64: 8, 128>}]} {
    %c0_i32 = arith.constant 0 : i32
    %0 = arith.cmpi eq, %arg2, %c0_i32 : i32
    %1 = arith.extui %0 : i1 to i32
    %c0_i32_0 = arith.constant 0 : i32
    %2 = arith.cmpi ne, %1, %c0_i32_0 : i32
    scf.if %2 {
      %cst_10 = arith.constant 0.000000e+00 : f32
      %12 = vector.broadcast %cst_10 : f32 to vector<8x128xf32>
      %c0_11 = arith.constant 0 : index
      %c0_12 = arith.constant 0 : index
      %13 = vector.load %arg7[%c0_11, %c0_12] : memref<8x128xf32, #tpu.memory_space<vmem>>, vector<8x128xf32>
      tpu.vector_store %arg7[%c0_11, %c0_12], %12 {strides = array<i32>} : memref<8x128xf32, #tpu.memory_space<vmem>>, vector<8x128xf32>,
    } else {
    }
    %c0 = arith.constant 0 : index
    %c0_1 = arith.constant 0 : index
    %3 = vector.load %arg7[%c0, %c0_1] : memref<8x128xf32, #tpu.memory_space<vmem>>, vector<8x128xf32>
    %c0_2 = arith.constant 0 : index
    %c0_3 = arith.constant 0 : index
    %4 = vector.load %arg3[%c0_2, %c0_3] : memref<8x256xbf16, #tpu.memory_space<vmem>>, vector<8x256xbf16>
    %c0_4 = arith.constant 0 : index
    %c0_5 = arith.constant 0 : index
    %5 = vector.load %arg4[%c0_4, %c0_5] : memref<256x128xbf16, #tpu.memory_space<vmem>>, vector<256x128xbf16>
    %cst = arith.constant dense<0.000000e+00> : vector<8x128xf32>
    %6 = tpu.matmul %4, %5, %cst {dimension_numbers = #tpu.dot_dimension_numbers<[1], [0], [0], [1], [0, 0, 1, 1], [], []>} : vector<8x256xbf16>, vector<256x128xbf16>, vector<8x128xf32> -> vector<8x128xf32>
    %7 = arith.addf %3, %6 : vector<8x128xf32>
    %c0_6 = arith.constant 0 : index
    %c0_7 = arith.constant 0 : index
    %8 = vector.load %arg7[%c0_6, %c0_7] : memref<8x128xf32, #tpu.memory_space<vmem>>, vector<8x128xf32>
    tpu.vector_store %arg7[%c0_6, %c0_7], %7 {strides = array<i32>} : memref<8x128xf32, #tpu.memory_space<vmem>>, vector<8x128xf32>,
    %c0_i32_8 = arith.constant 0 : i32
    %9 = arith.cmpi eq, %arg2, %c0_i32_8 : i32
    %10 = arith.extui %9 : i1 to i32
    %c0_i32_9 = arith.constant 0 : i32
    %11 = arith.cmpi ne, %10, %c0_i32_9 : i32
    scf.if %11 {
      %c0_10 = arith.constant 0 : index
      %c0_11 = arith.constant 0 : index
      %12 = vector.load %arg7[%c0_10, %c0_11] : memref<8x128xf32, #tpu.memory_space<vmem>>, vector<8x128xf32>
      %c0_12 = arith.constant 0 : index
      %c0_13 = arith.constant 0 : index
      %13 = vector.load %arg5[%c0_12, %c0_13] : memref<1x128xf32, #tpu.memory_space<vmem>>, vector<1x128xf32>
      %14 = vector.broadcast %13 : vector<1x128xf32> to vector<8x128xf32>
      %15 = arith.addf %12, %14 : vector<8x128xf32>
      %cst_14 = arith.constant 0.000000e+00 : f32
      %16 = vector.broadcast %cst_14 : f32 to vector<8x128xf32>
      %17 = arith.maximumf %15, %16 : vector<8x128xf32>
      %c0_15 = arith.constant 0 : index
      %c0_16 = arith.constant 0 : index
      %18 = vector.load %arg6[%c0_15, %c0_16] : memref<8x128xf32, #tpu.memory_space<vmem>>, vector<8x128xf32>
      tpu.vector_store %arg6[%c0_15, %c0_16], %17 {strides = array<i32>} : memref<8x128xf32, #tpu.memory_space<vmem>>, vector<8x128xf32>,
    } else {
    }
    return
  }
  func.func @transform_0(%arg0: i32, %arg1: i32, %arg2: i32) -> (i32, i32) {
    %c0_i32 = arith.constant 0 : i32
    return %arg0, %arg2 : i32, i32
  }
  func.func @transform_1(%arg0: i32, %arg1: i32, %arg2: i32) -> (i32, i32) {
    %c0_i32 = arith.constant 0 : i32
    return %arg2, %arg1 : i32, i32
  }
  func.func @transform_2(%arg0: i32, %arg1: i32, %arg2: i32) -> (i32, i32) {
    %c0_i32 = arith.constant 0 : i32
    %c0_i32_0 = arith.constant 0 : i32
    return %c0_i32, %arg1 : i32, i32
  }
  func.func @transform_3(%arg0: i32, %arg1: i32, %arg2: i32) -> (i32, i32) {
    %c0_i32 = arith.constant 0 : i32
    return %arg0, %arg1 : i32, i32
  }
}

module attributes {stable_mosaic.version = 11 : i64} {
  func.func @_matmul_bias_kernel(%arg0: i32, %arg1: i32, %arg2: i32, %arg3: memref<8x128xbf16, #tpu.memory_space<vmem>>, %arg4: memref<128x128xbf16, #tpu.memory_space<vmem>>, %arg5: memref<1x128xf32, #tpu.memory_space<vmem>>, %arg6: memref<8x128xf32, #tpu.memory_space<vmem>>, %arg7: memref<8x128xf32, #tpu.memory_space<vmem>>) attributes {dimension_semantics = [#tpu.dimension_semantics<parallel>, #tpu.dimension_semantics<parallel>, #tpu.dimension_semantics<arbitrary>], iteration_bounds = array<i64: 1, 1, 1>, scalar_prefetch = 0 : i64, scratch_operands = 1 : i64, tpu.core_type = #tpu.core_type<tc>, window_params = [{transform_indices = @transform_0, window_bounds = array<i64: 8, 128>}, {transform_indices = @transform_1, window_bounds = array<i64: 128, 128>}, {transform_indices = @transform_2, window_bounds = array<i64: 1, 128>}, {transform_indices = @transform_3, window_bounds = array<i64: 8, 128>}]} {
    %c0_i32 = arith.constant 0 : i32
    %0 = arith.cmpi eq, %arg2, %c0_i32 : i32
    %1 = arith.extui %0 : i1 to i32
    %c0_i32_0 = arith.constant 0 : i32
    %2 = arith.cmpi ne, %1, %c0_i32_0 : i32
    scf.if %2 {
      %cst_10 = arith.constant 0.000000e+00 : f32
      %12 = vector.broadcast %cst_10 : f32 to vector<8x128xf32>
      %c0_11 = arith.constant 0 : index
      %c0_12 = arith.constant 0 : index
      %13 = vector.load %arg7[%c0_11, %c0_12] : memref<8x128xf32, #tpu.memory_space<vmem>>, vector<8x128xf32>
      tpu.vector_store %arg7[%c0_11, %c0_12], %12 {strides = array<i32>} : memref<8x128xf32, #tpu.memory_space<vmem>>, vector<8x128xf32>,
    } else {
    }
    %c0 = arith.constant 0 : index
    %c0_1 = arith.constant 0 : index
    %3 = vector.load %arg7[%c0, %c0_1] : memref<8x128xf32, #tpu.memory_space<vmem>>, vector<8x128xf32>
    %c0_2 = arith.constant 0 : index
    %c0_3 = arith.constant 0 : index
    %4 = vector.load %arg3[%c0_2, %c0_3] : memref<8x128xbf16, #tpu.memory_space<vmem>>, vector<8x128xbf16>
    %c0_4 = arith.constant 0 : index
    %c0_5 = arith.constant 0 : index
    %5 = vector.load %arg4[%c0_4, %c0_5] : memref<128x128xbf16, #tpu.memory_space<vmem>>, vector<128x128xbf16>
    %cst = arith.constant dense<0.000000e+00> : vector<8x128xf32>
    %6 = tpu.matmul %4, %5, %cst {dimension_numbers = #tpu.dot_dimension_numbers<[1], [0], [0], [1], [0, 0, 1, 1], [], []>} : vector<8x128xbf16>, vector<128x128xbf16>, vector<8x128xf32> -> vector<8x128xf32>
    %7 = arith.addf %3, %6 : vector<8x128xf32>
    %c0_6 = arith.constant 0 : index
    %c0_7 = arith.constant 0 : index
    %8 = vector.load %arg7[%c0_6, %c0_7] : memref<8x128xf32, #tpu.memory_space<vmem>>, vector<8x128xf32>
    tpu.vector_store %arg7[%c0_6, %c0_7], %7 {strides = array<i32>} : memref<8x128xf32, #tpu.memory_space<vmem>>, vector<8x128xf32>,
    %c0_i32_8 = arith.constant 0 : i32
    %9 = arith.cmpi eq, %arg2, %c0_i32_8 : i32
    %10 = arith.extui %9 : i1 to i32
    %c0_i32_9 = arith.constant 0 : i32
    %11 = arith.cmpi ne, %10, %c0_i32_9 : i32
    scf.if %11 {
      %c0_10 = arith.constant 0 : index
      %c0_11 = arith.constant 0 : index
      %12 = vector.load %arg7[%c0_10, %c0_11] : memref<8x128xf32, #tpu.memory_space<vmem>>, vector<8x128xf32>
      %c0_12 = arith.constant 0 : index
      %c0_13 = arith.constant 0 : index
      %13 = vector.load %arg5[%c0_12, %c0_13] : memref<1x128xf32, #tpu.memory_space<vmem>>, vector<1x128xf32>
      %14 = vector.broadcast %13 : vector<1x128xf32> to vector<8x128xf32>
      %15 = arith.addf %12, %14 : vector<8x128xf32>
      %c0_14 = arith.constant 0 : index
      %c0_15 = arith.constant 0 : index
      %16 = vector.load %arg6[%c0_14, %c0_15] : memref<8x128xf32, #tpu.memory_space<vmem>>, vector<8x128xf32>
      tpu.vector_store %arg6[%c0_14, %c0_15], %15 {strides = array<i32>} : memref<8x128xf32, #tpu.memory_space<vmem>>, vector<8x128xf32>,
    } else {
    }
    return
  }
  func.func @transform_0(%arg0: i32, %arg1: i32, %arg2: i32) -> (i32, i32) {
    %c0_i32 = arith.constant 0 : i32
    return %arg0, %arg2 : i32, i32
  }
  func.func @transform_1(%arg0: i32, %arg1: i32, %arg2: i32) -> (i32, i32) {
    %c0_i32 = arith.constant 0 : i32
    return %arg2, %arg1 : i32, i32
  }
  func.func @transform_2(%arg0: i32, %arg1: i32, %arg2: i32) -> (i32, i32) {
    %c0_i32 = arith.constant 0 : i32
    %c0_i32_0 = arith.constant 0 : i32
    return %c0_i32, %arg1 : i32, i32
  }
  func.func @transform_3(%arg0: i32, %arg1: i32, %arg2: i32) -> (i32, i32) {
    %c0_i32 = arith.constant 0 : i32
    return %arg0, %arg1 : i32, i32
  }
}

module attributes {stable_mosaic.version = 11 : i64} {
  func.func @_matmul_bias_res_kernel(%arg0: i32, %arg1: i32, %arg2: i32, %arg3: memref<8x128xbf16, #tpu.memory_space<vmem>>, %arg4: memref<128x128xbf16, #tpu.memory_space<vmem>>, %arg5: memref<1x128xf32, #tpu.memory_space<vmem>>, %arg6: memref<8x128xf32, #tpu.memory_space<vmem>>, %arg7: memref<8x128xf32, #tpu.memory_space<vmem>>, %arg8: memref<8x128xf32, #tpu.memory_space<vmem>>) attributes {dimension_semantics = [#tpu.dimension_semantics<parallel>, #tpu.dimension_semantics<parallel>, #tpu.dimension_semantics<arbitrary>], iteration_bounds = array<i64: 1, 1, 1>, scalar_prefetch = 0 : i64, scratch_operands = 1 : i64, tpu.core_type = #tpu.core_type<tc>, window_params = [{transform_indices = @transform_0, window_bounds = array<i64: 8, 128>}, {transform_indices = @transform_1, window_bounds = array<i64: 128, 128>}, {transform_indices = @transform_2, window_bounds = array<i64: 1, 128>}, {transform_indices = @transform_3, window_bounds = array<i64: 8, 128>}, {transform_indices = @transform_4, window_bounds = array<i64: 8, 128>}]} {
    %c0_i32 = arith.constant 0 : i32
    %0 = arith.cmpi eq, %arg2, %c0_i32 : i32
    %1 = arith.extui %0 : i1 to i32
    %c0_i32_0 = arith.constant 0 : i32
    %2 = arith.cmpi ne, %1, %c0_i32_0 : i32
    scf.if %2 {
      %cst_10 = arith.constant 0.000000e+00 : f32
      %12 = vector.broadcast %cst_10 : f32 to vector<8x128xf32>
      %c0_11 = arith.constant 0 : index
      %c0_12 = arith.constant 0 : index
      %13 = vector.load %arg8[%c0_11, %c0_12] : memref<8x128xf32, #tpu.memory_space<vmem>>, vector<8x128xf32>
      tpu.vector_store %arg8[%c0_11, %c0_12], %12 {strides = array<i32>} : memref<8x128xf32, #tpu.memory_space<vmem>>, vector<8x128xf32>,
    } else {
    }
    %c0 = arith.constant 0 : index
    %c0_1 = arith.constant 0 : index
    %3 = vector.load %arg8[%c0, %c0_1] : memref<8x128xf32, #tpu.memory_space<vmem>>, vector<8x128xf32>
    %c0_2 = arith.constant 0 : index
    %c0_3 = arith.constant 0 : index
    %4 = vector.load %arg3[%c0_2, %c0_3] : memref<8x128xbf16, #tpu.memory_space<vmem>>, vector<8x128xbf16>
    %c0_4 = arith.constant 0 : index
    %c0_5 = arith.constant 0 : index
    %5 = vector.load %arg4[%c0_4, %c0_5] : memref<128x128xbf16, #tpu.memory_space<vmem>>, vector<128x128xbf16>
    %cst = arith.constant dense<0.000000e+00> : vector<8x128xf32>
    %6 = tpu.matmul %4, %5, %cst {dimension_numbers = #tpu.dot_dimension_numbers<[1], [0], [0], [1], [0, 0, 1, 1], [], []>} : vector<8x128xbf16>, vector<128x128xbf16>, vector<8x128xf32> -> vector<8x128xf32>
    %7 = arith.addf %3, %6 : vector<8x128xf32>
    %c0_6 = arith.constant 0 : index
    %c0_7 = arith.constant 0 : index
    %8 = vector.load %arg8[%c0_6, %c0_7] : memref<8x128xf32, #tpu.memory_space<vmem>>, vector<8x128xf32>
    tpu.vector_store %arg8[%c0_6, %c0_7], %7 {strides = array<i32>} : memref<8x128xf32, #tpu.memory_space<vmem>>, vector<8x128xf32>,
    %c0_i32_8 = arith.constant 0 : i32
    %9 = arith.cmpi eq, %arg2, %c0_i32_8 : i32
    %10 = arith.extui %9 : i1 to i32
    %c0_i32_9 = arith.constant 0 : i32
    %11 = arith.cmpi ne, %10, %c0_i32_9 : i32
    scf.if %11 {
      %c0_10 = arith.constant 0 : index
      %c0_11 = arith.constant 0 : index
      %12 = vector.load %arg8[%c0_10, %c0_11] : memref<8x128xf32, #tpu.memory_space<vmem>>, vector<8x128xf32>
      %c0_12 = arith.constant 0 : index
      %c0_13 = arith.constant 0 : index
      %13 = vector.load %arg5[%c0_12, %c0_13] : memref<1x128xf32, #tpu.memory_space<vmem>>, vector<1x128xf32>
      %14 = vector.broadcast %13 : vector<1x128xf32> to vector<8x128xf32>
      %15 = arith.addf %12, %14 : vector<8x128xf32>
      %c0_14 = arith.constant 0 : index
      %c0_15 = arith.constant 0 : index
      %16 = vector.load %arg6[%c0_14, %c0_15] : memref<8x128xf32, #tpu.memory_space<vmem>>, vector<8x128xf32>
      %17 = arith.addf %15, %16 : vector<8x128xf32>
      %cst_16 = arith.constant 0.000000e+00 : f32
      %18 = vector.broadcast %cst_16 : f32 to vector<8x128xf32>
      %19 = arith.maximumf %17, %18 : vector<8x128xf32>
      %c0_17 = arith.constant 0 : index
      %c0_18 = arith.constant 0 : index
      %20 = vector.load %arg7[%c0_17, %c0_18] : memref<8x128xf32, #tpu.memory_space<vmem>>, vector<8x128xf32>
      tpu.vector_store %arg7[%c0_17, %c0_18], %19 {strides = array<i32>} : memref<8x128xf32, #tpu.memory_space<vmem>>, vector<8x128xf32>,
    } else {
    }
    return
  }
  func.func @transform_0(%arg0: i32, %arg1: i32, %arg2: i32) -> (i32, i32) {
    %c0_i32 = arith.constant 0 : i32
    return %arg0, %arg2 : i32, i32
  }
  func.func @transform_1(%arg0: i32, %arg1: i32, %arg2: i32) -> (i32, i32) {
    %c0_i32 = arith.constant 0 : i32
    return %arg2, %arg1 : i32, i32
  }
  func.func @transform_2(%arg0: i32, %arg1: i32, %arg2: i32) -> (i32, i32) {
    %c0_i32 = arith.constant 0 : i32
    %c0_i32_0 = arith.constant 0 : i32
    return %c0_i32, %arg1 : i32, i32
  }
  func.func @transform_3(%arg0: i32, %arg1: i32, %arg2: i32) -> (i32, i32) {
    %c0_i32 = arith.constant 0 : i32
    return %arg0, %arg1 : i32, i32
  }
  func.func @transform_4(%arg0: i32, %arg1: i32, %arg2: i32) -> (i32, i32) {
    %c0_i32 = arith.constant 0 : i32
    return %arg0, %arg1 : i32, i32
  }
}

module attributes {stable_mosaic.version = 11 : i64} {
  func.func @_matmul_bias_kernel(%arg0: i32, %arg1: i32, %arg2: i32, %arg3: memref<8x128xbf16, #tpu.memory_space<vmem>>, %arg4: memref<128x128xbf16, #tpu.memory_space<vmem>>, %arg5: memref<1x128xf32, #tpu.memory_space<vmem>>, %arg6: memref<8x128xf32, #tpu.memory_space<vmem>>, %arg7: memref<8x128xf32, #tpu.memory_space<vmem>>) attributes {dimension_semantics = [#tpu.dimension_semantics<parallel>, #tpu.dimension_semantics<parallel>, #tpu.dimension_semantics<arbitrary>], iteration_bounds = array<i64: 1, 1, 1>, scalar_prefetch = 0 : i64, scratch_operands = 1 : i64, tpu.core_type = #tpu.core_type<tc>, window_params = [{transform_indices = @transform_0, window_bounds = array<i64: 8, 128>}, {transform_indices = @transform_1, window_bounds = array<i64: 128, 128>}, {transform_indices = @transform_2, window_bounds = array<i64: 1, 128>}, {transform_indices = @transform_3, window_bounds = array<i64: 8, 128>}]} {
    %c0_i32 = arith.constant 0 : i32
    %0 = arith.cmpi eq, %arg2, %c0_i32 : i32
    %1 = arith.extui %0 : i1 to i32
    %c0_i32_0 = arith.constant 0 : i32
    %2 = arith.cmpi ne, %1, %c0_i32_0 : i32
    scf.if %2 {
      %cst_10 = arith.constant 0.000000e+00 : f32
      %12 = vector.broadcast %cst_10 : f32 to vector<8x128xf32>
      %c0_11 = arith.constant 0 : index
      %c0_12 = arith.constant 0 : index
      %13 = vector.load %arg7[%c0_11, %c0_12] : memref<8x128xf32, #tpu.memory_space<vmem>>, vector<8x128xf32>
      tpu.vector_store %arg7[%c0_11, %c0_12], %12 {strides = array<i32>} : memref<8x128xf32, #tpu.memory_space<vmem>>, vector<8x128xf32>,
    } else {
    }
    %c0 = arith.constant 0 : index
    %c0_1 = arith.constant 0 : index
    %3 = vector.load %arg7[%c0, %c0_1] : memref<8x128xf32, #tpu.memory_space<vmem>>, vector<8x128xf32>
    %c0_2 = arith.constant 0 : index
    %c0_3 = arith.constant 0 : index
    %4 = vector.load %arg3[%c0_2, %c0_3] : memref<8x128xbf16, #tpu.memory_space<vmem>>, vector<8x128xbf16>
    %c0_4 = arith.constant 0 : index
    %c0_5 = arith.constant 0 : index
    %5 = vector.load %arg4[%c0_4, %c0_5] : memref<128x128xbf16, #tpu.memory_space<vmem>>, vector<128x128xbf16>
    %cst = arith.constant dense<0.000000e+00> : vector<8x128xf32>
    %6 = tpu.matmul %4, %5, %cst {dimension_numbers = #tpu.dot_dimension_numbers<[1], [0], [0], [1], [0, 0, 1, 1], [], []>} : vector<8x128xbf16>, vector<128x128xbf16>, vector<8x128xf32> -> vector<8x128xf32>
    %7 = arith.addf %3, %6 : vector<8x128xf32>
    %c0_6 = arith.constant 0 : index
    %c0_7 = arith.constant 0 : index
    %8 = vector.load %arg7[%c0_6, %c0_7] : memref<8x128xf32, #tpu.memory_space<vmem>>, vector<8x128xf32>
    tpu.vector_store %arg7[%c0_6, %c0_7], %7 {strides = array<i32>} : memref<8x128xf32, #tpu.memory_space<vmem>>, vector<8x128xf32>,
    %c0_i32_8 = arith.constant 0 : i32
    %9 = arith.cmpi eq, %arg2, %c0_i32_8 : i32
    %10 = arith.extui %9 : i1 to i32
    %c0_i32_9 = arith.constant 0 : i32
    %11 = arith.cmpi ne, %10, %c0_i32_9 : i32
    scf.if %11 {
      %c0_10 = arith.constant 0 : index
      %c0_11 = arith.constant 0 : index
      %12 = vector.load %arg7[%c0_10, %c0_11] : memref<8x128xf32, #tpu.memory_space<vmem>>, vector<8x128xf32>
      %c0_12 = arith.constant 0 : index
      %c0_13 = arith.constant 0 : index
      %13 = vector.load %arg5[%c0_12, %c0_13] : memref<1x128xf32, #tpu.memory_space<vmem>>, vector<1x128xf32>
      %14 = vector.broadcast %13 : vector<1x128xf32> to vector<8x128xf32>
      %15 = arith.addf %12, %14 : vector<8x128xf32>
      %cst_14 = arith.constant 0.000000e+00 : f32
      %16 = vector.broadcast %cst_14 : f32 to vector<8x128xf32>
      %17 = arith.maximumf %15, %16 : vector<8x128xf32>
      %c0_15 = arith.constant 0 : index
      %c0_16 = arith.constant 0 : index
      %18 = vector.load %arg6[%c0_15, %c0_16] : memref<8x128xf32, #tpu.memory_space<vmem>>, vector<8x128xf32>
      tpu.vector_store %arg6[%c0_15, %c0_16], %17 {strides = array<i32>} : memref<8x128xf32, #tpu.memory_space<vmem>>, vector<8x128xf32>,
    } else {
    }
    return
  }
  func.func @transform_0(%arg0: i32, %arg1: i32, %arg2: i32) -> (i32, i32) {
    %c0_i32 = arith.constant 0 : i32
    return %arg0, %arg2 : i32, i32
  }
  func.func @transform_1(%arg0: i32, %arg1: i32, %arg2: i32) -> (i32, i32) {
    %c0_i32 = arith.constant 0 : i32
    return %arg2, %arg1 : i32, i32
  }
  func.func @transform_2(%arg0: i32, %arg1: i32, %arg2: i32) -> (i32, i32) {
    %c0_i32 = arith.constant 0 : i32
    %c0_i32_0 = arith.constant 0 : i32
    return %c0_i32, %arg1 : i32, i32
  }
  func.func @transform_3(%arg0: i32, %arg1: i32, %arg2: i32) -> (i32, i32) {
    %c0_i32 = arith.constant 0 : i32
    return %arg0, %arg1 : i32, i32
  }
}

module attributes {stable_mosaic.version = 11 : i64} {
  func.func @_matmul_bias_kernel(%arg0: i32, %arg1: i32, %arg2: i32, %arg3: memref<8x128xbf16, #tpu.memory_space<vmem>>, %arg4: memref<128x128xbf16, #tpu.memory_space<vmem>>, %arg5: memref<1x128xf32, #tpu.memory_space<vmem>>, %arg6: memref<8x128xf32, #tpu.memory_space<vmem>>, %arg7: memref<8x128xf32, #tpu.memory_space<vmem>>) attributes {dimension_semantics = [#tpu.dimension_semantics<parallel>, #tpu.dimension_semantics<parallel>, #tpu.dimension_semantics<arbitrary>], iteration_bounds = array<i64: 1, 1, 3>, scalar_prefetch = 0 : i64, scratch_operands = 1 : i64, tpu.core_type = #tpu.core_type<tc>, window_params = [{transform_indices = @transform_0, window_bounds = array<i64: 8, 128>}, {transform_indices = @transform_1, window_bounds = array<i64: 128, 128>}, {transform_indices = @transform_2, window_bounds = array<i64: 1, 128>}, {transform_indices = @transform_3, window_bounds = array<i64: 8, 128>}]} {
    %c0_i32 = arith.constant 0 : i32
    %0 = arith.cmpi eq, %arg2, %c0_i32 : i32
    %1 = arith.extui %0 : i1 to i32
    %c0_i32_0 = arith.constant 0 : i32
    %2 = arith.cmpi ne, %1, %c0_i32_0 : i32
    scf.if %2 {
      %cst_9 = arith.constant 0.000000e+00 : f32
      %12 = vector.broadcast %cst_9 : f32 to vector<8x128xf32>
      %c0_10 = arith.constant 0 : index
      %c0_11 = arith.constant 0 : index
      %13 = vector.load %arg7[%c0_10, %c0_11] : memref<8x128xf32, #tpu.memory_space<vmem>>, vector<8x128xf32>
      tpu.vector_store %arg7[%c0_10, %c0_11], %12 {strides = array<i32>} : memref<8x128xf32, #tpu.memory_space<vmem>>, vector<8x128xf32>,
    } else {
    }
    %c0 = arith.constant 0 : index
    %c0_1 = arith.constant 0 : index
    %3 = vector.load %arg7[%c0, %c0_1] : memref<8x128xf32, #tpu.memory_space<vmem>>, vector<8x128xf32>
    %c0_2 = arith.constant 0 : index
    %c0_3 = arith.constant 0 : index
    %4 = vector.load %arg3[%c0_2, %c0_3] : memref<8x128xbf16, #tpu.memory_space<vmem>>, vector<8x128xbf16>
    %c0_4 = arith.constant 0 : index
    %c0_5 = arith.constant 0 : index
    %5 = vector.load %arg4[%c0_4, %c0_5] : memref<128x128xbf16, #tpu.memory_space<vmem>>, vector<128x128xbf16>
    %cst = arith.constant dense<0.000000e+00> : vector<8x128xf32>
    %6 = tpu.matmul %4, %5, %cst {dimension_numbers = #tpu.dot_dimension_numbers<[1], [0], [0], [1], [0, 0, 1, 1], [], []>} : vector<8x128xbf16>, vector<128x128xbf16>, vector<8x128xf32> -> vector<8x128xf32>
    %7 = arith.addf %3, %6 : vector<8x128xf32>
    %c0_6 = arith.constant 0 : index
    %c0_7 = arith.constant 0 : index
    %8 = vector.load %arg7[%c0_6, %c0_7] : memref<8x128xf32, #tpu.memory_space<vmem>>, vector<8x128xf32>
    tpu.vector_store %arg7[%c0_6, %c0_7], %7 {strides = array<i32>} : memref<8x128xf32, #tpu.memory_space<vmem>>, vector<8x128xf32>,
    %c2_i32 = arith.constant 2 : i32
    %9 = arith.cmpi eq, %arg2, %c2_i32 : i32
    %10 = arith.extui %9 : i1 to i32
    %c0_i32_8 = arith.constant 0 : i32
    %11 = arith.cmpi ne, %10, %c0_i32_8 : i32
    scf.if %11 {
      %c0_9 = arith.constant 0 : index
      %c0_10 = arith.constant 0 : index
      %12 = vector.load %arg7[%c0_9, %c0_10] : memref<8x128xf32, #tpu.memory_space<vmem>>, vector<8x128xf32>
      %c0_11 = arith.constant 0 : index
      %c0_12 = arith.constant 0 : index
      %13 = vector.load %arg5[%c0_11, %c0_12] : memref<1x128xf32, #tpu.memory_space<vmem>>, vector<1x128xf32>
      %14 = vector.broadcast %13 : vector<1x128xf32> to vector<8x128xf32>
      %15 = arith.addf %12, %14 : vector<8x128xf32>
      %cst_13 = arith.constant 0.000000e+00 : f32
      %16 = vector.broadcast %cst_13 : f32 to vector<8x128xf32>
      %17 = arith.maximumf %15, %16 : vector<8x128xf32>
      %c0_14 = arith.constant 0 : index
      %c0_15 = arith.constant 0 : index
      %18 = vector.load %arg6[%c0_14, %c0_15] : memref<8x128xf32, #tpu.memory_space<vmem>>, vector<8x128xf32>
      tpu.vector_store %arg6[%c0_14, %c0_15], %17 {strides = array<i32>} : memref<8x128xf32, #tpu.memory_space<vmem>>, vector<8x128xf32>,
    } else {
    }
    return
  }
  func.func @transform_0(%arg0: i32, %arg1: i32, %arg2: i32) -> (i32, i32) {
    %c0_i32 = arith.constant 0 : i32
    return %arg0, %arg2 : i32, i32
  }
  func.func @transform_1(%arg0: i32, %arg1: i32, %arg2: i32) -> (i32, i32) {
    %c0_i32 = arith.constant 0 : i32
    return %arg2, %arg1 : i32, i32
  }
  func.func @transform_2(%arg0: i32, %arg1: i32, %arg2: i32) -> (i32, i32) {
    %c0_i32 = arith.constant 0 : i32
    %c0_i32_0 = arith.constant 0 : i32
    return %c0_i32, %arg1 : i32, i32
  }
  func.func @transform_3(%arg0: i32, %arg1: i32, %arg2: i32) -> (i32, i32) {
    %c0_i32 = arith.constant 0 : i32
    return %arg0, %arg1 : i32, i32
  }
}

module attributes {stable_mosaic.version = 11 : i64} {
  func.func @_pool_embed_kernel(%arg0: i32, %arg1: memref<2x1x128xf32, #tpu.memory_space<vmem>>, %arg2: memref<128x128xbf16, #tpu.memory_space<vmem>>, %arg3: memref<1x128xf32, #tpu.memory_space<vmem>>, %arg4: memref<2x128xf32, #tpu.memory_space<vmem>>) attributes {dimension_semantics = [#tpu.dimension_semantics<arbitrary>], iteration_bounds = array<i64: 1>, scalar_prefetch = 0 : i64, scratch_operands = 0 : i64, tpu.core_type = #tpu.core_type<tc>, window_params = [{pipeline_mode = #tpu.pipeline_mode<synchronous>, transform_indices = @transform_0, window_bounds = array<i64: 2, 1, 128>}, {pipeline_mode = #tpu.pipeline_mode<synchronous>, transform_indices = @transform_1, window_bounds = array<i64: 128, 128>}, {pipeline_mode = #tpu.pipeline_mode<synchronous>, transform_indices = @transform_2, window_bounds = array<i64: 1, 128>}, {pipeline_mode = #tpu.pipeline_mode<synchronous>, transform_indices = @transform_3, window_bounds = array<i64: 2, 128>}]} {
    %c0 = arith.constant 0 : index
    %c0_0 = arith.constant 0 : index
    %c0_1 = arith.constant 0 : index
    %0 = vector.load %arg1[%c0, %c0_0, %c0_1] : memref<2x1x128xf32, #tpu.memory_space<vmem>>, vector<2x1x128xf32>
    %cst = arith.constant dense<0.000000e+00> : vector<2x128xf32>
    %1 = vector.multi_reduction <add>, %0, %cst [1] : vector<2x1x128xf32> to vector<2x128xf32>
    %cst_2 = arith.constant 1.000000e+00 : f32
    %2 = vector.broadcast %cst_2 : f32 to vector<2x128xf32>
    %3 = arith.mulf %1, %2 : vector<2x128xf32>
    %4 = arith.truncf %3 : vector<2x128xf32> to vector<2x128xbf16>
    %c0_3 = arith.constant 0 : index
    %c0_4 = arith.constant 0 : index
    %5 = vector.load %arg2[%c0_3, %c0_4] : memref<128x128xbf16, #tpu.memory_space<vmem>>, vector<128x128xbf16>
    %cst_5 = arith.constant dense<0.000000e+00> : vector<2x128xf32>
    %6 = tpu.matmul %4, %5, %cst_5 {dimension_numbers = #tpu.dot_dimension_numbers<[1], [0], [0], [1], [0, 0, 1, 1], [], []>} : vector<2x128xbf16>, vector<128x128xbf16>, vector<2x128xf32> -> vector<2x128xf32>
    %c0_6 = arith.constant 0 : index
    %c0_7 = arith.constant 0 : index
    %7 = vector.load %arg3[%c0_6, %c0_7] : memref<1x128xf32, #tpu.memory_space<vmem>>, vector<1x128xf32>
    %8 = vector.broadcast %7 : vector<1x128xf32> to vector<2x128xf32>
    %9 = arith.addf %6, %8 : vector<2x128xf32>
    %c0_8 = arith.constant 0 : index
    %c0_9 = arith.constant 0 : index
    %10 = vector.load %arg4[%c0_8, %c0_9] : memref<2x128xf32, #tpu.memory_space<vmem>>, vector<2x128xf32>
    tpu.vector_store %arg4[%c0_8, %c0_9], %9 {strides = array<i32>} : memref<2x128xf32, #tpu.memory_space<vmem>>, vector<2x128xf32>,
    return
  }
  func.func @transform_0(%arg0: i32) -> (i32, i32, i32) {
    %c0_i32 = arith.constant 0 : i32
    %c0_i32_0 = arith.constant 0 : i32
    %c0_i32_1 = arith.constant 0 : i32
    %c0_i32_2 = arith.constant 0 : i32
    return %c0_i32, %c0_i32_0, %c0_i32_1 : i32, i32, i32
  }
  func.func @transform_1(%arg0: i32) -> (i32, i32) {
    %c0_i32 = arith.constant 0 : i32
    %c0_i32_0 = arith.constant 0 : i32
    %c0_i32_1 = arith.constant 0 : i32
    return %c0_i32, %c0_i32_0 : i32, i32
  }
  func.func @transform_2(%arg0: i32) -> (i32, i32) {
    %c0_i32 = arith.constant 0 : i32
    %c0_i32_0 = arith.constant 0 : i32
    %c0_i32_1 = arith.constant 0 : i32
    return %c0_i32, %c0_i32_0 : i32, i32
  }
  func.func @transform_3(%arg0: i32) -> (i32, i32) {
    %c0_i32 = arith.constant 0 : i32
    %c0_i32_0 = arith.constant 0 : i32
    %c0_i32_1 = arith.constant 0 : i32
    return %c0_i32, %c0_i32_0 : i32, i32
  }
}

</mosaic_0001>

<llo_original>
// kernel: encoder_cnn_forward.56
$region0: #{encoder_cnn_forward.56}
  #allocation0 [shape = 'u32[]', space=smem, size = 0x4, offset = 0x4, fixed_abs, tag = 'smem constant byte address 0x4 - core index']
  #allocation1 [shape = 'u32[144,128]{1,0:T(1,128)}', space=vmem, size = 0x12000, scoped, tag = 'internal scratch']
  %s0 = inlined_call_operand.vmem [shape: f32[128,9,4], index: 0, kind: input, shape index: {}]
  %s1 = inlined_call_operand.vmem [shape: f32[128,4], index: 1, kind: output, shape index: {}]
  %s2 = sld [smem:[#allocation0]]
  $region14: #{encoder_cnn_forward.56} parent=0
    _
  %s4 = ssub.s32 1, %s2
  %s5 = scalar_select 0, %s4, %s2
  // Predicated region
  $region2: #{encoder_cnn_forward.56} parent=0 // pred_check
    _
  $region3: #{encoder_cnn_forward.56} parent=0 // pred_check_branch
    %7 = sbr.rel (0) target = $region5
  $region4: #{encoder_cnn_forward.56} parent=0 // pred_region
    _
  $region5: #{encoder_cnn_forward.56} parent=0 // pred_fallthru
    _
  %v8 = vld [vmem:[%s0] sm:$0xff]
  %v9 = vld [vmem:[%s0 + $0x8] sm:$0x1]
  %v10 = vld [vmem:[%s0 + $0x10] sm:$0xff]
  %v11 = vld [vmem:[%s0 + $0x18] sm:$0x1]
  %v12 = vld [vmem:[%s0 + $0x20] sm:$0xff]
  %v13 = vld [vmem:[%s0 + $0x28] sm:$0x1]
  %v14 = vld [vmem:[%s0 + $0x30] sm:$0xff]
  %v15 = vld [vmem:[%s0 + $0x38] sm:$0x1]
  %v16 = vld [vmem:[%s0 + $0x40] sm:$0xff]
  %v17 = vld [vmem:[%s0 + $0x48] sm:$0x1]
  %v18 = vld [vmem:[%s0 + $0x50] sm:$0xff]
  %v19 = vld [vmem:[%s0 + $0x58] sm:$0x1]
  %v20 = vld [vmem:[%s0 + $0x60] sm:$0xff]
  %v21 = vld [vmem:[%s0 + $0x68] sm:$0x1]
  %v22 = vld [vmem:[%s0 + $0x70] sm:$0xff]
  %v23 = vld [vmem:[%s0 + $0x78] sm:$0x1]
  %v24 = vld [vmem:[%s0 + $0x80] sm:$0xff]
  %v25 = vld [vmem:[%s0 + $0x88] sm:$0x1]
  %v26 = vld [vmem:[%s0 + $0x90] sm:$0xff]
  %v27 = vld [vmem:[%s0 + $0x98] sm:$0x1]
  %v28 = vld [vmem:[%s0 + $0xa0] sm:$0xff]
  %v29 = vld [vmem:[%s0 + $0xa8] sm:$0x1]
  %v30 = vld [vmem:[%s0 + $0xb0] sm:$0xff]
  %v31 = vld [vmem:[%s0 + $0xb8] sm:$0x1]
  %v32 = vld [vmem:[%s0 + $0xc0] sm:$0xff]
  %v33 = vld [vmem:[%s0 + $0xc8] sm:$0x1]
  %v34 = vld [vmem:[%s0 + $0xd0] sm:$0xff]
  %v35 = vld [vmem:[%s0 + $0xd8] sm:$0x1]
  %v36 = vld [vmem:[%s0 + $0xe0] sm:$0xff]
  %v37 = vld [vmem:[%s0 + $0xe8] sm:$0x1]
  %v38 = vld [vmem:[%s0 + $0xf0] sm:$0xff]
  %v39 = vld [vmem:[%s0 + $0xf8] sm:$0x1]
  %v40 = vld [vmem:[%s0 + $0x100] sm:$0xff]
  %v41 = vld [vmem:[%s0 + $0x108] sm:$0x1]
  %v42 = vld [vmem:[%s0 + $0x110] sm:$0xff]
  %v43 = vld [vmem:[%s0 + $0x118] sm:$0x1]
  %v44 = vld [vmem:[%s0 + $0x120] sm:$0xff]
  %v45 = vld [vmem:[%s0 + $0x128] sm:$0x1]
  %v46 = vld [vmem:[%s0 + $0x130] sm:$0xff]
  %v47 = vld [vmem:[%s0 + $0x138] sm:$0x1]
  %v48 = vld [vmem:[%s0 + $0x140] sm:$0xff]
  %v49 = vld [vmem:[%s0 + $0x148] sm:$0x1]
  %v50 = vld [vmem:[%s0 + $0x150] sm:$0xff]
  %v51 = vld [vmem:[%s0 + $0x158] sm:$0x1]
  %v52 = vld [vmem:[%s0 + $0x160] sm:$0xff]
  %v53 = vld [vmem:[%s0 + $0x168] sm:$0x1]
  %v54 = vld [vmem:[%s0 + $0x170] sm:$0xff]
  %v55 = vld [vmem:[%s0 + $0x178] sm:$0x1]
  %v56 = vld [vmem:[%s0 + $0x180] sm:$0xff]
  %v57 = vld [vmem:[%s0 + $0x188] sm:$0x1]
  %v58 = vld [vmem:[%s0 + $0x190] sm:$0xff]
  %v59 = vld [vmem:[%s0 + $0x198] sm:$0x1]
  %v60 = vld [vmem:[%s0 + $0x1a0] sm:$0xff]
  %v61 = vld [vmem:[%s0 + $0x1a8] sm:$0x1]
  %v62 = vld [vmem:[%s0 + $0x1b0] sm:$0xff]
  %v63 = vld [vmem:[%s0 + $0x1b8] sm:$0x1]
  %v64 = vld [vmem:[%s0 + $0x1c0] sm:$0xff]
  %v65 = vld [vmem:[%s0 + $0x1c8] sm:$0x1]
  %v66 = vld [vmem:[%s0 + $0x1d0] sm:$0xff]
  %v67 = vld [vmem:[%s0 + $0x1d8] sm:$0x1]
  %v68 = vld [vmem:[%s0 + $0x1e0] sm:$0xff]
  %v69 = vld [vmem:[%s0 + $0x1e8] sm:$0x1]
  %v70 = vld [vmem:[%s0 + $0x1f0] sm:$0xff]
  %v71 = vld [vmem:[%s0 + $0x1f8] sm:$0x1]
  %v72 = vld [vmem:[%s0 + $0x200] sm:$0xff]
  %v73 = vld [vmem:[%s0 + $0x208] sm:$0x1]
  %v74 = vld [vmem:[%s0 + $0x210] sm:$0xff]
  %v75 = vld [vmem:[%s0 + $0x218] sm:$0x1]
  %v76 = vld [vmem:[%s0 + $0x220] sm:$0xff]
  %v77 = vld [vmem:[%s0 + $0x228] sm:$0x1]
  %v78 = vld [vmem:[%s0 + $0x230] sm:$0xff]
  %v79 = vld [vmem:[%s0 + $0x238] sm:$0x1]
  %v80 = vld [vmem:[%s0 + $0x240] sm:$0xff]
  %v81 = vld [vmem:[%s0 + $0x248] sm:$0x1]
  %v82 = vld [vmem:[%s0 + $0x250] sm:$0xff]
  %v83 = vld [vmem:[%s0 + $0x258] sm:$0x1]
  %v84 = vld [vmem:[%s0 + $0x260] sm:$0xff]
  %v85 = vld [vmem:[%s0 + $0x268] sm:$0x1]
  %v86 = vld [vmem:[%s0 + $0x270] sm:$0xff]
  %v87 = vld [vmem:[%s0 + $0x278] sm:$0x1]
  %v88 = vld [vmem:[%s0 + $0x280] sm:$0xff]
  %v89 = vld [vmem:[%s0 + $0x288] sm:$0x1]
  %v90 = vld [vmem:[%s0 + $0x290] sm:$0xff]
  %v91 = vld [vmem:[%s0 + $0x298] sm:$0x1]
  %v92 = vld [vmem:[%s0 + $0x2a0] sm:$0xff]
  %v93 = vld [vmem:[%s0 + $0x2a8] sm:$0x1]
  %v94 = vld [vmem:[%s0 + $0x2b0] sm:$0xff]
  %v95 = vld [vmem:[%s0 + $0x2b8] sm:$0x1]
  %v96 = vld [vmem:[%s0 + $0x2c0] sm:$0xff]
  %v97 = vld [vmem:[%s0 + $0x2c8] sm:$0x1]
  %v98 = vld [vmem:[%s0 + $0x2d0] sm:$0xff]
  %v99 = vld [vmem:[%s0 + $0x2d8] sm:$0x1]
  %v100 = vld [vmem:[%s0 + $0x2e0] sm:$0xff]
  %v101 = vld [vmem:[%s0 + $0x2e8] sm:$0x1]
  %v102 = vld [vmem:[%s0 + $0x2f0] sm:$0xff]
  %v103 = vld [vmem:[%s0 + $0x2f8] sm:$0x1]
  %v104 = vld [vmem:[%s0 + $0x300] sm:$0xff]
  %v105 = vld [vmem:[%s0 + $0x308] sm:$0x1]
  %v106 = vld [vmem:[%s0 + $0x310] sm:$0xff]
  %v107 = vld [vmem:[%s0 + $0x318] sm:$0x1]
  %v108 = vld [vmem:[%s0 + $0x320] sm:$0xff]
  %v109 = vld [vmem:[%s0 + $0x328] sm:$0x1]
  %v110 = vld [vmem:[%s0 + $0x330] sm:$0xff]
  %v111 = vld [vmem:[%s0 + $0x338] sm:$0x1]
  %v112 = vld [vmem:[%s0 + $0x340] sm:$0xff]
  %v113 = vld [vmem:[%s0 + $0x348] sm:$0x1]
  %v114 = vld [vmem:[%s0 + $0x350] sm:$0xff]
  %v115 = vld [vmem:[%s0 + $0x358] sm:$0x1]
  %v116 = vld [vmem:[%s0 + $0x360] sm:$0xff]
  %v117 = vld [vmem:[%s0 + $0x368] sm:$0x1]
  %v118 = vld [vmem:[%s0 + $0x370] sm:$0xff]
  %v119 = vld [vmem:[%s0 + $0x378] sm:$0x1]
  %v120 = vld [vmem:[%s0 + $0x380] sm:$0xff]
  %v121 = vld [vmem:[%s0 + $0x388] sm:$0x1]
  %v122 = vld [vmem:[%s0 + $0x390] sm:$0xff]
  %v123 = vld [vmem:[%s0 + $0x398] sm:$0x1]
  %v124 = vld [vmem:[%s0 + $0x3a0] sm:$0xff]
  %v125 = vld [vmem:[%s0 + $0x3a8] sm:$0x1]
  %v126 = vld [vmem:[%s0 + $0x3b0] sm:$0xff]
  %v127 = vld [vmem:[%s0 + $0x3b8] sm:$0x1]
  %v128 = vld [vmem:[%s0 + $0x3c0] sm:$0xff]
  %v129 = vld [vmem:[%s0 + $0x3c8] sm:$0x1]
  %v130 = vld [vmem:[%s0 + $0x3d0] sm:$0xff]
  %v131 = vld [vmem:[%s0 + $0x3d8] sm:$0x1]
  %v132 = vld [vmem:[%s0 + $0x3e0] sm:$0xff]
  %v133 = vld [vmem:[%s0 + $0x3e8] sm:$0x1]
  %v134 = vld [vmem:[%s0 + $0x3f0] sm:$0xff]
  %v135 = vld [vmem:[%s0 + $0x3f8] sm:$0x1]
  %v136 = vld [vmem:[%s0 + $0x400] sm:$0xff]
  %v137 = vld [vmem:[%s0 + $0x408] sm:$0x1]
  %v138 = vld [vmem:[%s0 + $0x410] sm:$0xff]
  %v139 = vld [vmem:[%s0 + $0x418] sm:$0x1]
  %v140 = vld [vmem:[%s0 + $0x420] sm:$0xff]
  %v141 = vld [vmem:[%s0 + $0x428] sm:$0x1]
  %v142 = vld [vmem:[%s0 + $0x430] sm:$0xff]
  %v143 = vld [vmem:[%s0 + $0x438] sm:$0x1]
  %v144 = vld [vmem:[%s0 + $0x440] sm:$0xff]
  %v145 = vld [vmem:[%s0 + $0x448] sm:$0x1]
  %v146 = vld [vmem:[%s0 + $0x450] sm:$0xff]
  %v147 = vld [vmem:[%s0 + $0x458] sm:$0x1]
  %v148 = vld [vmem:[%s0 + $0x460] sm:$0xff]
  %v149 = vld [vmem:[%s0 + $0x468] sm:$0x1]
  %v150 = vld [vmem:[%s0 + $0x470] sm:$0xff]
  %v151 = vld [vmem:[%s0 + $0x478] sm:$0x1]
  %v152 = vld [vmem:[%s0 + $0x480] sm:$0xff]
  %v153 = vld [vmem:[%s0 + $0x488] sm:$0x1]
  %v154 = vld [vmem:[%s0 + $0x490] sm:$0xff]
  %v155 = vld [vmem:[%s0 + $0x498] sm:$0x1]
  %v156 = vld [vmem:[%s0 + $0x4a0] sm:$0xff]
  %v157 = vld [vmem:[%s0 + $0x4a8] sm:$0x1]
  %v158 = vld [vmem:[%s0 + $0x4b0] sm:$0xff]
  %v159 = vld [vmem:[%s0 + $0x4b8] sm:$0x1]
  %v160 = vld [vmem:[%s0 + $0x4c0] sm:$0xff]
  %v161 = vld [vmem:[%s0 + $0x4c8] sm:$0x1]
  %v162 = vld [vmem:[%s0 + $0x4d0] sm:$0xff]
  %v163 = vld [vmem:[%s0 + $0x4d8] sm:$0x1]
  %v164 = vld [vmem:[%s0 + $0x4e0] sm:$0xff]
  %v165 = vld [vmem:[%s0 + $0x4e8] sm:$0x1]
  %v166 = vld [vmem:[%s0 + $0x4f0] sm:$0xff]
  %v167 = vld [vmem:[%s0 + $0x4f8] sm:$0x1]
  %v168 = vld [vmem:[%s0 + $0x500] sm:$0xff]
  %v169 = vld [vmem:[%s0 + $0x508] sm:$0x1]
  %v170 = vld [vmem:[%s0 + $0x510] sm:$0xff]
  %v171 = vld [vmem:[%s0 + $0x518] sm:$0x1]
  %v172 = vld [vmem:[%s0 + $0x520] sm:$0xff]
  %v173 = vld [vmem:[%s0 + $0x528] sm:$0x1]
  %v174 = vld [vmem:[%s0 + $0x530] sm:$0xff]
  %v175 = vld [vmem:[%s0 + $0x538] sm:$0x1]
  %v176 = vld [vmem:[%s0 + $0x540] sm:$0xff]
  %v177 = vld [vmem:[%s0 + $0x548] sm:$0x1]
  %v178 = vld [vmem:[%s0 + $0x550] sm:$0xff]
  %v179 = vld [vmem:[%s0 + $0x558] sm:$0x1]
  %v180 = vld [vmem:[%s0 + $0x560] sm:$0xff]
  %v181 = vld [vmem:[%s0 + $0x568] sm:$0x1]
  %v182 = vld [vmem:[%s0 + $0x570] sm:$0xff]
  %v183 = vld [vmem:[%s0 + $0x578] sm:$0x1]
  %v184 = vld [vmem:[%s0 + $0x580] sm:$0xff]
  %v185 = vld [vmem:[%s0 + $0x588] sm:$0x1]
  %v186 = vld [vmem:[%s0 + $0x590] sm:$0xff]
  %v187 = vld [vmem:[%s0 + $0x598] sm:$0x1]
  %v188 = vld [vmem:[%s0 + $0x5a0] sm:$0xff]
  %v189 = vld [vmem:[%s0 + $0x5a8] sm:$0x1]
  %v190 = vld [vmem:[%s0 + $0x5b0] sm:$0xff]
  %v191 = vld [vmem:[%s0 + $0x5b8] sm:$0x1]
  %v192 = vld [vmem:[%s0 + $0x5c0] sm:$0xff]
  %v193 = vld [vmem:[%s0 + $0x5c8] sm:$0x1]
  %v194 = vld [vmem:[%s0 + $0x5d0] sm:$0xff]
  %v195 = vld [vmem:[%s0 + $0x5d8] sm:$0x1]
  %v196 = vld [vmem:[%s0 + $0x5e0] sm:$0xff]
  %v197 = vld [vmem:[%s0 + $0x5e8] sm:$0x1]
  %v198 = vld [vmem:[%s0 + $0x5f0] sm:$0xff]
  %v199 = vld [vmem:[%s0 + $0x5f8] sm:$0x1]
  %v200 = vld [vmem:[%s0 + $0x600] sm:$0xff]
  %v201 = vld [vmem:[%s0 + $0x608] sm:$0x1]
  %v202 = vld [vmem:[%s0 + $0x610] sm:$0xff]
  %v203 = vld [vmem:[%s0 + $0x618] sm:$0x1]
  %v204 = vld [vmem:[%s0 + $0x620] sm:$0xff]
  %v205 = vld [vmem:[%s0 + $0x628] sm:$0x1]
  %v206 = vld [vmem:[%s0 + $0x630] sm:$0xff]
  %v207 = vld [vmem:[%s0 + $0x638] sm:$0x1]
  %v208 = vld [vmem:[%s0 + $0x640] sm:$0xff]
  %v209 = vld [vmem:[%s0 + $0x648] sm:$0x1]
  %v210 = vld [vmem:[%s0 + $0x650] sm:$0xff]
  %v211 = vld [vmem:[%s0 + $0x658] sm:$0x1]
  %v212 = vld [vmem:[%s0 + $0x660] sm:$0xff]
  %v213 = vld [vmem:[%s0 + $0x668] sm:$0x1]
  %v214 = vld [vmem:[%s0 + $0x670] sm:$0xff]
  %v215 = vld [vmem:[%s0 + $0x678] sm:$0x1]
  %v216 = vld [vmem:[%s0 + $0x680] sm:$0xff]
  %v217 = vld [vmem:[%s0 + $0x688] sm:$0x1]
  %v218 = vld [vmem:[%s0 + $0x690] sm:$0xff]
  %v219 = vld [vmem:[%s0 + $0x698] sm:$0x1]
  %v220 = vld [vmem:[%s0 + $0x6a0] sm:$0xff]
  %v221 = vld [vmem:[%s0 + $0x6a8] sm:$0x1]
  %v222 = vld [vmem:[%s0 + $0x6b0] sm:$0xff]
  %v223 = vld [vmem:[%s0 + $0x6b8] sm:$0x1]
  %v224 = vld [vmem:[%s0 + $0x6c0] sm:$0xff]
  %v225 = vld [vmem:[%s0 + $0x6c8] sm:$0x1]
  %v226 = vld [vmem:[%s0 + $0x6d0] sm:$0xff]
  %v227 = vld [vmem:[%s0 + $0x6d8] sm:$0x1]
  %v228 = vld [vmem:[%s0 + $0x6e0] sm:$0xff]
  %v229 = vld [vmem:[%s0 + $0x6e8] sm:$0x1]
  %v230 = vld [vmem:[%s0 + $0x6f0] sm:$0xff]
  %v231 = vld [vmem:[%s0 + $0x6f8] sm:$0x1]
  %v232 = vld [vmem:[%s0 + $0x700] sm:$0xff]
  %v233 = vld [vmem:[%s0 + $0x708] sm:$0x1]
  %v234 = vld [vmem:[%s0 + $0x710] sm:$0xff]
  %v235 = vld [vmem:[%s0 + $0x718] sm:$0x1]
  %v236 = vld [vmem:[%s0 + $0x720] sm:$0xff]
  %v237 = vld [vmem:[%s0 + $0x728] sm:$0x1]
  %v238 = vld [vmem:[%s0 + $0x730] sm:$0xff]
  %v239 = vld [vmem:[%s0 + $0x738] sm:$0x1]
  %v240 = vld [vmem:[%s0 + $0x740] sm:$0xff]
  %v241 = vld [vmem:[%s0 + $0x748] sm:$0x1]
  %v242 = vld [vmem:[%s0 + $0x750] sm:$0xff]
  %v243 = vld [vmem:[%s0 + $0x758] sm:$0x1]
  %v244 = vld [vmem:[%s0 + $0x760] sm:$0xff]
  %v245 = vld [vmem:[%s0 + $0x768] sm:$0x1]
  %v246 = vld [vmem:[%s0 + $0x770] sm:$0xff]
  %v247 = vld [vmem:[%s0 + $0x778] sm:$0x1]
  %v248 = vld [vmem:[%s0 + $0x780] sm:$0xff]
  %v249 = vld [vmem:[%s0 + $0x788] sm:$0x1]
  %v250 = vld [vmem:[%s0 + $0x790] sm:$0xff]
  %v251 = vld [vmem:[%s0 + $0x798] sm:$0x1]
  %v252 = vld [vmem:[%s0 + $0x7a0] sm:$0xff]
  %v253 = vld [vmem:[%s0 + $0x7a8] sm:$0x1]
  %v254 = vld [vmem:[%s0 + $0x7b0] sm:$0xff]
  %v255 = vld [vmem:[%s0 + $0x7b8] sm:$0x1]
  %v256 = vld [vmem:[%s0 + $0x7c0] sm:$0xff]
  %v257 = vld [vmem:[%s0 + $0x7c8] sm:$0x1]
  %v258 = vld [vmem:[%s0 + $0x7d0] sm:$0xff]
  %v259 = vld [vmem:[%s0 + $0x7d8] sm:$0x1]
  %v260 = vld [vmem:[%s0 + $0x7e0] sm:$0xff]
  %v261 = vld [vmem:[%s0 + $0x7e8] sm:$0x1]
  %v262 = vld [vmem:[%s0 + $0x7f0] sm:$0xff]
  %v263 = vld [vmem:[%s0 + $0x7f8] sm:$0x1]
  %vm264 = vcmask 31744
  %v265 = vsel %vm264, %v8, -inf
  %vm266 = vcmask 24576
  %v267 = vsel %vm266, %v9, -inf
  %v268 = vmax.f32 %v265, %v267
  %v269 = vrot.slane %v268, 4
  %v270 = vmax.f32 %v268, %v269
  %v271 = vrot.slane %v270, 2
  %v272 = vmax.f32 %v270, %v271
  %v273 = vrot.slane %v272, 1
  %v274 = vmax.f32 %v272, %v273
  %v275 = vsel %vm264, %v10, -inf
  %v276 = vsel %vm266, %v11, -inf
  %v277 = vmax.f32 %v275, %v276
  %v278 = vrot.slane %v277, 4
  %v279 = vmax.f32 %v277, %v278
  %v280 = vrot.slane %v279, 2
  %v281 = vmax.f32 %v279, %v280
  %v282 = vrot.slane %v281, 1
  %v283 = vmax.f32 %v281, %v282
  %v284 = vsel %vm264, %v12, -inf
  %v285 = vsel %vm266, %v13, -inf
  %v286 = vmax.f32 %v284, %v285
  %v287 = vrot.slane %v286, 4
  %v288 = vmax.f32 %v286, %v287
  %v289 = vrot.slane %v288, 2
  %v290 = vmax.f32 %v288, %v289
  %v291 = vrot.slane %v290, 1
  %v292 = vmax.f32 %v290, %v291
  %v293 = vsel %vm264, %v14, -inf
  %v294 = vsel %vm266, %v15, -inf
  %v295 = vmax.f32 %v293, %v294
  %v296 = vrot.slane %v295, 4
  %v297 = vmax.f32 %v295, %v296
  %v298 = vrot.slane %v297, 2
  %v299 = vmax.f32 %v297, %v298
  %v300 = vrot.slane %v299, 1
  %v301 = vmax.f32 %v299, %v300
  %v302 = vsel %vm264, %v16, -inf
  %v303 = vsel %vm266, %v17, -inf
  %v304 = vmax.f32 %v302, %v303
  %v305 = vrot.slane %v304, 4
  %v306 = vmax.f32 %v304, %v305
  %v307 = vrot.slane %v306, 2
  %v308 = vmax.f32 %v306, %v307
  %v309 = vrot.slane %v308, 1
  %v310 = vmax.f32 %v308, %v309
  %v311 = vsel %vm264, %v18, -inf
  %v312 = vsel %vm266, %v19, -inf
  %v313 = vmax.f32 %v311, %v312
  %v314 = vrot.slane %v313, 4
  %v315 = vmax.f32 %v313, %v314
  %v316 = vrot.slane %v315, 2
  %v317 = vmax.f32 %v315, %v316
  %v318 = vrot.slane %v317, 1
  %v319 = vmax.f32 %v317, %v318
  %v320 = vsel %vm264, %v20, -inf
  %v321 = vsel %vm266, %v21, -inf
  %v322 = vmax.f32 %v320, %v321
  %v323 = vrot.slane %v322, 4
  %v324 = vmax.f32 %v322, %v323
  %v325 = vrot.slane %v324, 2
  %v326 = vmax.f32 %v324, %v325
  %v327 = vrot.slane %v326, 1
  %v328 = vmax.f32 %v326, %v327
  %v329 = vsel %vm264, %v22, -inf
  %v330 = vsel %vm266, %v23, -inf
  %v331 = vmax.f32 %v329, %v330
  %v332 = vrot.slane %v331, 4
  %v333 = vmax.f32 %v331, %v332
  %v334 = vrot.slane %v333, 2
  %v335 = vmax.f32 %v333, %v334
  %v336 = vrot.slane %v335, 1
  %v337 = vmax.f32 %v335, %v336
  %v338 = vsel %vm264, %v24, -inf
  %v339 = vsel %vm266, %v25, -inf
  %v340 = vmax.f32 %v338, %v339
  %v341 = vrot.slane %v340, 4
  %v342 = vmax.f32 %v340, %v341
  %v343 = vrot.slane %v342, 2
  %v344 = vmax.f32 %v342, %v343
  %v345 = vrot.slane %v344, 1
  %v346 = vmax.f32 %v344, %v345
  %v347 = vsel %vm264, %v26, -inf
  %v348 = vsel %vm266, %v27, -inf
  %v349 = vmax.f32 %v347, %v348
  %v350 = vrot.slane %v349, 4
  %v351 = vmax.f32 %v349, %v350
  %v352 = vrot.slane %v351, 2
  %v353 = vmax.f32 %v351, %v352
  %v354 = vrot.slane %v353, 1
  %v355 = vmax.f32 %v353, %v354
  %v356 = vsel %vm264, %v28, -inf
  %v357 = vsel %vm266, %v29, -inf
  %v358 = vmax.f32 %v356, %v357
  %v359 = vrot.slane %v358, 4
  %v360 = vmax.f32 %v358, %v359
  %v361 = vrot.slane %v360, 2
  %v362 = vmax.f32 %v360, %v361
  %v363 = vrot.slane %v362, 1
  %v364 = vmax.f32 %v362, %v363
  %v365 = vsel %vm264, %v30, -inf
  %v366 = vsel %vm266, %v31, -inf
  %v367 = vmax.f32 %v365, %v366
  %v368 = vrot.slane %v367, 4
  %v369 = vmax.f32 %v367, %v368
  %v370 = vrot.slane %v369, 2
  %v371 = vmax.f32 %v369, %v370
  %v372 = vrot.slane %v371, 1
  %v373 = vmax.f32 %v371, %v372
  %v374 = vsel %vm264, %v32, -inf
  %v375 = vsel %vm266, %v33, -inf
  %v376 = vmax.f32 %v374, %v375
  %v377 = vrot.slane %v376, 4
  %v378 = vmax.f32 %v376, %v377
  %v379 = vrot.slane %v378, 2
  %v380 = vmax.f32 %v378, %v379
  %v381 = vrot.slane %v380, 1
  %v382 = vmax.f32 %v380, %v381
  %v383 = vsel %vm264, %v34, -inf
  %v384 = vsel %vm266, %v35, -inf
  %v385 = vmax.f32 %v383, %v384
  %v386 = vrot.slane %v385, 4
  %v387 = vmax.f32 %v385, %v386
  %v388 = vrot.slane %v387, 2
  %v389 = vmax.f32 %v387, %v388
  %v390 = vrot.slane %v389, 1
  %v391 = vmax.f32 %v389, %v390
  %v392 = vsel %vm264, %v36, -inf
  %v393 = vsel %vm266, %v37, -inf
  %v394 = vmax.f32 %v392, %v393
  %v395 = vrot.slane %v394, 4
  %v396 = vmax.f32 %v394, %v395
  %v397 = vrot.slane %v396, 2
  %v398 = vmax.f32 %v396, %v397
  %v399 = vrot.slane %v398, 1
  %v400 = vmax.f32 %v398, %v399
  %v401 = vsel %vm264, %v38, -inf
  %v402 = vsel %vm266, %v39, -inf
  %v403 = vmax.f32 %v401, %v402
  %v404 = vrot.slane %v403, 4
  %v405 = vmax.f32 %v403, %v404
  %v406 = vrot.slane %v405, 2
  %v407 = vmax.f32 %v405, %v406
  %v408 = vrot.slane %v407, 1
  %v409 = vmax.f32 %v407, %v408
  %v410 = vsel %vm264, %v40, -inf
  %v411 = vsel %vm266, %v41, -inf
  %v412 = vmax.f32 %v410, %v411
  %v413 = vrot.slane %v412, 4
  %v414 = vmax.f32 %v412, %v413
  %v415 = vrot.slane %v414, 2
  %v416 = vmax.f32 %v414, %v415
  %v417 = vrot.slane %v416, 1
  %v418 = vmax.f32 %v416, %v417
  %v419 = vsel %vm264, %v42, -inf
  %v420 = vsel %vm266, %v43, -inf
  %v421 = vmax.f32 %v419, %v420
  %v422 = vrot.slane %v421, 4
  %v423 = vmax.f32 %v421, %v422
  %v424 = vrot.slane %v423, 2
  %v425 = vmax.f32 %v423, %v424
  %v426 = vrot.slane %v425, 1
  %v427 = vmax.f32 %v425, %v426
  %v428 = vsel %vm264, %v44, -inf
  %v429 = vsel %vm266, %v45, -inf
  %v430 = vmax.f32 %v428, %v429
  %v431 = vrot.slane %v430, 4
  %v432 = vmax.f32 %v430, %v431
  %v433 = vrot.slane %v432, 2
  %v434 = vmax.f32 %v432, %v433
  %v435 = vrot.slane %v434, 1
  %v436 = vmax.f32 %v434, %v435
  %v437 = vsel %vm264, %v46, -inf
  %v438 = vsel %vm266, %v47, -inf
  %v439 = vmax.f32 %v437, %v438
  %v440 = vrot.slane %v439, 4
  %v441 = vmax.f32 %v439, %v440
  %v442 = vrot.slane %v441, 2
  %v443 = vmax.f32 %v441, %v442
  %v444 = vrot.slane %v443, 1
  %v445 = vmax.f32 %v443, %v444
  %v446 = vsel %vm264, %v48, -inf
  %v447 = vsel %vm266, %v49, -inf
  %v448 = vmax.f32 %v446, %v447
  %v449 = vrot.slane %v448, 4
  %v450 = vmax.f32 %v448, %v449
  %v451 = vrot.slane %v450, 2
  %v452 = vmax.f32 %v450, %v451
  %v453 = vrot.slane %v452, 1
  %v454 = vmax.f32 %v452, %v453
  %v455 = vsel %vm264, %v50, -inf
  %v456 = vsel %vm266, %v51, -inf
  %v457 = vmax.f32 %v455, %v456
  %v458 = vrot.slane %v457, 4
  %v459 = vmax.f32 %v457, %v458
  %v460 = vrot.slane %v459, 2
  %v461 = vmax.f32 %v459, %v460
  %v462 = vrot.slane %v461, 1
  %v463 = vmax.f32 %v461, %v462
  %v464 = vsel %vm264, %v52, -inf
  %v465 = vsel %vm266, %v53, -inf
  %v466 = vmax.f32 %v464, %v465
  %v467 = vrot.slane %v466, 4
  %v468 = vmax.f32 %v466, %v467
  %v469 = vrot.slane %v468, 2
  %v470 = vmax.f32 %v468, %v469
  %v471 = vrot.slane %v470, 1
  %v472 = vmax.f32 %v470, %v471
  %v473 = vsel %vm264, %v54, -inf
  %v474 = vsel %vm266, %v55, -inf
  %v475 = vmax.f32 %v473, %v474
  %v476 = vrot.slane %v475, 4
  %v477 = vmax.f32 %v475, %v476
  %v478 = vrot.slane %v477, 2
  %v479 = vmax.f32 %v477, %v478
  %v480 = vrot.slane %v479, 1
  %v481 = vmax.f32 %v479, %v480
  %v482 = vsel %vm264, %v56, -inf
  %v483 = vsel %vm266, %v57, -inf
  %v484 = vmax.f32 %v482, %v483
  %v485 = vrot.slane %v484, 4
  %v486 = vmax.f32 %v484, %v485
  %v487 = vrot.slane %v486, 2
  %v488 = vmax.f32 %v486, %v487
  %v489 = vrot.slane %v488, 1
  %v490 = vmax.f32 %v488, %v489
  %v491 = vsel %vm264, %v58, -inf
  %v492 = vsel %vm266, %v59, -inf
  %v493 = vmax.f32 %v491, %v492
  %v494 = vrot.slane %v493, 4
  %v495 = vmax.f32 %v493, %v494
  %v496 = vrot.slane %v495, 2
  %v497 = vmax.f32 %v495, %v496
  %v498 = vrot.slane %v497, 1
  %v499 = vmax.f32 %v497, %v498
  %v500 = vsel %vm264, %v60, -inf
  %v501 = vsel %vm266, %v61, -inf
  %v502 = vmax.f32 %v500, %v501
  %v503 = vrot.slane %v502, 4
  %v504 = vmax.f32 %v502, %v503
  %v505 = vrot.slane %v504, 2
  %v506 = vmax.f32 %v504, %v505
  %v507 = vrot.slane %v506, 1
  %v508 = vmax.f32 %v506, %v507
  %v509 = vsel %vm264, %v62, -inf
  %v510 = vsel %vm266, %v63, -inf
  %v511 = vmax.f32 %v509, %v510
  %v512 = vrot.slane %v511, 4
  %v513 = vmax.f32 %v511, %v512
  %v514 = vrot.slane %v513, 2
  %v515 = vmax.f32 %v513, %v514
  %v516 = vrot.slane %v515, 1
  %v517 = vmax.f32 %v515, %v516
  %v518 = vsel %vm264, %v64, -inf
  %v519 = vsel %vm266, %v65, -inf
  %v520 = vmax.f32 %v518, %v519
  %v521 = vrot.slane %v520, 4
  %v522 = vmax.f32 %v520, %v521
  %v523 = vrot.slane %v522, 2
  %v524 = vmax.f32 %v522, %v523
  %v525 = vrot.slane %v524, 1
  %v526 = vmax.f32 %v524, %v525
  %v527 = vsel %vm264, %v66, -inf
  %v528 = vsel %vm266, %v67, -inf
  %v529 = vmax.f32 %v527, %v528
  %v530 = vrot.slane %v529, 4
  %v531 = vmax.f32 %v529, %v530
  %v532 = vrot.slane %v531, 2
  %v533 = vmax.f32 %v531, %v532
  %v534 = vrot.slane %v533, 1
  %v535 = vmax.f32 %v533, %v534
  %v536 = vsel %vm264, %v68, -inf
  %v537 = vsel %vm266, %v69, -inf
  %v538 = vmax.f32 %v536, %v537
  %v539 = vrot.slane %v538, 4
  %v540 = vmax.f32 %v538, %v539
  %v541 = vrot.slane %v540, 2
  %v542 = vmax.f32 %v540, %v541
  %v543 = vrot.slane %v542, 1
  %v544 = vmax.f32 %v542, %v543
  %v545 = vsel %vm264, %v70, -inf
  %v546 = vsel %vm266, %v71, -inf
  %v547 = vmax.f32 %v545, %v546
  %v548 = vrot.slane %v547, 4
  %v549 = vmax.f32 %v547, %v548
  %v550 = vrot.slane %v549, 2
  %v551 = vmax.f32 %v549, %v550
  %v552 = vrot.slane %v551, 1
  %v553 = vmax.f32 %v551, %v552
  %v554 = vsel %vm264, %v72, -inf
  %v555 = vsel %vm266, %v73, -inf
  %v556 = vmax.f32 %v554, %v555
  %v557 = vrot.slane %v556, 4
  %v558 = vmax.f32 %v556, %v557
  %v559 = vrot.slane %v558, 2
  %v560 = vmax.f32 %v558, %v559
  %v561 = vrot.slane %v560, 1
  %v562 = vmax.f32 %v560, %v561
  %v563 = vsel %vm264, %v74, -inf
  %v564 = vsel %vm266, %v75, -inf
  %v565 = vmax.f32 %v563, %v564
  %v566 = vrot.slane %v565, 4
  %v567 = vmax.f32 %v565, %v566
  %v568 = vrot.slane %v567, 2
  %v569 = vmax.f32 %v567, %v568
  %v570 = vrot.slane %v569, 1
  %v571 = vmax.f32 %v569, %v570
  %v572 = vsel %vm264, %v76, -inf
  %v573 = vsel %vm266, %v77, -inf
  %v574 = vmax.f32 %v572, %v573
  %v575 = vrot.slane %v574, 4
  %v576 = vmax.f32 %v574, %v575
  %v577 = vrot.slane %v576, 2
  %v578 = vmax.f32 %v576, %v577
  %v579 = vrot.slane %v578, 1
  %v580 = vmax.f32 %v578, %v579
  %v581 = vsel %vm264, %v78, -inf
  %v582 = vsel %vm266, %v79, -inf
  %v583 = vmax.f32 %v581, %v582
  %v584 = vrot.slane %v583, 4
  %v585 = vmax.f32 %v583, %v584
  %v586 = vrot.slane %v585, 2
  %v587 = vmax.f32 %v585, %v586
  %v588 = vrot.slane %v587, 1
  %v589 = vmax.f32 %v587, %v588
  %v590 = vsel %vm264, %v80, -inf
  %v591 = vsel %vm266, %v81, -inf
  %v592 = vmax.f32 %v590, %v591
  %v593 = vrot.slane %v592, 4
  %v594 = vmax.f32 %v592, %v593
  %v595 = vrot.slane %v594, 2
  %v596 = vmax.f32 %v594, %v595
  %v597 = vrot.slane %v596, 1
  %v598 = vmax.f32 %v596, %v597
  %v599 = vsel %vm264, %v82, -inf
  %v600 = vsel %vm266, %v83, -inf
  %v601 = vmax.f32 %v599, %v600
  %v602 = vrot.slane %v601, 4
  %v603 = vmax.f32 %v601, %v602
  %v604 = vrot.slane %v603, 2
  %v605 = vmax.f32 %v603, %v604
  %v606 = vrot.slane %v605, 1
  %v607 = vmax.f32 %v605, %v606
  %v608 = vsel %vm264, %v84, -inf
  %v609 = vsel %vm266, %v85, -inf
  %v610 = vmax.f32 %v608, %v609
  %v611 = vrot.slane %v610, 4
  %v612 = vmax.f32 %v610, %v611
  %v613 = vrot.slane %v612, 2
  %v614 = vmax.f32 %v612, %v613
  %v615 = vrot.slane %v614, 1
  %v616 = vmax.f32 %v614, %v615
  %v617 = vsel %vm264, %v86, -inf
  %v618 = vsel %vm266, %v87, -inf
  %v619 = vmax.f32 %v617, %v618
  %v620 = vrot.slane %v619, 4
  %v621 = vmax.f32 %v619, %v620
  %v622 = vrot.slane %v621, 2
  %v623 = vmax.f32 %v621, %v622
  %v624 = vrot.slane %v623, 1
  %v625 = vmax.f32 %v623, %v624
  %v626 = vsel %vm264, %v88, -inf
  %v627 = vsel %vm266, %v89, -inf
  %v628 = vmax.f32 %v626, %v627
  %v629 = vrot.slane %v628, 4
  %v630 = vmax.f32 %v628, %v629
  %v631 = vrot.slane %v630, 2
  %v632 = vmax.f32 %v630, %v631
  %v633 = vrot.slane %v632, 1
  %v634 = vmax.f32 %v632, %v633
  %v635 = vsel %vm264, %v90, -inf
  %v636 = vsel %vm266, %v91, -inf
  %v637 = vmax.f32 %v635, %v636
  %v638 = vrot.slane %v637, 4
  %v639 = vmax.f32 %v637, %v638
  %v640 = vrot.slane %v639, 2
  %v641 = vmax.f32 %v639, %v640
  %v642 = vrot.slane %v641, 1
  %v643 = vmax.f32 %v641, %v642
  %v644 = vsel %vm264, %v92, -inf
  %v645 = vsel %vm266, %v93, -inf
  %v646 = vmax.f32 %v644, %v645
  %v647 = vrot.slane %v646, 4
  %v648 = vmax.f32 %v646, %v647
  %v649 = vrot.slane %v648, 2
  %v650 = vmax.f32 %v648, %v649
  %v651 = vrot.slane %v650, 1
  %v652 = vmax.f32 %v650, %v651
  %v653 = vsel %vm264, %v94, -inf
  %v654 = vsel %vm266, %v95, -inf
  %v655 = vmax.f32 %v653, %v654
  %v656 = vrot.slane %v655, 4
  %v657 = vmax.f32 %v655, %v656
  %v658 = vrot.slane %v657, 2
  %v659 = vmax.f32 %v657, %v658
  %v660 = vrot.slane %v659, 1
  %v661 = vmax.f32 %v659, %v660
  %v662 = vsel %vm264, %v96, -inf
  %v663 = vsel %vm266, %v97, -inf
  %v664 = vmax.f32 %v662, %v663
  %v665 = vrot.slane %v664, 4
  %v666 = vmax.f32 %v664, %v665
  %v667 = vrot.slane %v666, 2
  %v668 = vmax.f32 %v666, %v667
  %v669 = vrot.slane %v668, 1
  %v670 = vmax.f32 %v668, %v669
  %v671 = vsel %vm264, %v98, -inf
  %v672 = vsel %vm266, %v99, -inf
  %v673 = vmax.f32 %v671, %v672
  %v674 = vrot.slane %v673, 4
  %v675 = vmax.f32 %v673, %v674
  %v676 = vrot.slane %v675, 2
  %v677 = vmax.f32 %v675, %v676
  %v678 = vrot.slane %v677, 1
  %v679 = vmax.f32 %v677, %v678
  %v680 = vsel %vm264, %v100, -inf
  %v681 = vsel %vm266, %v101, -inf
  %v682 = vmax.f32 %v680, %v681
  %v683 = vrot.slane %v682, 4
  %v684 = vmax.f32 %v682, %v683
  %v685 = vrot.slane %v684, 2
  %v686 = vmax.f32 %v684, %v685
  %v687 = vrot.slane %v686, 1
  %v688 = vmax.f32 %v686, %v687
  %v689 = vsel %vm264, %v102, -inf
  %v690 = vsel %vm266, %v103, -inf
  %v691 = vmax.f32 %v689, %v690
  %v692 = vrot.slane %v691, 4
  %v693 = vmax.f32 %v691, %v692
  %v694 = vrot.slane %v693, 2
  %v695 = vmax.f32 %v693, %v694
  %v696 = vrot.slane %v695, 1
  %v697 = vmax.f32 %v695, %v696
  %v698 = vsel %vm264, %v104, -inf
  %v699 = vsel %vm266, %v105, -inf
  %v700 = vmax.f32 %v698, %v699
  %v701 = vrot.slane %v700, 4
  %v702 = vmax.f32 %v700, %v701
  %v703 = vrot.slane %v702, 2
  %v704 = vmax.f32 %v702, %v703
  %v705 = vrot.slane %v704, 1
  %v706 = vmax.f32 %v704, %v705
  %v707 = vsel %vm264, %v106, -inf
  %v708 = vsel %vm266, %v107, -inf
  %v709 = vmax.f32 %v707, %v708
  %v710 = vrot.slane %v709, 4
  %v711 = vmax.f32 %v709, %v710
  %v712 = vrot.slane %v711, 2
  %v713 = vmax.f32 %v711, %v712
  %v714 = vrot.slane %v713, 1
  %v715 = vmax.f32 %v713, %v714
  %v716 = vsel %vm264, %v108, -inf
  %v717 = vsel %vm266, %v109, -inf
  %v718 = vmax.f32 %v716, %v717
  %v719 = vrot.slane %v718, 4
  %v720 = vmax.f32 %v718, %v719
  %v721 = vrot.slane %v720, 2
  %v722 = vmax.f32 %v720, %v721
  %v723 = vrot.slane %v722, 1
  %v724 = vmax.f32 %v722, %v723
  %v725 = vsel %vm264, %v110, -inf
  %v726 = vsel %vm266, %v111, -inf
  %v727 = vmax.f32 %v725, %v726
  %v728 = vrot.slane %v727, 4
  %v729 = vmax.f32 %v727, %v728
  %v730 = vrot.slane %v729, 2
  %v731 = vmax.f32 %v729, %v730
  %v732 = vrot.slane %v731, 1
  %v733 = vmax.f32 %v731, %v732
  %v734 = vsel %vm264, %v112, -inf
  %v735 = vsel %vm266, %v113, -inf
  %v736 = vmax.f32 %v734, %v735
  %v737 = vrot.slane %v736, 4
  %v738 = vmax.f32 %v736, %v737
  %v739 = vrot.slane %v738, 2
  %v740 = vmax.f32 %v738, %v739
  %v741 = vrot.slane %v740, 1
  %v742 = vmax.f32 %v740, %v741
  %v743 = vsel %vm264, %v114, -inf
  %v744 = vsel %vm266, %v115, -inf
  %v745 = vmax.f32 %v743, %v744
  %v746 = vrot.slane %v745, 4
  %v747 = vmax.f32 %v745, %v746
  %v748 = vrot.slane %v747, 2
  %v749 = vmax.f32 %v747, %v748
  %v750 = vrot.slane %v749, 1
  %v751 = vmax.f32 %v749, %v750
  %v752 = vsel %vm264, %v116, -inf
  %v753 = vsel %vm266, %v117, -inf
  %v754 = vmax.f32 %v752, %v753
  %v755 = vrot.slane %v754, 4
  %v756 = vmax.f32 %v754, %v755
  %v757 = vrot.slane %v756, 2
  %v758 = vmax.f32 %v756, %v757
  %v759 = vrot.slane %v758, 1
  %v760 = vmax.f32 %v758, %v759
  %v761 = vsel %vm264, %v118, -inf
  %v762 = vsel %vm266, %v119, -inf
  %v763 = vmax.f32 %v761, %v762
  %v764 = vrot.slane %v763, 4
  %v765 = vmax.f32 %v763, %v764
  %v766 = vrot.slane %v765, 2
  %v767 = vmax.f32 %v765, %v766
  %v768 = vrot.slane %v767, 1
  %v769 = vmax.f32 %v767, %v768
  %v770 = vsel %vm264, %v120, -inf
  %v771 = vsel %vm266, %v121, -inf
  %v772 = vmax.f32 %v770, %v771
  %v773 = vrot.slane %v772, 4
  %v774 = vmax.f32 %v772, %v773
  %v775 = vrot.slane %v774, 2
  %v776 = vmax.f32 %v774, %v775
  %v777 = vrot.slane %v776, 1
  %v778 = vmax.f32 %v776, %v777
  %v779 = vsel %vm264, %v122, -inf
  %v780 = vsel %vm266, %v123, -inf
  %v781 = vmax.f32 %v779, %v780
  %v782 = vrot.slane %v781, 4
  %v783 = vmax.f32 %v781, %v782
  %v784 = vrot.slane %v783, 2
  %v785 = vmax.f32 %v783, %v784
  %v786 = vrot.slane %v785, 1
  %v787 = vmax.f32 %v785, %v786
  %v788 = vsel %vm264, %v124, -inf
  %v789 = vsel %vm266, %v125, -inf
  %v790 = vmax.f32 %v788, %v789
  %v791 = vrot.slane %v790, 4
  %v792 = vmax.f32 %v790, %v791
  %v793 = vrot.slane %v792, 2
  %v794 = vmax.f32 %v792, %v793
  %v795 = vrot.slane %v794, 1
  %v796 = vmax.f32 %v794, %v795
  %v797 = vsel %vm264, %v126, -inf
  %v798 = vsel %vm266, %v127, -inf
  %v799 = vmax.f32 %v797, %v798
  %v800 = vrot.slane %v799, 4
  %v801 = vmax.f32 %v799, %v800
  %v802 = vrot.slane %v801, 2
  %v803 = vmax.f32 %v801, %v802
  %v804 = vrot.slane %v803, 1
  %v805 = vmax.f32 %v803, %v804
  %v806 = vsel %vm264, %v128, -inf
  %v807 = vsel %vm266, %v129, -inf
  %v808 = vmax.f32 %v806, %v807
  %v809 = vrot.slane %v808, 4
  %v810 = vmax.f32 %v808, %v809
  %v811 = vrot.slane %v810, 2
  %v812 = vmax.f32 %v810, %v811
  %v813 = vrot.slane %v812, 1
  %v814 = vmax.f32 %v812, %v813
  %v815 = vsel %vm264, %v130, -inf
  %v816 = vsel %vm266, %v131, -inf
  %v817 = vmax.f32 %v815, %v816
  %v818 = vrot.slane %v817, 4
  %v819 = vmax.f32 %v817, %v818
  %v820 = vrot.slane %v819, 2
  %v821 = vmax.f32 %v819, %v820
  %v822 = vrot.slane %v821, 1
  %v823 = vmax.f32 %v821, %v822
  %v824 = vsel %vm264, %v132, -inf
  %v825 = vsel %vm266, %v133, -inf
  %v826 = vmax.f32 %v824, %v825
  %v827 = vrot.slane %v826, 4
  %v828 = vmax.f32 %v826, %v827
  %v829 = vrot.slane %v828, 2
  %v830 = vmax.f32 %v828, %v829
  %v831 = vrot.slane %v830, 1
  %v832 = vmax.f32 %v830, %v831
  %v833 = vsel %vm264, %v134, -inf
  %v834 = vsel %vm266, %v135, -inf
  %v835 = vmax.f32 %v833, %v834
  %v836 = vrot.slane %v835, 4
  %v837 = vmax.f32 %v835, %v836
  %v838 = vrot.slane %v837, 2
  %v839 = vmax.f32 %v837, %v838
  %v840 = vrot.slane %v839, 1
  %v841 = vmax.f32 %v839, %v840
  %v842 = vsel %vm264, %v136, -inf
  %v843 = vsel %vm266, %v137, -inf
  %v844 = vmax.f32 %v842, %v843
  %v845 = vrot.slane %v844, 4
  %v846 = vmax.f32 %v844, %v845
  %v847 = vrot.slane %v846, 2
  %v848 = vmax.f32 %v846, %v847
  %v849 = vrot.slane %v848, 1
  %v850 = vmax.f32 %v848, %v849
  %v851 = vsel %vm264, %v138, -inf
  %v852 = vsel %vm266, %v139, -inf
  %v853 = vmax.f32 %v851, %v852
  %v854 = vrot.slane %v853, 4
  %v855 = vmax.f32 %v853, %v854
  %v856 = vrot.slane %v855, 2
  %v857 = vmax.f32 %v855, %v856
  %v858 = vrot.slane %v857, 1
  %v859 = vmax.f32 %v857, %v858
  %v860 = vsel %vm264, %v140, -inf
  %v861 = vsel %vm266, %v141, -inf
  %v862 = vmax.f32 %v860, %v861
  %v863 = vrot.slane %v862, 4
  %v864 = vmax.f32 %v862, %v863
  %v865 = vrot.slane %v864, 2
  %v866 = vmax.f32 %v864, %v865
  %v867 = vrot.slane %v866, 1
  %v868 = vmax.f32 %v866, %v867
  %v869 = vsel %vm264, %v142, -inf
  %v870 = vsel %vm266, %v143, -inf
  %v871 = vmax.f32 %v869, %v870
  %v872 = vrot.slane %v871, 4
  %v873 = vmax.f32 %v871, %v872
  %v874 = vrot.slane %v873, 2
  %v875 = vmax.f32 %v873, %v874
  %v876 = vrot.slane %v875, 1
  %v877 = vmax.f32 %v875, %v876
  %v878 = vsel %vm264, %v144, -inf
  %v879 = vsel %vm266, %v145, -inf
  %v880 = vmax.f32 %v878, %v879
  %v881 = vrot.slane %v880, 4
  %v882 = vmax.f32 %v880, %v881
  %v883 = vrot.slane %v882, 2
  %v884 = vmax.f32 %v882, %v883
  %v885 = vrot.slane %v884, 1
  %v886 = vmax.f32 %v884, %v885
  %v887 = vsel %vm264, %v146, -inf
  %v888 = vsel %vm266, %v147, -inf
  %v889 = vmax.f32 %v887, %v888
  %v890 = vrot.slane %v889, 4
  %v891 = vmax.f32 %v889, %v890
  %v892 = vrot.slane %v891, 2
  %v893 = vmax.f32 %v891, %v892
  %v894 = vrot.slane %v893, 1
  %v895 = vmax.f32 %v893, %v894
  %v896 = vsel %vm264, %v148, -inf
  %v897 = vsel %vm266, %v149, -inf
  %v898 = vmax.f32 %v896, %v897
  %v899 = vrot.slane %v898, 4
  %v900 = vmax.f32 %v898, %v899
  %v901 = vrot.slane %v900, 2
  %v902 = vmax.f32 %v900, %v901
  %v903 = vrot.slane %v902, 1
  %v904 = vmax.f32 %v902, %v903
  %v905 = vsel %vm264, %v150, -inf
  %v906 = vsel %vm266, %v151, -inf
  %v907 = vmax.f32 %v905, %v906
  %v908 = vrot.slane %v907, 4
  %v909 = vmax.f32 %v907, %v908
  %v910 = vrot.slane %v909, 2
  %v911 = vmax.f32 %v909, %v910
  %v912 = vrot.slane %v911, 1
  %v913 = vmax.f32 %v911, %v912
  %v914 = vsel %vm264, %v152, -inf
  %v915 = vsel %vm266, %v153, -inf
  %v916 = vmax.f32 %v914, %v915
  %v917 = vrot.slane %v916, 4
  %v918 = vmax.f32 %v916, %v917
  %v919 = vrot.slane %v918, 2
  %v920 = vmax.f32 %v918, %v919
  %v921 = vrot.slane %v920, 1
  %v922 = vmax.f32 %v920, %v921
  %v923 = vsel %vm264, %v154, -inf
  %v924 = vsel %vm266, %v155, -inf
  %v925 = vmax.f32 %v923, %v924
  %v926 = vrot.slane %v925, 4
  %v927 = vmax.f32 %v925, %v926
  %v928 = vrot.slane %v927, 2
  %v929 = vmax.f32 %v927, %v928
  %v930 = vrot.slane %v929, 1
  %v931 = vmax.f32 %v929, %v930
  %v932 = vsel %vm264, %v156, -inf
  %v933 = vsel %vm266, %v157, -inf
  %v934 = vmax.f32 %v932, %v933
  %v935 = vrot.slane %v934, 4
  %v936 = vmax.f32 %v934, %v935
  %v937 = vrot.slane %v936, 2
  %v938 = vmax.f32 %v936, %v937
  %v939 = vrot.slane %v938, 1
  %v940 = vmax.f32 %v938, %v939
  %v941 = vsel %vm264, %v158, -inf
  %v942 = vsel %vm266, %v159, -inf
  %v943 = vmax.f32 %v941, %v942
  %v944 = vrot.slane %v943, 4
  %v945 = vmax.f32 %v943, %v944
  %v946 = vrot.slane %v945, 2
  %v947 = vmax.f32 %v945, %v946
  %v948 = vrot.slane %v947, 1
  %v949 = vmax.f32 %v947, %v948
  %v950 = vsel %vm264, %v160, -inf
  %v951 = vsel %vm266, %v161, -inf
  %v952 = vmax.f32 %v950, %v951
  %v953 = vrot.slane %v952, 4
  %v954 = vmax.f32 %v952, %v953
  %v955 = vrot.slane %v954, 2
  %v956 = vmax.f32 %v954, %v955
  %v957 = vrot.slane %v956, 1
  %v958 = vmax.f32 %v956, %v957
  %v959 = vsel %vm264, %v162, -inf
  %v960 = vsel %vm266, %v163, -inf
  %v961 = vmax.f32 %v959, %v960
  %v962 = vrot.slane %v961, 4
  %v963 = vmax.f32 %v961, %v962
  %v964 = vrot.slane %v963, 2
  %v965 = vmax.f32 %v963, %v964
  %v966 = vrot.slane %v965, 1
  %v967 = vmax.f32 %v965, %v966
  %v968 = vsel %vm264, %v164, -inf
  %v969 = vsel %vm266, %v165, -inf
  %v970 = vmax.f32 %v968, %v969
  %v971 = vrot.slane %v970, 4
  %v972 = vmax.f32 %v970, %v971
  %v973 = vrot.slane %v972, 2
  %v974 = vmax.f32 %v972, %v973
  %v975 = vrot.slane %v974, 1
  %v976 = vmax.f32 %v974, %v975
  %v977 = vsel %vm264, %v166, -inf
  %v978 = vsel %vm266, %v167, -inf
  %v979 = vmax.f32 %v977, %v978
  %v980 = vrot.slane %v979, 4
  %v981 = vmax.f32 %v979, %v980
  %v982 = vrot.slane %v981, 2
  %v983 = vmax.f32 %v981, %v982
  %v984 = vrot.slane %v983, 1
  %v985 = vmax.f32 %v983, %v984
  %v986 = vsel %vm264, %v168, -inf
  %v987 = vsel %vm266, %v169, -inf
  %v988 = vmax.f32 %v986, %v987
  %v989 = vrot.slane %v988, 4
  %v990 = vmax.f32 %v988, %v989
  %v991 = vrot.slane %v990, 2
  %v992 = vmax.f32 %v990, %v991
  %v993 = vrot.slane %v992, 1
  %v994 = vmax.f32 %v992, %v993
  %v995 = vsel %vm264, %v170, -inf
  %v996 = vsel %vm266, %v171, -inf
  %v997 = vmax.f32 %v995, %v996
  %v998 = vrot.slane %v997, 4
  %v999 = vmax.f32 %v997, %v998
  %v1000 = vrot.slane %v999, 2
  %v1001 = vmax.f32 %v999, %v1000
  %v1002 = vrot.slane %v1001, 1
  %v1003 = vmax.f32 %v1001, %v1002
  %v1004 = vsel %vm264, %v172, -inf
  %v1005 = vsel %vm266, %v173, -inf
  %v1006 = vmax.f32 %v1004, %v1005
  %v1007 = vrot.slane %v1006, 4
  %v1008 = vmax.f32 %v1006, %v1007
  %v1009 = vrot.slane %v1008, 2
  %v1010 = vmax.f32 %v1008, %v1009
  %v1011 = vrot.slane %v1010, 1
  %v1012 = vmax.f32 %v1010, %v1011
  %v1013 = vsel %vm264, %v174, -inf
  %v1014 = vsel %vm266, %v175, -inf
  %v1015 = vmax.f32 %v1013, %v1014
  %v1016 = vrot.slane %v1015, 4
  %v1017 = vmax.f32 %v1015, %v1016
  %v1018 = vrot.slane %v1017, 2
  %v1019 = vmax.f32 %v1017, %v1018
  %v1020 = vrot.slane %v1019, 1
  %v1021 = vmax.f32 %v1019, %v1020
  %v1022 = vsel %vm264, %v176, -inf
  %v1023 = vsel %vm266, %v177, -inf
  %v1024 = vmax.f32 %v1022, %v1023
  %v1025 = vrot.slane %v1024, 4
  %v1026 = vmax.f32 %v1024, %v1025
  %v1027 = vrot.slane %v1026, 2
  %v1028 = vmax.f32 %v1026, %v1027
  %v1029 = vrot.slane %v1028, 1
  %v1030 = vmax.f32 %v1028, %v1029
  %v1031 = vsel %vm264, %v178, -inf
  %v1032 = vsel %vm266, %v179, -inf
  %v1033 = vmax.f32 %v1031, %v1032
  %v1034 = vrot.slane %v1033, 4
  %v1035 = vmax.f32 %v1033, %v1034
  %v1036 = vrot.slane %v1035, 2
  %v1037 = vmax.f32 %v1035, %v1036
  %v1038 = vrot.slane %v1037, 1
  %v1039 = vmax.f32 %v1037, %v1038
  %v1040 = vsel %vm264, %v180, -inf
  %v1041 = vsel %vm266, %v181, -inf
  %v1042 = vmax.f32 %v1040, %v1041
  %v1043 = vrot.slane %v1042, 4
  %v1044 = vmax.f32 %v1042, %v1043
  %v1045 = vrot.slane %v1044, 2
  %v1046 = vmax.f32 %v1044, %v1045
  %v1047 = vrot.slane %v1046, 1
  %v1048 = vmax.f32 %v1046, %v1047
  %v1049 = vsel %vm264, %v182, -inf
  %v1050 = vsel %vm266, %v183, -inf
  %v1051 = vmax.f32 %v1049, %v1050
  %v1052 = vrot.slane %v1051, 4
  %v1053 = vmax.f32 %v1051, %v1052
  %v1054 = vrot.slane %v1053, 2
  %v1055 = vmax.f32 %v1053, %v1054
  %v1056 = vrot.slane %v1055, 1
  %v1057 = vmax.f32 %v1055, %v1056
  %v1058 = vsel %vm264, %v184, -inf
  %v1059 = vsel %vm266, %v185, -inf
  %v1060 = vmax.f32 %v1058, %v1059
  %v1061 = vrot.slane %v1060, 4
  %v1062 = vmax.f32 %v1060, %v1061
  %v1063 = vrot.slane %v1062, 2
  %v1064 = vmax.f32 %v1062, %v1063
  %v1065 = vrot.slane %v1064, 1
  %v1066 = vmax.f32 %v1064, %v1065
  %v1067 = vsel %vm264, %v186, -inf
  %v1068 = vsel %vm266, %v187, -inf
  %v1069 = vmax.f32 %v1067, %v1068
  %v1070 = vrot.slane %v1069, 4
  %v1071 = vmax.f32 %v1069, %v1070
  %v1072 = vrot.slane %v1071, 2
  %v1073 = vmax.f32 %v1071, %v1072
  %v1074 = vrot.slane %v1073, 1
  %v1075 = vmax.f32 %v1073, %v1074
  %v1076 = vsel %vm264, %v188, -inf
  %v1077 = vsel %vm266, %v189, -inf
  %v1078 = vmax.f32 %v1076, %v1077
  %v1079 = vrot.slane %v1078, 4
  %v1080 = vmax.f32 %v1078, %v1079
  %v1081 = vrot.slane %v1080, 2
  %v1082 = vmax.f32 %v1080, %v1081
  %v1083 = vrot.slane %v1082, 1
  %v1084 = vmax.f32 %v1082, %v1083
  %v1085 = vsel %vm264, %v190, -inf
  %v1086 = vsel %vm266, %v191, -inf
  %v1087 = vmax.f32 %v1085, %v1086
  %v1088 = vrot.slane %v1087, 4
  %v1089 = vmax.f32 %v1087, %v1088
  %v1090 = vrot.slane %v1089, 2
  %v1091 = vmax.f32 %v1089, %v1090
  %v1092 = vrot.slane %v1091, 1
  %v1093 = vmax.f32 %v1091, %v1092
  %v1094 = vsel %vm264, %v192, -inf
  %v1095 = vsel %vm266, %v193, -inf
  %v1096 = vmax.f32 %v1094, %v1095
  %v1097 = vrot.slane %v1096, 4
  %v1098 = vmax.f32 %v1096, %v1097
  %v1099 = vrot.slane %v1098, 2
  %v1100 = vmax.f32 %v1098, %v1099
  %v1101 = vrot.slane %v1100, 1
  %v1102 = vmax.f32 %v1100, %v1101
  %v1103 = vsel %vm264, %v194, -inf
  %v1104 = vsel %vm266, %v195, -inf
  %v1105 = vmax.f32 %v1103, %v1104
  %v1106 = vrot.slane %v1105, 4
  %v1107 = vmax.f32 %v1105, %v1106
  %v1108 = vrot.slane %v1107, 2
  %v1109 = vmax.f32 %v1107, %v1108
  %v1110 = vrot.slane %v1109, 1
  %v1111 = vmax.f32 %v1109, %v1110
  %v1112 = vsel %vm264, %v196, -inf
  %v1113 = vsel %vm266, %v197, -inf
  %v1114 = vmax.f32 %v1112, %v1113
  %v1115 = vrot.slane %v1114, 4
  %v1116 = vmax.f32 %v1114, %v1115
  %v1117 = vrot.slane %v1116, 2
  %v1118 = vmax.f32 %v1116, %v1117
  %v1119 = vrot.slane %v1118, 1
  %v1120 = vmax.f32 %v1118, %v1119
  %v1121 = vsel %vm264, %v198, -inf
  %v1122 = vsel %vm266, %v199, -inf
  %v1123 = vmax.f32 %v1121, %v1122
  %v1124 = vrot.slane %v1123, 4
  %v1125 = vmax.f32 %v1123, %v1124
  %v1126 = vrot.slane %v1125, 2
  %v1127 = vmax.f32 %v1125, %v1126
  %v1128 = vrot.slane %v1127, 1
  %v1129 = vmax.f32 %v1127, %v1128
  %v1130 = vsel %vm264, %v200, -inf
  %v1131 = vsel %vm266, %v201, -inf
  %v1132 = vmax.f32 %v1130, %v1131
  %v1133 = vrot.slane %v1132, 4
  %v1134 = vmax.f32 %v1132, %v1133
  %v1135 = vrot.slane %v1134, 2
  %v1136 = vmax.f32 %v1134, %v1135
  %v1137 = vrot.slane %v1136, 1
  %v1138 = vmax.f32 %v1136, %v1137
  %v1139 = vsel %vm264, %v202, -inf
  %v1140 = vsel %vm266, %v203, -inf
  %v1141 = vmax.f32 %v1139, %v1140
  %v1142 = vrot.slane %v1141, 4
  %v1143 = vmax.f32 %v1141, %v1142
  %v1144 = vrot.slane %v1143, 2
  %v1145 = vmax.f32 %v1143, %v1144
  %v1146 = vrot.slane %v1145, 1
  %v1147 = vmax.f32 %v1145, %v1146
  %v1148 = vsel %vm264, %v204, -inf
  %v1149 = vsel %vm266, %v205, -inf
  %v1150 = vmax.f32 %v1148, %v1149
  %v1151 = vrot.slane %v1150, 4
  %v1152 = vmax.f32 %v1150, %v1151
  %v1153 = vrot.slane %v1152, 2
  %v1154 = vmax.f32 %v1152, %v1153
  %v1155 = vrot.slane %v1154, 1
  %v1156 = vmax.f32 %v1154, %v1155
  %v1157 = vsel %vm264, %v206, -inf
  %v1158 = vsel %vm266, %v207, -inf
  %v1159 = vmax.f32 %v1157, %v1158
  %v1160 = vrot.slane %v1159, 4
  %v1161 = vmax.f32 %v1159, %v1160
  %v1162 = vrot.slane %v1161, 2
  %v1163 = vmax.f32 %v1161, %v1162
  %v1164 = vrot.slane %v1163, 1
  %v1165 = vmax.f32 %v1163, %v1164
  %v1166 = vsel %vm264, %v208, -inf
  %v1167 = vsel %vm266, %v209, -inf
  %v1168 = vmax.f32 %v1166, %v1167
  %v1169 = vrot.slane %v1168, 4
  %v1170 = vmax.f32 %v1168, %v1169
  %v1171 = vrot.slane %v1170, 2
  %v1172 = vmax.f32 %v1170, %v1171
  %v1173 = vrot.slane %v1172, 1
  %v1174 = vmax.f32 %v1172, %v1173
  %v1175 = vsel %vm264, %v210, -inf
  %v1176 = vsel %vm266, %v211, -inf
  %v1177 = vmax.f32 %v1175, %v1176
  %v1178 = vrot.slane %v1177, 4
  %v1179 = vmax.f32 %v1177, %v1178
  %v1180 = vrot.slane %v1179, 2
  %v1181 = vmax.f32 %v1179, %v1180
  %v1182 = vrot.slane %v1181, 1
  %v1183 = vmax.f32 %v1181, %v1182
  %v1184 = vsel %vm264, %v212, -inf
  %v1185 = vsel %vm266, %v213, -inf
  %v1186 = vmax.f32 %v1184, %v1185
  %v1187 = vrot.slane %v1186, 4
  %v1188 = vmax.f32 %v1186, %v1187
  %v1189 = vrot.slane %v1188, 2
  %v1190 = vmax.f32 %v1188, %v1189
  %v1191 = vrot.slane %v1190, 1
  %v1192 = vmax.f32 %v1190, %v1191
  %v1193 = vsel %vm264, %v214, -inf
  %v1194 = vsel %vm266, %v215, -inf
  %v1195 = vmax.f32 %v1193, %v1194
  %v1196 = vrot.slane %v1195, 4
  %v1197 = vmax.f32 %v1195, %v1196
  %v1198 = vrot.slane %v1197, 2
  %v1199 = vmax.f32 %v1197, %v1198
  %v1200 = vrot.slane %v1199, 1
  %v1201 = vmax.f32 %v1199, %v1200
  %v1202 = vsel %vm264, %v216, -inf
  %v1203 = vsel %vm266, %v217, -inf
  %v1204 = vmax.f32 %v1202, %v1203
  %v1205 = vrot.slane %v1204, 4
  %v1206 = vmax.f32 %v1204, %v1205
  %v1207 = vrot.slane %v1206, 2
  %v1208 = vmax.f32 %v1206, %v1207
  %v1209 = vrot.slane %v1208, 1
  %v1210 = vmax.f32 %v1208, %v1209
  %v1211 = vsel %vm264, %v218, -inf
  %v1212 = vsel %vm266, %v219, -inf
  %v1213 = vmax.f32 %v1211, %v1212
  %v1214 = vrot.slane %v1213, 4
  %v1215 = vmax.f32 %v1213, %v1214
  %v1216 = vrot.slane %v1215, 2
  %v1217 = vmax.f32 %v1215, %v1216
  %v1218 = vrot.slane %v1217, 1
  %v1219 = vmax.f32 %v1217, %v1218
  %v1220 = vsel %vm264, %v220, -inf
  %v1221 = vsel %vm266, %v221, -inf
  %v1222 = vmax.f32 %v1220, %v1221
  %v1223 = vrot.slane %v1222, 4
  %v1224 = vmax.f32 %v1222, %v1223
  %v1225 = vrot.slane %v1224, 2
  %v1226 = vmax.f32 %v1224, %v1225
  %v1227 = vrot.slane %v1226, 1
  %v1228 = vmax.f32 %v1226, %v1227
  %v1229 = vsel %vm264, %v222, -inf
  %v1230 = vsel %vm266, %v223, -inf
  %v1231 = vmax.f32 %v1229, %v1230
  %v1232 = vrot.slane %v1231, 4
  %v1233 = vmax.f32 %v1231, %v1232
  %v1234 = vrot.slane %v1233, 2
  %v1235 = vmax.f32 %v1233, %v1234
  %v1236 = vrot.slane %v1235, 1
  %v1237 = vmax.f32 %v1235, %v1236
  %v1238 = vsel %vm264, %v224, -inf
  %v1239 = vsel %vm266, %v225, -inf
  %v1240 = vmax.f32 %v1238, %v1239
  %v1241 = vrot.slane %v1240, 4
  %v1242 = vmax.f32 %v1240, %v1241
  %v1243 = vrot.slane %v1242, 2
  %v1244 = vmax.f32 %v1242, %v1243
  %v1245 = vrot.slane %v1244, 1
  %v1246 = vmax.f32 %v1244, %v1245
  %v1247 = vsel %vm264, %v226, -inf
  %v1248 = vsel %vm266, %v227, -inf
  %v1249 = vmax.f32 %v1247, %v1248
  %v1250 = vrot.slane %v1249, 4
  %v1251 = vmax.f32 %v1249, %v1250
  %v1252 = vrot.slane %v1251, 2
  %v1253 = vmax.f32 %v1251, %v1252
  %v1254 = vrot.slane %v1253, 1
  %v1255 = vmax.f32 %v1253, %v1254
  %v1256 = vsel %vm264, %v228, -inf
  %v1257 = vsel %vm266, %v229, -inf
  %v1258 = vmax.f32 %v1256, %v1257
  %v1259 = vrot.slane %v1258, 4
  %v1260 = vmax.f32 %v1258, %v1259
  %v1261 = vrot.slane %v1260, 2
  %v1262 = vmax.f32 %v1260, %v1261
  %v1263 = vrot.slane %v1262, 1
  %v1264 = vmax.f32 %v1262, %v1263
  %v1265 = vsel %vm264, %v230, -inf
  %v1266 = vsel %vm266, %v231, -inf
  %v1267 = vmax.f32 %v1265, %v1266
  %v1268 = vrot.slane %v1267, 4
  %v1269 = vmax.f32 %v1267, %v1268
  %v1270 = vrot.slane %v1269, 2
  %v1271 = vmax.f32 %v1269, %v1270
  %v1272 = vrot.slane %v1271, 1
  %v1273 = vmax.f32 %v1271, %v1272
  %v1274 = vsel %vm264, %v232, -inf
  %v1275 = vsel %vm266, %v233, -inf
  %v1276 = vmax.f32 %v1274, %v1275
  %v1277 = vrot.slane %v1276, 4
  %v1278 = vmax.f32 %v1276, %v1277
  %v1279 = vrot.slane %v1278, 2
  %v1280 = vmax.f32 %v1278, %v1279
  %v1281 = vrot.slane %v1280, 1
  %v1282 = vmax.f32 %v1280, %v1281
  %v1283 = vsel %vm264, %v234, -inf
  %v1284 = vsel %vm266, %v235, -inf
  %v1285 = vmax.f32 %v1283, %v1284
  %v1286 = vrot.slane %v1285, 4
  %v1287 = vmax.f32 %v1285, %v1286
  %v1288 = vrot.slane %v1287, 2
  %v1289 = vmax.f32 %v1287, %v1288
  %v1290 = vrot.slane %v1289, 1
  %v1291 = vmax.f32 %v1289, %v1290
  %v1292 = vsel %vm264, %v236, -inf
  %v1293 = vsel %vm266, %v237, -inf
  %v1294 = vmax.f32 %v1292, %v1293
  %v1295 = vrot.slane %v1294, 4
  %v1296 = vmax.f32 %v1294, %v1295
  %v1297 = vrot.slane %v1296, 2
  %v1298 = vmax.f32 %v1296, %v1297
  %v1299 = vrot.slane %v1298, 1
  %v1300 = vmax.f32 %v1298, %v1299
  %v1301 = vsel %vm264, %v238, -inf
  %v1302 = vsel %vm266, %v239, -inf
  %v1303 = vmax.f32 %v1301, %v1302
  %v1304 = vrot.slane %v1303, 4
  %v1305 = vmax.f32 %v1303, %v1304
  %v1306 = vrot.slane %v1305, 2
  %v1307 = vmax.f32 %v1305, %v1306
  %v1308 = vrot.slane %v1307, 1
  %v1309 = vmax.f32 %v1307, %v1308
  %v1310 = vsel %vm264, %v240, -inf
  %v1311 = vsel %vm266, %v241, -inf
  %v1312 = vmax.f32 %v1310, %v1311
  %v1313 = vrot.slane %v1312, 4
  %v1314 = vmax.f32 %v1312, %v1313
  %v1315 = vrot.slane %v1314, 2
  %v1316 = vmax.f32 %v1314, %v1315
  %v1317 = vrot.slane %v1316, 1
  %v1318 = vmax.f32 %v1316, %v1317
  %v1319 = vsel %vm264, %v242, -inf
  %v1320 = vsel %vm266, %v243, -inf
  %v1321 = vmax.f32 %v1319, %v1320
  %v1322 = vrot.slane %v1321, 4
  %v1323 = vmax.f32 %v1321, %v1322
  %v1324 = vrot.slane %v1323, 2
  %v1325 = vmax.f32 %v1323, %v1324
  %v1326 = vrot.slane %v1325, 1
  %v1327 = vmax.f32 %v1325, %v1326
  %v1328 = vsel %vm264, %v244, -inf
  %v1329 = vsel %vm266, %v245, -inf
  %v1330 = vmax.f32 %v1328, %v1329
  %v1331 = vrot.slane %v1330, 4
  %v1332 = vmax.f32 %v1330, %v1331
  %v1333 = vrot.slane %v1332, 2
  %v1334 = vmax.f32 %v1332, %v1333
  %v1335 = vrot.slane %v1334, 1
  %v1336 = vmax.f32 %v1334, %v1335
  %v1337 = vsel %vm264, %v246, -inf
  %v1338 = vsel %vm266, %v247, -inf
  %v1339 = vmax.f32 %v1337, %v1338
  %v1340 = vrot.slane %v1339, 4
  %v1341 = vmax.f32 %v1339, %v1340
  %v1342 = vrot.slane %v1341, 2
  %v1343 = vmax.f32 %v1341, %v1342
  %v1344 = vrot.slane %v1343, 1
  %v1345 = vmax.f32 %v1343, %v1344
  %v1346 = vsel %vm264, %v248, -inf
  %v1347 = vsel %vm266, %v249, -inf
  %v1348 = vmax.f32 %v1346, %v1347
  %v1349 = vrot.slane %v1348, 4
  %v1350 = vmax.f32 %v1348, %v1349
  %v1351 = vrot.slane %v1350, 2
  %v1352 = vmax.f32 %v1350, %v1351
  %v1353 = vrot.slane %v1352, 1
  %v1354 = vmax.f32 %v1352, %v1353
  %v1355 = vsel %vm264, %v250, -inf
  %v1356 = vsel %vm266, %v251, -inf
  %v1357 = vmax.f32 %v1355, %v1356
  %v1358 = vrot.slane %v1357, 4
  %v1359 = vmax.f32 %v1357, %v1358
  %v1360 = vrot.slane %v1359, 2
  %v1361 = vmax.f32 %v1359, %v1360
  %v1362 = vrot.slane %v1361, 1
  %v1363 = vmax.f32 %v1361, %v1362
  %v1364 = vsel %vm264, %v252, -inf
  %v1365 = vsel %vm266, %v253, -inf
  %v1366 = vmax.f32 %v1364, %v1365
  %v1367 = vrot.slane %v1366, 4
  %v1368 = vmax.f32 %v1366, %v1367
  %v1369 = vrot.slane %v1368, 2
  %v1370 = vmax.f32 %v1368, %v1369
  %v1371 = vrot.slane %v1370, 1
  %v1372 = vmax.f32 %v1370, %v1371
  %v1373 = vsel %vm264, %v254, -inf
  %v1374 = vsel %vm266, %v255, -inf
  %v1375 = vmax.f32 %v1373, %v1374
  %v1376 = vrot.slane %v1375, 4
  %v1377 = vmax.f32 %v1375, %v1376
  %v1378 = vrot.slane %v1377, 2
  %v1379 = vmax.f32 %v1377, %v1378
  %v1380 = vrot.slane %v1379, 1
  %v1381 = vmax.f32 %v1379, %v1380
  %v1382 = vsel %vm264, %v256, -inf
  %v1383 = vsel %vm266, %v257, -inf
  %v1384 = vmax.f32 %v1382, %v1383
  %v1385 = vrot.slane %v1384, 4
  %v1386 = vmax.f32 %v1384, %v1385
  %v1387 = vrot.slane %v1386, 2
  %v1388 = vmax.f32 %v1386, %v1387
  %v1389 = vrot.slane %v1388, 1
  %v1390 = vmax.f32 %v1388, %v1389
  %v1391 = vsel %vm264, %v258, -inf
  %v1392 = vsel %vm266, %v259, -inf
  %v1393 = vmax.f32 %v1391, %v1392
  %v1394 = vrot.slane %v1393, 4
  %v1395 = vmax.f32 %v1393, %v1394
  %v1396 = vrot.slane %v1395, 2
  %v1397 = vmax.f32 %v1395, %v1396
  %v1398 = vrot.slane %v1397, 1
  %v1399 = vmax.f32 %v1397, %v1398
  %v1400 = vsel %vm264, %v260, -inf
  %v1401 = vsel %vm266, %v261, -inf
  %v1402 = vmax.f32 %v1400, %v1401
  %v1403 = vrot.slane %v1402, 4
  %v1404 = vmax.f32 %v1402, %v1403
  %v1405 = vrot.slane %v1404, 2
  %v1406 = vmax.f32 %v1404, %v1405
  %v1407 = vrot.slane %v1406, 1
  %v1408 = vmax.f32 %v1406, %v1407
  %v1409 = vsel %vm264, %v262, -inf
  %v1410 = vsel %vm266, %v263, -inf
  %v1411 = vmax.f32 %v1409, %v1410
  %v1412 = vrot.slane %v1411, 4
  %v1413 = vmax.f32 %v1411, %v1412
  %v1414 = vrot.slane %v1413, 2
  %v1415 = vmax.f32 %v1413, %v1414
  %v1416 = vrot.slane %v1415, 1
  %v1417 = vmax.f32 %v1415, %v1416
  %vm1546 = vcmask 1041409
  %v1547 = vsel %vm1546, %v283, %v274
  %vm1548 = vcmask 1042434
  %v1549 = vsel %vm1548, %v292, %v1547
  %vm1550 = vcmask 1043459
  %v1551 = vsel %vm1550, %v301, %v1549
  %vm1552 = vcmask 1044484
  %v1553 = vsel %vm1552, %v310, %v1551
  %vm1554 = vcmask 1045509
  %v1555 = vsel %vm1554, %v319, %v1553
  %vm1556 = vcmask 1046534
  %v1557 = vsel %vm1556, %v328, %v1555
  %vm1558 = vcmask 1047559
  %v1559 = vsel %vm1558, %v337, %v1557
  %v1560 = vsel %vm1546, %v355, %v346
  %v1561 = vsel %vm1548, %v364, %v1560
  %v1562 = vsel %vm1550, %v373, %v1561
  %v1563 = vsel %vm1552, %v382, %v1562
  %v1564 = vsel %vm1554, %v391, %v1563
  %v1565 = vsel %vm1556, %v400, %v1564
  %v1566 = vsel %vm1558, %v409, %v1565
  %v1567 = vsel %vm1546, %v427, %v418
  %v1568 = vsel %vm1548, %v436, %v1567
  %v1569 = vsel %vm1550, %v445, %v1568
  %v1570 = vsel %vm1552, %v454, %v1569
  %v1571 = vsel %vm1554, %v463, %v1570
  %v1572 = vsel %vm1556, %v472, %v1571
  %v1573 = vsel %vm1558, %v481, %v1572
  %v1574 = vsel %vm1546, %v499, %v490
  %v1575 = vsel %vm1548, %v508, %v1574
  %v1576 = vsel %vm1550, %v517, %v1575
  %v1577 = vsel %vm1552, %v526, %v1576
  %v1578 = vsel %vm1554, %v535, %v1577
  %v1579 = vsel %vm1556, %v544, %v1578
  %v1580 = vsel %vm1558, %v553, %v1579
  %v1581 = vsel %vm1546, %v571, %v562
  %v1582 = vsel %vm1548, %v580, %v1581
  %v1583 = vsel %vm1550, %v589, %v1582
  %v1584 = vsel %vm1552, %v598, %v1583
  %v1585 = vsel %vm1554, %v607, %v1584
  %v1586 = vsel %vm1556, %v616, %v1585
  %v1587 = vsel %vm1558, %v625, %v1586
  %v1588 = vsel %vm1546, %v643, %v634
  %v1589 = vsel %vm1548, %v652, %v1588
  %v1590 = vsel %vm1550, %v661, %v1589
  %v1591 = vsel %vm1552, %v670, %v1590
  %v1592 = vsel %vm1554, %v679, %v1591
  %v1593 = vsel %vm1556, %v688, %v1592
  %v1594 = vsel %vm1558, %v697, %v1593
  %v1595 = vsel %vm1546, %v715, %v706
  %v1596 = vsel %vm1548, %v724, %v1595
  %v1597 = vsel %vm1550, %v733, %v1596
  %v1598 = vsel %vm1552, %v742, %v1597
  %v1599 = vsel %vm1554, %v751, %v1598
  %v1600 = vsel %vm1556, %v760, %v1599
  %v1601 = vsel %vm1558, %v769, %v1600
  %v1602 = vsel %vm1546, %v787, %v778
  %v1603 = vsel %vm1548, %v796, %v1602
  %v1604 = vsel %vm1550, %v805, %v1603
  %v1605 = vsel %vm1552, %v814, %v1604
  %v1606 = vsel %vm1554, %v823, %v1605
  %v1607 = vsel %vm1556, %v832, %v1606
  %v1608 = vsel %vm1558, %v841, %v1607
  %v1609 = vsel %vm1546, %v859, %v850
  %v1610 = vsel %vm1548, %v868, %v1609
  %v1611 = vsel %vm1550, %v877, %v1610
  %v1612 = vsel %vm1552, %v886, %v1611
  %v1613 = vsel %vm1554, %v895, %v1612
  %v1614 = vsel %vm1556, %v904, %v1613
  %v1615 = vsel %vm1558, %v913, %v1614
  %v1616 = vsel %vm1546, %v931, %v922
  %v1617 = vsel %vm1548, %v940, %v1616
  %v1618 = vsel %vm1550, %v949, %v1617
  %v1619 = vsel %vm1552, %v958, %v1618
  %v1620 = vsel %vm1554, %v967, %v1619
  %v1621 = vsel %vm1556, %v976, %v1620
  %v1622 = vsel %vm1558, %v985, %v1621
  %v1623 = vsel %vm1546, %v1003, %v994
  %v1624 = vsel %vm1548, %v1012, %v1623
  %v1625 = vsel %vm1550, %v1021, %v1624
  %v1626 = vsel %vm1552, %v1030, %v1625
  %v1627 = vsel %vm1554, %v1039, %v1626
  %v1628 = vsel %vm1556, %v1048, %v1627
  %v1629 = vsel %vm1558, %v1057, %v1628
  %v1630 = vsel %vm1546, %v1075, %v1066
  %v1631 = vsel %vm1548, %v1084, %v1630
  %v1632 = vsel %vm1550, %v1093, %v1631
  %v1633 = vsel %vm1552, %v1102, %v1632
  %v1634 = vsel %vm1554, %v1111, %v1633
  %v1635 = vsel %vm1556, %v1120, %v1634
  %v1636 = vsel %vm1558, %v1129, %v1635
  %v1637 = vsel %vm1546, %v1147, %v1138
  %v1638 = vsel %vm1548, %v1156, %v1637
  %v1639 = vsel %vm1550, %v1165, %v1638
  %v1640 = vsel %vm1552, %v1174, %v1639
  %v1641 = vsel %vm1554, %v1183, %v1640
  %v1642 = vsel %vm1556, %v1192, %v1641
  %v1643 = vsel %vm1558, %v1201, %v1642
  %v1644 = vsel %vm1546, %v1219, %v1210
  %v1645 = vsel %vm1548, %v1228, %v1644
  %v1646 = vsel %vm1550, %v1237, %v1645
  %v1647 = vsel %vm1552, %v1246, %v1646
  %v1648 = vsel %vm1554, %v1255, %v1647
  %v1649 = vsel %vm1556, %v1264, %v1648
  %v1650 = vsel %vm1558, %v1273, %v1649
  %v1651 = vsel %vm1546, %v1291, %v1282
  %v1652 = vsel %vm1548, %v1300, %v1651
  %v1653 = vsel %vm1550, %v1309, %v1652
  %v1654 = vsel %vm1552, %v1318, %v1653
  %v1655 = vsel %vm1554, %v1327, %v1654
  %v1656 = vsel %vm1556, %v1336, %v1655
  %v1657 = vsel %vm1558, %v1345, %v1656
  %v1658 = vsel %vm1546, %v1363, %v1354
  %v1659 = vsel %vm1548, %v1372, %v1658
  %v1660 = vsel %vm1550, %v1381, %v1659
  %v1661 = vsel %vm1552, %v1390, %v1660
  %v1662 = vsel %vm1554, %v1399, %v1661
  %v1663 = vsel %vm1556, %v1408, %v1662
  %v1664 = vsel %vm1558, %v1417, %v1663
  %1681 = vst.msk [vmem:[%s1] sm:$0xff] %vm264, %v1559
  %1682 = vst.msk [vmem:[%s1 + $0x8] sm:$0xff] %vm264, %v1566
  %1683 = vst.msk [vmem:[%s1 + $0x10] sm:$0xff] %vm264, %v1573
  %1684 = vst.msk [vmem:[%s1 + $0x18] sm:$0xff] %vm264, %v1580
  %1685 = vst.msk [vmem:[%s1 + $0x20] sm:$0xff] %vm264, %v1587
  %1686 = vst.msk [vmem:[%s1 + $0x28] sm:$0xff] %vm264, %v1594
  %1687 = vst.msk [vmem:[%s1 + $0x30] sm:$0xff] %vm264, %v1601
  %1688 = vst.msk [vmem:[%s1 + $0x38] sm:$0xff] %vm264, %v1608
  %1689 = vst.msk [vmem:[%s1 + $0x40] sm:$0xff] %vm264, %v1615
  %1690 = vst.msk [vmem:[%s1 + $0x48] sm:$0xff] %vm264, %v1622
  %1691 = vst.msk [vmem:[%s1 + $0x50] sm:$0xff] %vm264, %v1629
  %1692 = vst.msk [vmem:[%s1 + $0x58] sm:$0xff] %vm264, %v1636
  %1693 = vst.msk [vmem:[%s1 + $0x60] sm:$0xff] %vm264, %v1643
  %1694 = vst.msk [vmem:[%s1 + $0x68] sm:$0xff] %vm264, %v1650
  %1695 = vst.msk [vmem:[%s1 + $0x70] sm:$0xff] %vm264, %v1657
  %1696 = vst.msk [vmem:[%s1 + $0x78] sm:$0xff] %vm264, %v1664
  // Predicated region
  $region6: #{encoder_cnn_forward.56} parent=0 // pred_check
    _
  $region7: #{encoder_cnn_forward.56} parent=0 // pred_check_branch
    %1698 = sbr.rel (0) target = $region9
  $region8: #{encoder_cnn_forward.56} parent=0 // pred_region
    _
  $region9: #{encoder_cnn_forward.56} parent=0 // pred_fallthru
    _
  // Predicated region
  $region10: #{encoder_cnn_forward.56} parent=0 // pred_check
    _
  $region11: #{encoder_cnn_forward.56} parent=0 // pred_check_branch
    %1700 = sbr.rel (0) target = $region13
  $region12: #{encoder_cnn_forward.56} parent=0 // pred_region
    _
  $region13: #{encoder_cnn_forward.56} parent=0 // pred_fallthru
    _

// kernel: encoder_cnn_forward.55
$region0: #{encoder_cnn_forward.55}
  #allocation0 [shape = 'u32[]', space=smem, size = 0x4, offset = 0x4, fixed_abs, tag = 'smem constant byte address 0x4 - core index']
  #allocation1 [shape = 'u32[144,128]{1,0:T(1,128)}', space=vmem, size = 0x12000, scoped, tag = 'internal scratch']
  #allocation2 [shape = 'f32[512,128]{1,0:T(8,128)}', space=vmem, size = 0x40000, scoped, tag = 'scratch operand']
  %s0 = inlined_call_operand.vmem [shape: bf16[512,256], index: 0, kind: input, shape index: {}]
  %s1 = inlined_call_operand.vmem [shape: bf16[256,128], index: 1, kind: input, shape index: {}]
  %s2 = inlined_call_operand.vmem [shape: f32[1,128], index: 2, kind: input, shape index: {}]
  %s3 = inlined_call_operand.vmem [shape: f32[512,128], index: 3, kind: output, shape index: {}]
  %s4 = sld [smem:[#allocation0]]
  $region30: #{encoder_cnn_forward.55} parent=0
    _
  %s6 = ssub.s32 1, %s4
  %s7 = scalar_select 0, %s6, %s4
  // Predicated region
  $region2: #{encoder_cnn_forward.55} parent=0 // pred_check
    _
  $region3: #{encoder_cnn_forward.55} parent=0 // pred_check_branch
    %9 = sbr.rel (0) target = $region5
  $region4: #{encoder_cnn_forward.55} parent=0 // pred_region
    _
  $region5: #{encoder_cnn_forward.55} parent=0 // pred_fallthru
    _
  // Predicated region
  $region6: #{encoder_cnn_forward.55} parent=0 // pred_check
    _
  $region7: #{encoder_cnn_forward.55} parent=0 // pred_check_branch
    %11 = sbr.rel (0) target = $region9
  $region8: #{encoder_cnn_forward.55} parent=0 // pred_region
    _
  $region9: #{encoder_cnn_forward.55} parent=0 // pred_fallthru
    _
  // Predicated region
  $region10: #{encoder_cnn_forward.55} parent=0 // pred_check
    _
  $region11: #{encoder_cnn_forward.55} parent=0 // pred_check_branch
    %13 = sbr.rel (0) target = $region13
  $region12: #{encoder_cnn_forward.55} parent=0 // pred_region
    _
  $region13: #{encoder_cnn_forward.55} parent=0 // pred_fallthru
    _
  %p15 = scmp.eq.s32.totalorder 0, 0
  // Predicated region
  $region14: #{encoder_cnn_forward.55} parent=0 // pred_check
    %p16 = pneg %p15
  $region15: #{encoder_cnn_forward.55} parent=0 // pred_check_branch
    %18 = sbr.rel (%p16) target = $region17
  $region16: #{encoder_cnn_forward.55} parent=0 // pred_region
    %19 = vst [vmem:[#allocation2] sm:$0xff] 0.0
    %20 = vst [vmem:[#allocation2 + $0x8] sm:$0xff] 0.0
    %21 = vst [vmem:[#allocation2 + $0x10] sm:$0xff] 0.0
    %22 = vst [vmem:[#allocation2 + $0x18] sm:$0xff] 0.0
    %23 = vst [vmem:[#allocation2 + $0x20] sm:$0xff] 0.0
    %24 = vst [vmem:[#allocation2 + $0x28] sm:$0xff] 0.0
    %25 = vst [vmem:[#allocation2 + $0x30] sm:$0xff] 0.0
    %26 = vst [vmem:[#allocation2 + $0x38] sm:$0xff] 0.0
    %27 = vst [vmem:[#allocation2 + $0x40] sm:$0xff] 0.0
    %28 = vst [vmem:[#allocation2 + $0x48] sm:$0xff] 0.0
    %29 = vst [vmem:[#allocation2 + $0x50] sm:$0xff] 0.0
    %30 = vst [vmem:[#allocation2 + $0x58] sm:$0xff] 0.0
    %31 = vst [vmem:[#allocation2 + $0x60] sm:$0xff] 0.0
    %32 = vst [vmem:[#allocation2 + $0x68] sm:$0xff] 0.0
    %33 = vst [vmem:[#allocation2 + $0x70] sm:$0xff] 0.0
    %34 = vst [vmem:[#allocation2 + $0x78] sm:$0xff] 0.0
    %35 = vst [vmem:[#allocation2 + $0x80] sm:$0xff] 0.0
    %36 = vst [vmem:[#allocation2 + $0x88] sm:$0xff] 0.0
    %37 = vst [vmem:[#allocation2 + $0x90] sm:$0xff] 0.0
    %38 = vst [vmem:[#allocation2 + $0x98] sm:$0xff] 0.0
    %39 = vst [vmem:[#allocation2 + $0xa0] sm:$0xff] 0.0
    %40 = vst [vmem:[#allocation2 + $0xa8] sm:$0xff] 0.0
    %41 = vst [vmem:[#allocation2 + $0xb0] sm:$0xff] 0.0
    %42 = vst [vmem:[#allocation2 + $0xb8] sm:$0xff] 0.0
    %43 = vst [vmem:[#allocation2 + $0xc0] sm:$0xff] 0.0
    %44 = vst [vmem:[#allocation2 + $0xc8] sm:$0xff] 0.0
    %45 = vst [vmem:[#allocation2 + $0xd0] sm:$0xff] 0.0
    %46 = vst [vmem:[#allocation2 + $0xd8] sm:$0xff] 0.0
    %47 = vst [vmem:[#allocation2 + $0xe0] sm:$0xff] 0.0
    %48 = vst [vmem:[#allocation2 + $0xe8] sm:$0xff] 0.0
    %49 = vst [vmem:[#allocation2 + $0xf0] sm:$0xff] 0.0
    %50 = vst [vmem:[#allocation2 + $0xf8] sm:$0xff] 0.0
    %51 = vst [vmem:[#allocation2 + $0x100] sm:$0xff] 0.0
    %52 = vst [vmem:[#allocation2 + $0x108] sm:$0xff] 0.0
    %53 = vst [vmem:[#allocation2 + $0x110] sm:$0xff] 0.0
    %54 = vst [vmem:[#allocation2 + $0x118] sm:$0xff] 0.0
    %55 = vst [vmem:[#allocation2 + $0x120] sm:$0xff] 0.0
    %56 = vst [vmem:[#allocation2 + $0x128] sm:$0xff] 0.0
    %57 = vst [vmem:[#allocation2 + $0x130] sm:$0xff] 0.0
    %58 = vst [vmem:[#allocation2 + $0x138] sm:$0xff] 0.0
    %59 = vst [vmem:[#allocation2 + $0x140] sm:$0xff] 0.0
    %60 = vst [vmem:[#allocation2 + $0x148] sm:$0xff] 0.0
    %61 = vst [vmem:[#allocation2 + $0x150] sm:$0xff] 0.0
    %62 = vst [vmem:[#allocation2 + $0x158] sm:$0xff] 0.0
    %63 = vst [vmem:[#allocation2 + $0x160] sm:$0xff] 0.0
    %64 = vst [vmem:[#allocation2 + $0x168] sm:$0xff] 0.0
    %65 = vst [vmem:[#allocation2 + $0x170] sm:$0xff] 0.0
    %66 = vst [vmem:[#allocation2 + $0x178] sm:$0xff] 0.0
    %67 = vst [vmem:[#allocation2 + $0x180] sm:$0xff] 0.0
    %68 = vst [vmem:[#allocation2 + $0x188] sm:$0xff] 0.0
    %69 = vst [vmem:[#allocation2 + $0x190] sm:$0xff] 0.0
    %70 = vst [vmem:[#allocation2 + $0x198] sm:$0xff] 0.0
    %71 = vst [vmem:[#allocation2 + $0x1a0] sm:$0xff] 0.0
    %72 = vst [vmem:[#allocation2 + $0x1a8] sm:$0xff] 0.0
    %73 = vst [vmem:[#allocation2 + $0x1b0] sm:$0xff] 0.0
    %74 = vst [vmem:[#allocation2 + $0x1b8] sm:$0xff] 0.0
    %75 = vst [vmem:[#allocation2 + $0x1c0] sm:$0xff] 0.0
    %76 = vst [vmem:[#allocation2 + $0x1c8] sm:$0xff] 0.0
    %77 = vst [vmem:[#allocation2 + $0x1d0] sm:$0xff] 0.0
    %78 = vst [vmem:[#allocation2 + $0x1d8] sm:$0xff] 0.0
    %79 = vst [vmem:[#allocation2 + $0x1e0] sm:$0xff] 0.0
    %80 = vst [vmem:[#allocation2 + $0x1e8] sm:$0xff] 0.0
    %81 = vst [vmem:[#allocation2 + $0x1f0] sm:$0xff] 0.0
    %82 = vst [vmem:[#allocation2 + $0x1f8] sm:$0xff] 0.0
  $region17: #{encoder_cnn_forward.55} parent=0 // pred_fallthru
    _
  %v83 = vld [vmem:[#allocation2] sm:$0xff]
  %v84 = vld [vmem:[#allocation2 + $0x8] sm:$0xff]
  %v85 = vld [vmem:[#allocation2 + $0x10] sm:$0xff]
  %v86 = vld [vmem:[#allocation2 + $0x18] sm:$0xff]
  %v87 = vld [vmem:[#allocation2 + $0x20] sm:$0xff]
  %v88 = vld [vmem:[#allocation2 + $0x28] sm:$0xff]
  %v89 = vld [vmem:[#allocation2 + $0x30] sm:$0xff]
  %v90 = vld [vmem:[#allocation2 + $0x38] sm:$0xff]
  %v91 = vld [vmem:[#allocation2 + $0x40] sm:$0xff]
  %v92 = vld [vmem:[#allocation2 + $0x48] sm:$0xff]
  %v93 = vld [vmem:[#allocation2 + $0x50] sm:$0xff]
  %v94 = vld [vmem:[#allocation2 + $0x58] sm:$0xff]
  %v95 = vld [vmem:[#allocation2 + $0x60] sm:$0xff]
  %v96 = vld [vmem:[#allocation2 + $0x68] sm:$0xff]
  %v97 = vld [vmem:[#allocation2 + $0x70] sm:$0xff]
  %v98 = vld [vmem:[#allocation2 + $0x78] sm:$0xff]
  %v99 = vld [vmem:[#allocation2 + $0x80] sm:$0xff]
  %v100 = vld [vmem:[#allocation2 + $0x88] sm:$0xff]
  %v101 = vld [vmem:[#allocation2 + $0x90] sm:$0xff]
  %v102 = vld [vmem:[#allocation2 + $0x98] sm:$0xff]
  %v103 = vld [vmem:[#allocation2 + $0xa0] sm:$0xff]
  %v104 = vld [vmem:[#allocation2 + $0xa8] sm:$0xff]
  %v105 = vld [vmem:[#allocation2 + $0xb0] sm:$0xff]
  %v106 = vld [vmem:[#allocation2 + $0xb8] sm:$0xff]
  %v107 = vld [vmem:[#allocation2 + $0xc0] sm:$0xff]
  %v108 = vld [vmem:[#allocation2 + $0xc8] sm:$0xff]
  %v109 = vld [vmem:[#allocation2 + $0xd0] sm:$0xff]
  %v110 = vld [vmem:[#allocation2 + $0xd8] sm:$0xff]
  %v111 = vld [vmem:[#allocation2 + $0xe0] sm:$0xff]
  %v112 = vld [vmem:[#allocation2 + $0xe8] sm:$0xff]
  %v113 = vld [vmem:[#allocation2 + $0xf0] sm:$0xff]
  %v114 = vld [vmem:[#allocation2 + $0xf8] sm:$0xff]
  %v115 = vld [vmem:[#allocation2 + $0x100] sm:$0xff]
  %v116 = vld [vmem:[#allocation2 + $0x108] sm:$0xff]
  %v117 = vld [vmem:[#allocation2 + $0x110] sm:$0xff]
  %v118 = vld [vmem:[#allocation2 + $0x118] sm:$0xff]
  %v119 = vld [vmem:[#allocation2 + $0x120] sm:$0xff]
  %v120 = vld [vmem:[#allocation2 + $0x128] sm:$0xff]
  %v121 = vld [vmem:[#allocation2 + $0x130] sm:$0xff]
  %v122 = vld [vmem:[#allocation2 + $0x138] sm:$0xff]
  %v123 = vld [vmem:[#allocation2 + $0x140] sm:$0xff]
  %v124 = vld [vmem:[#allocation2 + $0x148] sm:$0xff]
  %v125 = vld [vmem:[#allocation2 + $0x150] sm:$0xff]
  %v126 = vld [vmem:[#allocation2 + $0x158] sm:$0xff]
  %v127 = vld [vmem:[#allocation2 + $0x160] sm:$0xff]
  %v128 = vld [vmem:[#allocation2 + $0x168] sm:$0xff]
  %v129 = vld [vmem:[#allocation2 + $0x170] sm:$0xff]
  %v130 = vld [vmem:[#allocation2 + $0x178] sm:$0xff]
  %v131 = vld [vmem:[#allocation2 + $0x180] sm:$0xff]
  %v132 = vld [vmem:[#allocation2 + $0x188] sm:$0xff]
  %v133 = vld [vmem:[#allocation2 + $0x190] sm:$0xff]
  %v134 = vld [vmem:[#allocation2 + $0x198] sm:$0xff]
  %v135 = vld [vmem:[#allocation2 + $0x1a0] sm:$0xff]
  %v136 = vld [vmem:[#allocation2 + $0x1a8] sm:$0xff]
  %v137 = vld [vmem:[#allocation2 + $0x1b0] sm:$0xff]
  %v138 = vld [vmem:[#allocation2 + $0x1b8] sm:$0xff]
  %v139 = vld [vmem:[#allocation2 + $0x1c0] sm:$0xff]
  %v140 = vld [vmem:[#allocation2 + $0x1c8] sm:$0xff]
  %v141 = vld [vmem:[#allocation2 + $0x1d0] sm:$0xff]
  %v142 = vld [vmem:[#allocation2 + $0x1d8] sm:$0xff]
  %v143 = vld [vmem:[#allocation2 + $0x1e0] sm:$0xff]
  %v144 = vld [vmem:[#allocation2 + $0x1e8] sm:$0xff]
  %v145 = vld [vmem:[#allocation2 + $0x1f0] sm:$0xff]
  %v146 = vld [vmem:[#allocation2 + $0x1f8] sm:$0xff]
  %v147 = vld [vmem:[%s0] sm:$0xff]
  %v148 = vld [vmem:[%s0 + $0x8] sm:$0xff]
  %v149 = vld [vmem:[%s0 + $0x10] sm:$0xff]
  %v150 = vld [vmem:[%s0 + $0x18] sm:$0xff]
  %v151 = vld [vmem:[%s0 + $0x20] sm:$0xff]
  %v152 = vld [vmem:[%s0 + $0x28] sm:$0xff]
  %v153 = vld [vmem:[%s0 + $0x30] sm:$0xff]
  %v154 = vld [vmem:[%s0 + $0x38] sm:$0xff]
  %v155 = vld [vmem:[%s0 + $0x40] sm:$0xff]
  %v156 = vld [vmem:[%s0 + $0x48] sm:$0xff]
  %v157 = vld [vmem:[%s0 + $0x50] sm:$0xff]
  %v158 = vld [vmem:[%s0 + $0x58] sm:$0xff]
  %v159 = vld [vmem:[%s0 + $0x60] sm:$0xff]
  %v160 = vld [vmem:[%s0 + $0x68] sm:$0xff]
  %v161 = vld [vmem:[%s0 + $0x70] sm:$0xff]
  %v162 = vld [vmem:[%s0 + $0x78] sm:$0xff]
  %v163 = vld [vmem:[%s0 + $0x80] sm:$0xff]
  %v164 = vld [vmem:[%s0 + $0x88] sm:$0xff]
  %v165 = vld [vmem:[%s0 + $0x90] sm:$0xff]
  %v166 = vld [vmem:[%s0 + $0x98] sm:$0xff]
  %v167 = vld [vmem:[%s0 + $0xa0] sm:$0xff]
  %v168 = vld [vmem:[%s0 + $0xa8] sm:$0xff]
  %v169 = vld [vmem:[%s0 + $0xb0] sm:$0xff]
  %v170 = vld [vmem:[%s0 + $0xb8] sm:$0xff]
  %v171 = vld [vmem:[%s0 + $0xc0] sm:$0xff]
  %v172 = vld [vmem:[%s0 + $0xc8] sm:$0xff]
  %v173 = vld [vmem:[%s0 + $0xd0] sm:$0xff]
  %v174 = vld [vmem:[%s0 + $0xd8] sm:$0xff]
  %v175 = vld [vmem:[%s0 + $0xe0] sm:$0xff]
  %v176 = vld [vmem:[%s0 + $0xe8] sm:$0xff]
  %v177 = vld [vmem:[%s0 + $0xf0] sm:$0xff]
  %v178 = vld [vmem:[%s0 + $0xf8] sm:$0xff]
  %v179 = vld [vmem:[%s0 + $0x100] sm:$0xff]
  %v180 = vld [vmem:[%s0 + $0x108] sm:$0xff]
  %v181 = vld [vmem:[%s0 + $0x110] sm:$0xff]
  %v182 = vld [vmem:[%s0 + $0x118] sm:$0xff]
  %v183 = vld [vmem:[%s0 + $0x120] sm:$0xff]
  %v184 = vld [vmem:[%s0 + $0x128] sm:$0xff]
  %v185 = vld [vmem:[%s0 + $0x130] sm:$0xff]
  %v186 = vld [vmem:[%s0 + $0x138] sm:$0xff]
  %v187 = vld [vmem:[%s0 + $0x140] sm:$0xff]
  %v188 = vld [vmem:[%s0 + $0x148] sm:$0xff]
  %v189 = vld [vmem:[%s0 + $0x150] sm:$0xff]
  %v190 = vld [vmem:[%s0 + $0x158] sm:$0xff]
  %v191 = vld [vmem:[%s0 + $0x160] sm:$0xff]
  %v192 = vld [vmem:[%s0 + $0x168] sm:$0xff]
  %v193 = vld [vmem:[%s0 + $0x170] sm:$0xff]
  %v194 = vld [vmem:[%s0 + $0x178] sm:$0xff]
  %v195 = vld [vmem:[%s0 + $0x180] sm:$0xff]
  %v196 = vld [vmem:[%s0 + $0x188] sm:$0xff]
  %v197 = vld [vmem:[%s0 + $0x190] sm:$0xff]
  %v198 = vld [vmem:[%s0 + $0x198] sm:$0xff]
  %v199 = vld [vmem:[%s0 + $0x1a0] sm:$0xff]
  %v200 = vld [vmem:[%s0 + $0x1a8] sm:$0xff]
  %v201 = vld [vmem:[%s0 + $0x1b0] sm:$0xff]
  %v202 = vld [vmem:[%s0 + $0x1b8] sm:$0xff]
  %v203 = vld [vmem:[%s0 + $0x1c0] sm:$0xff]
  %v204 = vld [vmem:[%s0 + $0x1c8] sm:$0xff]
  %v205 = vld [vmem:[%s0 + $0x1d0] sm:$0xff]
  %v206 = vld [vmem:[%s0 + $0x1d8] sm:$0xff]
  %v207 = vld [vmem:[%s0 + $0x1e0] sm:$0xff]
  %v208 = vld [vmem:[%s0 + $0x1e8] sm:$0xff]
  %v209 = vld [vmem:[%s0 + $0x1f0] sm:$0xff]
  %v210 = vld [vmem:[%s0 + $0x1f8] sm:$0xff]
  %v211 = vld [vmem:[%s1] sm:$0xf]
  %v212 = vld [vmem:[%s1 + $0x4] sm:$0xf]
  %v213 = vld [vmem:[%s1 + $0x8] sm:$0xf]
  %v214 = vld [vmem:[%s1 + $0xc] sm:$0xf]
  %v215 = vld [vmem:[%s1 + $0x10] sm:$0xf]
  %v216 = vld [vmem:[%s1 + $0x14] sm:$0xf]
  %v217 = vld [vmem:[%s1 + $0x18] sm:$0xf]
  %v218 = vld [vmem:[%s1 + $0x1c] sm:$0xf]
  %v219 = vld [vmem:[%s1 + $0x20] sm:$0xf]
  %v220 = vld [vmem:[%s1 + $0x24] sm:$0xf]
  %v221 = vld [vmem:[%s1 + $0x28] sm:$0xf]
  %v222 = vld [vmem:[%s1 + $0x2c] sm:$0xf]
  %v223 = vld [vmem:[%s1 + $0x30] sm:$0xf]
  %v224 = vld [vmem:[%s1 + $0x34] sm:$0xf]
  %v225 = vld [vmem:[%s1 + $0x38] sm:$0xf]
  %v226 = vld [vmem:[%s1 + $0x3c] sm:$0xf]
  %v227 = vld [vmem:[%s1 + $0x40] sm:$0xf]
  %v228 = vld [vmem:[%s1 + $0x44] sm:$0xf]
  %v229 = vld [vmem:[%s1 + $0x48] sm:$0xf]
  %v230 = vld [vmem:[%s1 + $0x4c] sm:$0xf]
  %v231 = vld [vmem:[%s1 + $0x50] sm:$0xf]
  %v232 = vld [vmem:[%s1 + $0x54] sm:$0xf]
  %v233 = vld [vmem:[%s1 + $0x58] sm:$0xf]
  %v234 = vld [vmem:[%s1 + $0x5c] sm:$0xf]
  %v235 = vld [vmem:[%s1 + $0x60] sm:$0xf]
  %v236 = vld [vmem:[%s1 + $0x64] sm:$0xf]
  %v237 = vld [vmem:[%s1 + $0x68] sm:$0xf]
  %v238 = vld [vmem:[%s1 + $0x6c] sm:$0xf]
  %v239 = vld [vmem:[%s1 + $0x70] sm:$0xf]
  %v240 = vld [vmem:[%s1 + $0x74] sm:$0xf]
  %v241 = vld [vmem:[%s1 + $0x78] sm:$0xf]
  %v242 = vld [vmem:[%s1 + $0x7c] sm:$0xf]
  %v307 = vunpack.c.l.b16 %v147
  %v308 = vunpack.c.h.b16 %v147
  %v309 = vunpack.c.l.b16 %v148
  %v310 = vunpack.c.h.b16 %v148
  %v311 = vunpack.c.l.b16 %v149
  %v312 = vunpack.c.h.b16 %v149
  %v313 = vunpack.c.l.b16 %v150
  %v314 = vunpack.c.h.b16 %v150
  %v315 = vunpack.c.l.b16 %v151
  %v316 = vunpack.c.h.b16 %v151
  %v317 = vunpack.c.l.b16 %v152
  %v318 = vunpack.c.h.b16 %v152
  %v319 = vunpack.c.l.b16 %v153
  %v320 = vunpack.c.h.b16 %v153
  %v321 = vunpack.c.l.b16 %v154
  %v322 = vunpack.c.h.b16 %v154
  %v323 = vunpack.c.l.b16 %v155
  %v324 = vunpack.c.h.b16 %v155
  %v325 = vunpack.c.l.b16 %v156
  %v326 = vunpack.c.h.b16 %v156
  %v327 = vunpack.c.l.b16 %v157
  %v328 = vunpack.c.h.b16 %v157
  %v329 = vunpack.c.l.b16 %v158
  %v330 = vunpack.c.h.b16 %v158
  %v331 = vunpack.c.l.b16 %v159
  %v332 = vunpack.c.h.b16 %v159
  %v333 = vunpack.c.l.b16 %v160
  %v334 = vunpack.c.h.b16 %v160
  %v335 = vunpack.c.l.b16 %v161
  %v336 = vunpack.c.h.b16 %v161
  %v337 = vunpack.c.l.b16 %v162
  %v338 = vunpack.c.h.b16 %v162
  %v339 = vunpack.c.l.b16 %v163
  %v340 = vunpack.c.h.b16 %v163
  %v341 = vunpack.c.l.b16 %v164
  %v342 = vunpack.c.h.b16 %v164
  %v343 = vunpack.c.l.b16 %v165
  %v344 = vunpack.c.h.b16 %v165
  %v345 = vunpack.c.l.b16 %v166
  %v346 = vunpack.c.h.b16 %v166
  %v347 = vunpack.c.l.b16 %v167
  %v348 = vunpack.c.h.b16 %v167
  %v349 = vunpack.c.l.b16 %v168
  %v350 = vunpack.c.h.b16 %v168
  %v351 = vunpack.c.l.b16 %v169
  %v352 = vunpack.c.h.b16 %v169
  %v353 = vunpack.c.l.b16 %v170
  %v354 = vunpack.c.h.b16 %v170
  %v355 = vunpack.c.l.b16 %v171
  %v356 = vunpack.c.h.b16 %v171
  %v357 = vunpack.c.l.b16 %v172
  %v358 = vunpack.c.h.b16 %v172
  %v359 = vunpack.c.l.b16 %v173
  %v360 = vunpack.c.h.b16 %v173
  %v361 = vunpack.c.l.b16 %v174
  %v362 = vunpack.c.h.b16 %v174
  %v363 = vunpack.c.l.b16 %v175
  %v364 = vunpack.c.h.b16 %v175
  %v365 = vunpack.c.l.b16 %v176
  %v366 = vunpack.c.h.b16 %v176
  %v367 = vunpack.c.l.b16 %v177
  %v368 = vunpack.c.h.b16 %v177
  %v369 = vunpack.c.l.b16 %v178
  %v370 = vunpack.c.h.b16 %v178
  %v371 = vunpack.c.l.b16 %v179
  %v372 = vunpack.c.h.b16 %v179
  %v373 = vunpack.c.l.b16 %v180
  %v374 = vunpack.c.h.b16 %v180
  %v375 = vunpack.c.l.b16 %v181
  %v376 = vunpack.c.h.b16 %v181
  %v377 = vunpack.c.l.b16 %v182
  %v378 = vunpack.c.h.b16 %v182
  %v379 = vunpack.c.l.b16 %v183
  %v380 = vunpack.c.h.b16 %v183
  %v381 = vunpack.c.l.b16 %v184
  %v382 = vunpack.c.h.b16 %v184
  %v383 = vunpack.c.l.b16 %v185
  %v384 = vunpack.c.h.b16 %v185
  %v385 = vunpack.c.l.b16 %v186
  %v386 = vunpack.c.h.b16 %v186
  %v387 = vunpack.c.l.b16 %v187
  %v388 = vunpack.c.h.b16 %v187
  %v389 = vunpack.c.l.b16 %v188
  %v390 = vunpack.c.h.b16 %v188
  %v391 = vunpack.c.l.b16 %v189
  %v392 = vunpack.c.h.b16 %v189
  %v393 = vunpack.c.l.b16 %v190
  %v394 = vunpack.c.h.b16 %v190
  %v395 = vunpack.c.l.b16 %v191
  %v396 = vunpack.c.h.b16 %v191
  %v397 = vunpack.c.l.b16 %v192
  %v398 = vunpack.c.h.b16 %v192
  %v399 = vunpack.c.l.b16 %v193
  %v400 = vunpack.c.h.b16 %v193
  %v401 = vunpack.c.l.b16 %v194
  %v402 = vunpack.c.h.b16 %v194
  %v403 = vunpack.c.l.b16 %v195
  %v404 = vunpack.c.h.b16 %v195
  %v405 = vunpack.c.l.b16 %v196
  %v406 = vunpack.c.h.b16 %v196
  %v407 = vunpack.c.l.b16 %v197
  %v408 = vunpack.c.h.b16 %v197
  %v409 = vunpack.c.l.b16 %v198
  %v410 = vunpack.c.h.b16 %v198
  %v411 = vunpack.c.l.b16 %v199
  %v412 = vunpack.c.h.b16 %v199
  %v413 = vunpack.c.l.b16 %v200
  %v414 = vunpack.c.h.b16 %v200
  %v415 = vunpack.c.l.b16 %v201
  %v416 = vunpack.c.h.b16 %v201
  %v417 = vunpack.c.l.b16 %v202
  %v418 = vunpack.c.h.b16 %v202
  %v419 = vunpack.c.l.b16 %v203
  %v420 = vunpack.c.h.b16 %v203
  %v421 = vunpack.c.l.b16 %v204
  %v422 = vunpack.c.h.b16 %v204
  %v423 = vunpack.c.l.b16 %v205
  %v424 = vunpack.c.h.b16 %v205
  %v425 = vunpack.c.l.b16 %v206
  %v426 = vunpack.c.h.b16 %v206
  %v427 = vunpack.c.l.b16 %v207
  %v428 = vunpack.c.h.b16 %v207
  %v429 = vunpack.c.l.b16 %v208
  %v430 = vunpack.c.h.b16 %v208
  %v431 = vunpack.c.l.b16 %v209
  %v432 = vunpack.c.h.b16 %v209
  %v433 = vunpack.c.l.b16 %v210
  %v434 = vunpack.c.h.b16 %v210
  %v435 = vpack.c.b16 %v309, %v307
  %v436 = vpack.c.b16 %v310, %v308
  %v437 = vpack.c.b16 %v313, %v311
  %v438 = vpack.c.b16 %v314, %v312
  %v439 = vpack.c.b16 %v317, %v315
  %v440 = vpack.c.b16 %v318, %v316
  %v441 = vpack.c.b16 %v321, %v319
  %v442 = vpack.c.b16 %v322, %v320
  %v443 = vpack.c.b16 %v325, %v323
  %v444 = vpack.c.b16 %v326, %v324
  %v445 = vpack.c.b16 %v329, %v327
  %v446 = vpack.c.b16 %v330, %v328
  %v447 = vpack.c.b16 %v333, %v331
  %v448 = vpack.c.b16 %v334, %v332
  %v449 = vpack.c.b16 %v337, %v335
  %v450 = vpack.c.b16 %v338, %v336
  %v451 = vpack.c.b16 %v341, %v339
  %v452 = vpack.c.b16 %v342, %v340
  %v453 = vpack.c.b16 %v345, %v343
  %v454 = vpack.c.b16 %v346, %v344
  %v455 = vpack.c.b16 %v349, %v347
  %v456 = vpack.c.b16 %v350, %v348
  %v457 = vpack.c.b16 %v353, %v351
  %v458 = vpack.c.b16 %v354, %v352
  %v459 = vpack.c.b16 %v357, %v355
  %v460 = vpack.c.b16 %v358, %v356
  %v461 = vpack.c.b16 %v361, %v359
  %v462 = vpack.c.b16 %v362, %v360
  %v463 = vpack.c.b16 %v365, %v363
  %v464 = vpack.c.b16 %v366, %v364
  %v465 = vpack.c.b16 %v369, %v367
  %v466 = vpack.c.b16 %v370, %v368
  %v467 = vpack.c.b16 %v373, %v371
  %v468 = vpack.c.b16 %v374, %v372
  %v469 = vpack.c.b16 %v377, %v375
  %v470 = vpack.c.b16 %v378, %v376
  %v471 = vpack.c.b16 %v381, %v379
  %v472 = vpack.c.b16 %v382, %v380
  %v473 = vpack.c.b16 %v385, %v383
  %v474 = vpack.c.b16 %v386, %v384
  %v475 = vpack.c.b16 %v389, %v387
  %v476 = vpack.c.b16 %v390, %v388
  %v477 = vpack.c.b16 %v393, %v391
  %v478 = vpack.c.b16 %v394, %v392
  %v479 = vpack.c.b16 %v397, %v395
  %v480 = vpack.c.b16 %v398, %v396
  %v481 = vpack.c.b16 %v401, %v399
  %v482 = vpack.c.b16 %v402, %v400
  %v483 = vpack.c.b16 %v405, %v403
  %v484 = vpack.c.b16 %v406, %v404
  %v485 = vpack.c.b16 %v409, %v407
  %v486 = vpack.c.b16 %v410, %v408
  %v487 = vpack.c.b16 %v413, %v411
  %v488 = vpack.c.b16 %v414, %v412
  %v489 = vpack.c.b16 %v417, %v415
  %v490 = vpack.c.b16 %v418, %v416
  %v491 = vpack.c.b16 %v421, %v419
  %v492 = vpack.c.b16 %v422, %v420
  %v493 = vpack.c.b16 %v425, %v423
  %v494 = vpack.c.b16 %v426, %v424
  %v495 = vpack.c.b16 %v429, %v427
  %v496 = vpack.c.b16 %v430, %v428
  %v497 = vpack.c.b16 %v433, %v431
  %v498 = vpack.c.b16 %v434, %v432
  %v595 = vunpack.c.l.b16 %v211
  %v596 = vunpack.c.l.b16 %v212
  %v597 = vunpack.c.l.b16 %v213
  %v598 = vunpack.c.l.b16 %v214
  %v599 = vunpack.c.l.b16 %v215
  %v600 = vunpack.c.l.b16 %v216
  %v601 = vunpack.c.l.b16 %v217
  %v602 = vunpack.c.l.b16 %v218
  %v603 = vunpack.c.l.b16 %v219
  %v604 = vunpack.c.l.b16 %v220
  %v605 = vunpack.c.l.b16 %v221
  %v606 = vunpack.c.l.b16 %v222
  %v607 = vunpack.c.l.b16 %v223
  %v608 = vunpack.c.l.b16 %v224
  %v609 = vunpack.c.l.b16 %v225
  %v610 = vunpack.c.l.b16 %v226
  %v611 = vunpack.c.l.b16 %v227
  %v612 = vunpack.c.l.b16 %v228
  %v613 = vunpack.c.l.b16 %v229
  %v614 = vunpack.c.l.b16 %v230
  %v615 = vunpack.c.l.b16 %v231
  %v616 = vunpack.c.l.b16 %v232
  %v617 = vunpack.c.l.b16 %v233
  %v618 = vunpack.c.l.b16 %v234
  %v619 = vunpack.c.l.b16 %v235
  %v620 = vunpack.c.l.b16 %v236
  %v621 = vunpack.c.l.b16 %v237
  %v622 = vunpack.c.l.b16 %v238
  %v623 = vunpack.c.l.b16 %v239
  %v624 = vunpack.c.l.b16 %v240
  %v625 = vunpack.c.l.b16 %v241
  %v626 = vunpack.c.l.b16 %v242
  %v627 = vpack.c.b16 %v596, %v595
  %v628 = vpack.c.b16 %v598, %v597
  %v629 = vpack.c.b16 %v600, %v599
  %v630 = vpack.c.b16 %v602, %v601
  %v631 = vpack.c.b16 %v604, %v603
  %v632 = vpack.c.b16 %v606, %v605
  %v633 = vpack.c.b16 %v608, %v607
  %v634 = vpack.c.b16 %v610, %v609
  %v635 = vpack.c.b16 %v612, %v611
  %v636 = vpack.c.b16 %v614, %v613
  %v637 = vpack.c.b16 %v616, %v615
  %v638 = vpack.c.b16 %v618, %v617
  %v639 = vpack.c.b16 %v620, %v619
  %v640 = vpack.c.b16 %v622, %v621
  %v641 = vpack.c.b16 %v624, %v623
  %v642 = vpack.c.b16 %v626, %v625
  %659 = vmatprep.subr.bf16.mxu0 0
  %660 = vmatpush1.bf16.msra.mxu0 %v627
  %661 = vmatprep.subr.bf16.mxu0 0
  %662 = vmatpush1.bf16.msra.mxu0 %v628
  %663 = vmatprep.subr.bf16.mxu0 0
  %664 = vmatpush1.bf16.msra.mxu0 %v629
  %665 = vmatprep.subr.bf16.mxu0 0
  %666 = vmatpush1.bf16.msra.mxu0 %v630
  %667 = vmatprep.subr.bf16.mxu0 0
  %668 = vmatpush1.bf16.msra.mxu0 %v631
  %669 = vmatprep.subr.bf16.mxu0 0
  %670 = vmatpush1.bf16.msra.mxu0 %v632
  %671 = vmatprep.subr.bf16.mxu0 0
  %672 = vmatpush1.bf16.msra.mxu0 %v633
  %673 = vmatprep.subr.bf16.mxu0 0
  %674 = vmatpush1.bf16.msra.mxu0 %v634
  %675 = vmatprep.subr.bf16.mxu0 0
  %676 = vmatpush1.bf16.msra.mxu0 %v635
  %677 = vmatprep.subr.bf16.mxu0 0
  %678 = vmatpush1.bf16.msra.mxu0 %v636
  %679 = vmatprep.subr.bf16.mxu0 0
  %680 = vmatpush1.bf16.msra.mxu0 %v637
  %681 = vmatprep.subr.bf16.mxu0 0
  %682 = vmatpush1.bf16.msra.mxu0 %v638
  %683 = vmatprep.subr.bf16.mxu0 0
  %684 = vmatpush1.bf16.msra.mxu0 %v639
  %685 = vmatprep.subr.bf16.mxu0 0
  %686 = vmatpush1.bf16.msra.mxu0 %v640
  %687 = vmatprep.subr.bf16.mxu0 0
  %688 = vmatpush1.bf16.msra.mxu0 %v641
  %689 = vmatprep.subr.bf16.mxu0 0
  %690 = vmatpush1.bf16.msra.mxu0 %v642
  %691 = vmatprep.mubr.bf16.mxu0 %v436
  %692 = vmatmul.mubr.bf16.gmra.mrb[0].mxu0 %v435
  %v693 = vpop.f32.mrb[0].mxu0
  %v694 = vadd.f32 0.0, %v693
  %v695 = vpop.f32.mrb[0].mxu0
  %v696 = vpop.f32.mrb[0].mxu0
  %v697 = vadd.f32 0.0, %v696
  %v698 = vpop.f32.mrb[0].mxu0
  %699 = vmatprep.mubr.bf16.mxu0 %v438
  %700 = vmatmul.mubr.bf16.gmra.mrb[0].mxu0 %v437
  %v701 = vpop.f32.mrb[0].mxu0
  %v702 = vadd.f32 0.0, %v701
  %v703 = vpop.f32.mrb[0].mxu0
  %v704 = vpop.f32.mrb[0].mxu0
  %v705 = vadd.f32 0.0, %v704
  %v706 = vpop.f32.mrb[0].mxu0
  %707 = vmatprep.mubr.bf16.mxu0 %v440
  %708 = vmatmul.mubr.bf16.gmra.mrb[0].mxu0 %v439
  %v709 = vpop.f32.mrb[0].mxu0
  %v710 = vadd.f32 0.0, %v709
  %v711 = vpop.f32.mrb[0].mxu0
  %v712 = vpop.f32.mrb[0].mxu0
  %v713 = vadd.f32 0.0, %v712
  %v714 = vpop.f32.mrb[0].mxu0
  %715 = vmatprep.mubr.bf16.mxu0 %v442
  %716 = vmatmul.mubr.bf16.gmra.mrb[0].mxu0 %v441
  %v717 = vpop.f32.mrb[0].mxu0
  %v718 = vadd.f32 0.0, %v717
  %v719 = vpop.f32.mrb[0].mxu0
  %v720 = vpop.f32.mrb[0].mxu0
  %v721 = vadd.f32 0.0, %v720
  %v722 = vpop.f32.mrb[0].mxu0
  %723 = vmatprep.mubr.bf16.mxu0 %v444
  %724 = vmatmul.mubr.bf16.gmra.mrb[0].mxu0 %v443
  %v725 = vpop.f32.mrb[0].mxu0
  %v726 = vadd.f32 0.0, %v725
  %v727 = vpop.f32.mrb[0].mxu0
  %v728 = vpop.f32.mrb[0].mxu0
  %v729 = vadd.f32 0.0, %v728
  %v730 = vpop.f32.mrb[0].mxu0
  %731 = vmatprep.mubr.bf16.mxu0 %v446
  %732 = vmatmul.mubr.bf16.gmra.mrb[0].mxu0 %v445
  %v733 = vpop.f32.mrb[0].mxu0
  %v734 = vadd.f32 0.0, %v733
  %v735 = vpop.f32.mrb[0].mxu0
  %v736 = vpop.f32.mrb[0].mxu0
  %v737 = vadd.f32 0.0, %v736
  %v738 = vpop.f32.mrb[0].mxu0
  %739 = vmatprep.mubr.bf16.mxu0 %v448
  %740 = vmatmul.mubr.bf16.gmra.mrb[0].mxu0 %v447
  %v741 = vpop.f32.mrb[0].mxu0
  %v742 = vadd.f32 0.0, %v741
  %v743 = vpop.f32.mrb[0].mxu0
  %v744 = vpop.f32.mrb[0].mxu0
  %v745 = vadd.f32 0.0, %v744
  %v746 = vpop.f32.mrb[0].mxu0
  %747 = vmatprep.mubr.bf16.mxu0 %v450
  %748 = vmatmul.mubr.bf16.gmra.mrb[0].mxu0 %v449
  %v749 = vpop.f32.mrb[0].mxu0
  %v750 = vadd.f32 0.0, %v749
  %v751 = vpop.f32.mrb[0].mxu0
  %v752 = vpop.f32.mrb[0].mxu0
  %v753 = vadd.f32 0.0, %v752
  %v754 = vpop.f32.mrb[0].mxu0
  %755 = vmatprep.mubr.bf16.mxu0 %v452
  %756 = vmatmul.mubr.bf16.gmra.mrb[0].mxu0 %v451
  %v757 = vpop.f32.mrb[0].mxu0
  %v758 = vadd.f32 0.0, %v757
  %v759 = vpop.f32.mrb[0].mxu0
  %v760 = vpop.f32.mrb[0].mxu0
  %v761 = vadd.f32 0.0, %v760
  %v762 = vpop.f32.mrb[0].mxu0
  %763 = vmatprep.mubr.bf16.mxu0 %v454
  %764 = vmatmul.mubr.bf16.gmra.mrb[0].mxu0 %v453
  %v765 = vpop.f32.mrb[0].mxu0
  %v766 = vadd.f32 0.0, %v765
  %v767 = vpop.f32.mrb[0].mxu0
  %v768 = vpop.f32.mrb[0].mxu0
  %v769 = vadd.f32 0.0, %v768
  %v770 = vpop.f32.mrb[0].mxu0
  %771 = vmatprep.mubr.bf16.mxu0 %v456
  %772 = vmatmul.mubr.bf16.gmra.mrb[0].mxu0 %v455
  %v773 = vpop.f32.mrb[0].mxu0
  %v774 = vadd.f32 0.0, %v773
  %v775 = vpop.f32.mrb[0].mxu0
  %v776 = vpop.f32.mrb[0].mxu0
  %v777 = vadd.f32 0.0, %v776
  %v778 = vpop.f32.mrb[0].mxu0
  %779 = vmatprep.mubr.bf16.mxu0 %v458
  %780 = vmatmul.mubr.bf16.gmra.mrb[0].mxu0 %v457
  %v781 = vpop.f32.mrb[0].mxu0
  %v782 = vadd.f32 0.0, %v781
  %v783 = vpop.f32.mrb[0].mxu0
  %v784 = vpop.f32.mrb[0].mxu0
  %v785 = vadd.f32 0.0, %v784
  %v786 = vpop.f32.mrb[0].mxu0
  %787 = vmatprep.mubr.bf16.mxu0 %v460
  %788 = vmatmul.mubr.bf16.gmra.mrb[0].mxu0 %v459
  %v789 = vpop.f32.mrb[0].mxu0
  %v790 = vadd.f32 0.0, %v789
  %v791 = vpop.f32.mrb[0].mxu0
  %v792 = vpop.f32.mrb[0].mxu0
  %v793 = vadd.f32 0.0, %v792
  %v794 = vpop.f32.mrb[0].mxu0
  %795 = vmatprep.mubr.bf16.mxu0 %v462
  %796 = vmatmul.mubr.bf16.gmra.mrb[0].mxu0 %v461
  %v797 = vpop.f32.mrb[0].mxu0
  %v798 = vadd.f32 0.0, %v797
  %v799 = vpop.f32.mrb[0].mxu0
  %v800 = vpop.f32.mrb[0].mxu0
  %v801 = vadd.f32 0.0, %v800
  %v802 = vpop.f32.mrb[0].mxu0
  %803 = vmatprep.mubr.bf16.mxu0 %v464
  %804 = vmatmul.mubr.bf16.gmra.mrb[0].mxu0 %v463
  %v805 = vpop.f32.mrb[0].mxu0
  %v806 = vadd.f32 0.0, %v805
  %v807 = vpop.f32.mrb[0].mxu0
  %v808 = vpop.f32.mrb[0].mxu0
  %v809 = vadd.f32 0.0, %v808
  %v810 = vpop.f32.mrb[0].mxu0
  %811 = vmatprep.mubr.bf16.mxu0 %v466
  %812 = vmatmul.mubr.bf16.gmra.mrb[0].mxu0 %v465
  %v813 = vpop.f32.mrb[0].mxu0
  %v814 = vadd.f32 0.0, %v813
  %v815 = vpop.f32.mrb[0].mxu0
  %v816 = vpop.f32.mrb[0].mxu0
  %v817 = vadd.f32 0.0, %v816
  %v818 = vpop.f32.mrb[0].mxu0
  %819 = vmatprep.mubr.bf16.mxu0 %v468
  %820 = vmatmul.mubr.bf16.gmra.mrb[0].mxu0 %v467
  %v821 = vpop.f32.mrb[0].mxu0
  %v822 = vadd.f32 0.0, %v821
  %v823 = vpop.f32.mrb[0].mxu0
  %v824 = vpop.f32.mrb[0].mxu0
  %v825 = vadd.f32 0.0, %v824
  %v826 = vpop.f32.mrb[0].mxu0
  %827 = vmatprep.mubr.bf16.mxu0 %v470
  %828 = vmatmul.mubr.bf16.gmra.mrb[0].mxu0 %v469
  %v829 = vpop.f32.mrb[0].mxu0
  %v830 = vadd.f32 0.0, %v829
  %v831 = vpop.f32.mrb[0].mxu0
  %v832 = vpop.f32.mrb[0].mxu0
  %v833 = vadd.f32 0.0, %v832
  %v834 = vpop.f32.mrb[0].mxu0
  %835 = vmatprep.mubr.bf16.mxu0 %v472
  %836 = vmatmul.mubr.bf16.gmra.mrb[0].mxu0 %v471
  %v837 = vpop.f32.mrb[0].mxu0
  %v838 = vadd.f32 0.0, %v837
  %v839 = vpop.f32.mrb[0].mxu0
  %v840 = vpop.f32.mrb[0].mxu0
  %v841 = vadd.f32 0.0, %v840
  %v842 = vpop.f32.mrb[0].mxu0
  %843 = vmatprep.mubr.bf16.mxu0 %v474
  %844 = vmatmul.mubr.bf16.gmra.mrb[0].mxu0 %v473
  %v845 = vpop.f32.mrb[0].mxu0
  %v846 = vadd.f32 0.0, %v845
  %v847 = vpop.f32.mrb[0].mxu0
  %v848 = vpop.f32.mrb[0].mxu0
  %v849 = vadd.f32 0.0, %v848
  %v850 = vpop.f32.mrb[0].mxu0
  %851 = vmatprep.mubr.bf16.mxu0 %v476
  %852 = vmatmul.mubr.bf16.gmra.mrb[0].mxu0 %v475
  %v853 = vpop.f32.mrb[0].mxu0
  %v854 = vadd.f32 0.0, %v853
  %v855 = vpop.f32.mrb[0].mxu0
  %v856 = vpop.f32.mrb[0].mxu0
  %v857 = vadd.f32 0.0, %v856
  %v858 = vpop.f32.mrb[0].mxu0
  %859 = vmatprep.mubr.bf16.mxu0 %v478
  %860 = vmatmul.mubr.bf16.gmra.mrb[0].mxu0 %v477
  %v861 = vpop.f32.mrb[0].mxu0
  %v862 = vadd.f32 0.0, %v861
  %v863 = vpop.f32.mrb[0].mxu0
  %v864 = vpop.f32.mrb[0].mxu0
  %v865 = vadd.f32 0.0, %v864
  %v866 = vpop.f32.mrb[0].mxu0
  %867 = vmatprep.mubr.bf16.mxu0 %v480
  %868 = vmatmul.mubr.bf16.gmra.mrb[0].mxu0 %v479
  %v869 = vpop.f32.mrb[0].mxu0
  %v870 = vadd.f32 0.0, %v869
  %v871 = vpop.f32.mrb[0].mxu0
  %v872 = vpop.f32.mrb[0].mxu0
  %v873 = vadd.f32 0.0, %v872
  %v874 = vpop.f32.mrb[0].mxu0
  %875 = vmatprep.mubr.bf16.mxu0 %v482
  %876 = vmatmul.mubr.bf16.gmra.mrb[0].mxu0 %v481
  %v877 = vpop.f32.mrb[0].mxu0
  %v878 = vadd.f32 0.0, %v877
  %v879 = vpop.f32.mrb[0].mxu0
  %v880 = vpop.f32.mrb[0].mxu0
  %v881 = vadd.f32 0.0, %v880
  %v882 = vpop.f32.mrb[0].mxu0
  %883 = vmatprep.mubr.bf16.mxu0 %v484
  %884 = vmatmul.mubr.bf16.gmra.mrb[0].mxu0 %v483
  %v885 = vpop.f32.mrb[0].mxu0
  %v886 = vadd.f32 0.0, %v885
  %v887 = vpop.f32.mrb[0].mxu0
  %v888 = vpop.f32.mrb[0].mxu0
  %v889 = vadd.f32 0.0, %v888
  %v890 = vpop.f32.mrb[0].mxu0
  %891 = vmatprep.mubr.bf16.mxu0 %v486
  %892 = vmatmul.mubr.bf16.gmra.mrb[0].mxu0 %v485
  %v893 = vpop.f32.mrb[0].mxu0
  %v894 = vadd.f32 0.0, %v893
  %v895 = vpop.f32.mrb[0].mxu0
  %v896 = vpop.f32.mrb[0].mxu0
  %v897 = vadd.f32 0.0, %v896
  %v898 = vpop.f32.mrb[0].mxu0
  %899 = vmatprep.mubr.bf16.mxu0 %v488
  %900 = vmatmul.mubr.bf16.gmra.mrb[0].mxu0 %v487
  %v901 = vpop.f32.mrb[0].mxu0
  %v902 = vadd.f32 0.0, %v901
  %v903 = vpop.f32.mrb[0].mxu0
  %v904 = vpop.f32.mrb[0].mxu0
  %v905 = vadd.f32 0.0, %v904
  %v906 = vpop.f32.mrb[0].mxu0
  %907 = vmatprep.mubr.bf16.mxu0 %v490
  %908 = vmatmul.mubr.bf16.gmra.mrb[0].mxu0 %v489
  %v909 = vpop.f32.mrb[0].mxu0
  %v910 = vadd.f32 0.0, %v909
  %v911 = vpop.f32.mrb[0].mxu0
  %v912 = vpop.f32.mrb[0].mxu0
  %v913 = vadd.f32 0.0, %v912
  %v914 = vpop.f32.mrb[0].mxu0
  %915 = vmatprep.mubr.bf16.mxu0 %v492
  %916 = vmatmul.mubr.bf16.gmra.mrb[0].mxu0 %v491
  %v917 = vpop.f32.mrb[0].mxu0
  %v918 = vadd.f32 0.0, %v917
  %v919 = vpop.f32.mrb[0].mxu0
  %v920 = vpop.f32.mrb[0].mxu0
  %v921 = vadd.f32 0.0, %v920
  %v922 = vpop.f32.mrb[0].mxu0
  %923 = vmatprep.mubr.bf16.mxu0 %v494
  %924 = vmatmul.mubr.bf16.gmra.mrb[0].mxu0 %v493
  %v925 = vpop.f32.mrb[0].mxu0
  %v926 = vadd.f32 0.0, %v925
  %v927 = vpop.f32.mrb[0].mxu0
  %v928 = vpop.f32.mrb[0].mxu0
  %v929 = vadd.f32 0.0, %v928
  %v930 = vpop.f32.mrb[0].mxu0
  %931 = vmatprep.mubr.bf16.mxu0 %v496
  %932 = vmatmul.mubr.bf16.gmra.mrb[0].mxu0 %v495
  %v933 = vpop.f32.mrb[0].mxu0
  %v934 = vadd.f32 0.0, %v933
  %v935 = vpop.f32.mrb[0].mxu0
  %v936 = vpop.f32.mrb[0].mxu0
  %v937 = vadd.f32 0.0, %v936
  %v938 = vpop.f32.mrb[0].mxu0
  %939 = vmatprep.mubr.bf16.mxu0 %v498
  %940 = vmatmul.mubr.bf16.gmra.mrb[0].mxu0 %v497
  %v941 = vpop.f32.mrb[0].mxu0
  %v942 = vadd.f32 0.0, %v941
  %v943 = vpop.f32.mrb[0].mxu0
  %v944 = vpop.f32.mrb[0].mxu0
  %v945 = vadd.f32 0.0, %v944
  %v946 = vpop.f32.mrb[0].mxu0
  %947 = vdwg.mxu0
  %v948 = vadd.f32 %v83, %v694
  %v949 = vadd.f32 %v84, %v697
  %v950 = vadd.f32 %v85, %v702
  %v951 = vadd.f32 %v86, %v705
  %v952 = vadd.f32 %v87, %v710
  %v953 = vadd.f32 %v88, %v713
  %v954 = vadd.f32 %v89, %v718
  %v955 = vadd.f32 %v90, %v721
  %v956 = vadd.f32 %v91, %v726
  %v957 = vadd.f32 %v92, %v729
  %v958 = vadd.f32 %v93, %v734
  %v959 = vadd.f32 %v94, %v737
  %v960 = vadd.f32 %v95, %v742
  %v961 = vadd.f32 %v96, %v745
  %v962 = vadd.f32 %v97, %v750
  %v963 = vadd.f32 %v98, %v753
  %v964 = vadd.f32 %v99, %v758
  %v965 = vadd.f32 %v100, %v761
  %v966 = vadd.f32 %v101, %v766
  %v967 = vadd.f32 %v102, %v769
  %v968 = vadd.f32 %v103, %v774
  %v969 = vadd.f32 %v104, %v777
  %v970 = vadd.f32 %v105, %v782
  %v971 = vadd.f32 %v106, %v785
  %v972 = vadd.f32 %v107, %v790
  %v973 = vadd.f32 %v108, %v793
  %v974 = vadd.f32 %v109, %v798
  %v975 = vadd.f32 %v110, %v801
  %v976 = vadd.f32 %v111, %v806
  %v977 = vadd.f32 %v112, %v809
  %v978 = vadd.f32 %v113, %v814
  %v979 = vadd.f32 %v114, %v817
  %v980 = vadd.f32 %v115, %v822
  %v981 = vadd.f32 %v116, %v825
  %v982 = vadd.f32 %v117, %v830
  %v983 = vadd.f32 %v118, %v833
  %v984 = vadd.f32 %v119, %v838
  %v985 = vadd.f32 %v120, %v841
  %v986 = vadd.f32 %v121, %v846
  %v987 = vadd.f32 %v122, %v849
  %v988 = vadd.f32 %v123, %v854
  %v989 = vadd.f32 %v124, %v857
  %v990 = vadd.f32 %v125, %v862
  %v991 = vadd.f32 %v126, %v865
  %v992 = vadd.f32 %v127, %v870
  %v993 = vadd.f32 %v128, %v873
  %v994 = vadd.f32 %v129, %v878
  %v995 = vadd.f32 %v130, %v881
  %v996 = vadd.f32 %v131, %v886
  %v997 = vadd.f32 %v132, %v889
  %v998 = vadd.f32 %v133, %v894
  %v999 = vadd.f32 %v134, %v897
  %v1000 = vadd.f32 %v135, %v902
  %v1001 = vadd.f32 %v136, %v905
  %v1002 = vadd.f32 %v137, %v910
  %v1003 = vadd.f32 %v138, %v913
  %v1004 = vadd.f32 %v139, %v918
  %v1005 = vadd.f32 %v140, %v921
  %v1006 = vadd.f32 %v141, %v926
  %v1007 = vadd.f32 %v142, %v929
  %v1008 = vadd.f32 %v143, %v934
  %v1009 = vadd.f32 %v144, %v937
  %v1010 = vadd.f32 %v145, %v942
  %v1011 = vadd.f32 %v146, %v945
  %1012 = vst [vmem:[#allocation2] sm:$0xff] %v948
  %1013 = vst [vmem:[#allocation2 + $0x8] sm:$0xff] %v949
  %1014 = vst [vmem:[#allocation2 + $0x10] sm:$0xff] %v950
  %1015 = vst [vmem:[#allocation2 + $0x18] sm:$0xff] %v951
  %1016 = vst [vmem:[#allocation2 + $0x20] sm:$0xff] %v952
  %1017 = vst [vmem:[#allocation2 + $0x28] sm:$0xff] %v953
  %1018 = vst [vmem:[#allocation2 + $0x30] sm:$0xff] %v954
  %1019 = vst [vmem:[#allocation2 + $0x38] sm:$0xff] %v955
  %1020 = vst [vmem:[#allocation2 + $0x40] sm:$0xff] %v956
  %1021 = vst [vmem:[#allocation2 + $0x48] sm:$0xff] %v957
  %1022 = vst [vmem:[#allocation2 + $0x50] sm:$0xff] %v958
  %1023 = vst [vmem:[#allocation2 + $0x58] sm:$0xff] %v959
  %1024 = vst [vmem:[#allocation2 + $0x60] sm:$0xff] %v960
  %1025 = vst [vmem:[#allocation2 + $0x68] sm:$0xff] %v961
  %1026 = vst [vmem:[#allocation2 + $0x70] sm:$0xff] %v962
  %1027 = vst [vmem:[#allocation2 + $0x78] sm:$0xff] %v963
  %1028 = vst [vmem:[#allocation2 + $0x80] sm:$0xff] %v964
  %1029 = vst [vmem:[#allocation2 + $0x88] sm:$0xff] %v965
  %1030 = vst [vmem:[#allocation2 + $0x90] sm:$0xff] %v966
  %1031 = vst [vmem:[#allocation2 + $0x98] sm:$0xff] %v967
  %1032 = vst [vmem:[#allocation2 + $0xa0] sm:$0xff] %v968
  %1033 = vst [vmem:[#allocation2 + $0xa8] sm:$0xff] %v969
  %1034 = vst [vmem:[#allocation2 + $0xb0] sm:$0xff] %v970
  %1035 = vst [vmem:[#allocation2 + $0xb8] sm:$0xff] %v971
  %1036 = vst [vmem:[#allocation2 + $0xc0] sm:$0xff] %v972
  %1037 = vst [vmem:[#allocation2 + $0xc8] sm:$0xff] %v973
  %1038 = vst [vmem:[#allocation2 + $0xd0] sm:$0xff] %v974
  %1039 = vst [vmem:[#allocation2 + $0xd8] sm:$0xff] %v975
  %1040 = vst [vmem:[#allocation2 + $0xe0] sm:$0xff] %v976
  %1041 = vst [vmem:[#allocation2 + $0xe8] sm:$0xff] %v977
  %1042 = vst [vmem:[#allocation2 + $0xf0] sm:$0xff] %v978
  %1043 = vst [vmem:[#allocation2 + $0xf8] sm:$0xff] %v979
  %1044 = vst [vmem:[#allocation2 + $0x100] sm:$0xff] %v980
  %1045 = vst [vmem:[#allocation2 + $0x108] sm:$0xff] %v981
  %1046 = vst [vmem:[#allocation2 + $0x110] sm:$0xff] %v982
  %1047 = vst [vmem:[#allocation2 + $0x118] sm:$0xff] %v983
  %1048 = vst [vmem:[#allocation2 + $0x120] sm:$0xff] %v984
  %1049 = vst [vmem:[#allocation2 + $0x128] sm:$0xff] %v985
  %1050 = vst [vmem:[#allocation2 + $0x130] sm:$0xff] %v986
  %1051 = vst [vmem:[#allocation2 + $0x138] sm:$0xff] %v987
  %1052 = vst [vmem:[#allocation2 + $0x140] sm:$0xff] %v988
  %1053 = vst [vmem:[#allocation2 + $0x148] sm:$0xff] %v989
  %1054 = vst [vmem:[#allocation2 + $0x150] sm:$0xff] %v990
  %1055 = vst [vmem:[#allocation2 + $0x158] sm:$0xff] %v991
  %1056 = vst [vmem:[#allocation2 + $0x160] sm:$0xff] %v992
  %1057 = vst [vmem:[#allocation2 + $0x168] sm:$0xff] %v993
  %1058 = vst [vmem:[#allocation2 + $0x170] sm:$0xff] %v994
  %1059 = vst [vmem:[#allocation2 + $0x178] sm:$0xff] %v995
  %1060 = vst [vmem:[#allocation2 + $0x180] sm:$0xff] %v996
  %1061 = vst [vmem:[#allocation2 + $0x188] sm:$0xff] %v997
  %1062 = vst [vmem:[#allocation2 + $0x190] sm:$0xff] %v998
  %1063 = vst [vmem:[#allocation2 + $0x198] sm:$0xff] %v999
  %1064 = vst [vmem:[#allocation2 + $0x1a0] sm:$0xff] %v1000
  %1065 = vst [vmem:[#allocation2 + $0x1a8] sm:$0xff] %v1001
  %1066 = vst [vmem:[#allocation2 + $0x1b0] sm:$0xff] %v1002
  %1067 = vst [vmem:[#allocation2 + $0x1b8] sm:$0xff] %v1003
  %1068 = vst [vmem:[#allocation2 + $0x1c0] sm:$0xff] %v1004
  %1069 = vst [vmem:[#allocation2 + $0x1c8] sm:$0xff] %v1005
  %1070 = vst [vmem:[#allocation2 + $0x1d0] sm:$0xff] %v1006
  %1071 = vst [vmem:[#allocation2 + $0x1d8] sm:$0xff] %v1007
  %1072 = vst [vmem:[#allocation2 + $0x1e0] sm:$0xff] %v1008
  %1073 = vst [vmem:[#allocation2 + $0x1e8] sm:$0xff] %v1009
  %1074 = vst [vmem:[#allocation2 + $0x1f0] sm:$0xff] %v1010
  %1075 = vst [vmem:[#allocation2 + $0x1f8] sm:$0xff] %v1011
  // Predicated region
  $region18: #{encoder_cnn_forward.55} parent=0 // pred_check
    %p1076 = pneg %p15
  $region19: #{encoder_cnn_forward.55} parent=0 // pred_check_branch
    %1078 = sbr.rel (%p1076) target = $region21
  $region20: #{encoder_cnn_forward.55} parent=0 // pred_region
    %v1079 = vld [vmem:[#allocation2] sm:$0xff]
    %v1080 = vld [vmem:[#allocation2 + $0x8] sm:$0xff]
    %v1081 = vld [vmem:[#allocation2 + $0x10] sm:$0xff]
    %v1082 = vld [vmem:[#allocation2 + $0x18] sm:$0xff]
    %v1083 = vld [vmem:[#allocation2 + $0x20] sm:$0xff]
    %v1084 = vld [vmem:[#allocation2 + $0x28] sm:$0xff]
    %v1085 = vld [vmem:[#allocation2 + $0x30] sm:$0xff]
    %v1086 = vld [vmem:[#allocation2 + $0x38] sm:$0xff]
    %v1087 = vld [vmem:[#allocation2 + $0x40] sm:$0xff]
    %v1088 = vld [vmem:[#allocation2 + $0x48] sm:$0xff]
    %v1089 = vld [vmem:[#allocation2 + $0x50] sm:$0xff]
    %v1090 = vld [vmem:[#allocation2 + $0x58] sm:$0xff]
    %v1091 = vld [vmem:[#allocation2 + $0x60] sm:$0xff]
    %v1092 = vld [vmem:[#allocation2 + $0x68] sm:$0xff]
    %v1093 = vld [vmem:[#allocation2 + $0x70] sm:$0xff]
    %v1094 = vld [vmem:[#allocation2 + $0x78] sm:$0xff]
    %v1095 = vld [vmem:[#allocation2 + $0x80] sm:$0xff]
    %v1096 = vld [vmem:[#allocation2 + $0x88] sm:$0xff]
    %v1097 = vld [vmem:[#allocation2 + $0x90] sm:$0xff]
    %v1098 = vld [vmem:[#allocation2 + $0x98] sm:$0xff]
    %v1099 = vld [vmem:[#allocation2 + $0xa0] sm:$0xff]
    %v1100 = vld [vmem:[#allocation2 + $0xa8] sm:$0xff]
    %v1101 = vld [vmem:[#allocation2 + $0xb0] sm:$0xff]
    %v1102 = vld [vmem:[#allocation2 + $0xb8] sm:$0xff]
    %v1103 = vld [vmem:[#allocation2 + $0xc0] sm:$0xff]
    %v1104 = vld [vmem:[#allocation2 + $0xc8] sm:$0xff]
    %v1105 = vld [vmem:[#allocation2 + $0xd0] sm:$0xff]
    %v1106 = vld [vmem:[#allocation2 + $0xd8] sm:$0xff]
    %v1107 = vld [vmem:[#allocation2 + $0xe0] sm:$0xff]
    %v1108 = vld [vmem:[#allocation2 + $0xe8] sm:$0xff]
    %v1109 = vld [vmem:[#allocation2 + $0xf0] sm:$0xff]
    %v1110 = vld [vmem:[#allocation2 + $0xf8] sm:$0xff]
    %v1111 = vld [vmem:[#allocation2 + $0x100] sm:$0xff]
    %v1112 = vld [vmem:[#allocation2 + $0x108] sm:$0xff]
    %v1113 = vld [vmem:[#allocation2 + $0x110] sm:$0xff]
    %v1114 = vld [vmem:[#allocation2 + $0x118] sm:$0xff]
    %v1115 = vld [vmem:[#allocation2 + $0x120] sm:$0xff]
    %v1116 = vld [vmem:[#allocation2 + $0x128] sm:$0xff]
    %v1117 = vld [vmem:[#allocation2 + $0x130] sm:$0xff]
    %v1118 = vld [vmem:[#allocation2 + $0x138] sm:$0xff]
    %v1119 = vld [vmem:[#allocation2 + $0x140] sm:$0xff]
    %v1120 = vld [vmem:[#allocation2 + $0x148] sm:$0xff]
    %v1121 = vld [vmem:[#allocation2 + $0x150] sm:$0xff]
    %v1122 = vld [vmem:[#allocation2 + $0x158] sm:$0xff]
    %v1123 = vld [vmem:[#allocation2 + $0x160] sm:$0xff]
    %v1124 = vld [vmem:[#allocation2 + $0x168] sm:$0xff]
    %v1125 = vld [vmem:[#allocation2 + $0x170] sm:$0xff]
    %v1126 = vld [vmem:[#allocation2 + $0x178] sm:$0xff]
    %v1127 = vld [vmem:[#allocation2 + $0x180] sm:$0xff]
    %v1128 = vld [vmem:[#allocation2 + $0x188] sm:$0xff]
    %v1129 = vld [vmem:[#allocation2 + $0x190] sm:$0xff]
    %v1130 = vld [vmem:[#allocation2 + $0x198] sm:$0xff]
    %v1131 = vld [vmem:[#allocation2 + $0x1a0] sm:$0xff]
    %v1132 = vld [vmem:[#allocation2 + $0x1a8] sm:$0xff]
    %v1133 = vld [vmem:[#allocation2 + $0x1b0] sm:$0xff]
    %v1134 = vld [vmem:[#allocation2 + $0x1b8] sm:$0xff]
    %v1135 = vld [vmem:[#allocation2 + $0x1c0] sm:$0xff]
    %v1136 = vld [vmem:[#allocation2 + $0x1c8] sm:$0xff]
    %v1137 = vld [vmem:[#allocation2 + $0x1d0] sm:$0xff]
    %v1138 = vld [vmem:[#allocation2 + $0x1d8] sm:$0xff]
    %v1139 = vld [vmem:[#allocation2 + $0x1e0] sm:$0xff]
    %v1140 = vld [vmem:[#allocation2 + $0x1e8] sm:$0xff]
    %v1141 = vld [vmem:[#allocation2 + $0x1f0] sm:$0xff]
    %v1142 = vld [vmem:[#allocation2 + $0x1f8] sm:$0xff]
    %v1143 = vld [vmem:[%s2] sm:$0x1]
    %v1145 = vlaneseq
    %v1146 = vshrl.u32 %v1145, 7
    %v1147 = vsub.s32 0, %v1146
    %v1148 = vrot.slane %v1143, %v1147
    %v1150 = vadd.f32 %v1079, %v1148
    %v1151 = vadd.f32 %v1080, %v1148
    %v1152 = vadd.f32 %v1081, %v1148
    %v1153 = vadd.f32 %v1082, %v1148
    %v1154 = vadd.f32 %v1083, %v1148
    %v1155 = vadd.f32 %v1084, %v1148
    %v1156 = vadd.f32 %v1085, %v1148
    %v1157 = vadd.f32 %v1086, %v1148
    %v1158 = vadd.f32 %v1087, %v1148
    %v1159 = vadd.f32 %v1088, %v1148
    %v1160 = vadd.f32 %v1089, %v1148
    %v1161 = vadd.f32 %v1090, %v1148
    %v1162 = vadd.f32 %v1091, %v1148
    %v1163 = vadd.f32 %v1092, %v1148
    %v1164 = vadd.f32 %v1093, %v1148
    %v1165 = vadd.f32 %v1094, %v1148
    %v1166 = vadd.f32 %v1095, %v1148
    %v1167 = vadd.f32 %v1096, %v1148
    %v1168 = vadd.f32 %v1097, %v1148
    %v1169 = vadd.f32 %v1098, %v1148
    %v1170 = vadd.f32 %v1099, %v1148
    %v1171 = vadd.f32 %v1100, %v1148
    %v1172 = vadd.f32 %v1101, %v1148
    %v1173 = vadd.f32 %v1102, %v1148
    %v1174 = vadd.f32 %v1103, %v1148
    %v1175 = vadd.f32 %v1104, %v1148
    %v1176 = vadd.f32 %v1105, %v1148
    %v1177 = vadd.f32 %v1106, %v1148
    %v1178 = vadd.f32 %v1107, %v1148
    %v1179 = vadd.f32 %v1108, %v1148
    %v1180 = vadd.f32 %v1109, %v1148
    %v1181 = vadd.f32 %v1110, %v1148
    %v1182 = vadd.f32 %v1111, %v1148
    %v1183 = vadd.f32 %v1112, %v1148
    %v1184 = vadd.f32 %v1113, %v1148
    %v1185 = vadd.f32 %v1114, %v1148
    %v1186 = vadd.f32 %v1115, %v1148
    %v1187 = vadd.f32 %v1116, %v1148
    %v1188 = vadd.f32 %v1117, %v1148
    %v1189 = vadd.f32 %v1118, %v1148
    %v1190 = vadd.f32 %v1119, %v1148
    %v1191 = vadd.f32 %v1120, %v1148
    %v1192 = vadd.f32 %v1121, %v1148
    %v1193 = vadd.f32 %v1122, %v1148
    %v1194 = vadd.f32 %v1123, %v1148
    %v1195 = vadd.f32 %v1124, %v1148
    %v1196 = vadd.f32 %v1125, %v1148
    %v1197 = vadd.f32 %v1126, %v1148
    %v1198 = vadd.f32 %v1127, %v1148
    %v1199 = vadd.f32 %v1128, %v1148
    %v1200 = vadd.f32 %v1129, %v1148
    %v1201 = vadd.f32 %v1130, %v1148
    %v1202 = vadd.f32 %v1131, %v1148
    %v1203 = vadd.f32 %v1132, %v1148
    %v1204 = vadd.f32 %v1133, %v1148
    %v1205 = vadd.f32 %v1134, %v1148
    %v1206 = vadd.f32 %v1135, %v1148
    %v1207 = vadd.f32 %v1136, %v1148
    %v1208 = vadd.f32 %v1137, %v1148
    %v1209 = vadd.f32 %v1138, %v1148
    %v1210 = vadd.f32 %v1139, %v1148
    %v1211 = vadd.f32 %v1140, %v1148
    %v1212 = vadd.f32 %v1141, %v1148
    %v1213 = vadd.f32 %v1142, %v1148
    %v1214 = vmax.f32 %v1150, 0.0
    %v1215 = vmax.f32 %v1151, 0.0
    %v1216 = vmax.f32 %v1152, 0.0
    %v1217 = vmax.f32 %v1153, 0.0
    %v1218 = vmax.f32 %v1154, 0.0
    %v1219 = vmax.f32 %v1155, 0.0
    %v1220 = vmax.f32 %v1156, 0.0
    %v1221 = vmax.f32 %v1157, 0.0
    %v1222 = vmax.f32 %v1158, 0.0
    %v1223 = vmax.f32 %v1159, 0.0
    %v1224 = vmax.f32 %v1160, 0.0
    %v1225 = vmax.f32 %v1161, 0.0
    %v1226 = vmax.f32 %v1162, 0.0
    %v1227 = vmax.f32 %v1163, 0.0
    %v1228 = vmax.f32 %v1164, 0.0
    %v1229 = vmax.f32 %v1165, 0.0
    %v1230 = vmax.f32 %v1166, 0.0
    %v1231 = vmax.f32 %v1167, 0.0
    %v1232 = vmax.f32 %v1168, 0.0
    %v1233 = vmax.f32 %v1169, 0.0
    %v1234 = vmax.f32 %v1170, 0.0
    %v1235 = vmax.f32 %v1171, 0.0
    %v1236 = vmax.f32 %v1172, 0.0
    %v1237 = vmax.f32 %v1173, 0.0
    %v1238 = vmax.f32 %v1174, 0.0
    %v1239 = vmax.f32 %v1175, 0.0
    %v1240 = vmax.f32 %v1176, 0.0
    %v1241 = vmax.f32 %v1177, 0.0
    %v1242 = vmax.f32 %v1178, 0.0
    %v1243 = vmax.f32 %v1179, 0.0
    %v1244 = vmax.f32 %v1180, 0.0
    %v1245 = vmax.f32 %v1181, 0.0
    %v1246 = vmax.f32 %v1182, 0.0
    %v1247 = vmax.f32 %v1183, 0.0
    %v1248 = vmax.f32 %v1184, 0.0
    %v1249 = vmax.f32 %v1185, 0.0
    %v1250 = vmax.f32 %v1186, 0.0
    %v1251 = vmax.f32 %v1187, 0.0
    %v1252 = vmax.f32 %v1188, 0.0
    %v1253 = vmax.f32 %v1189, 0.0
    %v1254 = vmax.f32 %v1190, 0.0
    %v1255 = vmax.f32 %v1191, 0.0
    %v1256 = vmax.f32 %v1192, 0.0
    %v1257 = vmax.f32 %v1193, 0.0
    %v1258 = vmax.f32 %v1194, 0.0
    %v1259 = vmax.f32 %v1195, 0.0
    %v1260 = vmax.f32 %v1196, 0.0
    %v1261 = vmax.f32 %v1197, 0.0
    %v1262 = vmax.f32 %v1198, 0.0
    %v1263 = vmax.f32 %v1199, 0.0
    %v1264 = vmax.f32 %v1200, 0.0
    %v1265 = vmax.f32 %v1201, 0.0
    %v1266 = vmax.f32 %v1202, 0.0
    %v1267 = vmax.f32 %v1203, 0.0
    %v1268 = vmax.f32 %v1204, 0.0
    %v1269 = vmax.f32 %v1205, 0.0
    %v1270 = vmax.f32 %v1206, 0.0
    %v1271 = vmax.f32 %v1207, 0.0
    %v1272 = vmax.f32 %v1208, 0.0
    %v1273 = vmax.f32 %v1209, 0.0
    %v1274 = vmax.f32 %v1210, 0.0
    %v1275 = vmax.f32 %v1211, 0.0
    %v1276 = vmax.f32 %v1212, 0.0
    %v1277 = vmax.f32 %v1213, 0.0
    %1278 = vst [vmem:[%s3] sm:$0xff] %v1214
    %1279 = vst [vmem:[%s3 + $0x8] sm:$0xff] %v1215
    %1280 = vst [vmem:[%s3 + $0x10] sm:$0xff] %v1216
    %1281 = vst [vmem:[%s3 + $0x18] sm:$0xff] %v1217
    %1282 = vst [vmem:[%s3 + $0x20] sm:$0xff] %v1218
    %1283 = vst [vmem:[%s3 + $0x28] sm:$0xff] %v1219
    %1284 = vst [vmem:[%s3 + $0x30] sm:$0xff] %v1220
    %1285 = vst [vmem:[%s3 + $0x38] sm:$0xff] %v1221
    %1286 = vst [vmem:[%s3 + $0x40] sm:$0xff] %v1222
    %1287 = vst [vmem:[%s3 + $0x48] sm:$0xff] %v1223
    %1288 = vst [vmem:[%s3 + $0x50] sm:$0xff] %v1224
    %1289 = vst [vmem:[%s3 + $0x58] sm:$0xff] %v1225
    %1290 = vst [vmem:[%s3 + $0x60] sm:$0xff] %v1226
    %1291 = vst [vmem:[%s3 + $0x68] sm:$0xff] %v1227
    %1292 = vst [vmem:[%s3 + $0x70] sm:$0xff] %v1228
    %1293 = vst [vmem:[%s3 + $0x78] sm:$0xff] %v1229
    %1294 = vst [vmem:[%s3 + $0x80] sm:$0xff] %v1230
    %1295 = vst [vmem:[%s3 + $0x88] sm:$0xff] %v1231
    %1296 = vst [vmem:[%s3 + $0x90] sm:$0xff] %v1232
    %1297 = vst [vmem:[%s3 + $0x98] sm:$0xff] %v1233
    %1298 = vst [vmem:[%s3 + $0xa0] sm:$0xff] %v1234
    %1299 = vst [vmem:[%s3 + $0xa8] sm:$0xff] %v1235
    %1300 = vst [vmem:[%s3 + $0xb0] sm:$0xff] %v1236
    %1301 = vst [vmem:[%s3 + $0xb8] sm:$0xff] %v1237
    %1302 = vst [vmem:[%s3 + $0xc0] sm:$0xff] %v1238
    %1303 = vst [vmem:[%s3 + $0xc8] sm:$0xff] %v1239
    %1304 = vst [vmem:[%s3 + $0xd0] sm:$0xff] %v1240
    %1305 = vst [vmem:[%s3 + $0xd8] sm:$0xff] %v1241
    %1306 = vst [vmem:[%s3 + $0xe0] sm:$0xff] %v1242
    %1307 = vst [vmem:[%s3 + $0xe8] sm:$0xff] %v1243
    %1308 = vst [vmem:[%s3 + $0xf0] sm:$0xff] %v1244
    %1309 = vst [vmem:[%s3 + $0xf8] sm:$0xff] %v1245
    %1310 = vst [vmem:[%s3 + $0x100] sm:$0xff] %v1246
    %1311 = vst [vmem:[%s3 + $0x108] sm:$0xff] %v1247
    %1312 = vst [vmem:[%s3 + $0x110] sm:$0xff] %v1248
    %1313 = vst [vmem:[%s3 + $0x118] sm:$0xff] %v1249
    %1314 = vst [vmem:[%s3 + $0x120] sm:$0xff] %v1250
    %1315 = vst [vmem:[%s3 + $0x128] sm:$0xff] %v1251
    %1316 = vst [vmem:[%s3 + $0x130] sm:$0xff] %v1252
    %1317 = vst [vmem:[%s3 + $0x138] sm:$0xff] %v1253
    %1318 = vst [vmem:[%s3 + $0x140] sm:$0xff] %v1254
    %1319 = vst [vmem:[%s3 + $0x148] sm:$0xff] %v1255
    %1320 = vst [vmem:[%s3 + $0x150] sm:$0xff] %v1256
    %1321 = vst [vmem:[%s3 + $0x158] sm:$0xff] %v1257
    %1322 = vst [vmem:[%s3 + $0x160] sm:$0xff] %v1258
    %1323 = vst [vmem:[%s3 + $0x168] sm:$0xff] %v1259
    %1324 = vst [vmem:[%s3 + $0x170] sm:$0xff] %v1260
    %1325 = vst [vmem:[%s3 + $0x178] sm:$0xff] %v1261
    %1326 = vst [vmem:[%s3 + $0x180] sm:$0xff] %v1262
    %1327 = vst [vmem:[%s3 + $0x188] sm:$0xff] %v1263
    %1328 = vst [vmem:[%s3 + $0x190] sm:$0xff] %v1264
    %1329 = vst [vmem:[%s3 + $0x198] sm:$0xff] %v1265
    %1330 = vst [vmem:[%s3 + $0x1a0] sm:$0xff] %v1266
    %1331 = vst [vmem:[%s3 + $0x1a8] sm:$0xff] %v1267
    %1332 = vst [vmem:[%s3 + $0x1b0] sm:$0xff] %v1268
    %1333 = vst [vmem:[%s3 + $0x1b8] sm:$0xff] %v1269
    %1334 = vst [vmem:[%s3 + $0x1c0] sm:$0xff] %v1270
    %1335 = vst [vmem:[%s3 + $0x1c8] sm:$0xff] %v1271
    %1336 = vst [vmem:[%s3 + $0x1d0] sm:$0xff] %v1272
    %1337 = vst [vmem:[%s3 + $0x1d8] sm:$0xff] %v1273
    %1338 = vst [vmem:[%s3 + $0x1e0] sm:$0xff] %v1274
    %1339 = vst [vmem:[%s3 + $0x1e8] sm:$0xff] %v1275
    %1340 = vst [vmem:[%s3 + $0x1f0] sm:$0xff] %v1276
    %1341 = vst [vmem:[%s3 + $0x1f8] sm:$0xff] %v1277
  $region21: #{encoder_cnn_forward.55} parent=0 // pred_fallthru
    _
  // Predicated region
  $region22: #{encoder_cnn_forward.55} parent=0 // pred_check
    _
  $region23: #{encoder_cnn_forward.55} parent=0 // pred_check_branch
    %1343 = sbr.rel (0) target = $region25
  $region24: #{encoder_cnn_forward.55} parent=0 // pred_region
    _
  $region25: #{encoder_cnn_forward.55} parent=0 // pred_fallthru
    _
  // Predicated region
  $region26: #{encoder_cnn_forward.55} parent=0 // pred_check
    _
  $region27: #{encoder_cnn_forward.55} parent=0 // pred_check_branch
    %1345 = sbr.rel (0) target = $region29
  $region28: #{encoder_cnn_forward.55} parent=0 // pred_region
    _
  $region29: #{encoder_cnn_forward.55} parent=0 // pred_fallthru
    _

// kernel: encoder_cnn_forward.57
$region0: #{encoder_cnn_forward.57}
  #allocation0 [shape = 'u32[]', space=smem, size = 0x4, offset = 0x4, fixed_abs, tag = 'smem constant byte address 0x4 - core index']
  #allocation1 [shape = 'u32[144,128]{1,0:T(1,128)}', space=vmem, size = 0x12000, scoped, tag = 'internal scratch']
  #allocation2 [shape = 'f32[128,128]{1,0:T(8,128)}', space=vmem, size = 0x10000, scoped, tag = 'scratch operand']
  %s0 = inlined_call_operand.vmem [shape: bf16[128,128], index: 0, kind: input, shape index: {}]
  %s1 = inlined_call_operand.vmem [shape: bf16[128,128], index: 1, kind: input, shape index: {}]
  %s2 = inlined_call_operand.vmem [shape: f32[1,128], index: 2, kind: input, shape index: {}]
  %s3 = inlined_call_operand.vmem [shape: f32[128,128], index: 3, kind: output, shape index: {}]
  %s4 = sld [smem:[#allocation0]]
  $region30: #{encoder_cnn_forward.57} parent=0
    _
  %s6 = ssub.s32 1, %s4
  %s7 = scalar_select 0, %s6, %s4
  // Predicated region
  $region2: #{encoder_cnn_forward.57} parent=0 // pred_check
    _
  $region3: #{encoder_cnn_forward.57} parent=0 // pred_check_branch
    %9 = sbr.rel (0) target = $region5
  $region4: #{encoder_cnn_forward.57} parent=0 // pred_region
    _
  $region5: #{encoder_cnn_forward.57} parent=0 // pred_fallthru
    _
  // Predicated region
  $region6: #{encoder_cnn_forward.57} parent=0 // pred_check
    _
  $region7: #{encoder_cnn_forward.57} parent=0 // pred_check_branch
    %11 = sbr.rel (0) target = $region9
  $region8: #{encoder_cnn_forward.57} parent=0 // pred_region
    _
  $region9: #{encoder_cnn_forward.57} parent=0 // pred_fallthru
    _
  // Predicated region
  $region10: #{encoder_cnn_forward.57} parent=0 // pred_check
    _
  $region11: #{encoder_cnn_forward.57} parent=0 // pred_check_branch
    %13 = sbr.rel (0) target = $region13
  $region12: #{encoder_cnn_forward.57} parent=0 // pred_region
    _
  $region13: #{encoder_cnn_forward.57} parent=0 // pred_fallthru
    _
  %p15 = scmp.eq.s32.totalorder 0, 0
  // Predicated region
  $region14: #{encoder_cnn_forward.57} parent=0 // pred_check
    %p16 = pneg %p15
  $region15: #{encoder_cnn_forward.57} parent=0 // pred_check_branch
    %18 = sbr.rel (%p16) target = $region17
  $region16: #{encoder_cnn_forward.57} parent=0 // pred_region
    %19 = vst [vmem:[#allocation2] sm:$0xff] 0.0
    %20 = vst [vmem:[#allocation2 + $0x8] sm:$0xff] 0.0
    %21 = vst [vmem:[#allocation2 + $0x10] sm:$0xff] 0.0
    %22 = vst [vmem:[#allocation2 + $0x18] sm:$0xff] 0.0
    %23 = vst [vmem:[#allocation2 + $0x20] sm:$0xff] 0.0
    %24 = vst [vmem:[#allocation2 + $0x28] sm:$0xff] 0.0
    %25 = vst [vmem:[#allocation2 + $0x30] sm:$0xff] 0.0
    %26 = vst [vmem:[#allocation2 + $0x38] sm:$0xff] 0.0
    %27 = vst [vmem:[#allocation2 + $0x40] sm:$0xff] 0.0
    %28 = vst [vmem:[#allocation2 + $0x48] sm:$0xff] 0.0
    %29 = vst [vmem:[#allocation2 + $0x50] sm:$0xff] 0.0
    %30 = vst [vmem:[#allocation2 + $0x58] sm:$0xff] 0.0
    %31 = vst [vmem:[#allocation2 + $0x60] sm:$0xff] 0.0
    %32 = vst [vmem:[#allocation2 + $0x68] sm:$0xff] 0.0
    %33 = vst [vmem:[#allocation2 + $0x70] sm:$0xff] 0.0
    %34 = vst [vmem:[#allocation2 + $0x78] sm:$0xff] 0.0
  $region17: #{encoder_cnn_forward.57} parent=0 // pred_fallthru
    _
  %v35 = vld [vmem:[#allocation2] sm:$0xff]
  %v36 = vld [vmem:[#allocation2 + $0x8] sm:$0xff]
  %v37 = vld [vmem:[#allocation2 + $0x10] sm:$0xff]
  %v38 = vld [vmem:[#allocation2 + $0x18] sm:$0xff]
  %v39 = vld [vmem:[#allocation2 + $0x20] sm:$0xff]
  %v40 = vld [vmem:[#allocation2 + $0x28] sm:$0xff]
  %v41 = vld [vmem:[#allocation2 + $0x30] sm:$0xff]
  %v42 = vld [vmem:[#allocation2 + $0x38] sm:$0xff]
  %v43 = vld [vmem:[#allocation2 + $0x40] sm:$0xff]
  %v44 = vld [vmem:[#allocation2 + $0x48] sm:$0xff]
  %v45 = vld [vmem:[#allocation2 + $0x50] sm:$0xff]
  %v46 = vld [vmem:[#allocation2 + $0x58] sm:$0xff]
  %v47 = vld [vmem:[#allocation2 + $0x60] sm:$0xff]
  %v48 = vld [vmem:[#allocation2 + $0x68] sm:$0xff]
  %v49 = vld [vmem:[#allocation2 + $0x70] sm:$0xff]
  %v50 = vld [vmem:[#allocation2 + $0x78] sm:$0xff]
  %v51 = vld [vmem:[%s0] sm:$0xf]
  %v52 = vld [vmem:[%s0 + $0x4] sm:$0xf]
  %v53 = vld [vmem:[%s0 + $0x8] sm:$0xf]
  %v54 = vld [vmem:[%s0 + $0xc] sm:$0xf]
  %v55 = vld [vmem:[%s0 + $0x10] sm:$0xf]
  %v56 = vld [vmem:[%s0 + $0x14] sm:$0xf]
  %v57 = vld [vmem:[%s0 + $0x18] sm:$0xf]
  %v58 = vld [vmem:[%s0 + $0x1c] sm:$0xf]
  %v59 = vld [vmem:[%s0 + $0x20] sm:$0xf]
  %v60 = vld [vmem:[%s0 + $0x24] sm:$0xf]
  %v61 = vld [vmem:[%s0 + $0x28] sm:$0xf]
  %v62 = vld [vmem:[%s0 + $0x2c] sm:$0xf]
  %v63 = vld [vmem:[%s0 + $0x30] sm:$0xf]
  %v64 = vld [vmem:[%s0 + $0x34] sm:$0xf]
  %v65 = vld [vmem:[%s0 + $0x38] sm:$0xf]
  %v66 = vld [vmem:[%s0 + $0x3c] sm:$0xf]
  %v67 = vld [vmem:[%s1] sm:$0xf]
  %v68 = vld [vmem:[%s1 + $0x4] sm:$0xf]
  %v69 = vld [vmem:[%s1 + $0x8] sm:$0xf]
  %v70 = vld [vmem:[%s1 + $0xc] sm:$0xf]
  %v71 = vld [vmem:[%s1 + $0x10] sm:$0xf]
  %v72 = vld [vmem:[%s1 + $0x14] sm:$0xf]
  %v73 = vld [vmem:[%s1 + $0x18] sm:$0xf]
  %v74 = vld [vmem:[%s1 + $0x1c] sm:$0xf]
  %v75 = vld [vmem:[%s1 + $0x20] sm:$0xf]
  %v76 = vld [vmem:[%s1 + $0x24] sm:$0xf]
  %v77 = vld [vmem:[%s1 + $0x28] sm:$0xf]
  %v78 = vld [vmem:[%s1 + $0x2c] sm:$0xf]
  %v79 = vld [vmem:[%s1 + $0x30] sm:$0xf]
  %v80 = vld [vmem:[%s1 + $0x34] sm:$0xf]
  %v81 = vld [vmem:[%s1 + $0x38] sm:$0xf]
  %v82 = vld [vmem:[%s1 + $0x3c] sm:$0xf]
  %v99 = vunpack.c.l.b16 %v51
  %v100 = vunpack.c.l.b16 %v52
  %v101 = vunpack.c.l.b16 %v53
  %v102 = vunpack.c.l.b16 %v54
  %v103 = vunpack.c.l.b16 %v55
  %v104 = vunpack.c.l.b16 %v56
  %v105 = vunpack.c.l.b16 %v57
  %v106 = vunpack.c.l.b16 %v58
  %v107 = vunpack.c.l.b16 %v59
  %v108 = vunpack.c.l.b16 %v60
  %v109 = vunpack.c.l.b16 %v61
  %v110 = vunpack.c.l.b16 %v62
  %v111 = vunpack.c.l.b16 %v63
  %v112 = vunpack.c.l.b16 %v64
  %v113 = vunpack.c.l.b16 %v65
  %v114 = vunpack.c.l.b16 %v66
  %v115 = vpack.c.b16 %v100, %v99
  %v116 = vpack.c.b16 %v102, %v101
  %v117 = vpack.c.b16 %v104, %v103
  %v118 = vpack.c.b16 %v106, %v105
  %v119 = vpack.c.b16 %v108, %v107
  %v120 = vpack.c.b16 %v110, %v109
  %v121 = vpack.c.b16 %v112, %v111
  %v122 = vpack.c.b16 %v114, %v113
  %v147 = vunpack.c.l.b16 %v67
  %v148 = vunpack.c.l.b16 %v68
  %v149 = vunpack.c.l.b16 %v69
  %v150 = vunpack.c.l.b16 %v70
  %v151 = vunpack.c.l.b16 %v71
  %v152 = vunpack.c.l.b16 %v72
  %v153 = vunpack.c.l.b16 %v73
  %v154 = vunpack.c.l.b16 %v74
  %v155 = vunpack.c.l.b16 %v75
  %v156 = vunpack.c.l.b16 %v76
  %v157 = vunpack.c.l.b16 %v77
  %v158 = vunpack.c.l.b16 %v78
  %v159 = vunpack.c.l.b16 %v79
  %v160 = vunpack.c.l.b16 %v80
  %v161 = vunpack.c.l.b16 %v81
  %v162 = vunpack.c.l.b16 %v82
  %v163 = vpack.c.b16 %v148, %v147
  %v164 = vpack.c.b16 %v150, %v149
  %v165 = vpack.c.b16 %v152, %v151
  %v166 = vpack.c.b16 %v154, %v153
  %v167 = vpack.c.b16 %v156, %v155
  %v168 = vpack.c.b16 %v158, %v157
  %v169 = vpack.c.b16 %v160, %v159
  %v170 = vpack.c.b16 %v162, %v161
  %179 = vmatprep.subr.bf16.mxu0 0
  %180 = vmatpush1.bf16.msra.mxu0 %v163
  %181 = vmatprep.subr.bf16.mxu0 0
  %182 = vmatpush1.bf16.msra.mxu0 %v164
  %183 = vmatprep.subr.bf16.mxu0 0
  %184 = vmatpush1.bf16.msra.mxu0 %v165
  %185 = vmatprep.subr.bf16.mxu0 0
  %186 = vmatpush1.bf16.msra.mxu0 %v166
  %187 = vmatprep.subr.bf16.mxu0 0
  %188 = vmatpush1.bf16.msra.mxu0 %v167
  %189 = vmatprep.subr.bf16.mxu0 0
  %190 = vmatpush1.bf16.msra.mxu0 %v168
  %191 = vmatprep.subr.bf16.mxu0 0
  %192 = vmatpush1.bf16.msra.mxu0 %v169
  %193 = vmatprep.subr.bf16.mxu0 0
  %194 = vmatpush1.bf16.msra.mxu0 %v170
  %195 = vmatprep.subr.bf16.mxu0 0
  %196 = vmatpush1.bf16.msra.mxu0 0
  %197 = vmatprep.subr.bf16.mxu0 0
  %198 = vmatpush1.bf16.msra.mxu0 0
  %199 = vmatprep.subr.bf16.mxu0 0
  %200 = vmatpush1.bf16.msra.mxu0 0
  %201 = vmatprep.subr.bf16.mxu0 0
  %202 = vmatpush1.bf16.msra.mxu0 0
  %203 = vmatprep.subr.bf16.mxu0 0
  %204 = vmatpush1.bf16.msra.mxu0 0
  %205 = vmatprep.subr.bf16.mxu0 0
  %206 = vmatpush1.bf16.msra.mxu0 0
  %207 = vmatprep.subr.bf16.mxu0 0
  %208 = vmatpush1.bf16.msra.mxu0 0
  %209 = vmatprep.subr.bf16.mxu0 0
  %210 = vmatpush1.bf16.msra.mxu0 0
  %211 = vmatprep.mubr.bf16.mxu0 0
  %212 = vmatmul.mubr.bf16.gmra.mrb[0].mxu0 %v115
  %v213 = vpop.f32.mrb[0].mxu0
  %v214 = vadd.f32 0.0, %v213
  %v215 = vpop.f32.mrb[0].mxu0
  %v216 = vpop.f32.mrb[0].mxu0
  %v217 = vadd.f32 0.0, %v216
  %v218 = vpop.f32.mrb[0].mxu0
  %219 = vmatprep.mubr.bf16.mxu0 0
  %220 = vmatmul.mubr.bf16.gmra.mrb[0].mxu0 %v116
  %v221 = vpop.f32.mrb[0].mxu0
  %v222 = vadd.f32 0.0, %v221
  %v223 = vpop.f32.mrb[0].mxu0
  %v224 = vpop.f32.mrb[0].mxu0
  %v225 = vadd.f32 0.0, %v224
  %v226 = vpop.f32.mrb[0].mxu0
  %227 = vmatprep.mubr.bf16.mxu0 0
  %228 = vmatmul.mubr.bf16.gmra.mrb[0].mxu0 %v117
  %v229 = vpop.f32.mrb[0].mxu0
  %v230 = vadd.f32 0.0, %v229
  %v231 = vpop.f32.mrb[0].mxu0
  %v232 = vpop.f32.mrb[0].mxu0
  %v233 = vadd.f32 0.0, %v232
  %v234 = vpop.f32.mrb[0].mxu0
  %235 = vmatprep.mubr.bf16.mxu0 0
  %236 = vmatmul.mubr.bf16.gmra.mrb[0].mxu0 %v118
  %v237 = vpop.f32.mrb[0].mxu0
  %v238 = vadd.f32 0.0, %v237
  %v239 = vpop.f32.mrb[0].mxu0
  %v240 = vpop.f32.mrb[0].mxu0
  %v241 = vadd.f32 0.0, %v240
  %v242 = vpop.f32.mrb[0].mxu0
  %243 = vmatprep.mubr.bf16.mxu0 0
  %244 = vmatmul.mubr.bf16.gmra.mrb[0].mxu0 %v119
  %v245 = vpop.f32.mrb[0].mxu0
  %v246 = vadd.f32 0.0, %v245
  %v247 = vpop.f32.mrb[0].mxu0
  %v248 = vpop.f32.mrb[0].mxu0
  %v249 = vadd.f32 0.0, %v248
  %v250 = vpop.f32.mrb[0].mxu0
  %251 = vmatprep.mubr.bf16.mxu0 0
  %252 = vmatmul.mubr.bf16.gmra.mrb[0].mxu0 %v120
  %v253 = vpop.f32.mrb[0].mxu0
  %v254 = vadd.f32 0.0, %v253
  %v255 = vpop.f32.mrb[0].mxu0
  %v256 = vpop.f32.mrb[0].mxu0
  %v257 = vadd.f32 0.0, %v256
  %v258 = vpop.f32.mrb[0].mxu0
  %259 = vmatprep.mubr.bf16.mxu0 0
  %260 = vmatmul.mubr.bf16.gmra.mrb[0].mxu0 %v121
  %v261 = vpop.f32.mrb[0].mxu0
  %v262 = vadd.f32 0.0, %v261
  %v263 = vpop.f32.mrb[0].mxu0
  %v264 = vpop.f32.mrb[0].mxu0
  %v265 = vadd.f32 0.0, %v264
  %v266 = vpop.f32.mrb[0].mxu0
  %267 = vmatprep.mubr.bf16.mxu0 0
  %268 = vmatmul.mubr.bf16.gmra.mrb[0].mxu0 %v122
  %v269 = vpop.f32.mrb[0].mxu0
  %v270 = vadd.f32 0.0, %v269
  %v271 = vpop.f32.mrb[0].mxu0
  %v272 = vpop.f32.mrb[0].mxu0
  %v273 = vadd.f32 0.0, %v272
  %v274 = vpop.f32.mrb[0].mxu0
  %275 = vdwg.mxu0
  %v276 = vadd.f32 %v35, %v214
  %v277 = vadd.f32 %v36, %v217
  %v278 = vadd.f32 %v37, %v222
  %v279 = vadd.f32 %v38, %v225
  %v280 = vadd.f32 %v39, %v230
  %v281 = vadd.f32 %v40, %v233
  %v282 = vadd.f32 %v41, %v238
  %v283 = vadd.f32 %v42, %v241
  %v284 = vadd.f32 %v43, %v246
  %v285 = vadd.f32 %v44, %v249
  %v286 = vadd.f32 %v45, %v254
  %v287 = vadd.f32 %v46, %v257
  %v288 = vadd.f32 %v47, %v262
  %v289 = vadd.f32 %v48, %v265
  %v290 = vadd.f32 %v49, %v270
  %v291 = vadd.f32 %v50, %v273
  %292 = vst [vmem:[#allocation2] sm:$0xff] %v276
  %293 = vst [vmem:[#allocation2 + $0x8] sm:$0xff] %v277
  %294 = vst [vmem:[#allocation2 + $0x10] sm:$0xff] %v278
  %295 = vst [vmem:[#allocation2 + $0x18] sm:$0xff] %v279
  %296 = vst [vmem:[#allocation2 + $0x20] sm:$0xff] %v280
  %297 = vst [vmem:[#allocation2 + $0x28] sm:$0xff] %v281
  %298 = vst [vmem:[#allocation2 + $0x30] sm:$0xff] %v282
  %299 = vst [vmem:[#allocation2 + $0x38] sm:$0xff] %v283
  %300 = vst [vmem:[#allocation2 + $0x40] sm:$0xff] %v284
  %301 = vst [vmem:[#allocation2 + $0x48] sm:$0xff] %v285
  %302 = vst [vmem:[#allocation2 + $0x50] sm:$0xff] %v286
  %303 = vst [vmem:[#allocation2 + $0x58] sm:$0xff] %v287
  %304 = vst [vmem:[#allocation2 + $0x60] sm:$0xff] %v288
  %305 = vst [vmem:[#allocation2 + $0x68] sm:$0xff] %v289
  %306 = vst [vmem:[#allocation2 + $0x70] sm:$0xff] %v290
  %307 = vst [vmem:[#allocation2 + $0x78] sm:$0xff] %v291
  // Predicated region
  $region18: #{encoder_cnn_forward.57} parent=0 // pred_check
    %p308 = pneg %p15
  $region19: #{encoder_cnn_forward.57} parent=0 // pred_check_branch
    %310 = sbr.rel (%p308) target = $region21
  $region20: #{encoder_cnn_forward.57} parent=0 // pred_region
    %v311 = vld [vmem:[#allocation2] sm:$0xff]
    %v312 = vld [vmem:[#allocation2 + $0x8] sm:$0xff]
    %v313 = vld [vmem:[#allocation2 + $0x10] sm:$0xff]
    %v314 = vld [vmem:[#allocation2 + $0x18] sm:$0xff]
    %v315 = vld [vmem:[#allocation2 + $0x20] sm:$0xff]
    %v316 = vld [vmem:[#allocation2 + $0x28] sm:$0xff]
    %v317 = vld [vmem:[#allocation2 + $0x30] sm:$0xff]
    %v318 = vld [vmem:[#allocation2 + $0x38] sm:$0xff]
    %v319 = vld [vmem:[#allocation2 + $0x40] sm:$0xff]
    %v320 = vld [vmem:[#allocation2 + $0x48] sm:$0xff]
    %v321 = vld [vmem:[#allocation2 + $0x50] sm:$0xff]
    %v322 = vld [vmem:[#allocation2 + $0x58] sm:$0xff]
    %v323 = vld [vmem:[#allocation2 + $0x60] sm:$0xff]
    %v324 = vld [vmem:[#allocation2 + $0x68] sm:$0xff]
    %v325 = vld [vmem:[#allocation2 + $0x70] sm:$0xff]
    %v326 = vld [vmem:[#allocation2 + $0x78] sm:$0xff]
    %v327 = vld [vmem:[%s2] sm:$0x1]
    %v329 = vlaneseq
    %v330 = vshrl.u32 %v329, 7
    %v331 = vsub.s32 0, %v330
    %v332 = vrot.slane %v327, %v331
    %v334 = vadd.f32 %v311, %v332
    %v335 = vadd.f32 %v312, %v332
    %v336 = vadd.f32 %v313, %v332
    %v337 = vadd.f32 %v314, %v332
    %v338 = vadd.f32 %v315, %v332
    %v339 = vadd.f32 %v316, %v332
    %v340 = vadd.f32 %v317, %v332
    %v341 = vadd.f32 %v318, %v332
    %v342 = vadd.f32 %v319, %v332
    %v343 = vadd.f32 %v320, %v332
    %v344 = vadd.f32 %v321, %v332
    %v345 = vadd.f32 %v322, %v332
    %v346 = vadd.f32 %v323, %v332
    %v347 = vadd.f32 %v324, %v332
    %v348 = vadd.f32 %v325, %v332
    %v349 = vadd.f32 %v326, %v332
    %v350 = vmax.f32 %v334, 0.0
    %v351 = vmax.f32 %v335, 0.0
    %v352 = vmax.f32 %v336, 0.0
    %v353 = vmax.f32 %v337, 0.0
    %v354 = vmax.f32 %v338, 0.0
    %v355 = vmax.f32 %v339, 0.0
    %v356 = vmax.f32 %v340, 0.0
    %v357 = vmax.f32 %v341, 0.0
    %v358 = vmax.f32 %v342, 0.0
    %v359 = vmax.f32 %v343, 0.0
    %v360 = vmax.f32 %v344, 0.0
    %v361 = vmax.f32 %v345, 0.0
    %v362 = vmax.f32 %v346, 0.0
    %v363 = vmax.f32 %v347, 0.0
    %v364 = vmax.f32 %v348, 0.0
    %v365 = vmax.f32 %v349, 0.0
    %366 = vst [vmem:[%s3] sm:$0xff] %v350
    %367 = vst [vmem:[%s3 + $0x8] sm:$0xff] %v351
    %368 = vst [vmem:[%s3 + $0x10] sm:$0xff] %v352
    %369 = vst [vmem:[%s3 + $0x18] sm:$0xff] %v353
    %370 = vst [vmem:[%s3 + $0x20] sm:$0xff] %v354
    %371 = vst [vmem:[%s3 + $0x28] sm:$0xff] %v355
    %372 = vst [vmem:[%s3 + $0x30] sm:$0xff] %v356
    %373 = vst [vmem:[%s3 + $0x38] sm:$0xff] %v357
    %374 = vst [vmem:[%s3 + $0x40] sm:$0xff] %v358
    %375 = vst [vmem:[%s3 + $0x48] sm:$0xff] %v359
    %376 = vst [vmem:[%s3 + $0x50] sm:$0xff] %v360
    %377 = vst [vmem:[%s3 + $0x58] sm:$0xff] %v361
    %378 = vst [vmem:[%s3 + $0x60] sm:$0xff] %v362
    %379 = vst [vmem:[%s3 + $0x68] sm:$0xff] %v363
    %380 = vst [vmem:[%s3 + $0x70] sm:$0xff] %v364
    %381 = vst [vmem:[%s3 + $0x78] sm:$0xff] %v365
  $region21: #{encoder_cnn_forward.57} parent=0 // pred_fallthru
    _
  // Predicated region
  $region22: #{encoder_cnn_forward.57} parent=0 // pred_check
    _
  $region23: #{encoder_cnn_forward.57} parent=0 // pred_check_branch
    %383 = sbr.rel (0) target = $region25
  $region24: #{encoder_cnn_forward.57} parent=0 // pred_region
    _
  $region25: #{encoder_cnn_forward.57} parent=0 // pred_fallthru
    _
  // Predicated region
  $region26: #{encoder_cnn_forward.57} parent=0 // pred_check
    _
  $region27: #{encoder_cnn_forward.57} parent=0 // pred_check_branch
    %385 = sbr.rel (0) target = $region29
  $region28: #{encoder_cnn_forward.57} parent=0 // pred_region
    _
  $region29: #{encoder_cnn_forward.57} parent=0 // pred_fallthru
    _

// kernel: encoder_cnn_forward.59
$region0: #{encoder_cnn_forward.59}
  #allocation0 [shape = 'u32[]', space=smem, size = 0x4, offset = 0x4, fixed_abs, tag = 'smem constant byte address 0x4 - core index']
  #allocation1 [shape = 'u32[144,128]{1,0:T(1,128)}', space=vmem, size = 0x12000, scoped, tag = 'internal scratch']
  #allocation2 [shape = 'f32[128,128]{1,0:T(8,128)}', space=vmem, size = 0x10000, scoped, tag = 'scratch operand']
  %s0 = inlined_call_operand.vmem [shape: bf16[128,128], index: 0, kind: input, shape index: {}]
  %s1 = inlined_call_operand.vmem [shape: bf16[128,128], index: 1, kind: input, shape index: {}]
  %s2 = inlined_call_operand.vmem [shape: f32[1,128], index: 2, kind: input, shape index: {}]
  %s3 = inlined_call_operand.vmem [shape: f32[128,128], index: 3, kind: output, shape index: {}]
  %s4 = sld [smem:[#allocation0]]
  $region30: #{encoder_cnn_forward.59} parent=0
    _
  %s6 = ssub.s32 1, %s4
  %s7 = scalar_select 0, %s6, %s4
  // Predicated region
  $region2: #{encoder_cnn_forward.59} parent=0 // pred_check
    _
  $region3: #{encoder_cnn_forward.59} parent=0 // pred_check_branch
    %9 = sbr.rel (0) target = $region5
  $region4: #{encoder_cnn_forward.59} parent=0 // pred_region
    _
  $region5: #{encoder_cnn_forward.59} parent=0 // pred_fallthru
    _
  // Predicated region
  $region6: #{encoder_cnn_forward.59} parent=0 // pred_check
    _
  $region7: #{encoder_cnn_forward.59} parent=0 // pred_check_branch
    %11 = sbr.rel (0) target = $region9
  $region8: #{encoder_cnn_forward.59} parent=0 // pred_region
    _
  $region9: #{encoder_cnn_forward.59} parent=0 // pred_fallthru
    _
  // Predicated region
  $region10: #{encoder_cnn_forward.59} parent=0 // pred_check
    _
  $region11: #{encoder_cnn_forward.59} parent=0 // pred_check_branch
    %13 = sbr.rel (0) target = $region13
  $region12: #{encoder_cnn_forward.59} parent=0 // pred_region
    _
  $region13: #{encoder_cnn_forward.59} parent=0 // pred_fallthru
    _
  %p15 = scmp.eq.s32.totalorder 0, 0
  // Predicated region
  $region14: #{encoder_cnn_forward.59} parent=0 // pred_check
    %p16 = pneg %p15
  $region15: #{encoder_cnn_forward.59} parent=0 // pred_check_branch
    %18 = sbr.rel (%p16) target = $region17
  $region16: #{encoder_cnn_forward.59} parent=0 // pred_region
    %19 = vst [vmem:[#allocation2] sm:$0xff] 0.0
    %20 = vst [vmem:[#allocation2 + $0x8] sm:$0xff] 0.0
    %21 = vst [vmem:[#allocation2 + $0x10] sm:$0xff] 0.0
    %22 = vst [vmem:[#allocation2 + $0x18] sm:$0xff] 0.0
    %23 = vst [vmem:[#allocation2 + $0x20] sm:$0xff] 0.0
    %24 = vst [vmem:[#allocation2 + $0x28] sm:$0xff] 0.0
    %25 = vst [vmem:[#allocation2 + $0x30] sm:$0xff] 0.0
    %26 = vst [vmem:[#allocation2 + $0x38] sm:$0xff] 0.0
    %27 = vst [vmem:[#allocation2 + $0x40] sm:$0xff] 0.0
    %28 = vst [vmem:[#allocation2 + $0x48] sm:$0xff] 0.0
    %29 = vst [vmem:[#allocation2 + $0x50] sm:$0xff] 0.0
    %30 = vst [vmem:[#allocation2 + $0x58] sm:$0xff] 0.0
    %31 = vst [vmem:[#allocation2 + $0x60] sm:$0xff] 0.0
    %32 = vst [vmem:[#allocation2 + $0x68] sm:$0xff] 0.0
    %33 = vst [vmem:[#allocation2 + $0x70] sm:$0xff] 0.0
    %34 = vst [vmem:[#allocation2 + $0x78] sm:$0xff] 0.0
  $region17: #{encoder_cnn_forward.59} parent=0 // pred_fallthru
    _
  %v35 = vld [vmem:[#allocation2] sm:$0xff]
  %v36 = vld [vmem:[#allocation2 + $0x8] sm:$0xff]
  %v37 = vld [vmem:[#allocation2 + $0x10] sm:$0xff]
  %v38 = vld [vmem:[#allocation2 + $0x18] sm:$0xff]
  %v39 = vld [vmem:[#allocation2 + $0x20] sm:$0xff]
  %v40 = vld [vmem:[#allocation2 + $0x28] sm:$0xff]
  %v41 = vld [vmem:[#allocation2 + $0x30] sm:$0xff]
  %v42 = vld [vmem:[#allocation2 + $0x38] sm:$0xff]
  %v43 = vld [vmem:[#allocation2 + $0x40] sm:$0xff]
  %v44 = vld [vmem:[#allocation2 + $0x48] sm:$0xff]
  %v45 = vld [vmem:[#allocation2 + $0x50] sm:$0xff]
  %v46 = vld [vmem:[#allocation2 + $0x58] sm:$0xff]
  %v47 = vld [vmem:[#allocation2 + $0x60] sm:$0xff]
  %v48 = vld [vmem:[#allocation2 + $0x68] sm:$0xff]
  %v49 = vld [vmem:[#allocation2 + $0x70] sm:$0xff]
  %v50 = vld [vmem:[#allocation2 + $0x78] sm:$0xff]
  %v51 = vld [vmem:[%s0] sm:$0xf]
  %v52 = vld [vmem:[%s0 + $0x4] sm:$0xf]
  %v53 = vld [vmem:[%s0 + $0x8] sm:$0xf]
  %v54 = vld [vmem:[%s0 + $0xc] sm:$0xf]
  %v55 = vld [vmem:[%s0 + $0x10] sm:$0xf]
  %v56 = vld [vmem:[%s0 + $0x14] sm:$0xf]
  %v57 = vld [vmem:[%s0 + $0x18] sm:$0xf]
  %v58 = vld [vmem:[%s0 + $0x1c] sm:$0xf]
  %v59 = vld [vmem:[%s0 + $0x20] sm:$0xf]
  %v60 = vld [vmem:[%s0 + $0x24] sm:$0xf]
  %v61 = vld [vmem:[%s0 + $0x28] sm:$0xf]
  %v62 = vld [vmem:[%s0 + $0x2c] sm:$0xf]
  %v63 = vld [vmem:[%s0 + $0x30] sm:$0xf]
  %v64 = vld [vmem:[%s0 + $0x34] sm:$0xf]
  %v65 = vld [vmem:[%s0 + $0x38] sm:$0xf]
  %v66 = vld [vmem:[%s0 + $0x3c] sm:$0xf]
  %v67 = vld [vmem:[%s1] sm:$0xf]
  %v68 = vld [vmem:[%s1 + $0x4] sm:$0xf]
  %v69 = vld [vmem:[%s1 + $0x8] sm:$0xf]
  %v70 = vld [vmem:[%s1 + $0xc] sm:$0xf]
  %v71 = vld [vmem:[%s1 + $0x10] sm:$0xf]
  %v72 = vld [vmem:[%s1 + $0x14] sm:$0xf]
  %v73 = vld [vmem:[%s1 + $0x18] sm:$0xf]
  %v74 = vld [vmem:[%s1 + $0x1c] sm:$0xf]
  %v75 = vld [vmem:[%s1 + $0x20] sm:$0xf]
  %v76 = vld [vmem:[%s1 + $0x24] sm:$0xf]
  %v77 = vld [vmem:[%s1 + $0x28] sm:$0xf]
  %v78 = vld [vmem:[%s1 + $0x2c] sm:$0xf]
  %v79 = vld [vmem:[%s1 + $0x30] sm:$0xf]
  %v80 = vld [vmem:[%s1 + $0x34] sm:$0xf]
  %v81 = vld [vmem:[%s1 + $0x38] sm:$0xf]
  %v82 = vld [vmem:[%s1 + $0x3c] sm:$0xf]
  %v99 = vunpack.c.l.b16 %v51
  %v100 = vunpack.c.l.b16 %v52
  %v101 = vunpack.c.l.b16 %v53
  %v102 = vunpack.c.l.b16 %v54
  %v103 = vunpack.c.l.b16 %v55
  %v104 = vunpack.c.l.b16 %v56
  %v105 = vunpack.c.l.b16 %v57
  %v106 = vunpack.c.l.b16 %v58
  %v107 = vunpack.c.l.b16 %v59
  %v108 = vunpack.c.l.b16 %v60
  %v109 = vunpack.c.l.b16 %v61
  %v110 = vunpack.c.l.b16 %v62
  %v111 = vunpack.c.l.b16 %v63
  %v112 = vunpack.c.l.b16 %v64
  %v113 = vunpack.c.l.b16 %v65
  %v114 = vunpack.c.l.b16 %v66
  %v115 = vpack.c.b16 %v100, %v99
  %v116 = vpack.c.b16 %v102, %v101
  %v117 = vpack.c.b16 %v104, %v103
  %v118 = vpack.c.b16 %v106, %v105
  %v119 = vpack.c.b16 %v108, %v107
  %v120 = vpack.c.b16 %v110, %v109
  %v121 = vpack.c.b16 %v112, %v111
  %v122 = vpack.c.b16 %v114, %v113
  %v147 = vunpack.c.l.b16 %v67
  %v148 = vunpack.c.l.b16 %v68
  %v149 = vunpack.c.l.b16 %v69
  %v150 = vunpack.c.l.b16 %v70
  %v151 = vunpack.c.l.b16 %v71
  %v152 = vunpack.c.l.b16 %v72
  %v153 = vunpack.c.l.b16 %v73
  %v154 = vunpack.c.l.b16 %v74
  %v155 = vunpack.c.l.b16 %v75
  %v156 = vunpack.c.l.b16 %v76
  %v157 = vunpack.c.l.b16 %v77
  %v158 = vunpack.c.l.b16 %v78
  %v159 = vunpack.c.l.b16 %v79
  %v160 = vunpack.c.l.b16 %v80
  %v161 = vunpack.c.l.b16 %v81
  %v162 = vunpack.c.l.b16 %v82
  %v163 = vpack.c.b16 %v148, %v147
  %v164 = vpack.c.b16 %v150, %v149
  %v165 = vpack.c.b16 %v152, %v151
  %v166 = vpack.c.b16 %v154, %v153
  %v167 = vpack.c.b16 %v156, %v155
  %v168 = vpack.c.b16 %v158, %v157
  %v169 = vpack.c.b16 %v160, %v159
  %v170 = vpack.c.b16 %v162, %v161
  %179 = vmatprep.subr.bf16.mxu0 0
  %180 = vmatpush1.bf16.msra.mxu0 %v163
  %181 = vmatprep.subr.bf16.mxu0 0
  %182 = vmatpush1.bf16.msra.mxu0 %v164
  %183 = vmatprep.subr.bf16.mxu0 0
  %184 = vmatpush1.bf16.msra.mxu0 %v165
  %185 = vmatprep.subr.bf16.mxu0 0
  %186 = vmatpush1.bf16.msra.mxu0 %v166
  %187 = vmatprep.subr.bf16.mxu0 0
  %188 = vmatpush1.bf16.msra.mxu0 %v167
  %189 = vmatprep.subr.bf16.mxu0 0
  %190 = vmatpush1.bf16.msra.mxu0 %v168
  %191 = vmatprep.subr.bf16.mxu0 0
  %192 = vmatpush1.bf16.msra.mxu0 %v169
  %193 = vmatprep.subr.bf16.mxu0 0
  %194 = vmatpush1.bf16.msra.mxu0 %v170
  %195 = vmatprep.subr.bf16.mxu0 0
  %196 = vmatpush1.bf16.msra.mxu0 0
  %197 = vmatprep.subr.bf16.mxu0 0
  %198 = vmatpush1.bf16.msra.mxu0 0
  %199 = vmatprep.subr.bf16.mxu0 0
  %200 = vmatpush1.bf16.msra.mxu0 0
  %201 = vmatprep.subr.bf16.mxu0 0
  %202 = vmatpush1.bf16.msra.mxu0 0
  %203 = vmatprep.subr.bf16.mxu0 0
  %204 = vmatpush1.bf16.msra.mxu0 0
  %205 = vmatprep.subr.bf16.mxu0 0
  %206 = vmatpush1.bf16.msra.mxu0 0
  %207 = vmatprep.subr.bf16.mxu0 0
  %208 = vmatpush1.bf16.msra.mxu0 0
  %209 = vmatprep.subr.bf16.mxu0 0
  %210 = vmatpush1.bf16.msra.mxu0 0
  %211 = vmatprep.mubr.bf16.mxu0 0
  %212 = vmatmul.mubr.bf16.gmra.mrb[0].mxu0 %v115
  %v213 = vpop.f32.mrb[0].mxu0
  %v214 = vadd.f32 0.0, %v213
  %v215 = vpop.f32.mrb[0].mxu0
  %v216 = vpop.f32.mrb[0].mxu0
  %v217 = vadd.f32 0.0, %v216
  %v218 = vpop.f32.mrb[0].mxu0
  %219 = vmatprep.mubr.bf16.mxu0 0
  %220 = vmatmul.mubr.bf16.gmra.mrb[0].mxu0 %v116
  %v221 = vpop.f32.mrb[0].mxu0
  %v222 = vadd.f32 0.0, %v221
  %v223 = vpop.f32.mrb[0].mxu0
  %v224 = vpop.f32.mrb[0].mxu0
  %v225 = vadd.f32 0.0, %v224
  %v226 = vpop.f32.mrb[0].mxu0
  %227 = vmatprep.mubr.bf16.mxu0 0
  %228 = vmatmul.mubr.bf16.gmra.mrb[0].mxu0 %v117
  %v229 = vpop.f32.mrb[0].mxu0
  %v230 = vadd.f32 0.0, %v229
  %v231 = vpop.f32.mrb[0].mxu0
  %v232 = vpop.f32.mrb[0].mxu0
  %v233 = vadd.f32 0.0, %v232
  %v234 = vpop.f32.mrb[0].mxu0
  %235 = vmatprep.mubr.bf16.mxu0 0
  %236 = vmatmul.mubr.bf16.gmra.mrb[0].mxu0 %v118
  %v237 = vpop.f32.mrb[0].mxu0
  %v238 = vadd.f32 0.0, %v237
  %v239 = vpop.f32.mrb[0].mxu0
  %v240 = vpop.f32.mrb[0].mxu0
  %v241 = vadd.f32 0.0, %v240
  %v242 = vpop.f32.mrb[0].mxu0
  %243 = vmatprep.mubr.bf16.mxu0 0
  %244 = vmatmul.mubr.bf16.gmra.mrb[0].mxu0 %v119
  %v245 = vpop.f32.mrb[0].mxu0
  %v246 = vadd.f32 0.0, %v245
  %v247 = vpop.f32.mrb[0].mxu0
  %v248 = vpop.f32.mrb[0].mxu0
  %v249 = vadd.f32 0.0, %v248
  %v250 = vpop.f32.mrb[0].mxu0
  %251 = vmatprep.mubr.bf16.mxu0 0
  %252 = vmatmul.mubr.bf16.gmra.mrb[0].mxu0 %v120
  %v253 = vpop.f32.mrb[0].mxu0
  %v254 = vadd.f32 0.0, %v253
  %v255 = vpop.f32.mrb[0].mxu0
  %v256 = vpop.f32.mrb[0].mxu0
  %v257 = vadd.f32 0.0, %v256
  %v258 = vpop.f32.mrb[0].mxu0
  %259 = vmatprep.mubr.bf16.mxu0 0
  %260 = vmatmul.mubr.bf16.gmra.mrb[0].mxu0 %v121
  %v261 = vpop.f32.mrb[0].mxu0
  %v262 = vadd.f32 0.0, %v261
  %v263 = vpop.f32.mrb[0].mxu0
  %v264 = vpop.f32.mrb[0].mxu0
  %v265 = vadd.f32 0.0, %v264
  %v266 = vpop.f32.mrb[0].mxu0
  %267 = vmatprep.mubr.bf16.mxu0 0
  %268 = vmatmul.mubr.bf16.gmra.mrb[0].mxu0 %v122
  %v269 = vpop.f32.mrb[0].mxu0
  %v270 = vadd.f32 0.0, %v269
  %v271 = vpop.f32.mrb[0].mxu0
  %v272 = vpop.f32.mrb[0].mxu0
  %v273 = vadd.f32 0.0, %v272
  %v274 = vpop.f32.mrb[0].mxu0
  %275 = vdwg.mxu0
  %v276 = vadd.f32 %v35, %v214
  %v277 = vadd.f32 %v36, %v217
  %v278 = vadd.f32 %v37, %v222
  %v279 = vadd.f32 %v38, %v225
  %v280 = vadd.f32 %v39, %v230
  %v281 = vadd.f32 %v40, %v233
  %v282 = vadd.f32 %v41, %v238
  %v283 = vadd.f32 %v42, %v241
  %v284 = vadd.f32 %v43, %v246
  %v285 = vadd.f32 %v44, %v249
  %v286 = vadd.f32 %v45, %v254
  %v287 = vadd.f32 %v46, %v257
  %v288 = vadd.f32 %v47, %v262
  %v289 = vadd.f32 %v48, %v265
  %v290 = vadd.f32 %v49, %v270
  %v291 = vadd.f32 %v50, %v273
  %292 = vst [vmem:[#allocation2] sm:$0xff] %v276
  %293 = vst [vmem:[#allocation2 + $0x8] sm:$0xff] %v277
  %294 = vst [vmem:[#allocation2 + $0x10] sm:$0xff] %v278
  %295 = vst [vmem:[#allocation2 + $0x18] sm:$0xff] %v279
  %296 = vst [vmem:[#allocation2 + $0x20] sm:$0xff] %v280
  %297 = vst [vmem:[#allocation2 + $0x28] sm:$0xff] %v281
  %298 = vst [vmem:[#allocation2 + $0x30] sm:$0xff] %v282
  %299 = vst [vmem:[#allocation2 + $0x38] sm:$0xff] %v283
  %300 = vst [vmem:[#allocation2 + $0x40] sm:$0xff] %v284
  %301 = vst [vmem:[#allocation2 + $0x48] sm:$0xff] %v285
  %302 = vst [vmem:[#allocation2 + $0x50] sm:$0xff] %v286
  %303 = vst [vmem:[#allocation2 + $0x58] sm:$0xff] %v287
  %304 = vst [vmem:[#allocation2 + $0x60] sm:$0xff] %v288
  %305 = vst [vmem:[#allocation2 + $0x68] sm:$0xff] %v289
  %306 = vst [vmem:[#allocation2 + $0x70] sm:$0xff] %v290
  %307 = vst [vmem:[#allocation2 + $0x78] sm:$0xff] %v291
  // Predicated region
  $region18: #{encoder_cnn_forward.59} parent=0 // pred_check
    %p308 = pneg %p15
  $region19: #{encoder_cnn_forward.59} parent=0 // pred_check_branch
    %310 = sbr.rel (%p308) target = $region21
  $region20: #{encoder_cnn_forward.59} parent=0 // pred_region
    %v311 = vld [vmem:[#allocation2] sm:$0xff]
    %v312 = vld [vmem:[#allocation2 + $0x8] sm:$0xff]
    %v313 = vld [vmem:[#allocation2 + $0x10] sm:$0xff]
    %v314 = vld [vmem:[#allocation2 + $0x18] sm:$0xff]
    %v315 = vld [vmem:[#allocation2 + $0x20] sm:$0xff]
    %v316 = vld [vmem:[#allocation2 + $0x28] sm:$0xff]
    %v317 = vld [vmem:[#allocation2 + $0x30] sm:$0xff]
    %v318 = vld [vmem:[#allocation2 + $0x38] sm:$0xff]
    %v319 = vld [vmem:[#allocation2 + $0x40] sm:$0xff]
    %v320 = vld [vmem:[#allocation2 + $0x48] sm:$0xff]
    %v321 = vld [vmem:[#allocation2 + $0x50] sm:$0xff]
    %v322 = vld [vmem:[#allocation2 + $0x58] sm:$0xff]
    %v323 = vld [vmem:[#allocation2 + $0x60] sm:$0xff]
    %v324 = vld [vmem:[#allocation2 + $0x68] sm:$0xff]
    %v325 = vld [vmem:[#allocation2 + $0x70] sm:$0xff]
    %v326 = vld [vmem:[#allocation2 + $0x78] sm:$0xff]
    %v327 = vld [vmem:[%s2] sm:$0x1]
    %v329 = vlaneseq
    %v330 = vshrl.u32 %v329, 7
    %v331 = vsub.s32 0, %v330
    %v332 = vrot.slane %v327, %v331
    %v334 = vadd.f32 %v311, %v332
    %v335 = vadd.f32 %v312, %v332
    %v336 = vadd.f32 %v313, %v332
    %v337 = vadd.f32 %v314, %v332
    %v338 = vadd.f32 %v315, %v332
    %v339 = vadd.f32 %v316, %v332
    %v340 = vadd.f32 %v317, %v332
    %v341 = vadd.f32 %v318, %v332
    %v342 = vadd.f32 %v319, %v332
    %v343 = vadd.f32 %v320, %v332
    %v344 = vadd.f32 %v321, %v332
    %v345 = vadd.f32 %v322, %v332
    %v346 = vadd.f32 %v323, %v332
    %v347 = vadd.f32 %v324, %v332
    %v348 = vadd.f32 %v325, %v332
    %v349 = vadd.f32 %v326, %v332
    %350 = vst [vmem:[%s3] sm:$0xff] %v334
    %351 = vst [vmem:[%s3 + $0x8] sm:$0xff] %v335
    %352 = vst [vmem:[%s3 + $0x10] sm:$0xff] %v336
    %353 = vst [vmem:[%s3 + $0x18] sm:$0xff] %v337
    %354 = vst [vmem:[%s3 + $0x20] sm:$0xff] %v338
    %355 = vst [vmem:[%s3 + $0x28] sm:$0xff] %v339
    %356 = vst [vmem:[%s3 + $0x30] sm:$0xff] %v340
    %357 = vst [vmem:[%s3 + $0x38] sm:$0xff] %v341
    %358 = vst [vmem:[%s3 + $0x40] sm:$0xff] %v342
    %359 = vst [vmem:[%s3 + $0x48] sm:$0xff] %v343
    %360 = vst [vmem:[%s3 + $0x50] sm:$0xff] %v344
    %361 = vst [vmem:[%s3 + $0x58] sm:$0xff] %v345
    %362 = vst [vmem:[%s3 + $0x60] sm:$0xff] %v346
    %363 = vst [vmem:[%s3 + $0x68] sm:$0xff] %v347
    %364 = vst [vmem:[%s3 + $0x70] sm:$0xff] %v348
    %365 = vst [vmem:[%s3 + $0x78] sm:$0xff] %v349
  $region21: #{encoder_cnn_forward.59} parent=0 // pred_fallthru
    _
  // Predicated region
  $region22: #{encoder_cnn_forward.59} parent=0 // pred_check
    _
  $region23: #{encoder_cnn_forward.59} parent=0 // pred_check_branch
    %367 = sbr.rel (0) target = $region25
  $region24: #{encoder_cnn_forward.59} parent=0 // pred_region
    _
  $region25: #{encoder_cnn_forward.59} parent=0 // pred_fallthru
    _
  // Predicated region
  $region26: #{encoder_cnn_forward.59} parent=0 // pred_check
    _
  $region27: #{encoder_cnn_forward.59} parent=0 // pred_check_branch
    %369 = sbr.rel (0) target = $region29
  $region28: #{encoder_cnn_forward.59} parent=0 // pred_region
    _
  $region29: #{encoder_cnn_forward.59} parent=0 // pred_fallthru
    _

// kernel: encoder_cnn_forward.60
$region0: #{encoder_cnn_forward.60}
  #allocation0 [shape = 'u32[]', space=smem, size = 0x4, offset = 0x4, fixed_abs, tag = 'smem constant byte address 0x4 - core index']
  #allocation1 [shape = 'u32[144,128]{1,0:T(1,128)}', space=vmem, size = 0x12000, scoped, tag = 'internal scratch']
  #allocation2 [shape = 'f32[128,128]{1,0:T(8,128)}', space=vmem, size = 0x10000, scoped, tag = 'scratch operand']
  %s0 = inlined_call_operand.vmem [shape: bf16[128,128], index: 0, kind: input, shape index: {}]
  %s1 = inlined_call_operand.vmem [shape: bf16[128,128], index: 1, kind: input, shape index: {}]
  %s2 = inlined_call_operand.vmem [shape: f32[1,128], index: 2, kind: input, shape index: {}]
  %s3 = inlined_call_operand.vmem [shape: f32[128,128], index: 3, kind: input, shape index: {}]
  %s4 = inlined_call_operand.vmem [shape: f32[128,128], index: 4, kind: output, shape index: {}]
  %s5 = sld [smem:[#allocation0]]
  $region34: #{encoder_cnn_forward.60} parent=0
    _
  %s7 = ssub.s32 1, %s5
  %s8 = scalar_select 0, %s7, %s5
  // Predicated region
  $region2: #{encoder_cnn_forward.60} parent=0 // pred_check
    _
  $region3: #{encoder_cnn_forward.60} parent=0 // pred_check_branch
    %10 = sbr.rel (0) target = $region5
  $region4: #{encoder_cnn_forward.60} parent=0 // pred_region
    _
  $region5: #{encoder_cnn_forward.60} parent=0 // pred_fallthru
    _
  // Predicated region
  $region6: #{encoder_cnn_forward.60} parent=0 // pred_check
    _
  $region7: #{encoder_cnn_forward.60} parent=0 // pred_check_branch
    %12 = sbr.rel (0) target = $region9
  $region8: #{encoder_cnn_forward.60} parent=0 // pred_region
    _
  $region9: #{encoder_cnn_forward.60} parent=0 // pred_fallthru
    _
  // Predicated region
  $region10: #{encoder_cnn_forward.60} parent=0 // pred_check
    _
  $region11: #{encoder_cnn_forward.60} parent=0 // pred_check_branch
    %14 = sbr.rel (0) target = $region13
  $region12: #{encoder_cnn_forward.60} parent=0 // pred_region
    _
  $region13: #{encoder_cnn_forward.60} parent=0 // pred_fallthru
    _
  // Predicated region
  $region14: #{encoder_cnn_forward.60} parent=0 // pred_check
    _
  $region15: #{encoder_cnn_forward.60} parent=0 // pred_check_branch
    %16 = sbr.rel (0) target = $region17
  $region16: #{encoder_cnn_forward.60} parent=0 // pred_region
    _
  $region17: #{encoder_cnn_forward.60} parent=0 // pred_fallthru
    _
  %p18 = scmp.eq.s32.totalorder 0, 0
  // Predicated region
  $region18: #{encoder_cnn_forward.60} parent=0 // pred_check
    %p19 = pneg %p18
  $region19: #{encoder_cnn_forward.60} parent=0 // pred_check_branch
    %21 = sbr.rel (%p19) target = $region21
  $region20: #{encoder_cnn_forward.60} parent=0 // pred_region
    %22 = vst [vmem:[#allocation2] sm:$0xff] 0.0
    %23 = vst [vmem:[#allocation2 + $0x8] sm:$0xff] 0.0
    %24 = vst [vmem:[#allocation2 + $0x10] sm:$0xff] 0.0
    %25 = vst [vmem:[#allocation2 + $0x18] sm:$0xff] 0.0
    %26 = vst [vmem:[#allocation2 + $0x20] sm:$0xff] 0.0
    %27 = vst [vmem:[#allocation2 + $0x28] sm:$0xff] 0.0
    %28 = vst [vmem:[#allocation2 + $0x30] sm:$0xff] 0.0
    %29 = vst [vmem:[#allocation2 + $0x38] sm:$0xff] 0.0
    %30 = vst [vmem:[#allocation2 + $0x40] sm:$0xff] 0.0
    %31 = vst [vmem:[#allocation2 + $0x48] sm:$0xff] 0.0
    %32 = vst [vmem:[#allocation2 + $0x50] sm:$0xff] 0.0
    %33 = vst [vmem:[#allocation2 + $0x58] sm:$0xff] 0.0
    %34 = vst [vmem:[#allocation2 + $0x60] sm:$0xff] 0.0
    %35 = vst [vmem:[#allocation2 + $0x68] sm:$0xff] 0.0
    %36 = vst [vmem:[#allocation2 + $0x70] sm:$0xff] 0.0
    %37 = vst [vmem:[#allocation2 + $0x78] sm:$0xff] 0.0
  $region21: #{encoder_cnn_forward.60} parent=0 // pred_fallthru
    _
  %v38 = vld [vmem:[#allocation2] sm:$0xff]
  %v39 = vld [vmem:[#allocation2 + $0x8] sm:$0xff]
  %v40 = vld [vmem:[#allocation2 + $0x10] sm:$0xff]
  %v41 = vld [vmem:[#allocation2 + $0x18] sm:$0xff]
  %v42 = vld [vmem:[#allocation2 + $0x20] sm:$0xff]
  %v43 = vld [vmem:[#allocation2 + $0x28] sm:$0xff]
  %v44 = vld [vmem:[#allocation2 + $0x30] sm:$0xff]
  %v45 = vld [vmem:[#allocation2 + $0x38] sm:$0xff]
  %v46 = vld [vmem:[#allocation2 + $0x40] sm:$0xff]
  %v47 = vld [vmem:[#allocation2 + $0x48] sm:$0xff]
  %v48 = vld [vmem:[#allocation2 + $0x50] sm:$0xff]
  %v49 = vld [vmem:[#allocation2 + $0x58] sm:$0xff]
  %v50 = vld [vmem:[#allocation2 + $0x60] sm:$0xff]
  %v51 = vld [vmem:[#allocation2 + $0x68] sm:$0xff]
  %v52 = vld [vmem:[#allocation2 + $0x70] sm:$0xff]
  %v53 = vld [vmem:[#allocation2 + $0x78] sm:$0xff]
  %v54 = vld [vmem:[%s0] sm:$0xf]
  %v55 = vld [vmem:[%s0 + $0x4] sm:$0xf]
  %v56 = vld [vmem:[%s0 + $0x8] sm:$0xf]
  %v57 = vld [vmem:[%s0 + $0xc] sm:$0xf]
  %v58 = vld [vmem:[%s0 + $0x10] sm:$0xf]
  %v59 = vld [vmem:[%s0 + $0x14] sm:$0xf]
  %v60 = vld [vmem:[%s0 + $0x18] sm:$0xf]
  %v61 = vld [vmem:[%s0 + $0x1c] sm:$0xf]
  %v62 = vld [vmem:[%s0 + $0x20] sm:$0xf]
  %v63 = vld [vmem:[%s0 + $0x24] sm:$0xf]
  %v64 = vld [vmem:[%s0 + $0x28] sm:$0xf]
  %v65 = vld [vmem:[%s0 + $0x2c] sm:$0xf]
  %v66 = vld [vmem:[%s0 + $0x30] sm:$0xf]
  %v67 = vld [vmem:[%s0 + $0x34] sm:$0xf]
  %v68 = vld [vmem:[%s0 + $0x38] sm:$0xf]
  %v69 = vld [vmem:[%s0 + $0x3c] sm:$0xf]
  %v70 = vld [vmem:[%s1] sm:$0xf]
  %v71 = vld [vmem:[%s1 + $0x4] sm:$0xf]
  %v72 = vld [vmem:[%s1 + $0x8] sm:$0xf]
  %v73 = vld [vmem:[%s1 + $0xc] sm:$0xf]
  %v74 = vld [vmem:[%s1 + $0x10] sm:$0xf]
  %v75 = vld [vmem:[%s1 + $0x14] sm:$0xf]
  %v76 = vld [vmem:[%s1 + $0x18] sm:$0xf]
  %v77 = vld [vmem:[%s1 + $0x1c] sm:$0xf]
  %v78 = vld [vmem:[%s1 + $0x20] sm:$0xf]
  %v79 = vld [vmem:[%s1 + $0x24] sm:$0xf]
  %v80 = vld [vmem:[%s1 + $0x28] sm:$0xf]
  %v81 = vld [vmem:[%s1 + $0x2c] sm:$0xf]
  %v82 = vld [vmem:[%s1 + $0x30] sm:$0xf]
  %v83 = vld [vmem:[%s1 + $0x34] sm:$0xf]
  %v84 = vld [vmem:[%s1 + $0x38] sm:$0xf]
  %v85 = vld [vmem:[%s1 + $0x3c] sm:$0xf]
  %v102 = vunpack.c.l.b16 %v54
  %v103 = vunpack.c.l.b16 %v55
  %v104 = vunpack.c.l.b16 %v56
  %v105 = vunpack.c.l.b16 %v57
  %v106 = vunpack.c.l.b16 %v58
  %v107 = vunpack.c.l.b16 %v59
  %v108 = vunpack.c.l.b16 %v60
  %v109 = vunpack.c.l.b16 %v61
  %v110 = vunpack.c.l.b16 %v62
  %v111 = vunpack.c.l.b16 %v63
  %v112 = vunpack.c.l.b16 %v64
  %v113 = vunpack.c.l.b16 %v65
  %v114 = vunpack.c.l.b16 %v66
  %v115 = vunpack.c.l.b16 %v67
  %v116 = vunpack.c.l.b16 %v68
  %v117 = vunpack.c.l.b16 %v69
  %v118 = vpack.c.b16 %v103, %v102
  %v119 = vpack.c.b16 %v105, %v104
  %v120 = vpack.c.b16 %v107, %v106
  %v121 = vpack.c.b16 %v109, %v108
  %v122 = vpack.c.b16 %v111, %v110
  %v123 = vpack.c.b16 %v113, %v112
  %v124 = vpack.c.b16 %v115, %v114
  %v125 = vpack.c.b16 %v117, %v116
  %v150 = vunpack.c.l.b16 %v70
  %v151 = vunpack.c.l.b16 %v71
  %v152 = vunpack.c.l.b16 %v72
  %v153 = vunpack.c.l.b16 %v73
  %v154 = vunpack.c.l.b16 %v74
  %v155 = vunpack.c.l.b16 %v75
  %v156 = vunpack.c.l.b16 %v76
  %v157 = vunpack.c.l.b16 %v77
  %v158 = vunpack.c.l.b16 %v78
  %v159 = vunpack.c.l.b16 %v79
  %v160 = vunpack.c.l.b16 %v80
  %v161 = vunpack.c.l.b16 %v81
  %v162 = vunpack.c.l.b16 %v82
  %v163 = vunpack.c.l.b16 %v83
  %v164 = vunpack.c.l.b16 %v84
  %v165 = vunpack.c.l.b16 %v85
  %v166 = vpack.c.b16 %v151, %v150
  %v167 = vpack.c.b16 %v153, %v152
  %v168 = vpack.c.b16 %v155, %v154
  %v169 = vpack.c.b16 %v157, %v156
  %v170 = vpack.c.b16 %v159, %v158
  %v171 = vpack.c.b16 %v161, %v160
  %v172 = vpack.c.b16 %v163, %v162
  %v173 = vpack.c.b16 %v165, %v164
  %182 = vmatprep.subr.bf16.mxu0 0
  %183 = vmatpush1.bf16.msra.mxu0 %v166
  %184 = vmatprep.subr.bf16.mxu0 0
  %185 = vmatpush1.bf16.msra.mxu0 %v167
  %186 = vmatprep.subr.bf16.mxu0 0
  %187 = vmatpush1.bf16.msra.mxu0 %v168
  %188 = vmatprep.subr.bf16.mxu0 0
  %189 = vmatpush1.bf16.msra.mxu0 %v169
  %190 = vmatprep.subr.bf16.mxu0 0
  %191 = vmatpush1.bf16.msra.mxu0 %v170
  %192 = vmatprep.subr.bf16.mxu0 0
  %193 = vmatpush1.bf16.msra.mxu0 %v171
  %194 = vmatprep.subr.bf16.mxu0 0
  %195 = vmatpush1.bf16.msra.mxu0 %v172
  %196 = vmatprep.subr.bf16.mxu0 0
  %197 = vmatpush1.bf16.msra.mxu0 %v173
  %198 = vmatprep.subr.bf16.mxu0 0
  %199 = vmatpush1.bf16.msra.mxu0 0
  %200 = vmatprep.subr.bf16.mxu0 0
  %201 = vmatpush1.bf16.msra.mxu0 0
  %202 = vmatprep.subr.bf16.mxu0 0
  %203 = vmatpush1.bf16.msra.mxu0 0
  %204 = vmatprep.subr.bf16.mxu0 0
  %205 = vmatpush1.bf16.msra.mxu0 0
  %206 = vmatprep.subr.bf16.mxu0 0
  %207 = vmatpush1.bf16.msra.mxu0 0
  %208 = vmatprep.subr.bf16.mxu0 0
  %209 = vmatpush1.bf16.msra.mxu0 0
  %210 = vmatprep.subr.bf16.mxu0 0
  %211 = vmatpush1.bf16.msra.mxu0 0
  %212 = vmatprep.subr.bf16.mxu0 0
  %213 = vmatpush1.bf16.msra.mxu0 0
  %214 = vmatprep.mubr.bf16.mxu0 0
  %215 = vmatmul.mubr.bf16.gmra.mrb[0].mxu0 %v118
  %v216 = vpop.f32.mrb[0].mxu0
  %v217 = vadd.f32 0.0, %v216
  %v218 = vpop.f32.mrb[0].mxu0
  %v219 = vpop.f32.mrb[0].mxu0
  %v220 = vadd.f32 0.0, %v219
  %v221 = vpop.f32.mrb[0].mxu0
  %222 = vmatprep.mubr.bf16.mxu0 0
  %223 = vmatmul.mubr.bf16.gmra.mrb[0].mxu0 %v119
  %v224 = vpop.f32.mrb[0].mxu0
  %v225 = vadd.f32 0.0, %v224
  %v226 = vpop.f32.mrb[0].mxu0
  %v227 = vpop.f32.mrb[0].mxu0
  %v228 = vadd.f32 0.0, %v227
  %v229 = vpop.f32.mrb[0].mxu0
  %230 = vmatprep.mubr.bf16.mxu0 0
  %231 = vmatmul.mubr.bf16.gmra.mrb[0].mxu0 %v120
  %v232 = vpop.f32.mrb[0].mxu0
  %v233 = vadd.f32 0.0, %v232
  %v234 = vpop.f32.mrb[0].mxu0
  %v235 = vpop.f32.mrb[0].mxu0
  %v236 = vadd.f32 0.0, %v235
  %v237 = vpop.f32.mrb[0].mxu0
  %238 = vmatprep.mubr.bf16.mxu0 0
  %239 = vmatmul.mubr.bf16.gmra.mrb[0].mxu0 %v121
  %v240 = vpop.f32.mrb[0].mxu0
  %v241 = vadd.f32 0.0, %v240
  %v242 = vpop.f32.mrb[0].mxu0
  %v243 = vpop.f32.mrb[0].mxu0
  %v244 = vadd.f32 0.0, %v243
  %v245 = vpop.f32.mrb[0].mxu0
  %246 = vmatprep.mubr.bf16.mxu0 0
  %247 = vmatmul.mubr.bf16.gmra.mrb[0].mxu0 %v122
  %v248 = vpop.f32.mrb[0].mxu0
  %v249 = vadd.f32 0.0, %v248
  %v250 = vpop.f32.mrb[0].mxu0
  %v251 = vpop.f32.mrb[0].mxu0
  %v252 = vadd.f32 0.0, %v251
  %v253 = vpop.f32.mrb[0].mxu0
  %254 = vmatprep.mubr.bf16.mxu0 0
  %255 = vmatmul.mubr.bf16.gmra.mrb[0].mxu0 %v123
  %v256 = vpop.f32.mrb[0].mxu0
  %v257 = vadd.f32 0.0, %v256
  %v258 = vpop.f32.mrb[0].mxu0
  %v259 = vpop.f32.mrb[0].mxu0
  %v260 = vadd.f32 0.0, %v259
  %v261 = vpop.f32.mrb[0].mxu0
  %262 = vmatprep.mubr.bf16.mxu0 0
  %263 = vmatmul.mubr.bf16.gmra.mrb[0].mxu0 %v124
  %v264 = vpop.f32.mrb[0].mxu0
  %v265 = vadd.f32 0.0, %v264
  %v266 = vpop.f32.mrb[0].mxu0
  %v267 = vpop.f32.mrb[0].mxu0
  %v268 = vadd.f32 0.0, %v267
  %v269 = vpop.f32.mrb[0].mxu0
  %270 = vmatprep.mubr.bf16.mxu0 0
  %271 = vmatmul.mubr.bf16.gmra.mrb[0].mxu0 %v125
  %v272 = vpop.f32.mrb[0].mxu0
  %v273 = vadd.f32 0.0, %v272
  %v274 = vpop.f32.mrb[0].mxu0
  %v275 = vpop.f32.mrb[0].mxu0
  %v276 = vadd.f32 0.0, %v275
  %v277 = vpop.f32.mrb[0].mxu0
  %278 = vdwg.mxu0
  %v279 = vadd.f32 %v38, %v217
  %v280 = vadd.f32 %v39, %v220
  %v281 = vadd.f32 %v40, %v225
  %v282 = vadd.f32 %v41, %v228
  %v283 = vadd.f32 %v42, %v233
  %v284 = vadd.f32 %v43, %v236
  %v285 = vadd.f32 %v44, %v241
  %v286 = vadd.f32 %v45, %v244
  %v287 = vadd.f32 %v46, %v249
  %v288 = vadd.f32 %v47, %v252
  %v289 = vadd.f32 %v48, %v257
  %v290 = vadd.f32 %v49, %v260
  %v291 = vadd.f32 %v50, %v265
  %v292 = vadd.f32 %v51, %v268
  %v293 = vadd.f32 %v52, %v273
  %v294 = vadd.f32 %v53, %v276
  %295 = vst [vmem:[#allocation2] sm:$0xff] %v279
  %296 = vst [vmem:[#allocation2 + $0x8] sm:$0xff] %v280
  %297 = vst [vmem:[#allocation2 + $0x10] sm:$0xff] %v281
  %298 = vst [vmem:[#allocation2 + $0x18] sm:$0xff] %v282
  %299 = vst [vmem:[#allocation2 + $0x20] sm:$0xff] %v283
  %300 = vst [vmem:[#allocation2 + $0x28] sm:$0xff] %v284
  %301 = vst [vmem:[#allocation2 + $0x30] sm:$0xff] %v285
  %302 = vst [vmem:[#allocation2 + $0x38] sm:$0xff] %v286
  %303 = vst [vmem:[#allocation2 + $0x40] sm:$0xff] %v287
  %304 = vst [vmem:[#allocation2 + $0x48] sm:$0xff] %v288
  %305 = vst [vmem:[#allocation2 + $0x50] sm:$0xff] %v289
  %306 = vst [vmem:[#allocation2 + $0x58] sm:$0xff] %v290
  %307 = vst [vmem:[#allocation2 + $0x60] sm:$0xff] %v291
  %308 = vst [vmem:[#allocation2 + $0x68] sm:$0xff] %v292
  %309 = vst [vmem:[#allocation2 + $0x70] sm:$0xff] %v293
  %310 = vst [vmem:[#allocation2 + $0x78] sm:$0xff] %v294
  // Predicated region
  $region22: #{encoder_cnn_forward.60} parent=0 // pred_check
    %p311 = pneg %p18
  $region23: #{encoder_cnn_forward.60} parent=0 // pred_check_branch
    %313 = sbr.rel (%p311) target = $region25
  $region24: #{encoder_cnn_forward.60} parent=0 // pred_region
    %v314 = vld [vmem:[#allocation2] sm:$0xff]
    %v315 = vld [vmem:[#allocation2 + $0x8] sm:$0xff]
    %v316 = vld [vmem:[#allocation2 + $0x10] sm:$0xff]
    %v317 = vld [vmem:[#allocation2 + $0x18] sm:$0xff]
    %v318 = vld [vmem:[#allocation2 + $0x20] sm:$0xff]
    %v319 = vld [vmem:[#allocation2 + $0x28] sm:$0xff]
    %v320 = vld [vmem:[#allocation2 + $0x30] sm:$0xff]
    %v321 = vld [vmem:[#allocation2 + $0x38] sm:$0xff]
    %v322 = vld [vmem:[#allocation2 + $0x40] sm:$0xff]
    %v323 = vld [vmem:[#allocation2 + $0x48] sm:$0xff]
    %v324 = vld [vmem:[#allocation2 + $0x50] sm:$0xff]
    %v325 = vld [vmem:[#allocation2 + $0x58] sm:$0xff]
    %v326 = vld [vmem:[#allocation2 + $0x60] sm:$0xff]
    %v327 = vld [vmem:[#allocation2 + $0x68] sm:$0xff]
    %v328 = vld [vmem:[#allocation2 + $0x70] sm:$0xff]
    %v329 = vld [vmem:[#allocation2 + $0x78] sm:$0xff]
    %v330 = vld [vmem:[%s2] sm:$0x1]
    %v332 = vlaneseq
    %v333 = vshrl.u32 %v332, 7
    %v334 = vsub.s32 0, %v333
    %v335 = vrot.slane %v330, %v334
    %v337 = vadd.f32 %v314, %v335
    %v338 = vadd.f32 %v315, %v335
    %v339 = vadd.f32 %v316, %v335
    %v340 = vadd.f32 %v317, %v335
    %v341 = vadd.f32 %v318, %v335
    %v342 = vadd.f32 %v319, %v335
    %v343 = vadd.f32 %v320, %v335
    %v344 = vadd.f32 %v321, %v335
    %v345 = vadd.f32 %v322, %v335
    %v346 = vadd.f32 %v323, %v335
    %v347 = vadd.f32 %v324, %v335
    %v348 = vadd.f32 %v325, %v335
    %v349 = vadd.f32 %v326, %v335
    %v350 = vadd.f32 %v327, %v335
    %v351 = vadd.f32 %v328, %v335
    %v352 = vadd.f32 %v329, %v335
    %v353 = vld [vmem:[%s3] sm:$0xff]
    %v354 = vld [vmem:[%s3 + $0x8] sm:$0xff]
    %v355 = vld [vmem:[%s3 + $0x10] sm:$0xff]
    %v356 = vld [vmem:[%s3 + $0x18] sm:$0xff]
    %v357 = vld [vmem:[%s3 + $0x20] sm:$0xff]
    %v358 = vld [vmem:[%s3 + $0x28] sm:$0xff]
    %v359 = vld [vmem:[%s3 + $0x30] sm:$0xff]
    %v360 = vld [vmem:[%s3 + $0x38] sm:$0xff]
    %v361 = vld [vmem:[%s3 + $0x40] sm:$0xff]
    %v362 = vld [vmem:[%s3 + $0x48] sm:$0xff]
    %v363 = vld [vmem:[%s3 + $0x50] sm:$0xff]
    %v364 = vld [vmem:[%s3 + $0x58] sm:$0xff]
    %v365 = vld [vmem:[%s3 + $0x60] sm:$0xff]
    %v366 = vld [vmem:[%s3 + $0x68] sm:$0xff]
    %v367 = vld [vmem:[%s3 + $0x70] sm:$0xff]
    %v368 = vld [vmem:[%s3 + $0x78] sm:$0xff]
    %v369 = vadd.f32 %v337, %v353
    %v370 = vadd.f32 %v338, %v354
    %v371 = vadd.f32 %v339, %v355
    %v372 = vadd.f32 %v340, %v356
    %v373 = vadd.f32 %v341, %v357
    %v374 = vadd.f32 %v342, %v358
    %v375 = vadd.f32 %v343, %v359
    %v376 = vadd.f32 %v344, %v360
    %v377 = vadd.f32 %v345, %v361
    %v378 = vadd.f32 %v346, %v362
    %v379 = vadd.f32 %v347, %v363
    %v380 = vadd.f32 %v348, %v364
    %v381 = vadd.f32 %v349, %v365
    %v382 = vadd.f32 %v350, %v366
    %v383 = vadd.f32 %v351, %v367
    %v384 = vadd.f32 %v352, %v368
    %v385 = vmax.f32 %v369, 0.0
    %v386 = vmax.f32 %v370, 0.0
    %v387 = vmax.f32 %v371, 0.0
    %v388 = vmax.f32 %v372, 0.0
    %v389 = vmax.f32 %v373, 0.0
    %v390 = vmax.f32 %v374, 0.0
    %v391 = vmax.f32 %v375, 0.0
    %v392 = vmax.f32 %v376, 0.0
    %v393 = vmax.f32 %v377, 0.0
    %v394 = vmax.f32 %v378, 0.0
    %v395 = vmax.f32 %v379, 0.0
    %v396 = vmax.f32 %v380, 0.0
    %v397 = vmax.f32 %v381, 0.0
    %v398 = vmax.f32 %v382, 0.0
    %v399 = vmax.f32 %v383, 0.0
    %v400 = vmax.f32 %v384, 0.0
    %401 = vst [vmem:[%s4] sm:$0xff] %v385
    %402 = vst [vmem:[%s4 + $0x8] sm:$0xff] %v386
    %403 = vst [vmem:[%s4 + $0x10] sm:$0xff] %v387
    %404 = vst [vmem:[%s4 + $0x18] sm:$0xff] %v388
    %405 = vst [vmem:[%s4 + $0x20] sm:$0xff] %v389
    %406 = vst [vmem:[%s4 + $0x28] sm:$0xff] %v390
    %407 = vst [vmem:[%s4 + $0x30] sm:$0xff] %v391
    %408 = vst [vmem:[%s4 + $0x38] sm:$0xff] %v392
    %409 = vst [vmem:[%s4 + $0x40] sm:$0xff] %v393
    %410 = vst [vmem:[%s4 + $0x48] sm:$0xff] %v394
    %411 = vst [vmem:[%s4 + $0x50] sm:$0xff] %v395
    %412 = vst [vmem:[%s4 + $0x58] sm:$0xff] %v396
    %413 = vst [vmem:[%s4 + $0x60] sm:$0xff] %v397
    %414 = vst [vmem:[%s4 + $0x68] sm:$0xff] %v398
    %415 = vst [vmem:[%s4 + $0x70] sm:$0xff] %v399
    %416 = vst [vmem:[%s4 + $0x78] sm:$0xff] %v400
  $region25: #{encoder_cnn_forward.60} parent=0 // pred_fallthru
    _
  // Predicated region
  $region26: #{encoder_cnn_forward.60} parent=0 // pred_check
    _
  $region27: #{encoder_cnn_forward.60} parent=0 // pred_check_branch
    %418 = sbr.rel (0) target = $region29
  $region28: #{encoder_cnn_forward.60} parent=0 // pred_region
    _
  $region29: #{encoder_cnn_forward.60} parent=0 // pred_fallthru
    _
  // Predicated region
  $region30: #{encoder_cnn_forward.60} parent=0 // pred_check
    _
  $region31: #{encoder_cnn_forward.60} parent=0 // pred_check_branch
    %420 = sbr.rel (0) target = $region33
  $region32: #{encoder_cnn_forward.60} parent=0 // pred_region
    _
  $region33: #{encoder_cnn_forward.60} parent=0 // pred_fallthru
    _

// kernel: encoder_cnn_forward.68
$region0: #{encoder_cnn_forward.68}
  #allocation0 [shape = 'u32[]', space=smem, size = 0x4, offset = 0x4, fixed_abs, tag = 'smem constant byte address 0x4 - core index']
  #allocation1 [shape = 'u32[144,128]{1,0:T(1,128)}', space=vmem, size = 0x12000, scoped, tag = 'internal scratch']
  #allocation2 [shape = 'f32[32,128]{1,0:T(8,128)}', space=vmem, size = 0x4000, scoped, tag = 'scratch operand']
  %s0 = inlined_call_operand.vmem [shape: bf16[32,128], index: 0, kind: input, shape index: {}]
  %s1 = inlined_call_operand.vmem [shape: bf16[128,128], index: 1, kind: input, shape index: {}]
  %s2 = inlined_call_operand.vmem [shape: f32[1,128], index: 2, kind: input, shape index: {}]
  %s3 = inlined_call_operand.vmem [shape: f32[32,128], index: 3, kind: output, shape index: {}]
  %s4 = sld [smem:[#allocation0]]
  $region30: #{encoder_cnn_forward.68} parent=0
    _
  %s6 = ssub.s32 1, %s4
  %s7 = scalar_select 0, %s6, %s4
  // Predicated region
  $region2: #{encoder_cnn_forward.68} parent=0 // pred_check
    _
  $region3: #{encoder_cnn_forward.68} parent=0 // pred_check_branch
    %9 = sbr.rel (0) target = $region5
  $region4: #{encoder_cnn_forward.68} parent=0 // pred_region
    _
  $region5: #{encoder_cnn_forward.68} parent=0 // pred_fallthru
    _
  // Predicated region
  $region6: #{encoder_cnn_forward.68} parent=0 // pred_check
    _
  $region7: #{encoder_cnn_forward.68} parent=0 // pred_check_branch
    %11 = sbr.rel (0) target = $region9
  $region8: #{encoder_cnn_forward.68} parent=0 // pred_region
    _
  $region9: #{encoder_cnn_forward.68} parent=0 // pred_fallthru
    _
  // Predicated region
  $region10: #{encoder_cnn_forward.68} parent=0 // pred_check
    _
  $region11: #{encoder_cnn_forward.68} parent=0 // pred_check_branch
    %13 = sbr.rel (0) target = $region13
  $region12: #{encoder_cnn_forward.68} parent=0 // pred_region
    _
  $region13: #{encoder_cnn_forward.68} parent=0 // pred_fallthru
    _
  %p15 = scmp.eq.s32.totalorder 0, 0
  // Predicated region
  $region14: #{encoder_cnn_forward.68} parent=0 // pred_check
    %p16 = pneg %p15
  $region15: #{encoder_cnn_forward.68} parent=0 // pred_check_branch
    %18 = sbr.rel (%p16) target = $region17
  $region16: #{encoder_cnn_forward.68} parent=0 // pred_region
    %19 = vst [vmem:[#allocation2] sm:$0xff] 0.0
    %20 = vst [vmem:[#allocation2 + $0x8] sm:$0xff] 0.0
    %21 = vst [vmem:[#allocation2 + $0x10] sm:$0xff] 0.0
    %22 = vst [vmem:[#allocation2 + $0x18] sm:$0xff] 0.0
  $region17: #{encoder_cnn_forward.68} parent=0 // pred_fallthru
    _
  %v23 = vld [vmem:[#allocation2] sm:$0xff]
  %v24 = vld [vmem:[#allocation2 + $0x8] sm:$0xff]
  %v25 = vld [vmem:[#allocation2 + $0x10] sm:$0xff]
  %v26 = vld [vmem:[#allocation2 + $0x18] sm:$0xff]
  %v27 = vld [vmem:[%s0] sm:$0xf]
  %v28 = vld [vmem:[%s0 + $0x4] sm:$0xf]
  %v29 = vld [vmem:[%s0 + $0x8] sm:$0xf]
  %v30 = vld [vmem:[%s0 + $0xc] sm:$0xf]
  %v31 = vld [vmem:[%s1] sm:$0xf]
  %v32 = vld [vmem:[%s1 + $0x4] sm:$0xf]
  %v33 = vld [vmem:[%s1 + $0x8] sm:$0xf]
  %v34 = vld [vmem:[%s1 + $0xc] sm:$0xf]
  %v35 = vld [vmem:[%s1 + $0x10] sm:$0xf]
  %v36 = vld [vmem:[%s1 + $0x14] sm:$0xf]
  %v37 = vld [vmem:[%s1 + $0x18] sm:$0xf]
  %v38 = vld [vmem:[%s1 + $0x1c] sm:$0xf]
  %v39 = vld [vmem:[%s1 + $0x20] sm:$0xf]
  %v40 = vld [vmem:[%s1 + $0x24] sm:$0xf]
  %v41 = vld [vmem:[%s1 + $0x28] sm:$0xf]
  %v42 = vld [vmem:[%s1 + $0x2c] sm:$0xf]
  %v43 = vld [vmem:[%s1 + $0x30] sm:$0xf]
  %v44 = vld [vmem:[%s1 + $0x34] sm:$0xf]
  %v45 = vld [vmem:[%s1 + $0x38] sm:$0xf]
  %v46 = vld [vmem:[%s1 + $0x3c] sm:$0xf]
  %v51 = vunpack.c.l.b16 %v27
  %v52 = vunpack.c.l.b16 %v28
  %v53 = vunpack.c.l.b16 %v29
  %v54 = vunpack.c.l.b16 %v30
  %v55 = vpack.c.b16 %v52, %v51
  %v56 = vpack.c.b16 %v54, %v53
  %v75 = vunpack.c.l.b16 %v31
  %v76 = vunpack.c.l.b16 %v32
  %v77 = vunpack.c.l.b16 %v33
  %v78 = vunpack.c.l.b16 %v34
  %v79 = vunpack.c.l.b16 %v35
  %v80 = vunpack.c.l.b16 %v36
  %v81 = vunpack.c.l.b16 %v37
  %v82 = vunpack.c.l.b16 %v38
  %v83 = vunpack.c.l.b16 %v39
  %v84 = vunpack.c.l.b16 %v40
  %v85 = vunpack.c.l.b16 %v41
  %v86 = vunpack.c.l.b16 %v42
  %v87 = vunpack.c.l.b16 %v43
  %v88 = vunpack.c.l.b16 %v44
  %v89 = vunpack.c.l.b16 %v45
  %v90 = vunpack.c.l.b16 %v46
  %v91 = vpack.c.b16 %v76, %v75
  %v92 = vpack.c.b16 %v78, %v77
  %v93 = vpack.c.b16 %v80, %v79
  %v94 = vpack.c.b16 %v82, %v81
  %v95 = vpack.c.b16 %v84, %v83
  %v96 = vpack.c.b16 %v86, %v85
  %v97 = vpack.c.b16 %v88, %v87
  %v98 = vpack.c.b16 %v90, %v89
  %107 = vmatprep.subr.bf16.mxu0 0
  %108 = vmatpush1.bf16.msra.mxu0 %v91
  %109 = vmatprep.subr.bf16.mxu0 0
  %110 = vmatpush1.bf16.msra.mxu0 %v92
  %111 = vmatprep.subr.bf16.mxu0 0
  %112 = vmatpush1.bf16.msra.mxu0 %v93
  %113 = vmatprep.subr.bf16.mxu0 0
  %114 = vmatpush1.bf16.msra.mxu0 %v94
  %115 = vmatprep.subr.bf16.mxu0 0
  %116 = vmatpush1.bf16.msra.mxu0 %v95
  %117 = vmatprep.subr.bf16.mxu0 0
  %118 = vmatpush1.bf16.msra.mxu0 %v96
  %119 = vmatprep.subr.bf16.mxu0 0
  %120 = vmatpush1.bf16.msra.mxu0 %v97
  %121 = vmatprep.subr.bf16.mxu0 0
  %122 = vmatpush1.bf16.msra.mxu0 %v98
  %123 = vmatprep.subr.bf16.mxu0 0
  %124 = vmatpush1.bf16.msra.mxu0 0
  %125 = vmatprep.subr.bf16.mxu0 0
  %126 = vmatpush1.bf16.msra.mxu0 0
  %127 = vmatprep.subr.bf16.mxu0 0
  %128 = vmatpush1.bf16.msra.mxu0 0
  %129 = vmatprep.subr.bf16.mxu0 0
  %130 = vmatpush1.bf16.msra.mxu0 0
  %131 = vmatprep.subr.bf16.mxu0 0
  %132 = vmatpush1.bf16.msra.mxu0 0
  %133 = vmatprep.subr.bf16.mxu0 0
  %134 = vmatpush1.bf16.msra.mxu0 0
  %135 = vmatprep.subr.bf16.mxu0 0
  %136 = vmatpush1.bf16.msra.mxu0 0
  %137 = vmatprep.subr.bf16.mxu0 0
  %138 = vmatpush1.bf16.msra.mxu0 0
  %139 = vmatprep.mubr.bf16.mxu0 0
  %140 = vmatmul.mubr.bf16.gmra.mrb[0].mxu0 %v55
  %v141 = vpop.f32.mrb[0].mxu0
  %v142 = vadd.f32 0.0, %v141
  %v143 = vpop.f32.mrb[0].mxu0
  %v144 = vpop.f32.mrb[0].mxu0
  %v145 = vadd.f32 0.0, %v144
  %v146 = vpop.f32.mrb[0].mxu0
  %147 = vmatprep.mubr.bf16.mxu0 0
  %148 = vmatmul.mubr.bf16.gmra.mrb[0].mxu0 %v56
  %v149 = vpop.f32.mrb[0].mxu0
  %v150 = vadd.f32 0.0, %v149
  %v151 = vpop.f32.mrb[0].mxu0
  %v152 = vpop.f32.mrb[0].mxu0
  %v153 = vadd.f32 0.0, %v152
  %v154 = vpop.f32.mrb[0].mxu0
  %155 = vdwg.mxu0
  %v156 = vadd.f32 %v23, %v142
  %v157 = vadd.f32 %v24, %v145
  %v158 = vadd.f32 %v25, %v150
  %v159 = vadd.f32 %v26, %v153
  %160 = vst [vmem:[#allocation2] sm:$0xff] %v156
  %161 = vst [vmem:[#allocation2 + $0x8] sm:$0xff] %v157
  %162 = vst [vmem:[#allocation2 + $0x10] sm:$0xff] %v158
  %163 = vst [vmem:[#allocation2 + $0x18] sm:$0xff] %v159
  // Predicated region
  $region18: #{encoder_cnn_forward.68} parent=0 // pred_check
    %p164 = pneg %p15
  $region19: #{encoder_cnn_forward.68} parent=0 // pred_check_branch
    %166 = sbr.rel (%p164) target = $region21
  $region20: #{encoder_cnn_forward.68} parent=0 // pred_region
    %v167 = vld [vmem:[#allocation2] sm:$0xff]
    %v168 = vld [vmem:[#allocation2 + $0x8] sm:$0xff]
    %v169 = vld [vmem:[#allocation2 + $0x10] sm:$0xff]
    %v170 = vld [vmem:[#allocation2 + $0x18] sm:$0xff]
    %v171 = vld [vmem:[%s2] sm:$0x1]
    %v173 = vlaneseq
    %v174 = vshrl.u32 %v173, 7
    %v175 = vsub.s32 0, %v174
    %v176 = vrot.slane %v171, %v175
    %v178 = vadd.f32 %v167, %v176
    %v179 = vadd.f32 %v168, %v176
    %v180 = vadd.f32 %v169, %v176
    %v181 = vadd.f32 %v170, %v176
    %v182 = vmax.f32 %v178, 0.0
    %v183 = vmax.f32 %v179, 0.0
    %v184 = vmax.f32 %v180, 0.0
    %v185 = vmax.f32 %v181, 0.0
    %186 = vst [vmem:[%s3] sm:$0xff] %v182
    %187 = vst [vmem:[%s3 + $0x8] sm:$0xff] %v183
    %188 = vst [vmem:[%s3 + $0x10] sm:$0xff] %v184
    %189 = vst [vmem:[%s3 + $0x18] sm:$0xff] %v185
  $region21: #{encoder_cnn_forward.68} parent=0 // pred_fallthru
    _
  // Predicated region
  $region22: #{encoder_cnn_forward.68} parent=0 // pred_check
    _
  $region23: #{encoder_cnn_forward.68} parent=0 // pred_check_branch
    %191 = sbr.rel (0) target = $region25
  $region24: #{encoder_cnn_forward.68} parent=0 // pred_region
    _
  $region25: #{encoder_cnn_forward.68} parent=0 // pred_fallthru
    _
  // Predicated region
  $region26: #{encoder_cnn_forward.68} parent=0 // pred_check
    _
  $region27: #{encoder_cnn_forward.68} parent=0 // pred_check_branch
    %193 = sbr.rel (0) target = $region29
  $region28: #{encoder_cnn_forward.68} parent=0 // pred_region
    _
  $region29: #{encoder_cnn_forward.68} parent=0 // pred_fallthru
    _

// kernel: encoder_cnn_forward.70
$region0: #{encoder_cnn_forward.70}
  #allocation0 [shape = 'u32[]', space=smem, size = 0x4, offset = 0x4, fixed_abs, tag = 'smem constant byte address 0x4 - core index']
  #allocation1 [shape = 'u32[144,128]{1,0:T(1,128)}', space=vmem, size = 0x12000, scoped, tag = 'internal scratch']
  #allocation2 [shape = 'f32[32,128]{1,0:T(8,128)}', space=vmem, size = 0x4000, scoped, tag = 'scratch operand']
  %s0 = inlined_call_operand.vmem [shape: bf16[32,128], index: 0, kind: input, shape index: {}]
  %s1 = inlined_call_operand.vmem [shape: bf16[128,128], index: 1, kind: input, shape index: {}]
  %s2 = inlined_call_operand.vmem [shape: f32[1,128], index: 2, kind: input, shape index: {}]
  %s3 = inlined_call_operand.vmem [shape: f32[32,128], index: 3, kind: input, shape index: {}]
  %s4 = inlined_call_operand.vmem [shape: f32[32,128], index: 4, kind: output, shape index: {}]
  %s5 = sld [smem:[#allocation0]]
  $region34: #{encoder_cnn_forward.70} parent=0
    _
  %s7 = ssub.s32 1, %s5
  %s8 = scalar_select 0, %s7, %s5
  // Predicated region
  $region2: #{encoder_cnn_forward.70} parent=0 // pred_check
    _
  $region3: #{encoder_cnn_forward.70} parent=0 // pred_check_branch
    %10 = sbr.rel (0) target = $region5
  $region4: #{encoder_cnn_forward.70} parent=0 // pred_region
    _
  $region5: #{encoder_cnn_forward.70} parent=0 // pred_fallthru
    _
  // Predicated region
  $region6: #{encoder_cnn_forward.70} parent=0 // pred_check
    _
  $region7: #{encoder_cnn_forward.70} parent=0 // pred_check_branch
    %12 = sbr.rel (0) target = $region9
  $region8: #{encoder_cnn_forward.70} parent=0 // pred_region
    _
  $region9: #{encoder_cnn_forward.70} parent=0 // pred_fallthru
    _
  // Predicated region
  $region10: #{encoder_cnn_forward.70} parent=0 // pred_check
    _
  $region11: #{encoder_cnn_forward.70} parent=0 // pred_check_branch
    %14 = sbr.rel (0) target = $region13
  $region12: #{encoder_cnn_forward.70} parent=0 // pred_region
    _
  $region13: #{encoder_cnn_forward.70} parent=0 // pred_fallthru
    _
  // Predicated region
  $region14: #{encoder_cnn_forward.70} parent=0 // pred_check
    _
  $region15: #{encoder_cnn_forward.70} parent=0 // pred_check_branch
    %16 = sbr.rel (0) target = $region17
  $region16: #{encoder_cnn_forward.70} parent=0 // pred_region
    _
  $region17: #{encoder_cnn_forward.70} parent=0 // pred_fallthru
    _
  %p18 = scmp.eq.s32.totalorder 0, 0
  // Predicated region
  $region18: #{encoder_cnn_forward.70} parent=0 // pred_check
    %p19 = pneg %p18
  $region19: #{encoder_cnn_forward.70} parent=0 // pred_check_branch
    %21 = sbr.rel (%p19) target = $region21
  $region20: #{encoder_cnn_forward.70} parent=0 // pred_region
    %22 = vst [vmem:[#allocation2] sm:$0xff] 0.0
    %23 = vst [vmem:[#allocation2 + $0x8] sm:$0xff] 0.0
    %24 = vst [vmem:[#allocation2 + $0x10] sm:$0xff] 0.0
    %25 = vst [vmem:[#allocation2 + $0x18] sm:$0xff] 0.0
  $region21: #{encoder_cnn_forward.70} parent=0 // pred_fallthru
    _
  %v26 = vld [vmem:[#allocation2] sm:$0xff]
  %v27 = vld [vmem:[#allocation2 + $0x8] sm:$0xff]
  %v28 = vld [vmem:[#allocation2 + $0x10] sm:$0xff]
  %v29 = vld [vmem:[#allocation2 + $0x18] sm:$0xff]
  %v30 = vld [vmem:[%s0] sm:$0xf]
  %v31 = vld [vmem:[%s0 + $0x4] sm:$0xf]
  %v32 = vld [vmem:[%s0 + $0x8] sm:$0xf]
  %v33 = vld [vmem:[%s0 + $0xc] sm:$0xf]
  %v34 = vld [vmem:[%s1] sm:$0xf]
  %v35 = vld [vmem:[%s1 + $0x4] sm:$0xf]
  %v36 = vld [vmem:[%s1 + $0x8] sm:$0xf]
  %v37 = vld [vmem:[%s1 + $0xc] sm:$0xf]
  %v38 = vld [vmem:[%s1 + $0x10] sm:$0xf]
  %v39 = vld [vmem:[%s1 + $0x14] sm:$0xf]
  %v40 = vld [vmem:[%s1 + $0x18] sm:$0xf]
  %v41 = vld [vmem:[%s1 + $0x1c] sm:$0xf]
  %v42 = vld [vmem:[%s1 + $0x20] sm:$0xf]
  %v43 = vld [vmem:[%s1 + $0x24] sm:$0xf]
  %v44 = vld [vmem:[%s1 + $0x28] sm:$0xf]
  %v45 = vld [vmem:[%s1 + $0x2c] sm:$0xf]
  %v46 = vld [vmem:[%s1 + $0x30] sm:$0xf]
  %v47 = vld [vmem:[%s1 + $0x34] sm:$0xf]
  %v48 = vld [vmem:[%s1 + $0x38] sm:$0xf]
  %v49 = vld [vmem:[%s1 + $0x3c] sm:$0xf]
  %v54 = vunpack.c.l.b16 %v30
  %v55 = vunpack.c.l.b16 %v31
  %v56 = vunpack.c.l.b16 %v32
  %v57 = vunpack.c.l.b16 %v33
  %v58 = vpack.c.b16 %v55, %v54
  %v59 = vpack.c.b16 %v57, %v56
  %v78 = vunpack.c.l.b16 %v34
  %v79 = vunpack.c.l.b16 %v35
  %v80 = vunpack.c.l.b16 %v36
  %v81 = vunpack.c.l.b16 %v37
  %v82 = vunpack.c.l.b16 %v38
  %v83 = vunpack.c.l.b16 %v39
  %v84 = vunpack.c.l.b16 %v40
  %v85 = vunpack.c.l.b16 %v41
  %v86 = vunpack.c.l.b16 %v42
  %v87 = vunpack.c.l.b16 %v43
  %v88 = vunpack.c.l.b16 %v44
  %v89 = vunpack.c.l.b16 %v45
  %v90 = vunpack.c.l.b16 %v46
  %v91 = vunpack.c.l.b16 %v47
  %v92 = vunpack.c.l.b16 %v48
  %v93 = vunpack.c.l.b16 %v49
  %v94 = vpack.c.b16 %v79, %v78
  %v95 = vpack.c.b16 %v81, %v80
  %v96 = vpack.c.b16 %v83, %v82
  %v97 = vpack.c.b16 %v85, %v84
  %v98 = vpack.c.b16 %v87, %v86
  %v99 = vpack.c.b16 %v89, %v88
  %v100 = vpack.c.b16 %v91, %v90
  %v101 = vpack.c.b16 %v93, %v92
  %110 = vmatprep.subr.bf16.mxu0 0
  %111 = vmatpush1.bf16.msra.mxu0 %v94
  %112 = vmatprep.subr.bf16.mxu0 0
  %113 = vmatpush1.bf16.msra.mxu0 %v95
  %114 = vmatprep.subr.bf16.mxu0 0
  %115 = vmatpush1.bf16.msra.mxu0 %v96
  %116 = vmatprep.subr.bf16.mxu0 0
  %117 = vmatpush1.bf16.msra.mxu0 %v97
  %118 = vmatprep.subr.bf16.mxu0 0
  %119 = vmatpush1.bf16.msra.mxu0 %v98
  %120 = vmatprep.subr.bf16.mxu0 0
  %121 = vmatpush1.bf16.msra.mxu0 %v99
  %122 = vmatprep.subr.bf16.mxu0 0
  %123 = vmatpush1.bf16.msra.mxu0 %v100
  %124 = vmatprep.subr.bf16.mxu0 0
  %125 = vmatpush1.bf16.msra.mxu0 %v101
  %126 = vmatprep.subr.bf16.mxu0 0
  %127 = vmatpush1.bf16.msra.mxu0 0
  %128 = vmatprep.subr.bf16.mxu0 0
  %129 = vmatpush1.bf16.msra.mxu0 0
  %130 = vmatprep.subr.bf16.mxu0 0
  %131 = vmatpush1.bf16.msra.mxu0 0
  %132 = vmatprep.subr.bf16.mxu0 0
  %133 = vmatpush1.bf16.msra.mxu0 0
  %134 = vmatprep.subr.bf16.mxu0 0
  %135 = vmatpush1.bf16.msra.mxu0 0
  %136 = vmatprep.subr.bf16.mxu0 0
  %137 = vmatpush1.bf16.msra.mxu0 0
  %138 = vmatprep.subr.bf16.mxu0 0
  %139 = vmatpush1.bf16.msra.mxu0 0
  %140 = vmatprep.subr.bf16.mxu0 0
  %141 = vmatpush1.bf16.msra.mxu0 0
  %142 = vmatprep.mubr.bf16.mxu0 0
  %143 = vmatmul.mubr.bf16.gmra.mrb[0].mxu0 %v58
  %v144 = vpop.f32.mrb[0].mxu0
  %v145 = vadd.f32 0.0, %v144
  %v146 = vpop.f32.mrb[0].mxu0
  %v147 = vpop.f32.mrb[0].mxu0
  %v148 = vadd.f32 0.0, %v147
  %v149 = vpop.f32.mrb[0].mxu0
  %150 = vmatprep.mubr.bf16.mxu0 0
  %151 = vmatmul.mubr.bf16.gmra.mrb[0].mxu0 %v59
  %v152 = vpop.f32.mrb[0].mxu0
  %v153 = vadd.f32 0.0, %v152
  %v154 = vpop.f32.mrb[0].mxu0
  %v155 = vpop.f32.mrb[0].mxu0
  %v156 = vadd.f32 0.0, %v155
  %v157 = vpop.f32.mrb[0].mxu0
  %158 = vdwg.mxu0
  %v159 = vadd.f32 %v26, %v145
  %v160 = vadd.f32 %v27, %v148
  %v161 = vadd.f32 %v28, %v153
  %v162 = vadd.f32 %v29, %v156
  %163 = vst [vmem:[#allocation2] sm:$0xff] %v159
  %164 = vst [vmem:[#allocation2 + $0x8] sm:$0xff] %v160
  %165 = vst [vmem:[#allocation2 + $0x10] sm:$0xff] %v161
  %166 = vst [vmem:[#allocation2 + $0x18] sm:$0xff] %v162
  // Predicated region
  $region22: #{encoder_cnn_forward.70} parent=0 // pred_check
    %p167 = pneg %p18
  $region23: #{encoder_cnn_forward.70} parent=0 // pred_check_branch
    %169 = sbr.rel (%p167) target = $region25
  $region24: #{encoder_cnn_forward.70} parent=0 // pred_region
    %v170 = vld [vmem:[#allocation2] sm:$0xff]
    %v171 = vld [vmem:[#allocation2 + $0x8] sm:$0xff]
    %v172 = vld [vmem:[#allocation2 + $0x10] sm:$0xff]
    %v173 = vld [vmem:[#allocation2 + $0x18] sm:$0xff]
    %v174 = vld [vmem:[%s2] sm:$0x1]
    %v176 = vlaneseq
    %v177 = vshrl.u32 %v176, 7
    %v178 = vsub.s32 0, %v177
    %v179 = vrot.slane %v174, %v178
    %v181 = vadd.f32 %v170, %v179
    %v182 = vadd.f32 %v171, %v179
    %v183 = vadd.f32 %v172, %v179
    %v184 = vadd.f32 %v173, %v179
    %v185 = vld [vmem:[%s3] sm:$0xff]
    %v186 = vld [vmem:[%s3 + $0x8] sm:$0xff]
    %v187 = vld [vmem:[%s3 + $0x10] sm:$0xff]
    %v188 = vld [vmem:[%s3 + $0x18] sm:$0xff]
    %v189 = vadd.f32 %v181, %v185
    %v190 = vadd.f32 %v182, %v186
    %v191 = vadd.f32 %v183, %v187
    %v192 = vadd.f32 %v184, %v188
    %v193 = vmax.f32 %v189, 0.0
    %v194 = vmax.f32 %v190, 0.0
    %v195 = vmax.f32 %v191, 0.0
    %v196 = vmax.f32 %v192, 0.0
    %197 = vst [vmem:[%s4] sm:$0xff] %v193
    %198 = vst [vmem:[%s4 + $0x8] sm:$0xff] %v194
    %199 = vst [vmem:[%s4 + $0x10] sm:$0xff] %v195
    %200 = vst [vmem:[%s4 + $0x18] sm:$0xff] %v196
  $region25: #{encoder_cnn_forward.70} parent=0 // pred_fallthru
    _
  // Predicated region
  $region26: #{encoder_cnn_forward.70} parent=0 // pred_check
    _
  $region27: #{encoder_cnn_forward.70} parent=0 // pred_check_branch
    %202 = sbr.rel (0) target = $region29
  $region28: #{encoder_cnn_forward.70} parent=0 // pred_region
    _
  $region29: #{encoder_cnn_forward.70} parent=0 // pred_fallthru
    _
  // Predicated region
  $region30: #{encoder_cnn_forward.70} parent=0 // pred_check
    _
  $region31: #{encoder_cnn_forward.70} parent=0 // pred_check_branch
    %204 = sbr.rel (0) target = $region33
  $region32: #{encoder_cnn_forward.70} parent=0 // pred_region
    _
  $region33: #{encoder_cnn_forward.70} parent=0 // pred_fallthru
    _

// kernel: encoder_cnn_forward.69
$region0: #{encoder_cnn_forward.69}
  #allocation0 [shape = 'u32[]', space=smem, size = 0x4, offset = 0x4, fixed_abs, tag = 'smem constant byte address 0x4 - core index']
  #allocation1 [shape = 'u32[144,128]{1,0:T(1,128)}', space=vmem, size = 0x12000, scoped, tag = 'internal scratch']
  #allocation2 [shape = 'f32[32,128]{1,0:T(8,128)}', space=vmem, size = 0x4000, scoped, tag = 'scratch operand']
  %s0 = inlined_call_operand.vmem [shape: bf16[32,128], index: 0, kind: input, shape index: {}]
  %s1 = inlined_call_operand.vmem [shape: bf16[128,128], index: 1, kind: input, shape index: {}]
  %s2 = inlined_call_operand.vmem [shape: f32[1,128], index: 2, kind: input, shape index: {}]
  %s3 = inlined_call_operand.vmem [shape: f32[32,128], index: 3, kind: output, shape index: {}]
  %s4 = sld [smem:[#allocation0]]
  $region30: #{encoder_cnn_forward.69} parent=0
    _
  %s6 = ssub.s32 1, %s4
  %s7 = scalar_select 0, %s6, %s4
  // Predicated region
  $region2: #{encoder_cnn_forward.69} parent=0 // pred_check
    _
  $region3: #{encoder_cnn_forward.69} parent=0 // pred_check_branch
    %9 = sbr.rel (0) target = $region5
  $region4: #{encoder_cnn_forward.69} parent=0 // pred_region
    _
  $region5: #{encoder_cnn_forward.69} parent=0 // pred_fallthru
    _
  // Predicated region
  $region6: #{encoder_cnn_forward.69} parent=0 // pred_check
    _
  $region7: #{encoder_cnn_forward.69} parent=0 // pred_check_branch
    %11 = sbr.rel (0) target = $region9
  $region8: #{encoder_cnn_forward.69} parent=0 // pred_region
    _
  $region9: #{encoder_cnn_forward.69} parent=0 // pred_fallthru
    _
  // Predicated region
  $region10: #{encoder_cnn_forward.69} parent=0 // pred_check
    _
  $region11: #{encoder_cnn_forward.69} parent=0 // pred_check_branch
    %13 = sbr.rel (0) target = $region13
  $region12: #{encoder_cnn_forward.69} parent=0 // pred_region
    _
  $region13: #{encoder_cnn_forward.69} parent=0 // pred_fallthru
    _
  %p15 = scmp.eq.s32.totalorder 0, 0
  // Predicated region
  $region14: #{encoder_cnn_forward.69} parent=0 // pred_check
    %p16 = pneg %p15
  $region15: #{encoder_cnn_forward.69} parent=0 // pred_check_branch
    %18 = sbr.rel (%p16) target = $region17
  $region16: #{encoder_cnn_forward.69} parent=0 // pred_region
    %19 = vst [vmem:[#allocation2] sm:$0xff] 0.0
    %20 = vst [vmem:[#allocation2 + $0x8] sm:$0xff] 0.0
    %21 = vst [vmem:[#allocation2 + $0x10] sm:$0xff] 0.0
    %22 = vst [vmem:[#allocation2 + $0x18] sm:$0xff] 0.0
  $region17: #{encoder_cnn_forward.69} parent=0 // pred_fallthru
    _
  %v23 = vld [vmem:[#allocation2] sm:$0xff]
  %v24 = vld [vmem:[#allocation2 + $0x8] sm:$0xff]
  %v25 = vld [vmem:[#allocation2 + $0x10] sm:$0xff]
  %v26 = vld [vmem:[#allocation2 + $0x18] sm:$0xff]
  %v27 = vld [vmem:[%s0] sm:$0xf]
  %v28 = vld [vmem:[%s0 + $0x4] sm:$0xf]
  %v29 = vld [vmem:[%s0 + $0x8] sm:$0xf]
  %v30 = vld [vmem:[%s0 + $0xc] sm:$0xf]
  %v31 = vld [vmem:[%s1] sm:$0xf]
  %v32 = vld [vmem:[%s1 + $0x4] sm:$0xf]
  %v33 = vld [vmem:[%s1 + $0x8] sm:$0xf]
  %v34 = vld [vmem:[%s1 + $0xc] sm:$0xf]
  %v35 = vld [vmem:[%s1 + $0x10] sm:$0xf]
  %v36 = vld [vmem:[%s1 + $0x14] sm:$0xf]
  %v37 = vld [vmem:[%s1 + $0x18] sm:$0xf]
  %v38 = vld [vmem:[%s1 + $0x1c] sm:$0xf]
  %v39 = vld [vmem:[%s1 + $0x20] sm:$0xf]
  %v40 = vld [vmem:[%s1 + $0x24] sm:$0xf]
  %v41 = vld [vmem:[%s1 + $0x28] sm:$0xf]
  %v42 = vld [vmem:[%s1 + $0x2c] sm:$0xf]
  %v43 = vld [vmem:[%s1 + $0x30] sm:$0xf]
  %v44 = vld [vmem:[%s1 + $0x34] sm:$0xf]
  %v45 = vld [vmem:[%s1 + $0x38] sm:$0xf]
  %v46 = vld [vmem:[%s1 + $0x3c] sm:$0xf]
  %v51 = vunpack.c.l.b16 %v27
  %v52 = vunpack.c.l.b16 %v28
  %v53 = vunpack.c.l.b16 %v29
  %v54 = vunpack.c.l.b16 %v30
  %v55 = vpack.c.b16 %v52, %v51
  %v56 = vpack.c.b16 %v54, %v53
  %v75 = vunpack.c.l.b16 %v31
  %v76 = vunpack.c.l.b16 %v32
  %v77 = vunpack.c.l.b16 %v33
  %v78 = vunpack.c.l.b16 %v34
  %v79 = vunpack.c.l.b16 %v35
  %v80 = vunpack.c.l.b16 %v36
  %v81 = vunpack.c.l.b16 %v37
  %v82 = vunpack.c.l.b16 %v38
  %v83 = vunpack.c.l.b16 %v39
  %v84 = vunpack.c.l.b16 %v40
  %v85 = vunpack.c.l.b16 %v41
  %v86 = vunpack.c.l.b16 %v42
  %v87 = vunpack.c.l.b16 %v43
  %v88 = vunpack.c.l.b16 %v44
  %v89 = vunpack.c.l.b16 %v45
  %v90 = vunpack.c.l.b16 %v46
  %v91 = vpack.c.b16 %v76, %v75
  %v92 = vpack.c.b16 %v78, %v77
  %v93 = vpack.c.b16 %v80, %v79
  %v94 = vpack.c.b16 %v82, %v81
  %v95 = vpack.c.b16 %v84, %v83
  %v96 = vpack.c.b16 %v86, %v85
  %v97 = vpack.c.b16 %v88, %v87
  %v98 = vpack.c.b16 %v90, %v89
  %107 = vmatprep.subr.bf16.mxu0 0
  %108 = vmatpush1.bf16.msra.mxu0 %v91
  %109 = vmatprep.subr.bf16.mxu0 0
  %110 = vmatpush1.bf16.msra.mxu0 %v92
  %111 = vmatprep.subr.bf16.mxu0 0
  %112 = vmatpush1.bf16.msra.mxu0 %v93
  %113 = vmatprep.subr.bf16.mxu0 0
  %114 = vmatpush1.bf16.msra.mxu0 %v94
  %115 = vmatprep.subr.bf16.mxu0 0
  %116 = vmatpush1.bf16.msra.mxu0 %v95
  %117 = vmatprep.subr.bf16.mxu0 0
  %118 = vmatpush1.bf16.msra.mxu0 %v96
  %119 = vmatprep.subr.bf16.mxu0 0
  %120 = vmatpush1.bf16.msra.mxu0 %v97
  %121 = vmatprep.subr.bf16.mxu0 0
  %122 = vmatpush1.bf16.msra.mxu0 %v98
  %123 = vmatprep.subr.bf16.mxu0 0
  %124 = vmatpush1.bf16.msra.mxu0 0
  %125 = vmatprep.subr.bf16.mxu0 0
  %126 = vmatpush1.bf16.msra.mxu0 0
  %127 = vmatprep.subr.bf16.mxu0 0
  %128 = vmatpush1.bf16.msra.mxu0 0
  %129 = vmatprep.subr.bf16.mxu0 0
  %130 = vmatpush1.bf16.msra.mxu0 0
  %131 = vmatprep.subr.bf16.mxu0 0
  %132 = vmatpush1.bf16.msra.mxu0 0
  %133 = vmatprep.subr.bf16.mxu0 0
  %134 = vmatpush1.bf16.msra.mxu0 0
  %135 = vmatprep.subr.bf16.mxu0 0
  %136 = vmatpush1.bf16.msra.mxu0 0
  %137 = vmatprep.subr.bf16.mxu0 0
  %138 = vmatpush1.bf16.msra.mxu0 0
  %139 = vmatprep.mubr.bf16.mxu0 0
  %140 = vmatmul.mubr.bf16.gmra.mrb[0].mxu0 %v55
  %v141 = vpop.f32.mrb[0].mxu0
  %v142 = vadd.f32 0.0, %v141
  %v143 = vpop.f32.mrb[0].mxu0
  %v144 = vpop.f32.mrb[0].mxu0
  %v145 = vadd.f32 0.0, %v144
  %v146 = vpop.f32.mrb[0].mxu0
  %147 = vmatprep.mubr.bf16.mxu0 0
  %148 = vmatmul.mubr.bf16.gmra.mrb[0].mxu0 %v56
  %v149 = vpop.f32.mrb[0].mxu0
  %v150 = vadd.f32 0.0, %v149
  %v151 = vpop.f32.mrb[0].mxu0
  %v152 = vpop.f32.mrb[0].mxu0
  %v153 = vadd.f32 0.0, %v152
  %v154 = vpop.f32.mrb[0].mxu0
  %155 = vdwg.mxu0
  %v156 = vadd.f32 %v23, %v142
  %v157 = vadd.f32 %v24, %v145
  %v158 = vadd.f32 %v25, %v150
  %v159 = vadd.f32 %v26, %v153
  %160 = vst [vmem:[#allocation2] sm:$0xff] %v156
  %161 = vst [vmem:[#allocation2 + $0x8] sm:$0xff] %v157
  %162 = vst [vmem:[#allocation2 + $0x10] sm:$0xff] %v158
  %163 = vst [vmem:[#allocation2 + $0x18] sm:$0xff] %v159
  // Predicated region
  $region18: #{encoder_cnn_forward.69} parent=0 // pred_check
    %p164 = pneg %p15
  $region19: #{encoder_cnn_forward.69} parent=0 // pred_check_branch
    %166 = sbr.rel (%p164) target = $region21
  $region20: #{encoder_cnn_forward.69} parent=0 // pred_region
    %v167 = vld [vmem:[#allocation2] sm:$0xff]
    %v168 = vld [vmem:[#allocation2 + $0x8] sm:$0xff]
    %v169 = vld [vmem:[#allocation2 + $0x10] sm:$0xff]
    %v170 = vld [vmem:[#allocation2 + $0x18] sm:$0xff]
    %v171 = vld [vmem:[%s2] sm:$0x1]
    %v173 = vlaneseq
    %v174 = vshrl.u32 %v173, 7
    %v175 = vsub.s32 0, %v174
    %v176 = vrot.slane %v171, %v175
    %v178 = vadd.f32 %v167, %v176
    %v179 = vadd.f32 %v168, %v176
    %v180 = vadd.f32 %v169, %v176
    %v181 = vadd.f32 %v170, %v176
    %182 = vst [vmem:[%s3] sm:$0xff] %v178
    %183 = vst [vmem:[%s3 + $0x8] sm:$0xff] %v179
    %184 = vst [vmem:[%s3 + $0x10] sm:$0xff] %v180
    %185 = vst [vmem:[%s3 + $0x18] sm:$0xff] %v181
  $region21: #{encoder_cnn_forward.69} parent=0 // pred_fallthru
    _
  // Predicated region
  $region22: #{encoder_cnn_forward.69} parent=0 // pred_check
    _
  $region23: #{encoder_cnn_forward.69} parent=0 // pred_check_branch
    %187 = sbr.rel (0) target = $region25
  $region24: #{encoder_cnn_forward.69} parent=0 // pred_region
    _
  $region25: #{encoder_cnn_forward.69} parent=0 // pred_fallthru
    _
  // Predicated region
  $region26: #{encoder_cnn_forward.69} parent=0 // pred_check
    _
  $region27: #{encoder_cnn_forward.69} parent=0 // pred_check_branch
    %189 = sbr.rel (0) target = $region29
  $region28: #{encoder_cnn_forward.69} parent=0 // pred_region
    _
  $region29: #{encoder_cnn_forward.69} parent=0 // pred_fallthru
    _

// kernel: encoder_cnn_forward.81
$region0: #{encoder_cnn_forward.81}
  #allocation0 [shape = 'u32[]', space=smem, size = 0x4, offset = 0x4, fixed_abs, tag = 'smem constant byte address 0x4 - core index']
  #allocation1 [shape = 'u32[144,128]{1,0:T(1,128)}', space=vmem, size = 0x12000, scoped, tag = 'internal scratch']
  #allocation2 [shape = 'f32[8,128]{1,0:T(8,128)}', space=vmem, size = 0x1000, scoped, tag = 'scratch operand']
  %s0 = inlined_call_operand.vmem [shape: bf16[8,256], index: 0, kind: input, shape index: {}]
  %s1 = inlined_call_operand.vmem [shape: bf16[256,128], index: 1, kind: input, shape index: {}]
  %s2 = inlined_call_operand.vmem [shape: f32[1,128], index: 2, kind: input, shape index: {}]
  %s3 = inlined_call_operand.vmem [shape: f32[8,128], index: 3, kind: output, shape index: {}]
  %s4 = sld [smem:[#allocation0]]
  $region30: #{encoder_cnn_forward.81} parent=0
    _
  %s6 = ssub.s32 1, %s4
  %s7 = scalar_select 0, %s6, %s4
  // Predicated region
  $region2: #{encoder_cnn_forward.81} parent=0 // pred_check
    _
  $region3: #{encoder_cnn_forward.81} parent=0 // pred_check_branch
    %9 = sbr.rel (0) target = $region5
  $region4: #{encoder_cnn_forward.81} parent=0 // pred_region
    _
  $region5: #{encoder_cnn_forward.81} parent=0 // pred_fallthru
    _
  // Predicated region
  $region6: #{encoder_cnn_forward.81} parent=0 // pred_check
    _
  $region7: #{encoder_cnn_forward.81} parent=0 // pred_check_branch
    %11 = sbr.rel (0) target = $region9
  $region8: #{encoder_cnn_forward.81} parent=0 // pred_region
    _
  $region9: #{encoder_cnn_forward.81} parent=0 // pred_fallthru
    _
  // Predicated region
  $region10: #{encoder_cnn_forward.81} parent=0 // pred_check
    _
  $region11: #{encoder_cnn_forward.81} parent=0 // pred_check_branch
    %13 = sbr.rel (0) target = $region13
  $region12: #{encoder_cnn_forward.81} parent=0 // pred_region
    _
  $region13: #{encoder_cnn_forward.81} parent=0 // pred_fallthru
    _
  %p15 = scmp.eq.s32.totalorder 0, 0
  // Predicated region
  $region14: #{encoder_cnn_forward.81} parent=0 // pred_check
    %p16 = pneg %p15
  $region15: #{encoder_cnn_forward.81} parent=0 // pred_check_branch
    %18 = sbr.rel (%p16) target = $region17
  $region16: #{encoder_cnn_forward.81} parent=0 // pred_region
    %19 = vst [vmem:[#allocation2] sm:$0xff] 0.0
  $region17: #{encoder_cnn_forward.81} parent=0 // pred_fallthru
    _
  %v20 = vld [vmem:[#allocation2] sm:$0xff]
  %v21 = vld [vmem:[%s0] sm:$0xff]
  %v22 = vld [vmem:[%s1] sm:$0xf]
  %v23 = vld [vmem:[%s1 + $0x4] sm:$0xf]
  %v24 = vld [vmem:[%s1 + $0x8] sm:$0xf]
  %v25 = vld [vmem:[%s1 + $0xc] sm:$0xf]
  %v26 = vld [vmem:[%s1 + $0x10] sm:$0xf]
  %v27 = vld [vmem:[%s1 + $0x14] sm:$0xf]
  %v28 = vld [vmem:[%s1 + $0x18] sm:$0xf]
  %v29 = vld [vmem:[%s1 + $0x1c] sm:$0xf]
  %v30 = vld [vmem:[%s1 + $0x20] sm:$0xf]
  %v31 = vld [vmem:[%s1 + $0x24] sm:$0xf]
  %v32 = vld [vmem:[%s1 + $0x28] sm:$0xf]
  %v33 = vld [vmem:[%s1 + $0x2c] sm:$0xf]
  %v34 = vld [vmem:[%s1 + $0x30] sm:$0xf]
  %v35 = vld [vmem:[%s1 + $0x34] sm:$0xf]
  %v36 = vld [vmem:[%s1 + $0x38] sm:$0xf]
  %v37 = vld [vmem:[%s1 + $0x3c] sm:$0xf]
  %v38 = vld [vmem:[%s1 + $0x40] sm:$0xf]
  %v39 = vld [vmem:[%s1 + $0x44] sm:$0xf]
  %v40 = vld [vmem:[%s1 + $0x48] sm:$0xf]
  %v41 = vld [vmem:[%s1 + $0x4c] sm:$0xf]
  %v42 = vld [vmem:[%s1 + $0x50] sm:$0xf]
  %v43 = vld [vmem:[%s1 + $0x54] sm:$0xf]
  %v44 = vld [vmem:[%s1 + $0x58] sm:$0xf]
  %v45 = vld [vmem:[%s1 + $0x5c] sm:$0xf]
  %v46 = vld [vmem:[%s1 + $0x60] sm:$0xf]
  %v47 = vld [vmem:[%s1 + $0x64] sm:$0xf]
  %v48 = vld [vmem:[%s1 + $0x68] sm:$0xf]
  %v49 = vld [vmem:[%s1 + $0x6c] sm:$0xf]
  %v50 = vld [vmem:[%s1 + $0x70] sm:$0xf]
  %v51 = vld [vmem:[%s1 + $0x74] sm:$0xf]
  %v52 = vld [vmem:[%s1 + $0x78] sm:$0xf]
  %v53 = vld [vmem:[%s1 + $0x7c] sm:$0xf]
  %v55 = vunpack.c.l.b16 %v21
  %v56 = vunpack.c.h.b16 %v21
  %v57 = vpack.c.b16 %v55, %v55
  %v58 = vpack.c.b16 %v56, %v56
  %v93 = vunpack.c.l.b16 %v22
  %v94 = vunpack.c.l.b16 %v23
  %v95 = vunpack.c.l.b16 %v24
  %v96 = vunpack.c.l.b16 %v25
  %v97 = vunpack.c.l.b16 %v26
  %v98 = vunpack.c.l.b16 %v27
  %v99 = vunpack.c.l.b16 %v28
  %v100 = vunpack.c.l.b16 %v29
  %v101 = vunpack.c.l.b16 %v30
  %v102 = vunpack.c.l.b16 %v31
  %v103 = vunpack.c.l.b16 %v32
  %v104 = vunpack.c.l.b16 %v33
  %v105 = vunpack.c.l.b16 %v34
  %v106 = vunpack.c.l.b16 %v35
  %v107 = vunpack.c.l.b16 %v36
  %v108 = vunpack.c.l.b16 %v37
  %v109 = vunpack.c.l.b16 %v38
  %v110 = vunpack.c.l.b16 %v39
  %v111 = vunpack.c.l.b16 %v40
  %v112 = vunpack.c.l.b16 %v41
  %v113 = vunpack.c.l.b16 %v42
  %v114 = vunpack.c.l.b16 %v43
  %v115 = vunpack.c.l.b16 %v44
  %v116 = vunpack.c.l.b16 %v45
  %v117 = vunpack.c.l.b16 %v46
  %v118 = vunpack.c.l.b16 %v47
  %v119 = vunpack.c.l.b16 %v48
  %v120 = vunpack.c.l.b16 %v49
  %v121 = vunpack.c.l.b16 %v50
  %v122 = vunpack.c.l.b16 %v51
  %v123 = vunpack.c.l.b16 %v52
  %v124 = vunpack.c.l.b16 %v53
  %v125 = vpack.c.b16 %v94, %v93
  %v126 = vpack.c.b16 %v96, %v95
  %v127 = vpack.c.b16 %v98, %v97
  %v128 = vpack.c.b16 %v100, %v99
  %v129 = vpack.c.b16 %v102, %v101
  %v130 = vpack.c.b16 %v104, %v103
  %v131 = vpack.c.b16 %v106, %v105
  %v132 = vpack.c.b16 %v108, %v107
  %v133 = vpack.c.b16 %v110, %v109
  %v134 = vpack.c.b16 %v112, %v111
  %v135 = vpack.c.b16 %v114, %v113
  %v136 = vpack.c.b16 %v116, %v115
  %v137 = vpack.c.b16 %v118, %v117
  %v138 = vpack.c.b16 %v120, %v119
  %v139 = vpack.c.b16 %v122, %v121
  %v140 = vpack.c.b16 %v124, %v123
  %157 = vmatprep.subr.bf16.mxu0 0
  %158 = vmatpush1.bf16.msra.mxu0 %v125
  %159 = vmatprep.subr.bf16.mxu0 0
  %160 = vmatpush1.bf16.msra.mxu0 %v126
  %161 = vmatprep.subr.bf16.mxu0 0
  %162 = vmatpush1.bf16.msra.mxu0 %v127
  %163 = vmatprep.subr.bf16.mxu0 0
  %164 = vmatpush1.bf16.msra.mxu0 %v128
  %165 = vmatprep.subr.bf16.mxu0 0
  %166 = vmatpush1.bf16.msra.mxu0 %v129
  %167 = vmatprep.subr.bf16.mxu0 0
  %168 = vmatpush1.bf16.msra.mxu0 %v130
  %169 = vmatprep.subr.bf16.mxu0 0
  %170 = vmatpush1.bf16.msra.mxu0 %v131
  %171 = vmatprep.subr.bf16.mxu0 0
  %172 = vmatpush1.bf16.msra.mxu0 %v132
  %173 = vmatprep.subr.bf16.mxu0 0
  %174 = vmatpush1.bf16.msra.mxu0 %v133
  %175 = vmatprep.subr.bf16.mxu0 0
  %176 = vmatpush1.bf16.msra.mxu0 %v134
  %177 = vmatprep.subr.bf16.mxu0 0
  %178 = vmatpush1.bf16.msra.mxu0 %v135
  %179 = vmatprep.subr.bf16.mxu0 0
  %180 = vmatpush1.bf16.msra.mxu0 %v136
  %181 = vmatprep.subr.bf16.mxu0 0
  %182 = vmatpush1.bf16.msra.mxu0 %v137
  %183 = vmatprep.subr.bf16.mxu0 0
  %184 = vmatpush1.bf16.msra.mxu0 %v138
  %185 = vmatprep.subr.bf16.mxu0 0
  %186 = vmatpush1.bf16.msra.mxu0 %v139
  %187 = vmatprep.subr.bf16.mxu0 0
  %188 = vmatpush1.bf16.msra.mxu0 %v140
  %189 = vmatprep.mubr.bf16.mxu0 %v58
  %190 = vmatmul.mubr.bf16.gmra.mrb[0].mxu0 %v57
  %v191 = vpop.f32.mrb[0].mxu0
  %v192 = vadd.f32 0.0, %v191
  %v193 = vpop.f32.mrb[0].mxu0
  %v194 = vpop.f32.mrb[0].mxu0
  %v195 = vpop.f32.mrb[0].mxu0
  %196 = vdwg.mxu0
  %v197 = vadd.f32 %v20, %v192
  %198 = vst [vmem:[#allocation2] sm:$0xff] %v197
  // Predicated region
  $region18: #{encoder_cnn_forward.81} parent=0 // pred_check
    %p199 = pneg %p15
  $region19: #{encoder_cnn_forward.81} parent=0 // pred_check_branch
    %201 = sbr.rel (%p199) target = $region21
  $region20: #{encoder_cnn_forward.81} parent=0 // pred_region
    %v202 = vld [vmem:[#allocation2] sm:$0xff]
    %v203 = vld [vmem:[%s2] sm:$0x1]
    %v205 = vlaneseq
    %v206 = vshrl.u32 %v205, 7
    %v207 = vsub.s32 0, %v206
    %v208 = vrot.slane %v203, %v207
    %v210 = vadd.f32 %v202, %v208
    %v211 = vmax.f32 %v210, 0.0
    %212 = vst [vmem:[%s3] sm:$0xff] %v211
  $region21: #{encoder_cnn_forward.81} parent=0 // pred_fallthru
    _
  // Predicated region
  $region22: #{encoder_cnn_forward.81} parent=0 // pred_check
    _
  $region23: #{encoder_cnn_forward.81} parent=0 // pred_check_branch
    %214 = sbr.rel (0) target = $region25
  $region24: #{encoder_cnn_forward.81} parent=0 // pred_region
    _
  $region25: #{encoder_cnn_forward.81} parent=0 // pred_fallthru
    _
  // Predicated region
  $region26: #{encoder_cnn_forward.81} parent=0 // pred_check
    _
  $region27: #{encoder_cnn_forward.81} parent=0 // pred_check_branch
    %216 = sbr.rel (0) target = $region29
  $region28: #{encoder_cnn_forward.81} parent=0 // pred_region
    _
  $region29: #{encoder_cnn_forward.81} parent=0 // pred_fallthru
    _

// kernel: encoder_cnn_forward.82
$region0: #{encoder_cnn_forward.82}
  #allocation0 [shape = 'u32[]', space=smem, size = 0x4, offset = 0x4, fixed_abs, tag = 'smem constant byte address 0x4 - core index']
  #allocation1 [shape = 'u32[144,128]{1,0:T(1,128)}', space=vmem, size = 0x12000, scoped, tag = 'internal scratch']
  #allocation2 [shape = 'f32[8,128]{1,0:T(8,128)}', space=vmem, size = 0x1000, scoped, tag = 'scratch operand']
  %s0 = inlined_call_operand.vmem [shape: bf16[8,128], index: 0, kind: input, shape index: {}]
  %s1 = inlined_call_operand.vmem [shape: bf16[128,128], index: 1, kind: input, shape index: {}]
  %s2 = inlined_call_operand.vmem [shape: f32[1,128], index: 2, kind: input, shape index: {}]
  %s3 = inlined_call_operand.vmem [shape: f32[8,128], index: 3, kind: output, shape index: {}]
  %s4 = sld [smem:[#allocation0]]
  $region30: #{encoder_cnn_forward.82} parent=0
    _
  %s6 = ssub.s32 1, %s4
  %s7 = scalar_select 0, %s6, %s4
  // Predicated region
  $region2: #{encoder_cnn_forward.82} parent=0 // pred_check
    _
  $region3: #{encoder_cnn_forward.82} parent=0 // pred_check_branch
    %9 = sbr.rel (0) target = $region5
  $region4: #{encoder_cnn_forward.82} parent=0 // pred_region
    _
  $region5: #{encoder_cnn_forward.82} parent=0 // pred_fallthru
    _
  // Predicated region
  $region6: #{encoder_cnn_forward.82} parent=0 // pred_check
    _
  $region7: #{encoder_cnn_forward.82} parent=0 // pred_check_branch
    %11 = sbr.rel (0) target = $region9
  $region8: #{encoder_cnn_forward.82} parent=0 // pred_region
    _
  $region9: #{encoder_cnn_forward.82} parent=0 // pred_fallthru
    _
  // Predicated region
  $region10: #{encoder_cnn_forward.82} parent=0 // pred_check
    _
  $region11: #{encoder_cnn_forward.82} parent=0 // pred_check_branch
    %13 = sbr.rel (0) target = $region13
  $region12: #{encoder_cnn_forward.82} parent=0 // pred_region
    _
  $region13: #{encoder_cnn_forward.82} parent=0 // pred_fallthru
    _
  %p15 = scmp.eq.s32.totalorder 0, 0
  // Predicated region
  $region14: #{encoder_cnn_forward.82} parent=0 // pred_check
    %p16 = pneg %p15
  $region15: #{encoder_cnn_forward.82} parent=0 // pred_check_branch
    %18 = sbr.rel (%p16) target = $region17
  $region16: #{encoder_cnn_forward.82} parent=0 // pred_region
    %19 = vst [vmem:[#allocation2] sm:$0xff] 0.0
  $region17: #{encoder_cnn_forward.82} parent=0 // pred_fallthru
    _
  %v20 = vld [vmem:[#allocation2] sm:$0xff]
  %v21 = vld [vmem:[%s0] sm:$0xf]
  %v22 = vld [vmem:[%s1] sm:$0xf]
  %v23 = vld [vmem:[%s1 + $0x4] sm:$0xf]
  %v24 = vld [vmem:[%s1 + $0x8] sm:$0xf]
  %v25 = vld [vmem:[%s1 + $0xc] sm:$0xf]
  %v26 = vld [vmem:[%s1 + $0x10] sm:$0xf]
  %v27 = vld [vmem:[%s1 + $0x14] sm:$0xf]
  %v28 = vld [vmem:[%s1 + $0x18] sm:$0xf]
  %v29 = vld [vmem:[%s1 + $0x1c] sm:$0xf]
  %v30 = vld [vmem:[%s1 + $0x20] sm:$0xf]
  %v31 = vld [vmem:[%s1 + $0x24] sm:$0xf]
  %v32 = vld [vmem:[%s1 + $0x28] sm:$0xf]
  %v33 = vld [vmem:[%s1 + $0x2c] sm:$0xf]
  %v34 = vld [vmem:[%s1 + $0x30] sm:$0xf]
  %v35 = vld [vmem:[%s1 + $0x34] sm:$0xf]
  %v36 = vld [vmem:[%s1 + $0x38] sm:$0xf]
  %v37 = vld [vmem:[%s1 + $0x3c] sm:$0xf]
  %v54 = vunpack.c.l.b16 %v22
  %v55 = vunpack.c.l.b16 %v23
  %v56 = vunpack.c.l.b16 %v24
  %v57 = vunpack.c.l.b16 %v25
  %v58 = vunpack.c.l.b16 %v26
  %v59 = vunpack.c.l.b16 %v27
  %v60 = vunpack.c.l.b16 %v28
  %v61 = vunpack.c.l.b16 %v29
  %v62 = vunpack.c.l.b16 %v30
  %v63 = vunpack.c.l.b16 %v31
  %v64 = vunpack.c.l.b16 %v32
  %v65 = vunpack.c.l.b16 %v33
  %v66 = vunpack.c.l.b16 %v34
  %v67 = vunpack.c.l.b16 %v35
  %v68 = vunpack.c.l.b16 %v36
  %v69 = vunpack.c.l.b16 %v37
  %v70 = vpack.c.b16 %v55, %v54
  %v71 = vpack.c.b16 %v57, %v56
  %v72 = vpack.c.b16 %v59, %v58
  %v73 = vpack.c.b16 %v61, %v60
  %v74 = vpack.c.b16 %v63, %v62
  %v75 = vpack.c.b16 %v65, %v64
  %v76 = vpack.c.b16 %v67, %v66
  %v77 = vpack.c.b16 %v69, %v68
  %86 = vmatprep.subr.bf16.mxu0 0
  %87 = vmatpush1.bf16.msra.mxu0 %v70
  %88 = vmatprep.subr.bf16.mxu0 0
  %89 = vmatpush1.bf16.msra.mxu0 %v71
  %90 = vmatprep.subr.bf16.mxu0 0
  %91 = vmatpush1.bf16.msra.mxu0 %v72
  %92 = vmatprep.subr.bf16.mxu0 0
  %93 = vmatpush1.bf16.msra.mxu0 %v73
  %94 = vmatprep.subr.bf16.mxu0 0
  %95 = vmatpush1.bf16.msra.mxu0 %v74
  %96 = vmatprep.subr.bf16.mxu0 0
  %97 = vmatpush1.bf16.msra.mxu0 %v75
  %98 = vmatprep.subr.bf16.mxu0 0
  %99 = vmatpush1.bf16.msra.mxu0 %v76
  %100 = vmatprep.subr.bf16.mxu0 0
  %101 = vmatpush1.bf16.msra.mxu0 %v77
  %102 = vmatprep.subr.bf16.mxu0 0
  %103 = vmatpush1.bf16.msra.mxu0 0
  %104 = vmatprep.subr.bf16.mxu0 0
  %105 = vmatpush1.bf16.msra.mxu0 0
  %106 = vmatprep.subr.bf16.mxu0 0
  %107 = vmatpush1.bf16.msra.mxu0 0
  %108 = vmatprep.subr.bf16.mxu0 0
  %109 = vmatpush1.bf16.msra.mxu0 0
  %110 = vmatprep.subr.bf16.mxu0 0
  %111 = vmatpush1.bf16.msra.mxu0 0
  %112 = vmatprep.subr.bf16.mxu0 0
  %113 = vmatpush1.bf16.msra.mxu0 0
  %114 = vmatprep.subr.bf16.mxu0 0
  %115 = vmatpush1.bf16.msra.mxu0 0
  %116 = vmatprep.subr.bf16.mxu0 0
  %117 = vmatpush1.bf16.msra.mxu0 0
  %118 = vmatprep.mubr.bf16.mxu0 0
  %119 = vmatmul.mubr.bf16.gmra.mrb[0].mxu0 %v21
  %v120 = vpop.f32.mrb[0].mxu0
  %v121 = vadd.f32 0.0, %v120
  %v122 = vpop.f32.mrb[0].mxu0
  %v123 = vpop.f32.mrb[0].mxu0
  %v124 = vpop.f32.mrb[0].mxu0
  %125 = vdwg.mxu0
  %v126 = vadd.f32 %v20, %v121
  %127 = vst [vmem:[#allocation2] sm:$0xff] %v126
  // Predicated region
  $region18: #{encoder_cnn_forward.82} parent=0 // pred_check
    %p128 = pneg %p15
  $region19: #{encoder_cnn_forward.82} parent=0 // pred_check_branch
    %130 = sbr.rel (%p128) target = $region21
  $region20: #{encoder_cnn_forward.82} parent=0 // pred_region
    %v131 = vld [vmem:[#allocation2] sm:$0xff]
    %v132 = vld [vmem:[%s2] sm:$0x1]
    %v134 = vlaneseq
    %v135 = vshrl.u32 %v134, 7
    %v136 = vsub.s32 0, %v135
    %v137 = vrot.slane %v132, %v136
    %v139 = vadd.f32 %v131, %v137
    %140 = vst [vmem:[%s3] sm:$0xff] %v139
  $region21: #{encoder_cnn_forward.82} parent=0 // pred_fallthru
    _
  // Predicated region
  $region22: #{encoder_cnn_forward.82} parent=0 // pred_check
    _
  $region23: #{encoder_cnn_forward.82} parent=0 // pred_check_branch
    %142 = sbr.rel (0) target = $region25
  $region24: #{encoder_cnn_forward.82} parent=0 // pred_region
    _
  $region25: #{encoder_cnn_forward.82} parent=0 // pred_fallthru
    _
  // Predicated region
  $region26: #{encoder_cnn_forward.82} parent=0 // pred_check
    _
  $region27: #{encoder_cnn_forward.82} parent=0 // pred_check_branch
    %144 = sbr.rel (0) target = $region29
  $region28: #{encoder_cnn_forward.82} parent=0 // pred_region
    _
  $region29: #{encoder_cnn_forward.82} parent=0 // pred_fallthru
    _

// kernel: encoder_cnn_forward.83
$region0: #{encoder_cnn_forward.83}
  #allocation0 [shape = 'u32[]', space=smem, size = 0x4, offset = 0x4, fixed_abs, tag = 'smem constant byte address 0x4 - core index']
  #allocation1 [shape = 'u32[144,128]{1,0:T(1,128)}', space=vmem, size = 0x12000, scoped, tag = 'internal scratch']
  #allocation2 [shape = 'f32[8,128]{1,0:T(8,128)}', space=vmem, size = 0x1000, scoped, tag = 'scratch operand']
  %s0 = inlined_call_operand.vmem [shape: bf16[8,128], index: 0, kind: input, shape index: {}]
  %s1 = inlined_call_operand.vmem [shape: bf16[128,128], index: 1, kind: input, shape index: {}]
  %s2 = inlined_call_operand.vmem [shape: f32[1,128], index: 2, kind: input, shape index: {}]
  %s3 = inlined_call_operand.vmem [shape: f32[8,128], index: 3, kind: input, shape index: {}]
  %s4 = inlined_call_operand.vmem [shape: f32[8,128], index: 4, kind: output, shape index: {}]
  %s5 = sld [smem:[#allocation0]]
  $region34: #{encoder_cnn_forward.83} parent=0
    _
  %s7 = ssub.s32 1, %s5
  %s8 = scalar_select 0, %s7, %s5
  // Predicated region
  $region2: #{encoder_cnn_forward.83} parent=0 // pred_check
    _
  $region3: #{encoder_cnn_forward.83} parent=0 // pred_check_branch
    %10 = sbr.rel (0) target = $region5
  $region4: #{encoder_cnn_forward.83} parent=0 // pred_region
    _
  $region5: #{encoder_cnn_forward.83} parent=0 // pred_fallthru
    _
  // Predicated region
  $region6: #{encoder_cnn_forward.83} parent=0 // pred_check
    _
  $region7: #{encoder_cnn_forward.83} parent=0 // pred_check_branch
    %12 = sbr.rel (0) target = $region9
  $region8: #{encoder_cnn_forward.83} parent=0 // pred_region
    _
  $region9: #{encoder_cnn_forward.83} parent=0 // pred_fallthru
    _
  // Predicated region
  $region10: #{encoder_cnn_forward.83} parent=0 // pred_check
    _
  $region11: #{encoder_cnn_forward.83} parent=0 // pred_check_branch
    %14 = sbr.rel (0) target = $region13
  $region12: #{encoder_cnn_forward.83} parent=0 // pred_region
    _
  $region13: #{encoder_cnn_forward.83} parent=0 // pred_fallthru
    _
  // Predicated region
  $region14: #{encoder_cnn_forward.83} parent=0 // pred_check
    _
  $region15: #{encoder_cnn_forward.83} parent=0 // pred_check_branch
    %16 = sbr.rel (0) target = $region17
  $region16: #{encoder_cnn_forward.83} parent=0 // pred_region
    _
  $region17: #{encoder_cnn_forward.83} parent=0 // pred_fallthru
    _
  %p18 = scmp.eq.s32.totalorder 0, 0
  // Predicated region
  $region18: #{encoder_cnn_forward.83} parent=0 // pred_check
    %p19 = pneg %p18
  $region19: #{encoder_cnn_forward.83} parent=0 // pred_check_branch
    %21 = sbr.rel (%p19) target = $region21
  $region20: #{encoder_cnn_forward.83} parent=0 // pred_region
    %22 = vst [vmem:[#allocation2] sm:$0xff] 0.0
  $region21: #{encoder_cnn_forward.83} parent=0 // pred_fallthru
    _
  %v23 = vld [vmem:[#allocation2] sm:$0xff]
  %v24 = vld [vmem:[%s0] sm:$0xf]
  %v25 = vld [vmem:[%s1] sm:$0xf]
  %v26 = vld [vmem:[%s1 + $0x4] sm:$0xf]
  %v27 = vld [vmem:[%s1 + $0x8] sm:$0xf]
  %v28 = vld [vmem:[%s1 + $0xc] sm:$0xf]
  %v29 = vld [vmem:[%s1 + $0x10] sm:$0xf]
  %v30 = vld [vmem:[%s1 + $0x14] sm:$0xf]
  %v31 = vld [vmem:[%s1 + $0x18] sm:$0xf]
  %v32 = vld [vmem:[%s1 + $0x1c] sm:$0xf]
  %v33 = vld [vmem:[%s1 + $0x20] sm:$0xf]
  %v34 = vld [vmem:[%s1 + $0x24] sm:$0xf]
  %v35 = vld [vmem:[%s1 + $0x28] sm:$0xf]
  %v36 = vld [vmem:[%s1 + $0x2c] sm:$0xf]
  %v37 = vld [vmem:[%s1 + $0x30] sm:$0xf]
  %v38 = vld [vmem:[%s1 + $0x34] sm:$0xf]
  %v39 = vld [vmem:[%s1 + $0x38] sm:$0xf]
  %v40 = vld [vmem:[%s1 + $0x3c] sm:$0xf]
  %v57 = vunpack.c.l.b16 %v25
  %v58 = vunpack.c.l.b16 %v26
  %v59 = vunpack.c.l.b16 %v27
  %v60 = vunpack.c.l.b16 %v28
  %v61 = vunpack.c.l.b16 %v29
  %v62 = vunpack.c.l.b16 %v30
  %v63 = vunpack.c.l.b16 %v31
  %v64 = vunpack.c.l.b16 %v32
  %v65 = vunpack.c.l.b16 %v33
  %v66 = vunpack.c.l.b16 %v34
  %v67 = vunpack.c.l.b16 %v35
  %v68 = vunpack.c.l.b16 %v36
  %v69 = vunpack.c.l.b16 %v37
  %v70 = vunpack.c.l.b16 %v38
  %v71 = vunpack.c.l.b16 %v39
  %v72 = vunpack.c.l.b16 %v40
  %v73 = vpack.c.b16 %v58, %v57
  %v74 = vpack.c.b16 %v60, %v59
  %v75 = vpack.c.b16 %v62, %v61
  %v76 = vpack.c.b16 %v64, %v63
  %v77 = vpack.c.b16 %v66, %v65
  %v78 = vpack.c.b16 %v68, %v67
  %v79 = vpack.c.b16 %v70, %v69
  %v80 = vpack.c.b16 %v72, %v71
  %89 = vmatprep.subr.bf16.mxu0 0
  %90 = vmatpush1.bf16.msra.mxu0 %v73
  %91 = vmatprep.subr.bf16.mxu0 0
  %92 = vmatpush1.bf16.msra.mxu0 %v74
  %93 = vmatprep.subr.bf16.mxu0 0
  %94 = vmatpush1.bf16.msra.mxu0 %v75
  %95 = vmatprep.subr.bf16.mxu0 0
  %96 = vmatpush1.bf16.msra.mxu0 %v76
  %97 = vmatprep.subr.bf16.mxu0 0
  %98 = vmatpush1.bf16.msra.mxu0 %v77
  %99 = vmatprep.subr.bf16.mxu0 0
  %100 = vmatpush1.bf16.msra.mxu0 %v78
  %101 = vmatprep.subr.bf16.mxu0 0
  %102 = vmatpush1.bf16.msra.mxu0 %v79
  %103 = vmatprep.subr.bf16.mxu0 0
  %104 = vmatpush1.bf16.msra.mxu0 %v80
  %105 = vmatprep.subr.bf16.mxu0 0
  %106 = vmatpush1.bf16.msra.mxu0 0
  %107 = vmatprep.subr.bf16.mxu0 0
  %108 = vmatpush1.bf16.msra.mxu0 0
  %109 = vmatprep.subr.bf16.mxu0 0
  %110 = vmatpush1.bf16.msra.mxu0 0
  %111 = vmatprep.subr.bf16.mxu0 0
  %112 = vmatpush1.bf16.msra.mxu0 0
  %113 = vmatprep.subr.bf16.mxu0 0
  %114 = vmatpush1.bf16.msra.mxu0 0
  %115 = vmatprep.subr.bf16.mxu0 0
  %116 = vmatpush1.bf16.msra.mxu0 0
  %117 = vmatprep.subr.bf16.mxu0 0
  %118 = vmatpush1.bf16.msra.mxu0 0
  %119 = vmatprep.subr.bf16.mxu0 0
  %120 = vmatpush1.bf16.msra.mxu0 0
  %121 = vmatprep.mubr.bf16.mxu0 0
  %122 = vmatmul.mubr.bf16.gmra.mrb[0].mxu0 %v24
  %v123 = vpop.f32.mrb[0].mxu0
  %v124 = vadd.f32 0.0, %v123
  %v125 = vpop.f32.mrb[0].mxu0
  %v126 = vpop.f32.mrb[0].mxu0
  %v127 = vpop.f32.mrb[0].mxu0
  %128 = vdwg.mxu0
  %v129 = vadd.f32 %v23, %v124
  %130 = vst [vmem:[#allocation2] sm:$0xff] %v129
  // Predicated region
  $region22: #{encoder_cnn_forward.83} parent=0 // pred_check
    %p131 = pneg %p18
  $region23: #{encoder_cnn_forward.83} parent=0 // pred_check_branch
    %133 = sbr.rel (%p131) target = $region25
  $region24: #{encoder_cnn_forward.83} parent=0 // pred_region
    %v134 = vld [vmem:[#allocation2] sm:$0xff]
    %v135 = vld [vmem:[%s2] sm:$0x1]
    %v137 = vlaneseq
    %v138 = vshrl.u32 %v137, 7
    %v139 = vsub.s32 0, %v138
    %v140 = vrot.slane %v135, %v139
    %v142 = vadd.f32 %v134, %v140
    %v143 = vld [vmem:[%s3] sm:$0xff]
    %v144 = vadd.f32 %v142, %v143
    %v145 = vmax.f32 %v144, 0.0
    %146 = vst [vmem:[%s4] sm:$0xff] %v145
  $region25: #{encoder_cnn_forward.83} parent=0 // pred_fallthru
    _
  // Predicated region
  $region26: #{encoder_cnn_forward.83} parent=0 // pred_check
    _
  $region27: #{encoder_cnn_forward.83} parent=0 // pred_check_branch
    %148 = sbr.rel (0) target = $region29
  $region28: #{encoder_cnn_forward.83} parent=0 // pred_region
    _
  $region29: #{encoder_cnn_forward.83} parent=0 // pred_fallthru
    _
  // Predicated region
  $region30: #{encoder_cnn_forward.83} parent=0 // pred_check
    _
  $region31: #{encoder_cnn_forward.83} parent=0 // pred_check_branch
    %150 = sbr.rel (0) target = $region33
  $region32: #{encoder_cnn_forward.83} parent=0 // pred_region
    _
  $region33: #{encoder_cnn_forward.83} parent=0 // pred_fallthru
    _

// kernel: encoder_cnn_forward.84
$region0: #{encoder_cnn_forward.84}
  #allocation0 [shape = 'u32[]', space=smem, size = 0x4, offset = 0x4, fixed_abs, tag = 'smem constant byte address 0x4 - core index']
  #allocation1 [shape = 'u32[144,128]{1,0:T(1,128)}', space=vmem, size = 0x12000, scoped, tag = 'internal scratch']
  #allocation2 [shape = 'f32[8,128]{1,0:T(8,128)}', space=vmem, size = 0x1000, scoped, tag = 'scratch operand']
  %s0 = inlined_call_operand.vmem [shape: bf16[8,128], index: 0, kind: input, shape index: {}]
  %s1 = inlined_call_operand.vmem [shape: bf16[128,128], index: 1, kind: input, shape index: {}]
  %s2 = inlined_call_operand.vmem [shape: f32[1,128], index: 2, kind: input, shape index: {}]
  %s3 = inlined_call_operand.vmem [shape: f32[8,128], index: 3, kind: output, shape index: {}]
  %s4 = sld [smem:[#allocation0]]
  $region30: #{encoder_cnn_forward.84} parent=0
    _
  %s6 = ssub.s32 1, %s4
  %s7 = scalar_select 0, %s6, %s4
  // Predicated region
  $region2: #{encoder_cnn_forward.84} parent=0 // pred_check
    _
  $region3: #{encoder_cnn_forward.84} parent=0 // pred_check_branch
    %9 = sbr.rel (0) target = $region5
  $region4: #{encoder_cnn_forward.84} parent=0 // pred_region
    _
  $region5: #{encoder_cnn_forward.84} parent=0 // pred_fallthru
    _
  // Predicated region
  $region6: #{encoder_cnn_forward.84} parent=0 // pred_check
    _
  $region7: #{encoder_cnn_forward.84} parent=0 // pred_check_branch
    %11 = sbr.rel (0) target = $region9
  $region8: #{encoder_cnn_forward.84} parent=0 // pred_region
    _
  $region9: #{encoder_cnn_forward.84} parent=0 // pred_fallthru
    _
  // Predicated region
  $region10: #{encoder_cnn_forward.84} parent=0 // pred_check
    _
  $region11: #{encoder_cnn_forward.84} parent=0 // pred_check_branch
    %13 = sbr.rel (0) target = $region13
  $region12: #{encoder_cnn_forward.84} parent=0 // pred_region
    _
  $region13: #{encoder_cnn_forward.84} parent=0 // pred_fallthru
    _
  %p15 = scmp.eq.s32.totalorder 0, 0
  // Predicated region
  $region14: #{encoder_cnn_forward.84} parent=0 // pred_check
    %p16 = pneg %p15
  $region15: #{encoder_cnn_forward.84} parent=0 // pred_check_branch
    %18 = sbr.rel (%p16) target = $region17
  $region16: #{encoder_cnn_forward.84} parent=0 // pred_region
    %19 = vst [vmem:[#allocation2] sm:$0xff] 0.0
  $region17: #{encoder_cnn_forward.84} parent=0 // pred_fallthru
    _
  %v20 = vld [vmem:[#allocation2] sm:$0xff]
  %v21 = vld [vmem:[%s0] sm:$0xf]
  %v22 = vld [vmem:[%s1] sm:$0xf]
  %v23 = vld [vmem:[%s1 + $0x4] sm:$0xf]
  %v24 = vld [vmem:[%s1 + $0x8] sm:$0xf]
  %v25 = vld [vmem:[%s1 + $0xc] sm:$0xf]
  %v26 = vld [vmem:[%s1 + $0x10] sm:$0xf]
  %v27 = vld [vmem:[%s1 + $0x14] sm:$0xf]
  %v28 = vld [vmem:[%s1 + $0x18] sm:$0xf]
  %v29 = vld [vmem:[%s1 + $0x1c] sm:$0xf]
  %v30 = vld [vmem:[%s1 + $0x20] sm:$0xf]
  %v31 = vld [vmem:[%s1 + $0x24] sm:$0xf]
  %v32 = vld [vmem:[%s1 + $0x28] sm:$0xf]
  %v33 = vld [vmem:[%s1 + $0x2c] sm:$0xf]
  %v34 = vld [vmem:[%s1 + $0x30] sm:$0xf]
  %v35 = vld [vmem:[%s1 + $0x34] sm:$0xf]
  %v36 = vld [vmem:[%s1 + $0x38] sm:$0xf]
  %v37 = vld [vmem:[%s1 + $0x3c] sm:$0xf]
  %v54 = vunpack.c.l.b16 %v22
  %v55 = vunpack.c.l.b16 %v23
  %v56 = vunpack.c.l.b16 %v24
  %v57 = vunpack.c.l.b16 %v25
  %v58 = vunpack.c.l.b16 %v26
  %v59 = vunpack.c.l.b16 %v27
  %v60 = vunpack.c.l.b16 %v28
  %v61 = vunpack.c.l.b16 %v29
  %v62 = vunpack.c.l.b16 %v30
  %v63 = vunpack.c.l.b16 %v31
  %v64 = vunpack.c.l.b16 %v32
  %v65 = vunpack.c.l.b16 %v33
  %v66 = vunpack.c.l.b16 %v34
  %v67 = vunpack.c.l.b16 %v35
  %v68 = vunpack.c.l.b16 %v36
  %v69 = vunpack.c.l.b16 %v37
  %v70 = vpack.c.b16 %v55, %v54
  %v71 = vpack.c.b16 %v57, %v56
  %v72 = vpack.c.b16 %v59, %v58
  %v73 = vpack.c.b16 %v61, %v60
  %v74 = vpack.c.b16 %v63, %v62
  %v75 = vpack.c.b16 %v65, %v64
  %v76 = vpack.c.b16 %v67, %v66
  %v77 = vpack.c.b16 %v69, %v68
  %86 = vmatprep.subr.bf16.mxu0 0
  %87 = vmatpush1.bf16.msra.mxu0 %v70
  %88 = vmatprep.subr.bf16.mxu0 0
  %89 = vmatpush1.bf16.msra.mxu0 %v71
  %90 = vmatprep.subr.bf16.mxu0 0
  %91 = vmatpush1.bf16.msra.mxu0 %v72
  %92 = vmatprep.subr.bf16.mxu0 0
  %93 = vmatpush1.bf16.msra.mxu0 %v73
  %94 = vmatprep.subr.bf16.mxu0 0
  %95 = vmatpush1.bf16.msra.mxu0 %v74
  %96 = vmatprep.subr.bf16.mxu0 0
  %97 = vmatpush1.bf16.msra.mxu0 %v75
  %98 = vmatprep.subr.bf16.mxu0 0
  %99 = vmatpush1.bf16.msra.mxu0 %v76
  %100 = vmatprep.subr.bf16.mxu0 0
  %101 = vmatpush1.bf16.msra.mxu0 %v77
  %102 = vmatprep.subr.bf16.mxu0 0
  %103 = vmatpush1.bf16.msra.mxu0 0
  %104 = vmatprep.subr.bf16.mxu0 0
  %105 = vmatpush1.bf16.msra.mxu0 0
  %106 = vmatprep.subr.bf16.mxu0 0
  %107 = vmatpush1.bf16.msra.mxu0 0
  %108 = vmatprep.subr.bf16.mxu0 0
  %109 = vmatpush1.bf16.msra.mxu0 0
  %110 = vmatprep.subr.bf16.mxu0 0
  %111 = vmatpush1.bf16.msra.mxu0 0
  %112 = vmatprep.subr.bf16.mxu0 0
  %113 = vmatpush1.bf16.msra.mxu0 0
  %114 = vmatprep.subr.bf16.mxu0 0
  %115 = vmatpush1.bf16.msra.mxu0 0
  %116 = vmatprep.subr.bf16.mxu0 0
  %117 = vmatpush1.bf16.msra.mxu0 0
  %118 = vmatprep.mubr.bf16.mxu0 0
  %119 = vmatmul.mubr.bf16.gmra.mrb[0].mxu0 %v21
  %v120 = vpop.f32.mrb[0].mxu0
  %v121 = vadd.f32 0.0, %v120
  %v122 = vpop.f32.mrb[0].mxu0
  %v123 = vpop.f32.mrb[0].mxu0
  %v124 = vpop.f32.mrb[0].mxu0
  %125 = vdwg.mxu0
  %v126 = vadd.f32 %v20, %v121
  %127 = vst [vmem:[#allocation2] sm:$0xff] %v126
  // Predicated region
  $region18: #{encoder_cnn_forward.84} parent=0 // pred_check
    %p128 = pneg %p15
  $region19: #{encoder_cnn_forward.84} parent=0 // pred_check_branch
    %130 = sbr.rel (%p128) target = $region21
  $region20: #{encoder_cnn_forward.84} parent=0 // pred_region
    %v131 = vld [vmem:[#allocation2] sm:$0xff]
    %v132 = vld [vmem:[%s2] sm:$0x1]
    %v134 = vlaneseq
    %v135 = vshrl.u32 %v134, 7
    %v136 = vsub.s32 0, %v135
    %v137 = vrot.slane %v132, %v136
    %v139 = vadd.f32 %v131, %v137
    %v140 = vmax.f32 %v139, 0.0
    %141 = vst [vmem:[%s3] sm:$0xff] %v140
  $region21: #{encoder_cnn_forward.84} parent=0 // pred_fallthru
    _
  // Predicated region
  $region22: #{encoder_cnn_forward.84} parent=0 // pred_check
    _
  $region23: #{encoder_cnn_forward.84} parent=0 // pred_check_branch
    %143 = sbr.rel (0) target = $region25
  $region24: #{encoder_cnn_forward.84} parent=0 // pred_region
    _
  $region25: #{encoder_cnn_forward.84} parent=0 // pred_fallthru
    _
  // Predicated region
  $region26: #{encoder_cnn_forward.84} parent=0 // pred_check
    _
  $region27: #{encoder_cnn_forward.84} parent=0 // pred_check_branch
    %145 = sbr.rel (0) target = $region29
  $region28: #{encoder_cnn_forward.84} parent=0 // pred_region
    _
  $region29: #{encoder_cnn_forward.84} parent=0 // pred_fallthru
    _

// kernel: encoder_cnn_forward.100
$region0: #{encoder_cnn_forward.100}
  #allocation0 [shape = 'u32[]', space=smem, size = 0x4, offset = 0x4, fixed_abs, tag = 'smem constant byte address 0x4 - core index']
  #allocation1 [shape = 'u32[144,128]{1,0:T(1,128)}', space=vmem, size = 0x12000, scoped, tag = 'internal scratch']
  #allocation2 [shape = 'f32[8,128]{1,0:T(8,128)}', space=vmem, size = 0x1000, scoped, tag = 'scratch operand']
  %s0 = inlined_call_operand.vmem [shape: bf16[8,384], index: 0, kind: input, shape index: {}]
  %s1 = inlined_call_operand.vmem [shape: bf16[384,128], index: 1, kind: input, shape index: {}]
  %s2 = inlined_call_operand.vmem [shape: f32[1,128], index: 2, kind: input, shape index: {}]
  %s3 = inlined_call_operand.vmem [shape: f32[8,128], index: 3, kind: output, shape index: {}]
  %s4 = sld [smem:[#allocation0]]
  $region53: #{encoder_cnn_forward.100} parent=0
    _
  %s6 = ssub.s32 1, %s4
  %s7 = scalar_select 0, %s6, %s4
  loop: start=0, step=1, limit=5
  $region2: #{encoder_cnn_forward.100} parent=0 // loop_pre_header
    _
  $region3: #{encoder_cnn_forward.100} parent=0 // loop_header
    %s9 = sphi 0, %s13
    %p10 = scmp.ge.s32.totalorder %s9, 5
    %s16 = sphi 0, %s35
    %s17 = sphi 0, %s31
    %s18 = sphi 0, %s27
    %s19 = sphi 0, %s16
    %s20 = sphi 0, %s17
    %s21 = sphi 0, %s18
    %s22 = sphi 0, %s19
    %s23 = sphi 0, %s20
    %s24 = sphi 0, %s21
    %s40 = sphi 0, %s42
    %s43 = sphi 0, %s40
    %s44 = sphi 0, %s43
    %s60 = sphi 0, %s44
    %s68 = sphi 0, %s70
    %s71 = sphi 0, %s68
    %s72 = sphi 0, %s71
    %s88 = sphi 0, %s72
    %s94 = sphi 0, %s96
    %s97 = sphi 0, %s94
    %s98 = sphi 0, %s97
    %s114 = sphi 0, %s98
    %s122 = sphi 0, %s124
    %s125 = sphi 0, %s122
    %s126 = sphi 0, %s125
    %s142 = sphi 0, %s126
  $region4: #{encoder_cnn_forward.100} parent=0 // loop_header_branch
    %12 = sbr.rel (%p10) target = $region8
  $region5: #{encoder_cnn_forward.100} parent=0 // loop_body
    %s14 = ssub.s32 %s9, 1
    %s15 = ssub.s32 %s9, 2
    %s25 = sadd.s32 1, %s18
    %p26 = scmp.ge.s32.totalorder %s25, 3
    %s27 = scalar_select %p26, 0, %s25
    %s28 = sadd.s32 1, %s17
    %s29 = scalar_select %p26, %s28, %s17
    %p30 = scmp.ge.s32.totalorder %s29, 1
    %s31 = scalar_select %p30, 0, %s29
    %s32 = sadd.s32 1, %s16
    %s33 = scalar_select %p30, %s32, %s16
    %p34 = scmp.ge.s32.totalorder %s33, 1
    %s35 = scalar_select %p34, 0, %s33
    %s36 = ssub.s32 %s16, %s35
    %s37 = ssub.s32 %s18, %s27
    %s38 = sor.u32 %s36, %s37
    %p39 = scmp.eq.s32.totalorder %s38, 0
    %s41 = sadd.s32 %s40, 1
    %s42 = scalar_select %p39, %s40, %s41
    %p45 = pneg %p39
    %p46 = scmp.eq.s32.totalorder %s9, 2
    %p47 = por %p45, %p46
    %p48 = scmp.ne.s32.totalorder %s40, %s43
    %p49 = scmp.eq.s32.totalorder %s9, 0
    %p50 = por %p48, %p49
    %p51 = scmp.ne.s32.totalorder %s40, %s43
    %p52 = scmp.eq.s32.totalorder %s14, 2
    %p53 = por %p51, %p52
    %p54 = scmp.ne.s32.totalorder %s43, %s44
    %p55 = scmp.eq.s32.totalorder %s14, 0
    %p56 = por %p54, %p55
    %p57 = scmp.ne.s32.totalorder %s43, %s44
    %p58 = scmp.eq.s32.totalorder %s15, 2
    %p59 = por %p57, %p58
    %p61 = scmp.ne.s32.totalorder %s44, %s60
    %p62 = scmp.eq.s32.totalorder %s15, 0
    %p63 = por %p61, %p62
    %s64 = ssub.s32 %s18, %s27
    %s65 = ssub.s32 %s17, %s31
    %s66 = sor.u32 %s64, %s65
    %p67 = scmp.eq.s32.totalorder %s66, 0
    %s69 = sadd.s32 %s68, 1
    %s70 = scalar_select %p67, %s68, %s69
    %p73 = pneg %p67
    %p74 = scmp.eq.s32.totalorder %s9, 2
    %p75 = por %p73, %p74
    %p76 = scmp.ne.s32.totalorder %s68, %s71
    %p77 = scmp.eq.s32.totalorder %s9, 0
    %p78 = por %p76, %p77
    %p79 = scmp.ne.s32.totalorder %s68, %s71
    %p80 = scmp.eq.s32.totalorder %s14, 2
    %p81 = por %p79, %p80
    %p82 = scmp.ne.s32.totalorder %s71, %s72
    %p83 = scmp.eq.s32.totalorder %s14, 0
    %p84 = por %p82, %p83
    %p85 = scmp.ne.s32.totalorder %s71, %s72
    %p86 = scmp.eq.s32.totalorder %s15, 2
    %p87 = por %p85, %p86
    %p89 = scmp.ne.s32.totalorder %s72, %s88
    %p90 = scmp.eq.s32.totalorder %s15, 0
    %p91 = por %p89, %p90
    %s92 = ssub.s32 %s17, %s31
    %p93 = scmp.eq.s32.totalorder %s92, 0
    %s95 = sadd.s32 %s94, 1
    %s96 = scalar_select %p93, %s94, %s95
    %p99 = pneg %p93
    %p100 = scmp.eq.s32.totalorder %s9, 2
    %p101 = por %p99, %p100
    %p102 = scmp.ne.s32.totalorder %s94, %s97
    %p103 = scmp.eq.s32.totalorder %s9, 0
    %p104 = por %p102, %p103
    %p105 = scmp.ne.s32.totalorder %s94, %s97
    %p106 = scmp.eq.s32.totalorder %s14, 2
    %p107 = por %p105, %p106
    %p108 = scmp.ne.s32.totalorder %s97, %s98
    %p109 = scmp.eq.s32.totalorder %s14, 0
    %p110 = por %p108, %p109
    %p111 = scmp.ne.s32.totalorder %s97, %s98
    %p112 = scmp.eq.s32.totalorder %s15, 2
    %p113 = por %p111, %p112
    %p115 = scmp.ne.s32.totalorder %s98, %s114
    %p116 = scmp.eq.s32.totalorder %s15, 0
    %p117 = por %p115, %p116
    %s118 = ssub.s32 %s16, %s35
    %s119 = ssub.s32 %s17, %s31
    %s120 = sor.u32 %s118, %s119
    %p121 = scmp.eq.s32.totalorder %s120, 0
    %s123 = sadd.s32 %s122, 1
    %s124 = scalar_select %p121, %s122, %s123
    %p127 = pneg %p121
    %p128 = scmp.eq.s32.totalorder %s9, 2
    %p129 = por %p127, %p128
    %p130 = scmp.ne.s32.totalorder %s122, %s125
    %p131 = scmp.eq.s32.totalorder %s9, 0
    %p132 = por %p130, %p131
    %p133 = scmp.ne.s32.totalorder %s122, %s125
    %p134 = scmp.eq.s32.totalorder %s14, 2
    %p135 = por %p133, %p134
    %p136 = scmp.ne.s32.totalorder %s125, %s126
    %p137 = scmp.eq.s32.totalorder %s14, 0
    %p138 = por %p136, %p137
    %p139 = scmp.ne.s32.totalorder %s125, %s126
    %p140 = scmp.eq.s32.totalorder %s15, 2
    %p141 = por %p139, %p140
    %p143 = scmp.ne.s32.totalorder %s126, %s142
    %p144 = scmp.eq.s32.totalorder %s15, 0
    %p145 = por %p143, %p144
    %p146 = scmp.le.s32.totalorder 1, %s9
    %p147 = scmp.lt.s32.totalorder %s9, 4
    %p148 = pnand %p146, %p147
    %p149 = pneg %p148
    // Predicated region
    $region9: #{encoder_cnn_forward.100} parent=5 // pred_check
      _
    $region10: #{encoder_cnn_forward.100} parent=5 // pred_check_branch
      %151 = sbr.rel (%p148) target = $region12
    $region11: #{encoder_cnn_forward.100} parent=5 // pred_region
      %s152 = ssub.s32 %s9, 1
      // Predicated region
      $region13: #{encoder_cnn_forward.100} parent=11 // pred_check
        %p153 = pneg %p110
      $region14: #{encoder_cnn_forward.100} parent=11 // pred_check_branch
        %155 = sbr.rel (%p153) target = $region16
      $region15: #{encoder_cnn_forward.100} parent=11 // pred_region
        %p156 = scmp.lt.s32.totalorder %s20, 0
        %s157 = scalar_select %p156, %s20, 0
        %s158 = scalar_lea.vmem %s2, %s157
      $region16: #{encoder_cnn_forward.100} parent=11 // pred_fallthru
        _
    $region12: #{encoder_cnn_forward.100} parent=5 // pred_fallthru
      _
    %p159 = scmp.lt.s32.totalorder %s9, 3
    // Predicated region
    $region17: #{encoder_cnn_forward.100} parent=5 // pred_check
      %p160 = pneg %p159
    $region18: #{encoder_cnn_forward.100} parent=5 // pred_check_branch
      %162 = sbr.rel (%p160) target = $region20
    $region19: #{encoder_cnn_forward.100} parent=5 // pred_region
      // Predicated region
      $region21: #{encoder_cnn_forward.100} parent=19 // pred_check
        %p163 = pneg %p50
      $region22: #{encoder_cnn_forward.100} parent=19 // pred_check_branch
        %165 = sbr.rel (%p163) target = $region24
      $region23: #{encoder_cnn_forward.100} parent=19 // pred_region
        %p166 = scmp.lt.s32.totalorder %s16, 0
        %s167 = scalar_select %p166, %s16, 0
        %p168 = scmp.lt.s32.totalorder %s18, 2
        %s169 = scalar_select %p168, %s18, 2
        %s170 = smul.addr %s167, 3
        %s171 = sadd.s32 %s169, %s170
        %s172 = smul.addr %s171, 4
        %s173 = scalar_lea.vmem %s0, %s172
      $region24: #{encoder_cnn_forward.100} parent=19 // pred_fallthru
        _
      // Predicated region
      $region25: #{encoder_cnn_forward.100} parent=19 // pred_check
        %p174 = pneg %p78
      $region26: #{encoder_cnn_forward.100} parent=19 // pred_check_branch
        %176 = sbr.rel (%p174) target = $region28
      $region27: #{encoder_cnn_forward.100} parent=19 // pred_region
        %s177 = smul.u32 16, %s18
        %p178 = scmp.lt.s32.totalorder %s177, 47
        %s179 = scalar_select %p178, %s177, 47
        %p180 = scmp.lt.s32.totalorder %s17, 0
        %s181 = scalar_select %p180, %s17, 0
        %s182 = sadd.s32 %s181, %s179
        %s183 = smul.addr %s182, 4
        %s184 = scalar_lea.vmem %s1, %s183
        %s185 = smul.u32 16, %s18
      $region28: #{encoder_cnn_forward.100} parent=19 // pred_fallthru
        _
    $region20: #{encoder_cnn_forward.100} parent=5 // pred_fallthru
      _
    %p186 = scmp.le.s32.totalorder 1, %s9
    %p187 = scmp.lt.s32.totalorder %s9, 4
    %p188 = pnand %p186, %p187
    %p189 = pneg %p188
    // Predicated region
    $region29: #{encoder_cnn_forward.100} parent=5 // pred_check
      _
    $region30: #{encoder_cnn_forward.100} parent=5 // pred_check_branch
      %191 = sbr.rel (%p188) target = $region32
    $region31: #{encoder_cnn_forward.100} parent=5 // pred_region
      %s192 = ssub.s32 %s9, 1
      %p193 = scmp.lt.s32.totalorder %s19, 0
      %s194 = scalar_select %p193, %s19, 0
      %p195 = scmp.lt.s32.totalorder %s21, 2
      %s196 = scalar_select %p195, %s21, 2
      %s197 = smul.addr %s194, 3
      %s198 = sadd.s32 %s196, %s197
      %s199 = smul.addr %s198, 4
      %s200 = scalar_lea.vmem %s0, %s199
      %p201 = pneg %p56
      %p202 = pneg %p53
      %s203 = smul.u32 16, %s21
      %p204 = scmp.lt.s32.totalorder %s203, 47
      %s205 = scalar_select %p204, %s203, 47
      %p206 = scmp.lt.s32.totalorder %s20, 0
      %s207 = scalar_select %p206, %s20, 0
      %s208 = sadd.s32 %s207, %s205
      %s209 = smul.addr %s208, 4
      %s210 = scalar_lea.vmem %s1, %s209
      %p211 = pneg %p84
      %p212 = pneg %p81
      %p213 = scmp.lt.s32.totalorder %s20, 0
      %s214 = scalar_select %p213, %s20, 0
      %s215 = scalar_lea.vmem %s2, %s214
      %p216 = pneg %p110
      %p217 = pneg %p107
      %p218 = pneg %p138
      %p219 = pneg %p135
      %p220 = scmp.lt.s32.totalorder %s19, 0
      %s221 = scalar_select %p220, %s19, 0
      %p222 = scmp.lt.s32.totalorder %s20, 0
      %s223 = scalar_select %p222, %s20, 0
      %s224 = sadd.s32 %s223, %s221
      %s225 = smul.addr %s224, 8
      %s226 = scalar_lea.vmem %s3, %s225
      %p227 = scmp.lt.s32.totalorder %s19, 0
      %s228 = scalar_select %p227, %s19, 0
      %p229 = scmp.lt.s32.totalorder %s21, 2
      %s230 = scalar_select %p229, %s21, 2
      %s231 = smul.addr %s228, 3
      %s232 = sadd.s32 %s230, %s231
      %s233 = smul.addr %s232, 4
      %s234 = scalar_lea.vmem %s0, %s233
      %s235 = smul.u32 16, %s21
      %p236 = scmp.lt.s32.totalorder %s235, 47
      %s237 = scalar_select %p236, %s235, 47
      %p238 = scmp.lt.s32.totalorder %s20, 0
      %s239 = scalar_select %p238, %s20, 0
      %s240 = sadd.s32 %s239, %s237
      %s241 = smul.addr %s240, 4
      %s242 = scalar_lea.vmem %s1, %s241
      %s243 = smul.u32 16, %s21
      %p244 = scmp.lt.s32.totalorder %s20, 0
      %s245 = scalar_select %p244, %s20, 0
      %s246 = scalar_lea.vmem %s2, %s245
      %p247 = scmp.lt.s32.totalorder %s19, 0
      %s248 = scalar_select %p247, %s19, 0
      %p249 = scmp.lt.s32.totalorder %s20, 0
      %s250 = scalar_select %p249, %s20, 0
      %s251 = sadd.s32 %s250, %s248
      %s252 = smul.addr %s251, 8
      %s253 = scalar_lea.vmem %s3, %s252
      %p255 = scmp.eq.s32.totalorder %s21, 0
      // Predicated region
      $region33: #{encoder_cnn_forward.100} parent=31 // pred_check
        %p256 = pneg %p255
      $region34: #{encoder_cnn_forward.100} parent=31 // pred_check_branch
        %258 = sbr.rel (%p256) target = $region36
      $region35: #{encoder_cnn_forward.100} parent=31 // pred_region
        %259 = vst [vmem:[#allocation2] sm:$0xff] 0.0
      $region36: #{encoder_cnn_forward.100} parent=31 // pred_fallthru
        _
      %v260 = vld [vmem:[#allocation2] sm:$0xff]
      %v261 = vld [vmem:[%s234] sm:$0xf]
      %v262 = vld [vmem:[%s242] sm:$0xf]
      %v263 = vld [vmem:[%s242 + $0x4] sm:$0xf]
      %v264 = vld [vmem:[%s242 + $0x8] sm:$0xf]
      %v265 = vld [vmem:[%s242 + $0xc] sm:$0xf]
      %v266 = vld [vmem:[%s242 + $0x10] sm:$0xf]
      %v267 = vld [vmem:[%s242 + $0x14] sm:$0xf]
      %v268 = vld [vmem:[%s242 + $0x18] sm:$0xf]
      %v269 = vld [vmem:[%s242 + $0x1c] sm:$0xf]
      %v270 = vld [vmem:[%s242 + $0x20] sm:$0xf]
      %v271 = vld [vmem:[%s242 + $0x24] sm:$0xf]
      %v272 = vld [vmem:[%s242 + $0x28] sm:$0xf]
      %v273 = vld [vmem:[%s242 + $0x2c] sm:$0xf]
      %v274 = vld [vmem:[%s242 + $0x30] sm:$0xf]
      %v275 = vld [vmem:[%s242 + $0x34] sm:$0xf]
      %v276 = vld [vmem:[%s242 + $0x38] sm:$0xf]
      %v277 = vld [vmem:[%s242 + $0x3c] sm:$0xf]
      %v294 = vunpack.c.l.b16 %v262
      %v295 = vunpack.c.l.b16 %v263
      %v296 = vunpack.c.l.b16 %v264
      %v297 = vunpack.c.l.b16 %v265
      %v298 = vunpack.c.l.b16 %v266
      %v299 = vunpack.c.l.b16 %v267
      %v300 = vunpack.c.l.b16 %v268
      %v301 = vunpack.c.l.b16 %v269
      %v302 = vunpack.c.l.b16 %v270
      %v303 = vunpack.c.l.b16 %v271
      %v304 = vunpack.c.l.b16 %v272
      %v305 = vunpack.c.l.b16 %v273
      %v306 = vunpack.c.l.b16 %v274
      %v307 = vunpack.c.l.b16 %v275
      %v308 = vunpack.c.l.b16 %v276
      %v309 = vunpack.c.l.b16 %v277
      %v310 = vpack.c.b16 %v295, %v294
      %v311 = vpack.c.b16 %v297, %v296
      %v312 = vpack.c.b16 %v299, %v298
      %v313 = vpack.c.b16 %v301, %v300
      %v314 = vpack.c.b16 %v303, %v302
      %v315 = vpack.c.b16 %v305, %v304
      %v316 = vpack.c.b16 %v307, %v306
      %v317 = vpack.c.b16 %v309, %v308
      %326 = vmatprep.subr.bf16.mxu0 0
      %327 = vmatpush1.bf16.msra.mxu0 %v310
      %328 = vmatprep.subr.bf16.mxu0 0
      %329 = vmatpush1.bf16.msra.mxu0 %v311
      %330 = vmatprep.subr.bf16.mxu0 0
      %331 = vmatpush1.bf16.msra.mxu0 %v312
      %332 = vmatprep.subr.bf16.mxu0 0
      %333 = vmatpush1.bf16.msra.mxu0 %v313
      %334 = vmatprep.subr.bf16.mxu0 0
      %335 = vmatpush1.bf16.msra.mxu0 %v314
      %336 = vmatprep.subr.bf16.mxu0 0
      %337 = vmatpush1.bf16.msra.mxu0 %v315
      %338 = vmatprep.subr.bf16.mxu0 0
      %339 = vmatpush1.bf16.msra.mxu0 %v316
      %340 = vmatprep.subr.bf16.mxu0 0
      %341 = vmatpush1.bf16.msra.mxu0 %v317
      %342 = vmatprep.subr.bf16.mxu0 0
      %343 = vmatpush1.bf16.msra.mxu0 0
      %344 = vmatprep.subr.bf16.mxu0 0
      %345 = vmatpush1.bf16.msra.mxu0 0
      %346 = vmatprep.subr.bf16.mxu0 0
      %347 = vmatpush1.bf16.msra.mxu0 0
      %348 = vmatprep.subr.bf16.mxu0 0
      %349 = vmatpush1.bf16.msra.mxu0 0
      %350 = vmatprep.subr.bf16.mxu0 0
      %351 = vmatpush1.bf16.msra.mxu0 0
      %352 = vmatprep.subr.bf16.mxu0 0
      %353 = vmatpush1.bf16.msra.mxu0 0
      %354 = vmatprep.subr.bf16.mxu0 0
      %355 = vmatpush1.bf16.msra.mxu0 0
      %356 = vmatprep.subr.bf16.mxu0 0
      %357 = vmatpush1.bf16.msra.mxu0 0
      %358 = vmatprep.mubr.bf16.mxu0 0
      %359 = vmatmul.mubr.bf16.gmra.mrb[0].mxu0 %v261
      %v360 = vpop.f32.mrb[0].mxu0
      %v361 = vadd.f32 0.0, %v360
      %v362 = vpop.f32.mrb[0].mxu0
      %v363 = vpop.f32.mrb[0].mxu0
      %v364 = vpop.f32.mrb[0].mxu0
      %365 = vdwg.mxu0
      %v366 = vadd.f32 %v260, %v361
      %367 = vst [vmem:[#allocation2] sm:$0xff] %v366
      %p368 = scmp.eq.s32.totalorder %s21, 2
      // Predicated region
      $region37: #{encoder_cnn_forward.100} parent=31 // pred_check
        %p369 = pneg %p368
      $region38: #{encoder_cnn_forward.100} parent=31 // pred_check_branch
        %371 = sbr.rel (%p369) target = $region40
      $region39: #{encoder_cnn_forward.100} parent=31 // pred_region
        %v372 = vld [vmem:[#allocation2] sm:$0xff]
        %v373 = vld [vmem:[%s246] sm:$0x1]
        %v375 = vlaneseq
        %v376 = vshrl.u32 %v375, 7
        %v377 = vsub.s32 0, %v376
        %v378 = vrot.slane %v373, %v377
        %v380 = vadd.f32 %v372, %v378
        %v381 = vmax.f32 %v380, 0.0
        %382 = vst [vmem:[%s253] sm:$0xff] %v381
      $region40: #{encoder_cnn_forward.100} parent=31 // pred_fallthru
        _
      %p383 = scmp.lt.s32.totalorder %s19, 0
      %s384 = scalar_select %p383, %s19, 0
      %p385 = scmp.lt.s32.totalorder %s20, 0
      %s386 = scalar_select %p385, %s20, 0
      %s387 = sadd.s32 %s386, %s384
      %s388 = smul.addr %s387, 8
      %s389 = scalar_lea.vmem %s3, %s388
      // Predicated region
      $region41: #{encoder_cnn_forward.100} parent=31 // pred_check
        %p390 = pneg %p135
      $region42: #{encoder_cnn_forward.100} parent=31 // pred_check_branch
        %392 = sbr.rel (%p390) target = $region44
      $region43: #{encoder_cnn_forward.100} parent=31 // pred_region
        _
      $region44: #{encoder_cnn_forward.100} parent=31 // pred_fallthru
        _
      // Predicated region
      $region45: #{encoder_cnn_forward.100} parent=31 // pred_check
        %p393 = pneg %p135
      $region46: #{encoder_cnn_forward.100} parent=31 // pred_check_branch
        %395 = sbr.rel (%p393) target = $region48
      $region47: #{encoder_cnn_forward.100} parent=31 // pred_region
        %p396 = scmp.lt.s32.totalorder %s19, 0
        %s397 = scalar_select %p396, %s19, 0
        %p398 = scmp.lt.s32.totalorder %s20, 0
        %s399 = scalar_select %p398, %s20, 0
        %s400 = sadd.s32 %s399, %s397
        %s401 = smul.addr %s400, 8
        %s402 = scalar_lea.vmem %s3, %s401
      $region48: #{encoder_cnn_forward.100} parent=31 // pred_fallthru
        _
    $region32: #{encoder_cnn_forward.100} parent=5 // pred_fallthru
      _
    %p403 = scmp.le.s32.totalorder 2, %s9
    // Predicated region
    $region49: #{encoder_cnn_forward.100} parent=5 // pred_check
      %p404 = pneg %p403
    $region50: #{encoder_cnn_forward.100} parent=5 // pred_check_branch
      %406 = sbr.rel (%p404) target = $region52
    $region51: #{encoder_cnn_forward.100} parent=5 // pred_region
      %s407 = ssub.s32 %s9, 2
    $region52: #{encoder_cnn_forward.100} parent=5 // pred_fallthru
      _
  $region6: #{encoder_cnn_forward.100} parent=0 // loop_footer
    %s13 = sadd.s32 1, %s9
  $region7: #{encoder_cnn_forward.100} parent=0 // loop_footer_branch
    %8 = sbr.rel target = $region3
  $region8: #{encoder_cnn_forward.100} parent=0 // loop_exit
    _

// kernel: encoder_cnn_forward.109
$region0: #{encoder_cnn_forward.109}
  #allocation0 [shape = 'u32[]', space=smem, size = 0x4, offset = 0x4, fixed_abs, tag = 'smem constant byte address 0x4 - core index']
  #allocation1 [shape = 'u32[144,128]{1,0:T(1,128)}', space=vmem, size = 0x12000, scoped, tag = 'internal scratch']
  %s0 = inlined_call_operand.vmem [shape: f32[2,1,128], index: 0, kind: input, shape index: {}]
  %s1 = inlined_call_operand.vmem [shape: bf16[128,128], index: 1, kind: input, shape index: {}]
  %s2 = inlined_call_operand.vmem [shape: f32[1,128], index: 2, kind: input, shape index: {}]
  %s3 = inlined_call_operand.hbm [shape: f32[2,128], index: 3, kind: output, shape index: {}]
  %s4 = sld [smem:[#allocation0]]
  $region22: #{encoder_cnn_forward.109} parent=0
    _
  %s6 = ssub.s32 1, %s4
  %s7 = scalar_select 0, %s6, %s4
  $region1: #{encoder_cnn_forward.109} parent=0
    #allocation2 [shape = 'u8[1024]{0}', space=vmem, size = 0x400, scoped, tag = 'output window, operand 0, single buffered']
    #allocation3 [shape = 's32[1]{0}', space=sflag, size = 0x4, scoped, tag = 'scoped memory for encoder_cnn_forward.109']
    %8 = vsyncpa [#allocation3], 0
    // Predicated region
    $region2: #{encoder_cnn_forward.109} parent=1 // pred_check
      _
    $region3: #{encoder_cnn_forward.109} parent=1 // pred_check_branch
      %10 = sbr.rel (0) target = $region5
    $region4: #{encoder_cnn_forward.109} parent=1 // pred_region
      _
    $region5: #{encoder_cnn_forward.109} parent=1 // pred_fallthru
      _
    // Predicated region
    $region6: #{encoder_cnn_forward.109} parent=1 // pred_check
      _
    $region7: #{encoder_cnn_forward.109} parent=1 // pred_check_branch
      %12 = sbr.rel (0) target = $region9
    $region8: #{encoder_cnn_forward.109} parent=1 // pred_region
      _
    $region9: #{encoder_cnn_forward.109} parent=1 // pred_fallthru
      _
    // Predicated region
    $region10: #{encoder_cnn_forward.109} parent=1 // pred_check
      _
    $region11: #{encoder_cnn_forward.109} parent=1 // pred_check_branch
      %14 = sbr.rel (0) target = $region13
    $region12: #{encoder_cnn_forward.109} parent=1 // pred_region
      _
    $region13: #{encoder_cnn_forward.109} parent=1 // pred_fallthru
      _
    %v16 = vld [vmem:[%s0] sm:$0x1]
    %v17 = vld [vmem:[%s0 + $0x1] sm:$0x1]
    %v18 = vadd.f32 %v16, 0.0
    %v19 = vadd.f32 %v17, 0.0
    %v20 = vpack.c.bf16 %v18, %v18
    %v21 = vpack.c.bf16 %v19, %v19
    %v22 = vld [vmem:[%s1] sm:$0xf]
    %v23 = vld [vmem:[%s1 + $0x4] sm:$0xf]
    %v24 = vld [vmem:[%s1 + $0x8] sm:$0xf]
    %v25 = vld [vmem:[%s1 + $0xc] sm:$0xf]
    %v26 = vld [vmem:[%s1 + $0x10] sm:$0xf]
    %v27 = vld [vmem:[%s1 + $0x14] sm:$0xf]
    %v28 = vld [vmem:[%s1 + $0x18] sm:$0xf]
    %v29 = vld [vmem:[%s1 + $0x1c] sm:$0xf]
    %v30 = vld [vmem:[%s1 + $0x20] sm:$0xf]
    %v31 = vld [vmem:[%s1 + $0x24] sm:$0xf]
    %v32 = vld [vmem:[%s1 + $0x28] sm:$0xf]
    %v33 = vld [vmem:[%s1 + $0x2c] sm:$0xf]
    %v34 = vld [vmem:[%s1 + $0x30] sm:$0xf]
    %v35 = vld [vmem:[%s1 + $0x34] sm:$0xf]
    %v36 = vld [vmem:[%s1 + $0x38] sm:$0xf]
    %v37 = vld [vmem:[%s1 + $0x3c] sm:$0xf]
    %v38 = vld [vmem:[%s2] sm:$0x1]
    %v40 = vlaneseq
    %v41 = vshrl.u32 %v40, 7
    %v42 = vsub.s32 0, %v41
    %v43 = vrot.slane %v38, %v42
    %v47 = vunpack.c.l.b16 %v20
    %v48 = vunpack.c.l.b16 %v21
    %v49 = vrot.slane %v48, 7
    %vm50 = vcmask 1041409
    %v51 = vsel %vm50, %v49, %v47
    %v52 = vpack.c.b16 %v51, %v51
    %v70 = vunpack.c.l.b16 %v22
    %v71 = vunpack.c.l.b16 %v23
    %v72 = vunpack.c.l.b16 %v24
    %v73 = vunpack.c.l.b16 %v25
    %v74 = vunpack.c.l.b16 %v26
    %v75 = vunpack.c.l.b16 %v27
    %v76 = vunpack.c.l.b16 %v28
    %v77 = vunpack.c.l.b16 %v29
    %v78 = vunpack.c.l.b16 %v30
    %v79 = vunpack.c.l.b16 %v31
    %v80 = vunpack.c.l.b16 %v32
    %v81 = vunpack.c.l.b16 %v33
    %v82 = vunpack.c.l.b16 %v34
    %v83 = vunpack.c.l.b16 %v35
    %v84 = vunpack.c.l.b16 %v36
    %v85 = vunpack.c.l.b16 %v37
    %v86 = vpack.c.b16 %v71, %v70
    %v87 = vpack.c.b16 %v73, %v72
    %v88 = vpack.c.b16 %v75, %v74
    %v89 = vpack.c.b16 %v77, %v76
    %v90 = vpack.c.b16 %v79, %v78
    %v91 = vpack.c.b16 %v81, %v80
    %v92 = vpack.c.b16 %v83, %v82
    %v93 = vpack.c.b16 %v85, %v84
    %102 = vmatprep.subr.bf16.mxu0 0
    %103 = vmatpush1.bf16.msra.mxu0 %v86
    %104 = vmatprep.subr.bf16.mxu0 0
    %105 = vmatpush1.bf16.msra.mxu0 %v87
    %106 = vmatprep.subr.bf16.mxu0 0
    %107 = vmatpush1.bf16.msra.mxu0 %v88
    %108 = vmatprep.subr.bf16.mxu0 0
    %109 = vmatpush1.bf16.msra.mxu0 %v89
    %110 = vmatprep.subr.bf16.mxu0 0
    %111 = vmatpush1.bf16.msra.mxu0 %v90
    %112 = vmatprep.subr.bf16.mxu0 0
    %113 = vmatpush1.bf16.msra.mxu0 %v91
    %114 = vmatprep.subr.bf16.mxu0 0
    %115 = vmatpush1.bf16.msra.mxu0 %v92
    %116 = vmatprep.subr.bf16.mxu0 0
    %117 = vmatpush1.bf16.msra.mxu0 %v93
    %118 = vmatprep.subr.bf16.mxu0 0
    %119 = vmatpush1.bf16.msra.mxu0 0
    %120 = vmatprep.subr.bf16.mxu0 0
    %121 = vmatpush1.bf16.msra.mxu0 0
    %122 = vmatprep.subr.bf16.mxu0 0
    %123 = vmatpush1.bf16.msra.mxu0 0
    %124 = vmatprep.subr.bf16.mxu0 0
    %125 = vmatpush1.bf16.msra.mxu0 0
    %126 = vmatprep.subr.bf16.mxu0 0
    %127 = vmatpush1.bf16.msra.mxu0 0
    %128 = vmatprep.subr.bf16.mxu0 0
    %129 = vmatpush1.bf16.msra.mxu0 0
    %130 = vmatprep.subr.bf16.mxu0 0
    %131 = vmatpush1.bf16.msra.mxu0 0
    %132 = vmatprep.subr.bf16.mxu0 0
    %133 = vmatpush1.bf16.msra.mxu0 0
    %134 = vmatprep.mubr.bf16.mxu0 0
    %135 = vmatmul.mubr.bf16.gmra.mrb[0].mxu0 %v52
    %v136 = vpop.f32.mrb[0].mxu0
    %v137 = vadd.f32 %v43, %v136
    %v138 = vpop.f32.mrb[0].mxu0
    %v139 = vpop.f32.mrb[0].mxu0
    %v140 = vpop.f32.mrb[0].mxu0
    %141 = vdwg.mxu0
    %142 = vst [vmem:[#allocation2] sm:$0x3] %v137
    // Predicated region
    $region14: #{encoder_cnn_forward.109} parent=1 // pred_check
      _
    $region15: #{encoder_cnn_forward.109} parent=1 // pred_check_branch
      %144 = sbr.rel (0) target = $region17
    $region16: #{encoder_cnn_forward.109} parent=1 // pred_region
      %s146 = ssub.s32 32, 32
      %147 = vsyncadd [#allocation3], %s146
      %s149 = sshll.u32 [#allocation2], 4
      %s150 = int_to_ptr.vmem [resolvable:$true] %s149
      %152 = dma.vmem_to_hbm [thread:$0]  %s150, 32, %s3, [#allocation3]
    $region17: #{encoder_cnn_forward.109} parent=1 // pred_fallthru
      _
    // Predicated region
    $region18: #{encoder_cnn_forward.109} parent=1 // pred_check
      _
    $region19: #{encoder_cnn_forward.109} parent=1 // pred_check_branch
      %154 = sbr.rel (0) target = $region21
    $region20: #{encoder_cnn_forward.109} parent=1 // pred_region
      %155 = dma.done [#allocation3], 32
    $region21: #{encoder_cnn_forward.109} parent=1 // pred_fallthru
      _
    %156 = vsyncpa [#allocation3], 1

</llo_original>
